<compile_context>
chip_gen: v5e
topology: v5e:2x2
jax: 0.10.0
libtpu: 0.0.40
codegen_flags: <defaults>
</compile_context>

<pallas_src>
import functools

import jax
import jax.numpy as jnp
from jax.experimental import pallas as pl
from jax.experimental.pallas import tpu as pltpu

HIDDEN = 32        # hidden_size (small config; PyTorch default is 128)
NUM_LAYERS = 3
NUM_HEADS = 8      # embed_dim = 2*HIDDEN must be divisible by NUM_HEADS
UNROLL_S = 32      # fully unroll the time recurrence below this length


# ------------------------------- fused forward kernel -------------------------------
def _fused_kernel(xf_ref, xr_ref,            # (S, B, 1) input and its time-reverse
                  w0f_ref, w0b_ref,          # (1, 8H) layer-0 merged input weights
                  wbig_ref,                  # (L-1, 4H, 8H) merged inter-layer input weights
                  whh_ref,                   # (L, 2H, 8H) block-diagonal recurrent weights
                  b_ref,                     # (L, 1, 8H) merged biases (b_ih + b_hh)
                  wqkv_ref, bqkv_ref,        # (E, 3E), (1, 3E)
                  wo_ref, bo_ref,            # (E, E), (1, E)
                  fp1w_ref, fp1b_ref,        # (E, H), (1, H)
                  fp2w_ref, fp2b_ref,        # (H, H//2), (1, H//2)
                  headw_ref, headbt_ref,     # (H//2, 1+H//4), (1+H//4, 1)  pred|unc1 merged
                  unc2w_ref, unc2bt_ref,     # (H//4, 1), (1, 1)
                  preds_ref, unc_ref, attnw_ref,   # (B, S), (B, S), (B, S, S)
                  gih_scr,                   # (S, B, 8H) precomputed gate pre-activations
                  hA_scr,                    # (S, B, 2H) h_cat stored at step index t
                  hR_scr,                    # (S, B, 2H) h_cat stored at step index S-1-t
                  *, S, B, H, L, nh):
    H2, H4, H6, H8 = 2 * H, 4 * H, 6 * H, 8 * H
    E = 2 * H

    # ------------------------------ bidirectional LSTM stack ------------------------------
    # Merged 8H gate-column layout: [g_f, g_b, i_f, i_b, f_f, f_b, o_f, o_b]
    # (fwd columns indexed by merged-step time t, bwd columns by original time S-1-t, i.e.
    #  the time reversal is baked into the precomputed gih so the recurrence is uniform).
    for layer in range(L):
        if layer == 0:
            # input_proj folded into the LSTM weights: scalar input -> broadcast multiply.
            gih_scr[...] = (xf_ref[...] * w0f_ref[...][None]
                            + xr_ref[...] * w0b_ref[...][None]
                            + b_ref[0][None])
        else:
            # one full-width MXU pass: [h(t) | h(S-1-t)] @ W_big  -> all 8H gate columns
            big = jnp.concatenate([hA_scr[...], hR_scr[...]], axis=-1)      # (S, B, 4H)
            g = jnp.dot(big.reshape(S * B, H4), wbig_ref[layer - 1],
                        preferred_element_type=jnp.float32) + b_ref[layer]
            gih_scr[...] = g.reshape(S, B, H8)

        whh = whh_ref[layer]                                                # (2H, 8H)

        def step(t, carry):
            h_c, c_c = carry                                                # (B, 2H) each, in vregs
            pre = gih_scr[t] + jnp.dot(h_c, whh,
                                       preferred_element_type=jnp.float32)  # (B, 8H)
            tg = jnp.tanh(pre[:, :H2])                                      # [g_f, g_b]
            sg = jax.nn.sigmoid(pre[:, H2:])                                # [i,i,f,f,o,o]
            i_c = sg[:, :H2]
            f_c = sg[:, H2:H4]
            o_c = sg[:, H4:H6]
            c_n = f_c * c_c + i_c * tg
            h_n = o_c * jnp.tanh(c_n)                                       # [h_fwd(t), h_bwd(S-1-t)]
            hA_scr[t] = h_n
            hR_scr[S - 1 - t] = h_n
            return (h_n, c_n)

        carry = (jnp.zeros((B, H2), jnp.float32), jnp.zeros((B, H2), jnp.float32))
        if S <= UNROLL_S:
            for t in range(S):                 # static indices, state stays in registers
                carry = step(t, carry)
        else:
            carry = jax.lax.fori_loop(0, S, step, carry, unroll=8)

    # Time-aligned LSTM features: feat[t] = [h_fwd(t), h_bwd(t)]  (stays in VMEM/vregs).
    feat = jnp.concatenate([hA_scr[...][:, :, :H], hR_scr[...][:, :, H:]], axis=-1)  # (S, B, E)

    # ---------------- attention + residual + feature projection + heads ----------------
    wqkv = wqkv_ref[...]
    bqkv = bqkv_ref[...]
    wo = wo_ref[...]
    bo = bo_ref[...]
    dh = E // nh
    scale = 1.0 / float(dh) ** 0.5

    pred_rows = []
    unc_rows = []
    # B is tiny & static; for larger B this loop should become a "parallel" grid axis.
    for b in range(B):
        xb = feat[:, b, :]                                                  # (S, E)
        qkv = jnp.dot(xb, wqkv, preferred_element_type=jnp.float32) + bqkv  # (S, 3E)
        q = qkv[:, :E] * scale
        k = qkv[:, E:2 * E]
        v = qkv[:, 2 * E:]

        attn_sum = jnp.zeros((S, S), jnp.float32)
        attn_out = jnp.zeros((S, E), jnp.float32)
        for h in range(nh):                                                 # static lane slices
            lo, hi = h * dh, (h + 1) * dh
            s = jax.lax.dot_general(q[:, lo:hi], k[:, lo:hi], (((1,), (1,)), ((), ())),
                                    preferred_element_type=jnp.float32)     # (S, S)
            p = jnp.exp(s - jnp.max(s, axis=-1, keepdims=True))
            a = p / jnp.sum(p, axis=-1, keepdims=True)                      # exact softmax (output)
            attn_sum = attn_sum + a
            ctx = jnp.dot(a, v[:, lo:hi], preferred_element_type=jnp.float32)       # (S, dh)
            attn_out = attn_out + jnp.dot(ctx, wo[lo:hi, :],
                                          preferred_element_type=jnp.float32)       # no head concat
        attnw_ref[b] = attn_sum * (1.0 / nh)                                # average_attn_weights

        xr = xb + attn_out + bo                                             # residual
        f1 = jnp.maximum(jnp.dot(xr, fp1w_ref[...],
                                 preferred_element_type=jnp.float32) + fp1b_ref[...], 0.0)
        f2 = jnp.maximum(jnp.dot(f1, fp2w_ref[...],
                                 preferred_element_type=jnp.float32) + fp2b_ref[...], 0.0)
        # merged prediction + uncertainty-hidden head, computed transposed so the outputs
        # come out with S on the lane axis -> lane-dense (B, S) stores.
        headT = jax.lax.dot_general(headw_ref[...], f2, (((0,), (1,)), ((), ())),
                                    preferred_element_type=jnp.float32) + headbt_ref[...]  # (1+H/4, S)
        pred_rows.append(headT[0:1, :])                                     # (1, S)
        u1T = jnp.maximum(headT[1:, :], 0.0)                                # (H/4, S)
        uncT = jnp.logaddexp(
            jax.lax.dot_general(unc2w_ref[...], u1T, (((0,), (0,)), ((), ())),
                                preferred_element_type=jnp.float32) + unc2bt_ref[...], 0.0)  # (1, S)
        unc_rows.append(uncT)

    preds_ref[...] = jnp.concatenate(pred_rows, axis=0)                     # (B, S)
    unc_ref[...] = jnp.concatenate(unc_rows, axis=0)                        # (B, S)


# ------------------------------------ parameters ------------------------------------
def _init(key, shape, scale=0.1):
    return (scale * jax.random.normal(key, shape)).astype(jnp.float32)


def init_params(key):
    """Raw parameters mirroring the PyTorch module (weights stored (in, out); y = x@W + b).
    LSTM gate columns use PyTorch order (i, f, g, o); b = b_ih + b_hh (a checkpoint loader
    must sum them and transpose PyTorch's (out, in) weights)."""
    H, E = HIDDEN, 2 * HIDDEN
    keys = iter(jax.random.split(key, 64))
    p = {}
    p["in_proj_w"] = _init(next(keys), (1, H))
    p["in_proj_b"] = _init(next(keys), (1, H))
    p["lstm"] = []
    for i in range(NUM_LAYERS):
        din = H if i == 0 else E
        layer = {}
        for d in ("fwd", "bwd"):
            layer[d] = {
                "wih": _init(next(keys), (din, 4 * H)),
                "whh": _init(next(keys), (H, 4 * H)),
                "b":   _init(next(keys), (1, 4 * H)),
            }
        p["lstm"].append(layer)
    for nm in ("wq", "wk", "wv", "wo"):
        p[nm] = _init(next(keys), (E, E))
    for nm in ("bq", "bk", "bv", "bo"):
        p[nm] = _init(next(keys), (1, E))
    p["fp1_w"] = _init(next(keys), (E, H));            p["fp1_b"] = _init(next(keys), (1, H))
    p["fp2_w"] = _init(next(keys), (H, H // 2));       p["fp2_b"] = _init(next(keys), (1, H // 2))
    p["pred_w"] = _init(next(keys), (H // 2, 1));      p["pred_b"] = _init(next(keys), (1, 1))
    p["unc1_w"] = _init(next(keys), (H // 2, H // 4)); p["unc1_b"] = _init(next(keys), (1, H // 4))
    p["unc2_w"] = _init(next(keys), (H // 4, 1));      p["unc2_b"] = _init(next(keys), (1, 1))
    # TODO(synk): self.log_var exists in __init__ but is unused in forward; omitted.
    return p


def _place(wf, wb, H):
    """Map per-direction 4H gate columns (PyTorch order i,f,g,o) into the merged 8H layout
    [g_f, g_b, i_f, i_b, f_f, f_b, o_f, o_b]."""
    def blocks(w):
        return w[:, 0:H], w[:, H:2 * H], w[:, 2 * H:3 * H], w[:, 3 * H:4 * H]  # i, f, g, o
    i_f, f_f, g_f, o_f = blocks(wf)
    i_b, f_b, g_b, o_b = blocks(wb)
    return jnp.concatenate([g_f, g_b, i_f, i_b, f_f, f_b, o_f, o_b], axis=1)


def fuse_params(p):
    """One-time preprocessing: fold input_proj into LSTM layer 0, build merged/block-diagonal
    LSTM weights, merged QKV and merged pred|unc1 head weights."""
    H = HIDDEN
    z14 = jnp.zeros((1, 4 * H), jnp.float32)
    zH4 = jnp.zeros((H, 4 * H), jnp.float32)
    f = {}

    # layer 0: input_proj folded (linear ∘ linear), per-direction scalar weight vectors
    l0 = p["lstm"][0]
    eff_w, eff_b = {}, {}
    for d in ("fwd", "bwd"):
        eff_w[d] = p["in_proj_w"] @ l0[d]["wih"]                       # (1, 4H)
        eff_b[d] = l0[d]["b"] + p["in_proj_b"] @ l0[d]["wih"]          # (1, 4H)
    f["w0f"] = _place(eff_w["fwd"], z14, H)                            # (1, 8H)
    f["w0b"] = _place(z14, eff_w["bwd"], H)
    bias = [_place(eff_b["fwd"], eff_b["bwd"], H)]

    # layers >= 1: merged input-gate weights acting on [h(t) | h(S-1-t)] (4H rows, 8H cols)
    wbig = []
    for i in range(1, NUM_LAYERS):
        wf = p["lstm"][i]["fwd"]["wih"]                                # (2H, 4H)
        wb = p["lstm"][i]["bwd"]["wih"]
        wbig.append(jnp.concatenate([
            _place(wf[0:H, :], zH4, H),        # rows 0:H   <- h_fwd(t)       -> fwd gates
            _place(zH4, wb[H:2 * H, :], H),    # rows H:2H  <- h_bwd(S-1-t)   -> bwd gates
            _place(zH4, wb[0:H, :], H),        # rows 2H:3H <- h_fwd(S-1-t)   -> bwd gates
            _place(wf[H:2 * H, :], zH4, H),    # rows 3H:4H <- h_bwd(t)       -> fwd gates
        ], axis=0))
        bias.append(_place(p["lstm"][i]["fwd"]["b"], p["lstm"][i]["bwd"]["b"], H))
    f["wbig"] = jnp.stack(wbig)                                        # (L-1, 4H, 8H)
    f["bias"] = jnp.stack(bias)                                        # (L, 1, 8H)

    # block-diagonal recurrent weights: rows 0:H = fwd h, rows H:2H = bwd h
    f["whh"] = jnp.stack([
        jnp.concatenate([_place(p["lstm"][i]["fwd"]["whh"], zH4, H),
                         _place(zH4, p["lstm"][i]["bwd"]["whh"], H)], axis=0)
        for i in range(NUM_LAYERS)])                                   # (L, 2H, 8H)

    # attention: merged QKV, separate output projection
    f["wqkv"] = jnp.concatenate([p["wq"], p["wk"], p["wv"]], axis=1)   # (E, 3E)
    f["bqkv"] = jnp.concatenate([p["bq"], p["bk"], p["bv"]], axis=1)   # (1, 3E)
    f["wo"], f["bo"] = p["wo"], p["bo"]

    # MLP + merged heads (pred column first, then unc1 columns); head biases pre-transposed
    for nm in ("fp1_w", "fp1_b", "fp2_w", "fp2_b"):
        f[nm] = p[nm]
    f["headw"] = jnp.concatenate([p["pred_w"], p["unc1_w"]], axis=1)               # (H/2, 1+H/4)
    f["headbT"] = jnp.concatenate([p["pred_b"], p["unc1_b"]], axis=1).T            # (1+H/4, 1)
    f["unc2_w"] = p["unc2_w"]                                                      # (H/4, 1)
    f["unc2bT"] = p["unc2_b"].T                                                    # (1, 1)
    return f


# ------------------------------------ forward pass ------------------------------------
@jax.jit
def bilstm_denoiser_forward(x, f):
    B, S = x.shape
    H, E, nh = HIDDEN, 2 * HIDDEN, NUM_HEADS
    dh = E // nh
    x_sb = jnp.transpose(x, (1, 0))[:, :, None]          # (S, B, 1) time-major
    x_rev = x_sb[::-1]                                   # host-side flip (tiny XLA op)

    kernel = functools.partial(_fused_kernel, S=S, B=B, H=H, L=NUM_LAYERS, nh=nh)

    lstm_flops = (2 * S * B * 4 * H * 8 * H * (NUM_LAYERS - 1)
                  + 2 * S * B * 2 * H * 8 * H * NUM_LAYERS)
    tail_flops = B * (2 * S * E * 3 * E + nh * 4 * S * S * dh + 2 * S * E * E
                      + 2 * S * E * H + 2 * S * H * (H // 2)
                      + 2 * S * (H // 2) * (1 + H // 4) + 2 * S * (H // 4))
    weight_elems = ((NUM_LAYERS - 1) * 4 * H * 8 * H + NUM_LAYERS * 2 * H * 8 * H
                    + NUM_LAYERS * 8 * H + E * 3 * E + E * E + E * H + H * (H // 2)
                    + (H // 2) * (1 + H // 4) + (H // 4))
    cost = pl.CostEstimate(
        flops=int(lstm_flops + tail_flops),
        transcendentals=int(S * B * 8 * H * NUM_LAYERS + B * nh * S * S + 2 * B * S),
        bytes_accessed=int(4 * (weight_elems + 2 * S * B + B * S * (S + 2))),
    )

    preds, unc, attnw = pl.pallas_call(
        kernel,
        out_shape=(jax.ShapeDtypeStruct((B, S), jnp.float32),
                   jax.ShapeDtypeStruct((B, S), jnp.float32),
                   jax.ShapeDtypeStruct((B, S, S), jnp.float32)),
        scratch_shapes=[
            pltpu.VMEM((S, B, 8 * H), jnp.float32),   # gih: precomputed gate pre-activations
            pltpu.VMEM((S, B, 2 * H), jnp.float32),   # h_cat stored at step index t
            pltpu.VMEM((S, B, 2 * H), jnp.float32),   # h_cat stored at step index S-1-t
        ],
        cost_estimate=cost,
    )(x_sb, x_rev, f["w0f"], f["w0b"], f["wbig"], f["whh"], f["bias"],
      f["wqkv"], f["bqkv"], f["wo"], f["bo"],
      f["fp1_w"], f["fp1_b"], f["fp2_w"], f["fp2_b"],
      f["headw"], f["headbT"], f["unc2_w"], f["unc2bT"])
    return preds, unc, attnw


# --------------------------- pure-JAX reference (raw params) ---------------------------
def reference_forward(x, p):
    H, E, nh = HIDDEN, 2 * HIDDEN, NUM_HEADS
    B, S = x.shape
    inp = x[:, :, None] * p["in_proj_w"] + p["in_proj_b"]          # (B, S, H)

    def run_dir(seq, w, reverse):
        hb = jnp.zeros((B, H), jnp.float32)
        cb = jnp.zeros((B, H), jnp.float32)
        outs = [None] * S
        order = range(S - 1, -1, -1) if reverse else range(S)
        for t in order:
            g = seq[:, t, :] @ w["wih"] + hb @ w["whh"] + w["b"]
            i = jax.nn.sigmoid(g[:, :H]); fg = jax.nn.sigmoid(g[:, H:2 * H])
            gg = jnp.tanh(g[:, 2 * H:3 * H]); o = jax.nn.sigmoid(g[:, 3 * H:])
            cb = fg * cb + i * gg
            hb = o * jnp.tanh(cb)
            outs[t] = hb
        return jnp.stack(outs, axis=1)                             # (B, S, H)

    cur = inp
    for i in range(NUM_LAYERS):
        fwd = run_dir(cur, p["lstm"][i]["fwd"], reverse=False)
        bwd = run_dir(cur, p["lstm"][i]["bwd"], reverse=True)
        cur = jnp.concatenate([fwd, bwd], axis=-1)                 # (B, S, E)

    dh = E // nh
    q = cur @ p["wq"] + p["bq"]; k = cur @ p["wk"] + p["bk"]; v = cur @ p["wv"] + p["bv"]
    qh = q.reshape(B, S, nh, dh).transpose(0, 2, 1, 3)
    kh = k.reshape(B, S, nh, dh).transpose(0, 2, 1, 3)
    vh = v.reshape(B, S, nh, dh).transpose(0, 2, 1, 3)
    s = jnp.einsum("bhqd,bhkd->bhqk", qh, kh) / jnp.sqrt(float(dh))
    a = jax.nn.softmax(s, axis=-1)
    ctx = jnp.einsum("bhqk,bhkd->bhqd", a, vh).transpose(0, 2, 1, 3).reshape(B, S, E)
    attn_out = ctx @ p["wo"] + p["bo"]
    attn_w = jnp.mean(a, axis=1)

    xr = cur + attn_out
    f1 = jax.nn.relu(xr @ p["fp1_w"] + p["fp1_b"])
    f2 = jax.nn.relu(f1 @ p["fp2_w"] + p["fp2_b"])
    preds = (f2 @ p["pred_w"] + p["pred_b"])[..., 0]
    u1 = jax.nn.relu(f2 @ p["unc1_w"] + p["unc1_b"])
    unc = jax.nn.softplus(u1 @ p["unc2_w"] + p["unc2_b"])[..., 0]
    return preds, unc, attn_w


if __name__ == "__main__":
    key = jax.random.PRNGKey(0)
    kx, kp = jax.random.split(key)
    B, S = 2, 8
    x = jax.random.normal(kx, (B, S), dtype=jnp.float32)
    params = init_params(kp)
    fused = fuse_params(params)

    preds, unc, attn_w = bilstm_denoiser_forward(x, fused)
    jax.block_until_ready((preds, unc, attn_w))

    assert preds.shape == (B, S) and unc.shape == (B, S) and attn_w.shape == (B, S, S)
    assert bool(jnp.all(jnp.isfinite(preds)))
    assert bool(jnp.all(jnp.isfinite(unc)))
    assert bool(jnp.all(unc >= 0.0))                  # Softplus output is non-negative

    # Validate the fused kernel against a pure-JAX reference built from the raw parameters.
    ref_p, ref_u, ref_a = reference_forward(x, params)
    for got, ref in ((preds, ref_p), (unc, ref_u), (attn_w, ref_a)):
        err = float(jnp.max(jnp.abs(got - ref)))
        assert err < 5e-3, f"kernel/reference mismatch: max abs err = {err}"

    print("KERNEL_OK")
</pallas_src>

<mosaic_0001>
module attributes {stable_mosaic.version = 11 : i64} {
  func.func @_fused_kernel(%arg0: memref<8x2x1xf32, #tpu.memory_space<vmem>>, %arg1: memref<8x2x1xf32, #tpu.memory_space<vmem>>, %arg2: memref<1x256xf32, #tpu.memory_space<vmem>>, %arg3: memref<1x256xf32, #tpu.memory_space<vmem>>, %arg4: memref<2x128x256xf32, #tpu.memory_space<vmem>>, %arg5: memref<3x64x256xf32, #tpu.memory_space<vmem>>, %arg6: memref<3x1x256xf32, #tpu.memory_space<vmem>>, %arg7: memref<64x192xf32, #tpu.memory_space<vmem>>, %arg8: memref<1x192xf32, #tpu.memory_space<vmem>>, %arg9: memref<64x64xf32, #tpu.memory_space<vmem>>, %arg10: memref<1x64xf32, #tpu.memory_space<vmem>>, %arg11: memref<64x32xf32, #tpu.memory_space<vmem>>, %arg12: memref<1x32xf32, #tpu.memory_space<vmem>>, %arg13: memref<32x16xf32, #tpu.memory_space<vmem>>, %arg14: memref<1x16xf32, #tpu.memory_space<vmem>>, %arg15: memref<16x9xf32, #tpu.memory_space<vmem>>, %arg16: memref<9x1xf32, #tpu.memory_space<vmem>>, %arg17: memref<8x1xf32, #tpu.memory_space<vmem>>, %arg18: memref<1x1xf32, #tpu.memory_space<vmem>>, %arg19: memref<2x8xf32, #tpu.memory_space<vmem>>, %arg20: memref<2x8xf32, #tpu.memory_space<vmem>>, %arg21: memref<2x8x8xf32, #tpu.memory_space<vmem>>, %arg22: memref<8x2x256xf32, #tpu.memory_space<vmem>>, %arg23: memref<8x2x64xf32, #tpu.memory_space<vmem>>, %arg24: memref<8x2x64xf32, #tpu.memory_space<vmem>>) attributes {dimension_semantics = [], scalar_prefetch = 0 : i64, scratch_operands = 3 : i64, tpu.core_type = #tpu.core_type<tc>} {
    %c0 = arith.constant 0 : index
    %c0_0 = arith.constant 0 : index
    %c0_1 = arith.constant 0 : index
    %0 = vector.load %arg0[%c0, %c0_0, %c0_1] : memref<8x2x1xf32, #tpu.memory_space<vmem>>, vector<8x2x1xf32>
    %c0_2 = arith.constant 0 : index
    %c0_3 = arith.constant 0 : index
    %1 = vector.load %arg2[%c0_2, %c0_3] : memref<1x256xf32, #tpu.memory_space<vmem>>, vector<1x256xf32>
    %2 = vector.shape_cast %1 : vector<1x256xf32> to vector<1x1x256xf32>
    %3 = vector.broadcast %0 : vector<8x2x1xf32> to vector<8x2x256xf32>
    %4 = vector.broadcast %2 : vector<1x1x256xf32> to vector<8x2x256xf32>
    %5 = arith.mulf %3, %4 : vector<8x2x256xf32>
    %c0_4 = arith.constant 0 : index
    %c0_5 = arith.constant 0 : index
    %c0_6 = arith.constant 0 : index
    %6 = vector.load %arg1[%c0_4, %c0_5, %c0_6] : memref<8x2x1xf32, #tpu.memory_space<vmem>>, vector<8x2x1xf32>
    %c0_7 = arith.constant 0 : index
    %c0_8 = arith.constant 0 : index
    %7 = vector.load %arg3[%c0_7, %c0_8] : memref<1x256xf32, #tpu.memory_space<vmem>>, vector<1x256xf32>
    %8 = vector.shape_cast %7 : vector<1x256xf32> to vector<1x1x256xf32>
    %9 = vector.broadcast %6 : vector<8x2x1xf32> to vector<8x2x256xf32>
    %10 = vector.broadcast %8 : vector<1x1x256xf32> to vector<8x2x256xf32>
    %11 = arith.mulf %9, %10 : vector<8x2x256xf32>
    %12 = arith.addf %5, %11 : vector<8x2x256xf32>
    %c0_9 = arith.constant 0 : index
    %c0_10 = arith.constant 0 : index
    %c0_11 = arith.constant 0 : index
    %13 = vector.load %arg6[%c0_9, %c0_10, %c0_11] : memref<3x1x256xf32, #tpu.memory_space<vmem>>, vector<1x1x256xf32>
    %14 = vector.shape_cast %13 : vector<1x1x256xf32> to vector<1x256xf32>
    %15 = vector.shape_cast %14 : vector<1x256xf32> to vector<1x1x256xf32>
    %16 = vector.broadcast %15 : vector<1x1x256xf32> to vector<8x2x256xf32>
    %17 = arith.addf %12, %16 : vector<8x2x256xf32>
    %c0_12 = arith.constant 0 : index
    %c0_13 = arith.constant 0 : index
    %c0_14 = arith.constant 0 : index
    %18 = vector.load %arg22[%c0_12, %c0_13, %c0_14] : memref<8x2x256xf32, #tpu.memory_space<vmem>>, vector<8x2x256xf32>
    tpu.vector_store %arg22[%c0_12, %c0_13, %c0_14], %17 {strides = array<i32>} : memref<8x2x256xf32, #tpu.memory_space<vmem>>, vector<8x2x256xf32>,
    %c0_15 = arith.constant 0 : index
    %c0_16 = arith.constant 0 : index
    %c0_17 = arith.constant 0 : index
    %19 = vector.load %arg5[%c0_15, %c0_16, %c0_17] : memref<3x64x256xf32, #tpu.memory_space<vmem>>, vector<1x64x256xf32>
    %20 = vector.shape_cast %19 : vector<1x64x256xf32> to vector<64x256xf32>
    %cst = arith.constant 0.000000e+00 : f32
    %21 = vector.broadcast %cst : f32 to vector<2x64xf32>
    %cst_18 = arith.constant 0.000000e+00 : f32
    %22 = vector.broadcast %cst_18 : f32 to vector<2x64xf32>
    %c0_19 = arith.constant 0 : index
    %c0_20 = arith.constant 0 : index
    %c0_21 = arith.constant 0 : index
    %23 = vector.load %arg22[%c0_19, %c0_20, %c0_21] : memref<8x2x256xf32, #tpu.memory_space<vmem>>, vector<1x2x256xf32>
    %24 = vector.shape_cast %23 : vector<1x2x256xf32> to vector<2x256xf32>
    %cst_22 = arith.constant dense<0.000000e+00> : vector<2x256xf32>
    %25 = tpu.matmul %21, %20, %cst_22 {dimension_numbers = #tpu.dot_dimension_numbers<[1], [0], [0], [1], [0, 0, 1, 1], [], []>} : vector<2x64xf32>, vector<64x256xf32>, vector<2x256xf32> -> vector<2x256xf32>
    %26 = arith.addf %24, %25 : vector<2x256xf32>
    %27 = vector.extract_strided_slice %26 {offsets = [0, 0], sizes = [2, 64], strides = [1, 1]} : vector<2x256xf32> to vector<2x64xf32>
    %28 = math.tanh %27 : vector<2x64xf32>
    %29 = vector.extract_strided_slice %26 {offsets = [0, 64], sizes = [2, 192], strides = [1, 1]} : vector<2x256xf32> to vector<2x192xf32>
    %30 = arith.negf %29 : vector<2x192xf32>
    %31 = math.exp %30 : vector<2x192xf32>
    %cst_23 = arith.constant 1.000000e+00 : f32
    %32 = vector.broadcast %cst_23 : f32 to vector<2x192xf32>
    %33 = arith.addf %32, %31 : vector<2x192xf32>
    %34 = arith.divf %32, %33 : vector<2x192xf32>
    %35 = vector.extract_strided_slice %34 {offsets = [0, 0], sizes = [2, 64], strides = [1, 1]} : vector<2x192xf32> to vector<2x64xf32>
    %36 = vector.extract_strided_slice %34 {offsets = [0, 64], sizes = [2, 64], strides = [1, 1]} : vector<2x192xf32> to vector<2x64xf32>
    %37 = vector.extract_strided_slice %34 {offsets = [0, 128], sizes = [2, 64], strides = [1, 1]} : vector<2x192xf32> to vector<2x64xf32>
    %38 = arith.mulf %36, %22 : vector<2x64xf32>
    %39 = arith.mulf %35, %28 : vector<2x64xf32>
    %40 = arith.addf %38, %39 : vector<2x64xf32>
    %41 = math.tanh %40 : vector<2x64xf32>
    %42 = arith.mulf %37, %41 : vector<2x64xf32>
    %c0_24 = arith.constant 0 : index
    %c0_25 = arith.constant 0 : index
    %c0_26 = arith.constant 0 : index
    %43 = vector.load %arg23[%c0_24, %c0_25, %c0_26] : memref<8x2x64xf32, #tpu.memory_space<vmem>>, vector<1x2x64xf32>
    %44 = vector.shape_cast %43 : vector<1x2x64xf32> to vector<2x64xf32>
    %45 = vector.shape_cast %42 : vector<2x64xf32> to vector<1x2x64xf32>
    tpu.vector_store %arg23[%c0_24, %c0_25, %c0_26], %45 {strides = array<i32>} : memref<8x2x64xf32, #tpu.memory_space<vmem>>, vector<1x2x64xf32>,
    %c7 = arith.constant 7 : index
    %c0_27 = arith.constant 0 : index
    %c0_28 = arith.constant 0 : index
    %46 = vector.load %arg24[%c7, %c0_27, %c0_28] : memref<8x2x64xf32, #tpu.memory_space<vmem>>, vector<1x2x64xf32>
    %47 = vector.shape_cast %46 : vector<1x2x64xf32> to vector<2x64xf32>
    %48 = vector.shape_cast %42 : vector<2x64xf32> to vector<1x2x64xf32>
    tpu.vector_store %arg24[%c7, %c0_27, %c0_28], %48 {strides = array<i32>} : memref<8x2x64xf32, #tpu.memory_space<vmem>>, vector<1x2x64xf32>,
    %c1 = arith.constant 1 : index
    %c0_29 = arith.constant 0 : index
    %c0_30 = arith.constant 0 : index
    %49 = vector.load %arg22[%c1, %c0_29, %c0_30] : memref<8x2x256xf32, #tpu.memory_space<vmem>>, vector<1x2x256xf32>
    %50 = vector.shape_cast %49 : vector<1x2x256xf32> to vector<2x256xf32>
    %cst_31 = arith.constant dense<0.000000e+00> : vector<2x256xf32>
    %51 = tpu.matmul %42, %20, %cst_31 {dimension_numbers = #tpu.dot_dimension_numbers<[1], [0], [0], [1], [0, 0, 1, 1], [], []>} : vector<2x64xf32>, vector<64x256xf32>, vector<2x256xf32> -> vector<2x256xf32>
    %52 = arith.addf %50, %51 : vector<2x256xf32>
    %53 = vector.extract_strided_slice %52 {offsets = [0, 0], sizes = [2, 64], strides = [1, 1]} : vector<2x256xf32> to vector<2x64xf32>
    %54 = math.tanh %53 : vector<2x64xf32>
    %55 = vector.extract_strided_slice %52 {offsets = [0, 64], sizes = [2, 192], strides = [1, 1]} : vector<2x256xf32> to vector<2x192xf32>
    %56 = arith.negf %55 : vector<2x192xf32>
    %57 = math.exp %56 : vector<2x192xf32>
    %cst_32 = arith.constant 1.000000e+00 : f32
    %58 = vector.broadcast %cst_32 : f32 to vector<2x192xf32>
    %59 = arith.addf %58, %57 : vector<2x192xf32>
    %60 = arith.divf %58, %59 : vector<2x192xf32>
    %61 = vector.extract_strided_slice %60 {offsets = [0, 0], sizes = [2, 64], strides = [1, 1]} : vector<2x192xf32> to vector<2x64xf32>
    %62 = vector.extract_strided_slice %60 {offsets = [0, 64], sizes = [2, 64], strides = [1, 1]} : vector<2x192xf32> to vector<2x64xf32>
    %63 = vector.extract_strided_slice %60 {offsets = [0, 128], sizes = [2, 64], strides = [1, 1]} : vector<2x192xf32> to vector<2x64xf32>
    %64 = arith.mulf %62, %40 : vector<2x64xf32>
    %65 = arith.mulf %61, %54 : vector<2x64xf32>
    %66 = arith.addf %64, %65 : vector<2x64xf32>
    %67 = math.tanh %66 : vector<2x64xf32>
    %68 = arith.mulf %63, %67 : vector<2x64xf32>
    %c1_33 = arith.constant 1 : index
    %c0_34 = arith.constant 0 : index
    %c0_35 = arith.constant 0 : index
    %69 = vector.load %arg23[%c1_33, %c0_34, %c0_35] : memref<8x2x64xf32, #tpu.memory_space<vmem>>, vector<1x2x64xf32>
    %70 = vector.shape_cast %69 : vector<1x2x64xf32> to vector<2x64xf32>
    %71 = vector.shape_cast %68 : vector<2x64xf32> to vector<1x2x64xf32>
    tpu.vector_store %arg23[%c1_33, %c0_34, %c0_35], %71 {strides = array<i32>} : memref<8x2x64xf32, #tpu.memory_space<vmem>>, vector<1x2x64xf32>,
    %c6 = arith.constant 6 : index
    %c0_36 = arith.constant 0 : index
    %c0_37 = arith.constant 0 : index
    %72 = vector.load %arg24[%c6, %c0_36, %c0_37] : memref<8x2x64xf32, #tpu.memory_space<vmem>>, vector<1x2x64xf32>
    %73 = vector.shape_cast %72 : vector<1x2x64xf32> to vector<2x64xf32>
    %74 = vector.shape_cast %68 : vector<2x64xf32> to vector<1x2x64xf32>
    tpu.vector_store %arg24[%c6, %c0_36, %c0_37], %74 {strides = array<i32>} : memref<8x2x64xf32, #tpu.memory_space<vmem>>, vector<1x2x64xf32>,
    %c2 = arith.constant 2 : index
    %c0_38 = arith.constant 0 : index
    %c0_39 = arith.constant 0 : index
    %75 = vector.load %arg22[%c2, %c0_38, %c0_39] : memref<8x2x256xf32, #tpu.memory_space<vmem>>, vector<1x2x256xf32>
    %76 = vector.shape_cast %75 : vector<1x2x256xf32> to vector<2x256xf32>
    %cst_40 = arith.constant dense<0.000000e+00> : vector<2x256xf32>
    %77 = tpu.matmul %68, %20, %cst_40 {dimension_numbers = #tpu.dot_dimension_numbers<[1], [0], [0], [1], [0, 0, 1, 1], [], []>} : vector<2x64xf32>, vector<64x256xf32>, vector<2x256xf32> -> vector<2x256xf32>
    %78 = arith.addf %76, %77 : vector<2x256xf32>
    %79 = vector.extract_strided_slice %78 {offsets = [0, 0], sizes = [2, 64], strides = [1, 1]} : vector<2x256xf32> to vector<2x64xf32>
    %80 = math.tanh %79 : vector<2x64xf32>
    %81 = vector.extract_strided_slice %78 {offsets = [0, 64], sizes = [2, 192], strides = [1, 1]} : vector<2x256xf32> to vector<2x192xf32>
    %82 = arith.negf %81 : vector<2x192xf32>
    %83 = math.exp %82 : vector<2x192xf32>
    %cst_41 = arith.constant 1.000000e+00 : f32
    %84 = vector.broadcast %cst_41 : f32 to vector<2x192xf32>
    %85 = arith.addf %84, %83 : vector<2x192xf32>
    %86 = arith.divf %84, %85 : vector<2x192xf32>
    %87 = vector.extract_strided_slice %86 {offsets = [0, 0], sizes = [2, 64], strides = [1, 1]} : vector<2x192xf32> to vector<2x64xf32>
    %88 = vector.extract_strided_slice %86 {offsets = [0, 64], sizes = [2, 64], strides = [1, 1]} : vector<2x192xf32> to vector<2x64xf32>
    %89 = vector.extract_strided_slice %86 {offsets = [0, 128], sizes = [2, 64], strides = [1, 1]} : vector<2x192xf32> to vector<2x64xf32>
    %90 = arith.mulf %88, %66 : vector<2x64xf32>
    %91 = arith.mulf %87, %80 : vector<2x64xf32>
    %92 = arith.addf %90, %91 : vector<2x64xf32>
    %93 = math.tanh %92 : vector<2x64xf32>
    %94 = arith.mulf %89, %93 : vector<2x64xf32>
    %c2_42 = arith.constant 2 : index
    %c0_43 = arith.constant 0 : index
    %c0_44 = arith.constant 0 : index
    %95 = vector.load %arg23[%c2_42, %c0_43, %c0_44] : memref<8x2x64xf32, #tpu.memory_space<vmem>>, vector<1x2x64xf32>
    %96 = vector.shape_cast %95 : vector<1x2x64xf32> to vector<2x64xf32>
    %97 = vector.shape_cast %94 : vector<2x64xf32> to vector<1x2x64xf32>
    tpu.vector_store %arg23[%c2_42, %c0_43, %c0_44], %97 {strides = array<i32>} : memref<8x2x64xf32, #tpu.memory_space<vmem>>, vector<1x2x64xf32>,
    %c5 = arith.constant 5 : index
    %c0_45 = arith.constant 0 : index
    %c0_46 = arith.constant 0 : index
    %98 = vector.load %arg24[%c5, %c0_45, %c0_46] : memref<8x2x64xf32, #tpu.memory_space<vmem>>, vector<1x2x64xf32>
    %99 = vector.shape_cast %98 : vector<1x2x64xf32> to vector<2x64xf32>
    %100 = vector.shape_cast %94 : vector<2x64xf32> to vector<1x2x64xf32>
    tpu.vector_store %arg24[%c5, %c0_45, %c0_46], %100 {strides = array<i32>} : memref<8x2x64xf32, #tpu.memory_space<vmem>>, vector<1x2x64xf32>,
    %c3 = arith.constant 3 : index
    %c0_47 = arith.constant 0 : index
    %c0_48 = arith.constant 0 : index
    %101 = vector.load %arg22[%c3, %c0_47, %c0_48] : memref<8x2x256xf32, #tpu.memory_space<vmem>>, vector<1x2x256xf32>
    %102 = vector.shape_cast %101 : vector<1x2x256xf32> to vector<2x256xf32>
    %cst_49 = arith.constant dense<0.000000e+00> : vector<2x256xf32>
    %103 = tpu.matmul %94, %20, %cst_49 {dimension_numbers = #tpu.dot_dimension_numbers<[1], [0], [0], [1], [0, 0, 1, 1], [], []>} : vector<2x64xf32>, vector<64x256xf32>, vector<2x256xf32> -> vector<2x256xf32>
    %104 = arith.addf %102, %103 : vector<2x256xf32>
    %105 = vector.extract_strided_slice %104 {offsets = [0, 0], sizes = [2, 64], strides = [1, 1]} : vector<2x256xf32> to vector<2x64xf32>
    %106 = math.tanh %105 : vector<2x64xf32>
    %107 = vector.extract_strided_slice %104 {offsets = [0, 64], sizes = [2, 192], strides = [1, 1]} : vector<2x256xf32> to vector<2x192xf32>
    %108 = arith.negf %107 : vector<2x192xf32>
    %109 = math.exp %108 : vector<2x192xf32>
    %cst_50 = arith.constant 1.000000e+00 : f32
    %110 = vector.broadcast %cst_50 : f32 to vector<2x192xf32>
    %111 = arith.addf %110, %109 : vector<2x192xf32>
    %112 = arith.divf %110, %111 : vector<2x192xf32>
    %113 = vector.extract_strided_slice %112 {offsets = [0, 0], sizes = [2, 64], strides = [1, 1]} : vector<2x192xf32> to vector<2x64xf32>
    %114 = vector.extract_strided_slice %112 {offsets = [0, 64], sizes = [2, 64], strides = [1, 1]} : vector<2x192xf32> to vector<2x64xf32>
    %115 = vector.extract_strided_slice %112 {offsets = [0, 128], sizes = [2, 64], strides = [1, 1]} : vector<2x192xf32> to vector<2x64xf32>
    %116 = arith.mulf %114, %92 : vector<2x64xf32>
    %117 = arith.mulf %113, %106 : vector<2x64xf32>
    %118 = arith.addf %116, %117 : vector<2x64xf32>
    %119 = math.tanh %118 : vector<2x64xf32>
    %120 = arith.mulf %115, %119 : vector<2x64xf32>
    %c3_51 = arith.constant 3 : index
    %c0_52 = arith.constant 0 : index
    %c0_53 = arith.constant 0 : index
    %121 = vector.load %arg23[%c3_51, %c0_52, %c0_53] : memref<8x2x64xf32, #tpu.memory_space<vmem>>, vector<1x2x64xf32>
    %122 = vector.shape_cast %121 : vector<1x2x64xf32> to vector<2x64xf32>
    %123 = vector.shape_cast %120 : vector<2x64xf32> to vector<1x2x64xf32>
    tpu.vector_store %arg23[%c3_51, %c0_52, %c0_53], %123 {strides = array<i32>} : memref<8x2x64xf32, #tpu.memory_space<vmem>>, vector<1x2x64xf32>,
    %c4 = arith.constant 4 : index
    %c0_54 = arith.constant 0 : index
    %c0_55 = arith.constant 0 : index
    %124 = vector.load %arg24[%c4, %c0_54, %c0_55] : memref<8x2x64xf32, #tpu.memory_space<vmem>>, vector<1x2x64xf32>
    %125 = vector.shape_cast %124 : vector<1x2x64xf32> to vector<2x64xf32>
    %126 = vector.shape_cast %120 : vector<2x64xf32> to vector<1x2x64xf32>
    tpu.vector_store %arg24[%c4, %c0_54, %c0_55], %126 {strides = array<i32>} : memref<8x2x64xf32, #tpu.memory_space<vmem>>, vector<1x2x64xf32>,
    %c4_56 = arith.constant 4 : index
    %c0_57 = arith.constant 0 : index
    %c0_58 = arith.constant 0 : index
    %127 = vector.load %arg22[%c4_56, %c0_57, %c0_58] : memref<8x2x256xf32, #tpu.memory_space<vmem>>, vector<1x2x256xf32>
    %128 = vector.shape_cast %127 : vector<1x2x256xf32> to vector<2x256xf32>
    %cst_59 = arith.constant dense<0.000000e+00> : vector<2x256xf32>
    %129 = tpu.matmul %120, %20, %cst_59 {dimension_numbers = #tpu.dot_dimension_numbers<[1], [0], [0], [1], [0, 0, 1, 1], [], []>} : vector<2x64xf32>, vector<64x256xf32>, vector<2x256xf32> -> vector<2x256xf32>
    %130 = arith.addf %128, %129 : vector<2x256xf32>
    %131 = vector.extract_strided_slice %130 {offsets = [0, 0], sizes = [2, 64], strides = [1, 1]} : vector<2x256xf32> to vector<2x64xf32>
    %132 = math.tanh %131 : vector<2x64xf32>
    %133 = vector.extract_strided_slice %130 {offsets = [0, 64], sizes = [2, 192], strides = [1, 1]} : vector<2x256xf32> to vector<2x192xf32>
    %134 = arith.negf %133 : vector<2x192xf32>
    %135 = math.exp %134 : vector<2x192xf32>
    %cst_60 = arith.constant 1.000000e+00 : f32
    %136 = vector.broadcast %cst_60 : f32 to vector<2x192xf32>
    %137 = arith.addf %136, %135 : vector<2x192xf32>
    %138 = arith.divf %136, %137 : vector<2x192xf32>
    %139 = vector.extract_strided_slice %138 {offsets = [0, 0], sizes = [2, 64], strides = [1, 1]} : vector<2x192xf32> to vector<2x64xf32>
    %140 = vector.extract_strided_slice %138 {offsets = [0, 64], sizes = [2, 64], strides = [1, 1]} : vector<2x192xf32> to vector<2x64xf32>
    %141 = vector.extract_strided_slice %138 {offsets = [0, 128], sizes = [2, 64], strides = [1, 1]} : vector<2x192xf32> to vector<2x64xf32>
    %142 = arith.mulf %140, %118 : vector<2x64xf32>
    %143 = arith.mulf %139, %132 : vector<2x64xf32>
    %144 = arith.addf %142, %143 : vector<2x64xf32>
    %145 = math.tanh %144 : vector<2x64xf32>
    %146 = arith.mulf %141, %145 : vector<2x64xf32>
    %c4_61 = arith.constant 4 : index
    %c0_62 = arith.constant 0 : index
    %c0_63 = arith.constant 0 : index
    %147 = vector.load %arg23[%c4_61, %c0_62, %c0_63] : memref<8x2x64xf32, #tpu.memory_space<vmem>>, vector<1x2x64xf32>
    %148 = vector.shape_cast %147 : vector<1x2x64xf32> to vector<2x64xf32>
    %149 = vector.shape_cast %146 : vector<2x64xf32> to vector<1x2x64xf32>
    tpu.vector_store %arg23[%c4_61, %c0_62, %c0_63], %149 {strides = array<i32>} : memref<8x2x64xf32, #tpu.memory_space<vmem>>, vector<1x2x64xf32>,
    %c3_64 = arith.constant 3 : index
    %c0_65 = arith.constant 0 : index
    %c0_66 = arith.constant 0 : index
    %150 = vector.load %arg24[%c3_64, %c0_65, %c0_66] : memref<8x2x64xf32, #tpu.memory_space<vmem>>, vector<1x2x64xf32>
    %151 = vector.shape_cast %150 : vector<1x2x64xf32> to vector<2x64xf32>
    %152 = vector.shape_cast %146 : vector<2x64xf32> to vector<1x2x64xf32>
    tpu.vector_store %arg24[%c3_64, %c0_65, %c0_66], %152 {strides = array<i32>} : memref<8x2x64xf32, #tpu.memory_space<vmem>>, vector<1x2x64xf32>,
    %c5_67 = arith.constant 5 : index
    %c0_68 = arith.constant 0 : index
    %c0_69 = arith.constant 0 : index
    %153 = vector.load %arg22[%c5_67, %c0_68, %c0_69] : memref<8x2x256xf32, #tpu.memory_space<vmem>>, vector<1x2x256xf32>
    %154 = vector.shape_cast %153 : vector<1x2x256xf32> to vector<2x256xf32>
    %cst_70 = arith.constant dense<0.000000e+00> : vector<2x256xf32>
    %155 = tpu.matmul %146, %20, %cst_70 {dimension_numbers = #tpu.dot_dimension_numbers<[1], [0], [0], [1], [0, 0, 1, 1], [], []>} : vector<2x64xf32>, vector<64x256xf32>, vector<2x256xf32> -> vector<2x256xf32>
    %156 = arith.addf %154, %155 : vector<2x256xf32>
    %157 = vector.extract_strided_slice %156 {offsets = [0, 0], sizes = [2, 64], strides = [1, 1]} : vector<2x256xf32> to vector<2x64xf32>
    %158 = math.tanh %157 : vector<2x64xf32>
    %159 = vector.extract_strided_slice %156 {offsets = [0, 64], sizes = [2, 192], strides = [1, 1]} : vector<2x256xf32> to vector<2x192xf32>
    %160 = arith.negf %159 : vector<2x192xf32>
    %161 = math.exp %160 : vector<2x192xf32>
    %cst_71 = arith.constant 1.000000e+00 : f32
    %162 = vector.broadcast %cst_71 : f32 to vector<2x192xf32>
    %163 = arith.addf %162, %161 : vector<2x192xf32>
    %164 = arith.divf %162, %163 : vector<2x192xf32>
    %165 = vector.extract_strided_slice %164 {offsets = [0, 0], sizes = [2, 64], strides = [1, 1]} : vector<2x192xf32> to vector<2x64xf32>
    %166 = vector.extract_strided_slice %164 {offsets = [0, 64], sizes = [2, 64], strides = [1, 1]} : vector<2x192xf32> to vector<2x64xf32>
    %167 = vector.extract_strided_slice %164 {offsets = [0, 128], sizes = [2, 64], strides = [1, 1]} : vector<2x192xf32> to vector<2x64xf32>
    %168 = arith.mulf %166, %144 : vector<2x64xf32>
    %169 = arith.mulf %165, %158 : vector<2x64xf32>
    %170 = arith.addf %168, %169 : vector<2x64xf32>
    %171 = math.tanh %170 : vector<2x64xf32>
    %172 = arith.mulf %167, %171 : vector<2x64xf32>
    %c5_72 = arith.constant 5 : index
    %c0_73 = arith.constant 0 : index
    %c0_74 = arith.constant 0 : index
    %173 = vector.load %arg23[%c5_72, %c0_73, %c0_74] : memref<8x2x64xf32, #tpu.memory_space<vmem>>, vector<1x2x64xf32>
    %174 = vector.shape_cast %173 : vector<1x2x64xf32> to vector<2x64xf32>
    %175 = vector.shape_cast %172 : vector<2x64xf32> to vector<1x2x64xf32>
    tpu.vector_store %arg23[%c5_72, %c0_73, %c0_74], %175 {strides = array<i32>} : memref<8x2x64xf32, #tpu.memory_space<vmem>>, vector<1x2x64xf32>,
    %c2_75 = arith.constant 2 : index
    %c0_76 = arith.constant 0 : index
    %c0_77 = arith.constant 0 : index
    %176 = vector.load %arg24[%c2_75, %c0_76, %c0_77] : memref<8x2x64xf32, #tpu.memory_space<vmem>>, vector<1x2x64xf32>
    %177 = vector.shape_cast %176 : vector<1x2x64xf32> to vector<2x64xf32>
    %178 = vector.shape_cast %172 : vector<2x64xf32> to vector<1x2x64xf32>
    tpu.vector_store %arg24[%c2_75, %c0_76, %c0_77], %178 {strides = array<i32>} : memref<8x2x64xf32, #tpu.memory_space<vmem>>, vector<1x2x64xf32>,
    %c6_78 = arith.constant 6 : index
    %c0_79 = arith.constant 0 : index
    %c0_80 = arith.constant 0 : index
    %179 = vector.load %arg22[%c6_78, %c0_79, %c0_80] : memref<8x2x256xf32, #tpu.memory_space<vmem>>, vector<1x2x256xf32>
    %180 = vector.shape_cast %179 : vector<1x2x256xf32> to vector<2x256xf32>
    %cst_81 = arith.constant dense<0.000000e+00> : vector<2x256xf32>
    %181 = tpu.matmul %172, %20, %cst_81 {dimension_numbers = #tpu.dot_dimension_numbers<[1], [0], [0], [1], [0, 0, 1, 1], [], []>} : vector<2x64xf32>, vector<64x256xf32>, vector<2x256xf32> -> vector<2x256xf32>
    %182 = arith.addf %180, %181 : vector<2x256xf32>
    %183 = vector.extract_strided_slice %182 {offsets = [0, 0], sizes = [2, 64], strides = [1, 1]} : vector<2x256xf32> to vector<2x64xf32>
    %184 = math.tanh %183 : vector<2x64xf32>
    %185 = vector.extract_strided_slice %182 {offsets = [0, 64], sizes = [2, 192], strides = [1, 1]} : vector<2x256xf32> to vector<2x192xf32>
    %186 = arith.negf %185 : vector<2x192xf32>
    %187 = math.exp %186 : vector<2x192xf32>
    %cst_82 = arith.constant 1.000000e+00 : f32
    %188 = vector.broadcast %cst_82 : f32 to vector<2x192xf32>
    %189 = arith.addf %188, %187 : vector<2x192xf32>
    %190 = arith.divf %188, %189 : vector<2x192xf32>
    %191 = vector.extract_strided_slice %190 {offsets = [0, 0], sizes = [2, 64], strides = [1, 1]} : vector<2x192xf32> to vector<2x64xf32>
    %192 = vector.extract_strided_slice %190 {offsets = [0, 64], sizes = [2, 64], strides = [1, 1]} : vector<2x192xf32> to vector<2x64xf32>
    %193 = vector.extract_strided_slice %190 {offsets = [0, 128], sizes = [2, 64], strides = [1, 1]} : vector<2x192xf32> to vector<2x64xf32>
    %194 = arith.mulf %192, %170 : vector<2x64xf32>
    %195 = arith.mulf %191, %184 : vector<2x64xf32>
    %196 = arith.addf %194, %195 : vector<2x64xf32>
    %197 = math.tanh %196 : vector<2x64xf32>
    %198 = arith.mulf %193, %197 : vector<2x64xf32>
    %c6_83 = arith.constant 6 : index
    %c0_84 = arith.constant 0 : index
    %c0_85 = arith.constant 0 : index
    %199 = vector.load %arg23[%c6_83, %c0_84, %c0_85] : memref<8x2x64xf32, #tpu.memory_space<vmem>>, vector<1x2x64xf32>
    %200 = vector.shape_cast %199 : vector<1x2x64xf32> to vector<2x64xf32>
    %201 = vector.shape_cast %198 : vector<2x64xf32> to vector<1x2x64xf32>
    tpu.vector_store %arg23[%c6_83, %c0_84, %c0_85], %201 {strides = array<i32>} : memref<8x2x64xf32, #tpu.memory_space<vmem>>, vector<1x2x64xf32>,
    %c1_86 = arith.constant 1 : index
    %c0_87 = arith.constant 0 : index
    %c0_88 = arith.constant 0 : index
    %202 = vector.load %arg24[%c1_86, %c0_87, %c0_88] : memref<8x2x64xf32, #tpu.memory_space<vmem>>, vector<1x2x64xf32>
    %203 = vector.shape_cast %202 : vector<1x2x64xf32> to vector<2x64xf32>
    %204 = vector.shape_cast %198 : vector<2x64xf32> to vector<1x2x64xf32>
    tpu.vector_store %arg24[%c1_86, %c0_87, %c0_88], %204 {strides = array<i32>} : memref<8x2x64xf32, #tpu.memory_space<vmem>>, vector<1x2x64xf32>,
    %c7_89 = arith.constant 7 : index
    %c0_90 = arith.constant 0 : index
    %c0_91 = arith.constant 0 : index
    %205 = vector.load %arg22[%c7_89, %c0_90, %c0_91] : memref<8x2x256xf32, #tpu.memory_space<vmem>>, vector<1x2x256xf32>
    %206 = vector.shape_cast %205 : vector<1x2x256xf32> to vector<2x256xf32>
    %cst_92 = arith.constant dense<0.000000e+00> : vector<2x256xf32>
    %207 = tpu.matmul %198, %20, %cst_92 {dimension_numbers = #tpu.dot_dimension_numbers<[1], [0], [0], [1], [0, 0, 1, 1], [], []>} : vector<2x64xf32>, vector<64x256xf32>, vector<2x256xf32> -> vector<2x256xf32>
    %208 = arith.addf %206, %207 : vector<2x256xf32>
    %209 = vector.extract_strided_slice %208 {offsets = [0, 0], sizes = [2, 64], strides = [1, 1]} : vector<2x256xf32> to vector<2x64xf32>
    %210 = math.tanh %209 : vector<2x64xf32>
    %211 = vector.extract_strided_slice %208 {offsets = [0, 64], sizes = [2, 192], strides = [1, 1]} : vector<2x256xf32> to vector<2x192xf32>
    %212 = arith.negf %211 : vector<2x192xf32>
    %213 = math.exp %212 : vector<2x192xf32>
    %cst_93 = arith.constant 1.000000e+00 : f32
    %214 = vector.broadcast %cst_93 : f32 to vector<2x192xf32>
    %215 = arith.addf %214, %213 : vector<2x192xf32>
    %216 = arith.divf %214, %215 : vector<2x192xf32>
    %217 = vector.extract_strided_slice %216 {offsets = [0, 0], sizes = [2, 64], strides = [1, 1]} : vector<2x192xf32> to vector<2x64xf32>
    %218 = vector.extract_strided_slice %216 {offsets = [0, 64], sizes = [2, 64], strides = [1, 1]} : vector<2x192xf32> to vector<2x64xf32>
    %219 = vector.extract_strided_slice %216 {offsets = [0, 128], sizes = [2, 64], strides = [1, 1]} : vector<2x192xf32> to vector<2x64xf32>
    %220 = arith.mulf %218, %196 : vector<2x64xf32>
    %221 = arith.mulf %217, %210 : vector<2x64xf32>
    %222 = arith.addf %220, %221 : vector<2x64xf32>
    %223 = math.tanh %222 : vector<2x64xf32>
    %224 = arith.mulf %219, %223 : vector<2x64xf32>
    %c7_94 = arith.constant 7 : index
    %c0_95 = arith.constant 0 : index
    %c0_96 = arith.constant 0 : index
    %225 = vector.load %arg23[%c7_94, %c0_95, %c0_96] : memref<8x2x64xf32, #tpu.memory_space<vmem>>, vector<1x2x64xf32>
    %226 = vector.shape_cast %225 : vector<1x2x64xf32> to vector<2x64xf32>
    %227 = vector.shape_cast %224 : vector<2x64xf32> to vector<1x2x64xf32>
    tpu.vector_store %arg23[%c7_94, %c0_95, %c0_96], %227 {strides = array<i32>} : memref<8x2x64xf32, #tpu.memory_space<vmem>>, vector<1x2x64xf32>,
    %c0_97 = arith.constant 0 : index
    %c0_98 = arith.constant 0 : index
    %c0_99 = arith.constant 0 : index
    %228 = vector.load %arg24[%c0_97, %c0_98, %c0_99] : memref<8x2x64xf32, #tpu.memory_space<vmem>>, vector<1x2x64xf32>
    %229 = vector.shape_cast %228 : vector<1x2x64xf32> to vector<2x64xf32>
    %230 = vector.shape_cast %224 : vector<2x64xf32> to vector<1x2x64xf32>
    tpu.vector_store %arg24[%c0_97, %c0_98, %c0_99], %230 {strides = array<i32>} : memref<8x2x64xf32, #tpu.memory_space<vmem>>, vector<1x2x64xf32>,
    %c0_100 = arith.constant 0 : index
    %c0_101 = arith.constant 0 : index
    %c0_102 = arith.constant 0 : index
    %231 = vector.load %arg23[%c0_100, %c0_101, %c0_102] : memref<8x2x64xf32, #tpu.memory_space<vmem>>, vector<8x2x64xf32>
    %c0_103 = arith.constant 0 : index
    %c0_104 = arith.constant 0 : index
    %c0_105 = arith.constant 0 : index
    %232 = vector.load %arg24[%c0_103, %c0_104, %c0_105] : memref<8x2x64xf32, #tpu.memory_space<vmem>>, vector<8x2x64xf32>
    %233 = tpu.concatenate %231, %232 in 2 : vector<8x2x64xf32>, vector<8x2x64xf32> -> vector<8x2x128xf32>
    %234 = vector.shape_cast %233 : vector<8x2x128xf32> to vector<16x128xf32>
    %c0_106 = arith.constant 0 : index
    %c0_107 = arith.constant 0 : index
    %c0_108 = arith.constant 0 : index
    %235 = vector.load %arg4[%c0_106, %c0_107, %c0_108] : memref<2x128x256xf32, #tpu.memory_space<vmem>>, vector<1x128x256xf32>
    %236 = vector.shape_cast %235 : vector<1x128x256xf32> to vector<128x256xf32>
    %cst_109 = arith.constant dense<0.000000e+00> : vector<16x256xf32>
    %237 = tpu.matmul %234, %236, %cst_109 {dimension_numbers = #tpu.dot_dimension_numbers<[1], [0], [0], [1], [0, 0, 1, 1], [], []>} : vector<16x128xf32>, vector<128x256xf32>, vector<16x256xf32> -> vector<16x256xf32>
    %c1_110 = arith.constant 1 : index
    %c0_111 = arith.constant 0 : index
    %c0_112 = arith.constant 0 : index
    %238 = vector.load %arg6[%c1_110, %c0_111, %c0_112] : memref<3x1x256xf32, #tpu.memory_space<vmem>>, vector<1x1x256xf32>
    %239 = vector.shape_cast %238 : vector<1x1x256xf32> to vector<1x256xf32>
    %240 = vector.broadcast %239 : vector<1x256xf32> to vector<16x256xf32>
    %241 = arith.addf %237, %240 : vector<16x256xf32>
    %242 = vector.shape_cast %241 : vector<16x256xf32> to vector<8x2x256xf32>
    %c0_113 = arith.constant 0 : index
    %c0_114 = arith.constant 0 : index
    %c0_115 = arith.constant 0 : index
    %243 = vector.load %arg22[%c0_113, %c0_114, %c0_115] : memref<8x2x256xf32, #tpu.memory_space<vmem>>, vector<8x2x256xf32>
    tpu.vector_store %arg22[%c0_113, %c0_114, %c0_115], %242 {strides = array<i32>} : memref<8x2x256xf32, #tpu.memory_space<vmem>>, vector<8x2x256xf32>,
    %c1_116 = arith.constant 1 : index
    %c0_117 = arith.constant 0 : index
    %c0_118 = arith.constant 0 : index
    %244 = vector.load %arg5[%c1_116, %c0_117, %c0_118] : memref<3x64x256xf32, #tpu.memory_space<vmem>>, vector<1x64x256xf32>
    %245 = vector.shape_cast %244 : vector<1x64x256xf32> to vector<64x256xf32>
    %cst_119 = arith.constant 0.000000e+00 : f32
    %246 = vector.broadcast %cst_119 : f32 to vector<2x64xf32>
    %cst_120 = arith.constant 0.000000e+00 : f32
    %247 = vector.broadcast %cst_120 : f32 to vector<2x64xf32>
    %c0_121 = arith.constant 0 : index
    %c0_122 = arith.constant 0 : index
    %c0_123 = arith.constant 0 : index
    %248 = vector.load %arg22[%c0_121, %c0_122, %c0_123] : memref<8x2x256xf32, #tpu.memory_space<vmem>>, vector<1x2x256xf32>
    %249 = vector.shape_cast %248 : vector<1x2x256xf32> to vector<2x256xf32>
    %cst_124 = arith.constant dense<0.000000e+00> : vector<2x256xf32>
    %250 = tpu.matmul %246, %245, %cst_124 {dimension_numbers = #tpu.dot_dimension_numbers<[1], [0], [0], [1], [0, 0, 1, 1], [], []>} : vector<2x64xf32>, vector<64x256xf32>, vector<2x256xf32> -> vector<2x256xf32>
    %251 = arith.addf %249, %250 : vector<2x256xf32>
    %252 = vector.extract_strided_slice %251 {offsets = [0, 0], sizes = [2, 64], strides = [1, 1]} : vector<2x256xf32> to vector<2x64xf32>
    %253 = math.tanh %252 : vector<2x64xf32>
    %254 = vector.extract_strided_slice %251 {offsets = [0, 64], sizes = [2, 192], strides = [1, 1]} : vector<2x256xf32> to vector<2x192xf32>
    %255 = arith.negf %254 : vector<2x192xf32>
    %256 = math.exp %255 : vector<2x192xf32>
    %cst_125 = arith.constant 1.000000e+00 : f32
    %257 = vector.broadcast %cst_125 : f32 to vector<2x192xf32>
    %258 = arith.addf %257, %256 : vector<2x192xf32>
    %259 = arith.divf %257, %258 : vector<2x192xf32>
    %260 = vector.extract_strided_slice %259 {offsets = [0, 0], sizes = [2, 64], strides = [1, 1]} : vector<2x192xf32> to vector<2x64xf32>
    %261 = vector.extract_strided_slice %259 {offsets = [0, 64], sizes = [2, 64], strides = [1, 1]} : vector<2x192xf32> to vector<2x64xf32>
    %262 = vector.extract_strided_slice %259 {offsets = [0, 128], sizes = [2, 64], strides = [1, 1]} : vector<2x192xf32> to vector<2x64xf32>
    %263 = arith.mulf %261, %247 : vector<2x64xf32>
    %264 = arith.mulf %260, %253 : vector<2x64xf32>
    %265 = arith.addf %263, %264 : vector<2x64xf32>
    %266 = math.tanh %265 : vector<2x64xf32>
    %267 = arith.mulf %262, %266 : vector<2x64xf32>
    %c0_126 = arith.constant 0 : index
    %c0_127 = arith.constant 0 : index
    %c0_128 = arith.constant 0 : index
    %268 = vector.load %arg23[%c0_126, %c0_127, %c0_128] : memref<8x2x64xf32, #tpu.memory_space<vmem>>, vector<1x2x64xf32>
    %269 = vector.shape_cast %268 : vector<1x2x64xf32> to vector<2x64xf32>
    %270 = vector.shape_cast %267 : vector<2x64xf32> to vector<1x2x64xf32>
    tpu.vector_store %arg23[%c0_126, %c0_127, %c0_128], %270 {strides = array<i32>} : memref<8x2x64xf32, #tpu.memory_space<vmem>>, vector<1x2x64xf32>,
    %c7_129 = arith.constant 7 : index
    %c0_130 = arith.constant 0 : index
    %c0_131 = arith.constant 0 : index
    %271 = vector.load %arg24[%c7_129, %c0_130, %c0_131] : memref<8x2x64xf32, #tpu.memory_space<vmem>>, vector<1x2x64xf32>
    %272 = vector.shape_cast %271 : vector<1x2x64xf32> to vector<2x64xf32>
    %273 = vector.shape_cast %267 : vector<2x64xf32> to vector<1x2x64xf32>
    tpu.vector_store %arg24[%c7_129, %c0_130, %c0_131], %273 {strides = array<i32>} : memref<8x2x64xf32, #tpu.memory_space<vmem>>, vector<1x2x64xf32>,
    %c1_132 = arith.constant 1 : index
    %c0_133 = arith.constant 0 : index
    %c0_134 = arith.constant 0 : index
    %274 = vector.load %arg22[%c1_132, %c0_133, %c0_134] : memref<8x2x256xf32, #tpu.memory_space<vmem>>, vector<1x2x256xf32>
    %275 = vector.shape_cast %274 : vector<1x2x256xf32> to vector<2x256xf32>
    %cst_135 = arith.constant dense<0.000000e+00> : vector<2x256xf32>
    %276 = tpu.matmul %267, %245, %cst_135 {dimension_numbers = #tpu.dot_dimension_numbers<[1], [0], [0], [1], [0, 0, 1, 1], [], []>} : vector<2x64xf32>, vector<64x256xf32>, vector<2x256xf32> -> vector<2x256xf32>
    %277 = arith.addf %275, %276 : vector<2x256xf32>
    %278 = vector.extract_strided_slice %277 {offsets = [0, 0], sizes = [2, 64], strides = [1, 1]} : vector<2x256xf32> to vector<2x64xf32>
    %279 = math.tanh %278 : vector<2x64xf32>
    %280 = vector.extract_strided_slice %277 {offsets = [0, 64], sizes = [2, 192], strides = [1, 1]} : vector<2x256xf32> to vector<2x192xf32>
    %281 = arith.negf %280 : vector<2x192xf32>
    %282 = math.exp %281 : vector<2x192xf32>
    %cst_136 = arith.constant 1.000000e+00 : f32
    %283 = vector.broadcast %cst_136 : f32 to vector<2x192xf32>
    %284 = arith.addf %283, %282 : vector<2x192xf32>
    %285 = arith.divf %283, %284 : vector<2x192xf32>
    %286 = vector.extract_strided_slice %285 {offsets = [0, 0], sizes = [2, 64], strides = [1, 1]} : vector<2x192xf32> to vector<2x64xf32>
    %287 = vector.extract_strided_slice %285 {offsets = [0, 64], sizes = [2, 64], strides = [1, 1]} : vector<2x192xf32> to vector<2x64xf32>
    %288 = vector.extract_strided_slice %285 {offsets = [0, 128], sizes = [2, 64], strides = [1, 1]} : vector<2x192xf32> to vector<2x64xf32>
    %289 = arith.mulf %287, %265 : vector<2x64xf32>
    %290 = arith.mulf %286, %279 : vector<2x64xf32>
    %291 = arith.addf %289, %290 : vector<2x64xf32>
    %292 = math.tanh %291 : vector<2x64xf32>
    %293 = arith.mulf %288, %292 : vector<2x64xf32>
    %c1_137 = arith.constant 1 : index
    %c0_138 = arith.constant 0 : index
    %c0_139 = arith.constant 0 : index
    %294 = vector.load %arg23[%c1_137, %c0_138, %c0_139] : memref<8x2x64xf32, #tpu.memory_space<vmem>>, vector<1x2x64xf32>
    %295 = vector.shape_cast %294 : vector<1x2x64xf32> to vector<2x64xf32>
    %296 = vector.shape_cast %293 : vector<2x64xf32> to vector<1x2x64xf32>
    tpu.vector_store %arg23[%c1_137, %c0_138, %c0_139], %296 {strides = array<i32>} : memref<8x2x64xf32, #tpu.memory_space<vmem>>, vector<1x2x64xf32>,
    %c6_140 = arith.constant 6 : index
    %c0_141 = arith.constant 0 : index
    %c0_142 = arith.constant 0 : index
    %297 = vector.load %arg24[%c6_140, %c0_141, %c0_142] : memref<8x2x64xf32, #tpu.memory_space<vmem>>, vector<1x2x64xf32>
    %298 = vector.shape_cast %297 : vector<1x2x64xf32> to vector<2x64xf32>
    %299 = vector.shape_cast %293 : vector<2x64xf32> to vector<1x2x64xf32>
    tpu.vector_store %arg24[%c6_140, %c0_141, %c0_142], %299 {strides = array<i32>} : memref<8x2x64xf32, #tpu.memory_space<vmem>>, vector<1x2x64xf32>,
    %c2_143 = arith.constant 2 : index
    %c0_144 = arith.constant 0 : index
    %c0_145 = arith.constant 0 : index
    %300 = vector.load %arg22[%c2_143, %c0_144, %c0_145] : memref<8x2x256xf32, #tpu.memory_space<vmem>>, vector<1x2x256xf32>
    %301 = vector.shape_cast %300 : vector<1x2x256xf32> to vector<2x256xf32>
    %cst_146 = arith.constant dense<0.000000e+00> : vector<2x256xf32>
    %302 = tpu.matmul %293, %245, %cst_146 {dimension_numbers = #tpu.dot_dimension_numbers<[1], [0], [0], [1], [0, 0, 1, 1], [], []>} : vector<2x64xf32>, vector<64x256xf32>, vector<2x256xf32> -> vector<2x256xf32>
    %303 = arith.addf %301, %302 : vector<2x256xf32>
    %304 = vector.extract_strided_slice %303 {offsets = [0, 0], sizes = [2, 64], strides = [1, 1]} : vector<2x256xf32> to vector<2x64xf32>
    %305 = math.tanh %304 : vector<2x64xf32>
    %306 = vector.extract_strided_slice %303 {offsets = [0, 64], sizes = [2, 192], strides = [1, 1]} : vector<2x256xf32> to vector<2x192xf32>
    %307 = arith.negf %306 : vector<2x192xf32>
    %308 = math.exp %307 : vector<2x192xf32>
    %cst_147 = arith.constant 1.000000e+00 : f32
    %309 = vector.broadcast %cst_147 : f32 to vector<2x192xf32>
    %310 = arith.addf %309, %308 : vector<2x192xf32>
    %311 = arith.divf %309, %310 : vector<2x192xf32>
    %312 = vector.extract_strided_slice %311 {offsets = [0, 0], sizes = [2, 64], strides = [1, 1]} : vector<2x192xf32> to vector<2x64xf32>
    %313 = vector.extract_strided_slice %311 {offsets = [0, 64], sizes = [2, 64], strides = [1, 1]} : vector<2x192xf32> to vector<2x64xf32>
    %314 = vector.extract_strided_slice %311 {offsets = [0, 128], sizes = [2, 64], strides = [1, 1]} : vector<2x192xf32> to vector<2x64xf32>
    %315 = arith.mulf %313, %291 : vector<2x64xf32>
    %316 = arith.mulf %312, %305 : vector<2x64xf32>
    %317 = arith.addf %315, %316 : vector<2x64xf32>
    %318 = math.tanh %317 : vector<2x64xf32>
    %319 = arith.mulf %314, %318 : vector<2x64xf32>
    %c2_148 = arith.constant 2 : index
    %c0_149 = arith.constant 0 : index
    %c0_150 = arith.constant 0 : index
    %320 = vector.load %arg23[%c2_148, %c0_149, %c0_150] : memref<8x2x64xf32, #tpu.memory_space<vmem>>, vector<1x2x64xf32>
    %321 = vector.shape_cast %320 : vector<1x2x64xf32> to vector<2x64xf32>
    %322 = vector.shape_cast %319 : vector<2x64xf32> to vector<1x2x64xf32>
    tpu.vector_store %arg23[%c2_148, %c0_149, %c0_150], %322 {strides = array<i32>} : memref<8x2x64xf32, #tpu.memory_space<vmem>>, vector<1x2x64xf32>,
    %c5_151 = arith.constant 5 : index
    %c0_152 = arith.constant 0 : index
    %c0_153 = arith.constant 0 : index
    %323 = vector.load %arg24[%c5_151, %c0_152, %c0_153] : memref<8x2x64xf32, #tpu.memory_space<vmem>>, vector<1x2x64xf32>
    %324 = vector.shape_cast %323 : vector<1x2x64xf32> to vector<2x64xf32>
    %325 = vector.shape_cast %319 : vector<2x64xf32> to vector<1x2x64xf32>
    tpu.vector_store %arg24[%c5_151, %c0_152, %c0_153], %325 {strides = array<i32>} : memref<8x2x64xf32, #tpu.memory_space<vmem>>, vector<1x2x64xf32>,
    %c3_154 = arith.constant 3 : index
    %c0_155 = arith.constant 0 : index
    %c0_156 = arith.constant 0 : index
    %326 = vector.load %arg22[%c3_154, %c0_155, %c0_156] : memref<8x2x256xf32, #tpu.memory_space<vmem>>, vector<1x2x256xf32>
    %327 = vector.shape_cast %326 : vector<1x2x256xf32> to vector<2x256xf32>
    %cst_157 = arith.constant dense<0.000000e+00> : vector<2x256xf32>
    %328 = tpu.matmul %319, %245, %cst_157 {dimension_numbers = #tpu.dot_dimension_numbers<[1], [0], [0], [1], [0, 0, 1, 1], [], []>} : vector<2x64xf32>, vector<64x256xf32>, vector<2x256xf32> -> vector<2x256xf32>
    %329 = arith.addf %327, %328 : vector<2x256xf32>
    %330 = vector.extract_strided_slice %329 {offsets = [0, 0], sizes = [2, 64], strides = [1, 1]} : vector<2x256xf32> to vector<2x64xf32>
    %331 = math.tanh %330 : vector<2x64xf32>
    %332 = vector.extract_strided_slice %329 {offsets = [0, 64], sizes = [2, 192], strides = [1, 1]} : vector<2x256xf32> to vector<2x192xf32>
    %333 = arith.negf %332 : vector<2x192xf32>
    %334 = math.exp %333 : vector<2x192xf32>
    %cst_158 = arith.constant 1.000000e+00 : f32
    %335 = vector.broadcast %cst_158 : f32 to vector<2x192xf32>
    %336 = arith.addf %335, %334 : vector<2x192xf32>
    %337 = arith.divf %335, %336 : vector<2x192xf32>
    %338 = vector.extract_strided_slice %337 {offsets = [0, 0], sizes = [2, 64], strides = [1, 1]} : vector<2x192xf32> to vector<2x64xf32>
    %339 = vector.extract_strided_slice %337 {offsets = [0, 64], sizes = [2, 64], strides = [1, 1]} : vector<2x192xf32> to vector<2x64xf32>
    %340 = vector.extract_strided_slice %337 {offsets = [0, 128], sizes = [2, 64], strides = [1, 1]} : vector<2x192xf32> to vector<2x64xf32>
    %341 = arith.mulf %339, %317 : vector<2x64xf32>
    %342 = arith.mulf %338, %331 : vector<2x64xf32>
    %343 = arith.addf %341, %342 : vector<2x64xf32>
    %344 = math.tanh %343 : vector<2x64xf32>
    %345 = arith.mulf %340, %344 : vector<2x64xf32>
    %c3_159 = arith.constant 3 : index
    %c0_160 = arith.constant 0 : index
    %c0_161 = arith.constant 0 : index
    %346 = vector.load %arg23[%c3_159, %c0_160, %c0_161] : memref<8x2x64xf32, #tpu.memory_space<vmem>>, vector<1x2x64xf32>
    %347 = vector.shape_cast %346 : vector<1x2x64xf32> to vector<2x64xf32>
    %348 = vector.shape_cast %345 : vector<2x64xf32> to vector<1x2x64xf32>
    tpu.vector_store %arg23[%c3_159, %c0_160, %c0_161], %348 {strides = array<i32>} : memref<8x2x64xf32, #tpu.memory_space<vmem>>, vector<1x2x64xf32>,
    %c4_162 = arith.constant 4 : index
    %c0_163 = arith.constant 0 : index
    %c0_164 = arith.constant 0 : index
    %349 = vector.load %arg24[%c4_162, %c0_163, %c0_164] : memref<8x2x64xf32, #tpu.memory_space<vmem>>, vector<1x2x64xf32>
    %350 = vector.shape_cast %349 : vector<1x2x64xf32> to vector<2x64xf32>
    %351 = vector.shape_cast %345 : vector<2x64xf32> to vector<1x2x64xf32>
    tpu.vector_store %arg24[%c4_162, %c0_163, %c0_164], %351 {strides = array<i32>} : memref<8x2x64xf32, #tpu.memory_space<vmem>>, vector<1x2x64xf32>,
    %c4_165 = arith.constant 4 : index
    %c0_166 = arith.constant 0 : index
    %c0_167 = arith.constant 0 : index
    %352 = vector.load %arg22[%c4_165, %c0_166, %c0_167] : memref<8x2x256xf32, #tpu.memory_space<vmem>>, vector<1x2x256xf32>
    %353 = vector.shape_cast %352 : vector<1x2x256xf32> to vector<2x256xf32>
    %cst_168 = arith.constant dense<0.000000e+00> : vector<2x256xf32>
    %354 = tpu.matmul %345, %245, %cst_168 {dimension_numbers = #tpu.dot_dimension_numbers<[1], [0], [0], [1], [0, 0, 1, 1], [], []>} : vector<2x64xf32>, vector<64x256xf32>, vector<2x256xf32> -> vector<2x256xf32>
    %355 = arith.addf %353, %354 : vector<2x256xf32>
    %356 = vector.extract_strided_slice %355 {offsets = [0, 0], sizes = [2, 64], strides = [1, 1]} : vector<2x256xf32> to vector<2x64xf32>
    %357 = math.tanh %356 : vector<2x64xf32>
    %358 = vector.extract_strided_slice %355 {offsets = [0, 64], sizes = [2, 192], strides = [1, 1]} : vector<2x256xf32> to vector<2x192xf32>
    %359 = arith.negf %358 : vector<2x192xf32>
    %360 = math.exp %359 : vector<2x192xf32>
    %cst_169 = arith.constant 1.000000e+00 : f32
    %361 = vector.broadcast %cst_169 : f32 to vector<2x192xf32>
    %362 = arith.addf %361, %360 : vector<2x192xf32>
    %363 = arith.divf %361, %362 : vector<2x192xf32>
    %364 = vector.extract_strided_slice %363 {offsets = [0, 0], sizes = [2, 64], strides = [1, 1]} : vector<2x192xf32> to vector<2x64xf32>
    %365 = vector.extract_strided_slice %363 {offsets = [0, 64], sizes = [2, 64], strides = [1, 1]} : vector<2x192xf32> to vector<2x64xf32>
    %366 = vector.extract_strided_slice %363 {offsets = [0, 128], sizes = [2, 64], strides = [1, 1]} : vector<2x192xf32> to vector<2x64xf32>
    %367 = arith.mulf %365, %343 : vector<2x64xf32>
    %368 = arith.mulf %364, %357 : vector<2x64xf32>
    %369 = arith.addf %367, %368 : vector<2x64xf32>
    %370 = math.tanh %369 : vector<2x64xf32>
    %371 = arith.mulf %366, %370 : vector<2x64xf32>
    %c4_170 = arith.constant 4 : index
    %c0_171 = arith.constant 0 : index
    %c0_172 = arith.constant 0 : index
    %372 = vector.load %arg23[%c4_170, %c0_171, %c0_172] : memref<8x2x64xf32, #tpu.memory_space<vmem>>, vector<1x2x64xf32>
    %373 = vector.shape_cast %372 : vector<1x2x64xf32> to vector<2x64xf32>
    %374 = vector.shape_cast %371 : vector<2x64xf32> to vector<1x2x64xf32>
    tpu.vector_store %arg23[%c4_170, %c0_171, %c0_172], %374 {strides = array<i32>} : memref<8x2x64xf32, #tpu.memory_space<vmem>>, vector<1x2x64xf32>,
    %c3_173 = arith.constant 3 : index
    %c0_174 = arith.constant 0 : index
    %c0_175 = arith.constant 0 : index
    %375 = vector.load %arg24[%c3_173, %c0_174, %c0_175] : memref<8x2x64xf32, #tpu.memory_space<vmem>>, vector<1x2x64xf32>
    %376 = vector.shape_cast %375 : vector<1x2x64xf32> to vector<2x64xf32>
    %377 = vector.shape_cast %371 : vector<2x64xf32> to vector<1x2x64xf32>
    tpu.vector_store %arg24[%c3_173, %c0_174, %c0_175], %377 {strides = array<i32>} : memref<8x2x64xf32, #tpu.memory_space<vmem>>, vector<1x2x64xf32>,
    %c5_176 = arith.constant 5 : index
    %c0_177 = arith.constant 0 : index
    %c0_178 = arith.constant 0 : index
    %378 = vector.load %arg22[%c5_176, %c0_177, %c0_178] : memref<8x2x256xf32, #tpu.memory_space<vmem>>, vector<1x2x256xf32>
    %379 = vector.shape_cast %378 : vector<1x2x256xf32> to vector<2x256xf32>
    %cst_179 = arith.constant dense<0.000000e+00> : vector<2x256xf32>
    %380 = tpu.matmul %371, %245, %cst_179 {dimension_numbers = #tpu.dot_dimension_numbers<[1], [0], [0], [1], [0, 0, 1, 1], [], []>} : vector<2x64xf32>, vector<64x256xf32>, vector<2x256xf32> -> vector<2x256xf32>
    %381 = arith.addf %379, %380 : vector<2x256xf32>
    %382 = vector.extract_strided_slice %381 {offsets = [0, 0], sizes = [2, 64], strides = [1, 1]} : vector<2x256xf32> to vector<2x64xf32>
    %383 = math.tanh %382 : vector<2x64xf32>
    %384 = vector.extract_strided_slice %381 {offsets = [0, 64], sizes = [2, 192], strides = [1, 1]} : vector<2x256xf32> to vector<2x192xf32>
    %385 = arith.negf %384 : vector<2x192xf32>
    %386 = math.exp %385 : vector<2x192xf32>
    %cst_180 = arith.constant 1.000000e+00 : f32
    %387 = vector.broadcast %cst_180 : f32 to vector<2x192xf32>
    %388 = arith.addf %387, %386 : vector<2x192xf32>
    %389 = arith.divf %387, %388 : vector<2x192xf32>
    %390 = vector.extract_strided_slice %389 {offsets = [0, 0], sizes = [2, 64], strides = [1, 1]} : vector<2x192xf32> to vector<2x64xf32>
    %391 = vector.extract_strided_slice %389 {offsets = [0, 64], sizes = [2, 64], strides = [1, 1]} : vector<2x192xf32> to vector<2x64xf32>
    %392 = vector.extract_strided_slice %389 {offsets = [0, 128], sizes = [2, 64], strides = [1, 1]} : vector<2x192xf32> to vector<2x64xf32>
    %393 = arith.mulf %391, %369 : vector<2x64xf32>
    %394 = arith.mulf %390, %383 : vector<2x64xf32>
    %395 = arith.addf %393, %394 : vector<2x64xf32>
    %396 = math.tanh %395 : vector<2x64xf32>
    %397 = arith.mulf %392, %396 : vector<2x64xf32>
    %c5_181 = arith.constant 5 : index
    %c0_182 = arith.constant 0 : index
    %c0_183 = arith.constant 0 : index
    %398 = vector.load %arg23[%c5_181, %c0_182, %c0_183] : memref<8x2x64xf32, #tpu.memory_space<vmem>>, vector<1x2x64xf32>
    %399 = vector.shape_cast %398 : vector<1x2x64xf32> to vector<2x64xf32>
    %400 = vector.shape_cast %397 : vector<2x64xf32> to vector<1x2x64xf32>
    tpu.vector_store %arg23[%c5_181, %c0_182, %c0_183], %400 {strides = array<i32>} : memref<8x2x64xf32, #tpu.memory_space<vmem>>, vector<1x2x64xf32>,
    %c2_184 = arith.constant 2 : index
    %c0_185 = arith.constant 0 : index
    %c0_186 = arith.constant 0 : index
    %401 = vector.load %arg24[%c2_184, %c0_185, %c0_186] : memref<8x2x64xf32, #tpu.memory_space<vmem>>, vector<1x2x64xf32>
    %402 = vector.shape_cast %401 : vector<1x2x64xf32> to vector<2x64xf32>
    %403 = vector.shape_cast %397 : vector<2x64xf32> to vector<1x2x64xf32>
    tpu.vector_store %arg24[%c2_184, %c0_185, %c0_186], %403 {strides = array<i32>} : memref<8x2x64xf32, #tpu.memory_space<vmem>>, vector<1x2x64xf32>,
    %c6_187 = arith.constant 6 : index
    %c0_188 = arith.constant 0 : index
    %c0_189 = arith.constant 0 : index
    %404 = vector.load %arg22[%c6_187, %c0_188, %c0_189] : memref<8x2x256xf32, #tpu.memory_space<vmem>>, vector<1x2x256xf32>
    %405 = vector.shape_cast %404 : vector<1x2x256xf32> to vector<2x256xf32>
    %cst_190 = arith.constant dense<0.000000e+00> : vector<2x256xf32>
    %406 = tpu.matmul %397, %245, %cst_190 {dimension_numbers = #tpu.dot_dimension_numbers<[1], [0], [0], [1], [0, 0, 1, 1], [], []>} : vector<2x64xf32>, vector<64x256xf32>, vector<2x256xf32> -> vector<2x256xf32>
    %407 = arith.addf %405, %406 : vector<2x256xf32>
    %408 = vector.extract_strided_slice %407 {offsets = [0, 0], sizes = [2, 64], strides = [1, 1]} : vector<2x256xf32> to vector<2x64xf32>
    %409 = math.tanh %408 : vector<2x64xf32>
    %410 = vector.extract_strided_slice %407 {offsets = [0, 64], sizes = [2, 192], strides = [1, 1]} : vector<2x256xf32> to vector<2x192xf32>
    %411 = arith.negf %410 : vector<2x192xf32>
    %412 = math.exp %411 : vector<2x192xf32>
    %cst_191 = arith.constant 1.000000e+00 : f32
    %413 = vector.broadcast %cst_191 : f32 to vector<2x192xf32>
    %414 = arith.addf %413, %412 : vector<2x192xf32>
    %415 = arith.divf %413, %414 : vector<2x192xf32>
    %416 = vector.extract_strided_slice %415 {offsets = [0, 0], sizes = [2, 64], strides = [1, 1]} : vector<2x192xf32> to vector<2x64xf32>
    %417 = vector.extract_strided_slice %415 {offsets = [0, 64], sizes = [2, 64], strides = [1, 1]} : vector<2x192xf32> to vector<2x64xf32>
    %418 = vector.extract_strided_slice %415 {offsets = [0, 128], sizes = [2, 64], strides = [1, 1]} : vector<2x192xf32> to vector<2x64xf32>
    %419 = arith.mulf %417, %395 : vector<2x64xf32>
    %420 = arith.mulf %416, %409 : vector<2x64xf32>
    %421 = arith.addf %419, %420 : vector<2x64xf32>
    %422 = math.tanh %421 : vector<2x64xf32>
    %423 = arith.mulf %418, %422 : vector<2x64xf32>
    %c6_192 = arith.constant 6 : index
    %c0_193 = arith.constant 0 : index
    %c0_194 = arith.constant 0 : index
    %424 = vector.load %arg23[%c6_192, %c0_193, %c0_194] : memref<8x2x64xf32, #tpu.memory_space<vmem>>, vector<1x2x64xf32>
    %425 = vector.shape_cast %424 : vector<1x2x64xf32> to vector<2x64xf32>
    %426 = vector.shape_cast %423 : vector<2x64xf32> to vector<1x2x64xf32>
    tpu.vector_store %arg23[%c6_192, %c0_193, %c0_194], %426 {strides = array<i32>} : memref<8x2x64xf32, #tpu.memory_space<vmem>>, vector<1x2x64xf32>,
    %c1_195 = arith.constant 1 : index
    %c0_196 = arith.constant 0 : index
    %c0_197 = arith.constant 0 : index
    %427 = vector.load %arg24[%c1_195, %c0_196, %c0_197] : memref<8x2x64xf32, #tpu.memory_space<vmem>>, vector<1x2x64xf32>
    %428 = vector.shape_cast %427 : vector<1x2x64xf32> to vector<2x64xf32>
    %429 = vector.shape_cast %423 : vector<2x64xf32> to vector<1x2x64xf32>
    tpu.vector_store %arg24[%c1_195, %c0_196, %c0_197], %429 {strides = array<i32>} : memref<8x2x64xf32, #tpu.memory_space<vmem>>, vector<1x2x64xf32>,
    %c7_198 = arith.constant 7 : index
    %c0_199 = arith.constant 0 : index
    %c0_200 = arith.constant 0 : index
    %430 = vector.load %arg22[%c7_198, %c0_199, %c0_200] : memref<8x2x256xf32, #tpu.memory_space<vmem>>, vector<1x2x256xf32>
    %431 = vector.shape_cast %430 : vector<1x2x256xf32> to vector<2x256xf32>
    %cst_201 = arith.constant dense<0.000000e+00> : vector<2x256xf32>
    %432 = tpu.matmul %423, %245, %cst_201 {dimension_numbers = #tpu.dot_dimension_numbers<[1], [0], [0], [1], [0, 0, 1, 1], [], []>} : vector<2x64xf32>, vector<64x256xf32>, vector<2x256xf32> -> vector<2x256xf32>
    %433 = arith.addf %431, %432 : vector<2x256xf32>
    %434 = vector.extract_strided_slice %433 {offsets = [0, 0], sizes = [2, 64], strides = [1, 1]} : vector<2x256xf32> to vector<2x64xf32>
    %435 = math.tanh %434 : vector<2x64xf32>
    %436 = vector.extract_strided_slice %433 {offsets = [0, 64], sizes = [2, 192], strides = [1, 1]} : vector<2x256xf32> to vector<2x192xf32>
    %437 = arith.negf %436 : vector<2x192xf32>
    %438 = math.exp %437 : vector<2x192xf32>
    %cst_202 = arith.constant 1.000000e+00 : f32
    %439 = vector.broadcast %cst_202 : f32 to vector<2x192xf32>
    %440 = arith.addf %439, %438 : vector<2x192xf32>
    %441 = arith.divf %439, %440 : vector<2x192xf32>
    %442 = vector.extract_strided_slice %441 {offsets = [0, 0], sizes = [2, 64], strides = [1, 1]} : vector<2x192xf32> to vector<2x64xf32>
    %443 = vector.extract_strided_slice %441 {offsets = [0, 64], sizes = [2, 64], strides = [1, 1]} : vector<2x192xf32> to vector<2x64xf32>
    %444 = vector.extract_strided_slice %441 {offsets = [0, 128], sizes = [2, 64], strides = [1, 1]} : vector<2x192xf32> to vector<2x64xf32>
    %445 = arith.mulf %443, %421 : vector<2x64xf32>
    %446 = arith.mulf %442, %435 : vector<2x64xf32>
    %447 = arith.addf %445, %446 : vector<2x64xf32>
    %448 = math.tanh %447 : vector<2x64xf32>
    %449 = arith.mulf %444, %448 : vector<2x64xf32>
    %c7_203 = arith.constant 7 : index
    %c0_204 = arith.constant 0 : index
    %c0_205 = arith.constant 0 : index
    %450 = vector.load %arg23[%c7_203, %c0_204, %c0_205] : memref<8x2x64xf32, #tpu.memory_space<vmem>>, vector<1x2x64xf32>
    %451 = vector.shape_cast %450 : vector<1x2x64xf32> to vector<2x64xf32>
    %452 = vector.shape_cast %449 : vector<2x64xf32> to vector<1x2x64xf32>
    tpu.vector_store %arg23[%c7_203, %c0_204, %c0_205], %452 {strides = array<i32>} : memref<8x2x64xf32, #tpu.memory_space<vmem>>, vector<1x2x64xf32>,
    %c0_206 = arith.constant 0 : index
    %c0_207 = arith.constant 0 : index
    %c0_208 = arith.constant 0 : index
    %453 = vector.load %arg24[%c0_206, %c0_207, %c0_208] : memref<8x2x64xf32, #tpu.memory_space<vmem>>, vector<1x2x64xf32>
    %454 = vector.shape_cast %453 : vector<1x2x64xf32> to vector<2x64xf32>
    %455 = vector.shape_cast %449 : vector<2x64xf32> to vector<1x2x64xf32>
    tpu.vector_store %arg24[%c0_206, %c0_207, %c0_208], %455 {strides = array<i32>} : memref<8x2x64xf32, #tpu.memory_space<vmem>>, vector<1x2x64xf32>,
    %c0_209 = arith.constant 0 : index
    %c0_210 = arith.constant 0 : index
    %c0_211 = arith.constant 0 : index
    %456 = vector.load %arg23[%c0_209, %c0_210, %c0_211] : memref<8x2x64xf32, #tpu.memory_space<vmem>>, vector<8x2x64xf32>
    %c0_212 = arith.constant 0 : index
    %c0_213 = arith.constant 0 : index
    %c0_214 = arith.constant 0 : index
    %457 = vector.load %arg24[%c0_212, %c0_213, %c0_214] : memref<8x2x64xf32, #tpu.memory_space<vmem>>, vector<8x2x64xf32>
    %458 = tpu.concatenate %456, %457 in 2 : vector<8x2x64xf32>, vector<8x2x64xf32> -> vector<8x2x128xf32>
    %459 = vector.shape_cast %458 : vector<8x2x128xf32> to vector<16x128xf32>
    %c1_215 = arith.constant 1 : index
    %c0_216 = arith.constant 0 : index
    %c0_217 = arith.constant 0 : index
    %460 = vector.load %arg4[%c1_215, %c0_216, %c0_217] : memref<2x128x256xf32, #tpu.memory_space<vmem>>, vector<1x128x256xf32>
    %461 = vector.shape_cast %460 : vector<1x128x256xf32> to vector<128x256xf32>
    %cst_218 = arith.constant dense<0.000000e+00> : vector<16x256xf32>
    %462 = tpu.matmul %459, %461, %cst_218 {dimension_numbers = #tpu.dot_dimension_numbers<[1], [0], [0], [1], [0, 0, 1, 1], [], []>} : vector<16x128xf32>, vector<128x256xf32>, vector<16x256xf32> -> vector<16x256xf32>
    %c2_219 = arith.constant 2 : index
    %c0_220 = arith.constant 0 : index
    %c0_221 = arith.constant 0 : index
    %463 = vector.load %arg6[%c2_219, %c0_220, %c0_221] : memref<3x1x256xf32, #tpu.memory_space<vmem>>, vector<1x1x256xf32>
    %464 = vector.shape_cast %463 : vector<1x1x256xf32> to vector<1x256xf32>
    %465 = vector.broadcast %464 : vector<1x256xf32> to vector<16x256xf32>
    %466 = arith.addf %462, %465 : vector<16x256xf32>
    %467 = vector.shape_cast %466 : vector<16x256xf32> to vector<8x2x256xf32>
    %c0_222 = arith.constant 0 : index
    %c0_223 = arith.constant 0 : index
    %c0_224 = arith.constant 0 : index
    %468 = vector.load %arg22[%c0_222, %c0_223, %c0_224] : memref<8x2x256xf32, #tpu.memory_space<vmem>>, vector<8x2x256xf32>
    tpu.vector_store %arg22[%c0_222, %c0_223, %c0_224], %467 {strides = array<i32>} : memref<8x2x256xf32, #tpu.memory_space<vmem>>, vector<8x2x256xf32>,
    %c2_225 = arith.constant 2 : index
    %c0_226 = arith.constant 0 : index
    %c0_227 = arith.constant 0 : index
    %469 = vector.load %arg5[%c2_225, %c0_226, %c0_227] : memref<3x64x256xf32, #tpu.memory_space<vmem>>, vector<1x64x256xf32>
    %470 = vector.shape_cast %469 : vector<1x64x256xf32> to vector<64x256xf32>
    %cst_228 = arith.constant 0.000000e+00 : f32
    %471 = vector.broadcast %cst_228 : f32 to vector<2x64xf32>
    %cst_229 = arith.constant 0.000000e+00 : f32
    %472 = vector.broadcast %cst_229 : f32 to vector<2x64xf32>
    %c0_230 = arith.constant 0 : index
    %c0_231 = arith.constant 0 : index
    %c0_232 = arith.constant 0 : index
    %473 = vector.load %arg22[%c0_230, %c0_231, %c0_232] : memref<8x2x256xf32, #tpu.memory_space<vmem>>, vector<1x2x256xf32>
    %474 = vector.shape_cast %473 : vector<1x2x256xf32> to vector<2x256xf32>
    %cst_233 = arith.constant dense<0.000000e+00> : vector<2x256xf32>
    %475 = tpu.matmul %471, %470, %cst_233 {dimension_numbers = #tpu.dot_dimension_numbers<[1], [0], [0], [1], [0, 0, 1, 1], [], []>} : vector<2x64xf32>, vector<64x256xf32>, vector<2x256xf32> -> vector<2x256xf32>
    %476 = arith.addf %474, %475 : vector<2x256xf32>
    %477 = vector.extract_strided_slice %476 {offsets = [0, 0], sizes = [2, 64], strides = [1, 1]} : vector<2x256xf32> to vector<2x64xf32>
    %478 = math.tanh %477 : vector<2x64xf32>
    %479 = vector.extract_strided_slice %476 {offsets = [0, 64], sizes = [2, 192], strides = [1, 1]} : vector<2x256xf32> to vector<2x192xf32>
    %480 = arith.negf %479 : vector<2x192xf32>
    %481 = math.exp %480 : vector<2x192xf32>
    %cst_234 = arith.constant 1.000000e+00 : f32
    %482 = vector.broadcast %cst_234 : f32 to vector<2x192xf32>
    %483 = arith.addf %482, %481 : vector<2x192xf32>
    %484 = arith.divf %482, %483 : vector<2x192xf32>
    %485 = vector.extract_strided_slice %484 {offsets = [0, 0], sizes = [2, 64], strides = [1, 1]} : vector<2x192xf32> to vector<2x64xf32>
    %486 = vector.extract_strided_slice %484 {offsets = [0, 64], sizes = [2, 64], strides = [1, 1]} : vector<2x192xf32> to vector<2x64xf32>
    %487 = vector.extract_strided_slice %484 {offsets = [0, 128], sizes = [2, 64], strides = [1, 1]} : vector<2x192xf32> to vector<2x64xf32>
    %488 = arith.mulf %486, %472 : vector<2x64xf32>
    %489 = arith.mulf %485, %478 : vector<2x64xf32>
    %490 = arith.addf %488, %489 : vector<2x64xf32>
    %491 = math.tanh %490 : vector<2x64xf32>
    %492 = arith.mulf %487, %491 : vector<2x64xf32>
    %c0_235 = arith.constant 0 : index
    %c0_236 = arith.constant 0 : index
    %c0_237 = arith.constant 0 : index
    %493 = vector.load %arg23[%c0_235, %c0_236, %c0_237] : memref<8x2x64xf32, #tpu.memory_space<vmem>>, vector<1x2x64xf32>
    %494 = vector.shape_cast %493 : vector<1x2x64xf32> to vector<2x64xf32>
    %495 = vector.shape_cast %492 : vector<2x64xf32> to vector<1x2x64xf32>
    tpu.vector_store %arg23[%c0_235, %c0_236, %c0_237], %495 {strides = array<i32>} : memref<8x2x64xf32, #tpu.memory_space<vmem>>, vector<1x2x64xf32>,
    %c7_238 = arith.constant 7 : index
    %c0_239 = arith.constant 0 : index
    %c0_240 = arith.constant 0 : index
    %496 = vector.load %arg24[%c7_238, %c0_239, %c0_240] : memref<8x2x64xf32, #tpu.memory_space<vmem>>, vector<1x2x64xf32>
    %497 = vector.shape_cast %496 : vector<1x2x64xf32> to vector<2x64xf32>
    %498 = vector.shape_cast %492 : vector<2x64xf32> to vector<1x2x64xf32>
    tpu.vector_store %arg24[%c7_238, %c0_239, %c0_240], %498 {strides = array<i32>} : memref<8x2x64xf32, #tpu.memory_space<vmem>>, vector<1x2x64xf32>,
    %c1_241 = arith.constant 1 : index
    %c0_242 = arith.constant 0 : index
    %c0_243 = arith.constant 0 : index
    %499 = vector.load %arg22[%c1_241, %c0_242, %c0_243] : memref<8x2x256xf32, #tpu.memory_space<vmem>>, vector<1x2x256xf32>
    %500 = vector.shape_cast %499 : vector<1x2x256xf32> to vector<2x256xf32>
    %cst_244 = arith.constant dense<0.000000e+00> : vector<2x256xf32>
    %501 = tpu.matmul %492, %470, %cst_244 {dimension_numbers = #tpu.dot_dimension_numbers<[1], [0], [0], [1], [0, 0, 1, 1], [], []>} : vector<2x64xf32>, vector<64x256xf32>, vector<2x256xf32> -> vector<2x256xf32>
    %502 = arith.addf %500, %501 : vector<2x256xf32>
    %503 = vector.extract_strided_slice %502 {offsets = [0, 0], sizes = [2, 64], strides = [1, 1]} : vector<2x256xf32> to vector<2x64xf32>
    %504 = math.tanh %503 : vector<2x64xf32>
    %505 = vector.extract_strided_slice %502 {offsets = [0, 64], sizes = [2, 192], strides = [1, 1]} : vector<2x256xf32> to vector<2x192xf32>
    %506 = arith.negf %505 : vector<2x192xf32>
    %507 = math.exp %506 : vector<2x192xf32>
    %cst_245 = arith.constant 1.000000e+00 : f32
    %508 = vector.broadcast %cst_245 : f32 to vector<2x192xf32>
    %509 = arith.addf %508, %507 : vector<2x192xf32>
    %510 = arith.divf %508, %509 : vector<2x192xf32>
    %511 = vector.extract_strided_slice %510 {offsets = [0, 0], sizes = [2, 64], strides = [1, 1]} : vector<2x192xf32> to vector<2x64xf32>
    %512 = vector.extract_strided_slice %510 {offsets = [0, 64], sizes = [2, 64], strides = [1, 1]} : vector<2x192xf32> to vector<2x64xf32>
    %513 = vector.extract_strided_slice %510 {offsets = [0, 128], sizes = [2, 64], strides = [1, 1]} : vector<2x192xf32> to vector<2x64xf32>
    %514 = arith.mulf %512, %490 : vector<2x64xf32>
    %515 = arith.mulf %511, %504 : vector<2x64xf32>
    %516 = arith.addf %514, %515 : vector<2x64xf32>
    %517 = math.tanh %516 : vector<2x64xf32>
    %518 = arith.mulf %513, %517 : vector<2x64xf32>
    %c1_246 = arith.constant 1 : index
    %c0_247 = arith.constant 0 : index
    %c0_248 = arith.constant 0 : index
    %519 = vector.load %arg23[%c1_246, %c0_247, %c0_248] : memref<8x2x64xf32, #tpu.memory_space<vmem>>, vector<1x2x64xf32>
    %520 = vector.shape_cast %519 : vector<1x2x64xf32> to vector<2x64xf32>
    %521 = vector.shape_cast %518 : vector<2x64xf32> to vector<1x2x64xf32>
    tpu.vector_store %arg23[%c1_246, %c0_247, %c0_248], %521 {strides = array<i32>} : memref<8x2x64xf32, #tpu.memory_space<vmem>>, vector<1x2x64xf32>,
    %c6_249 = arith.constant 6 : index
    %c0_250 = arith.constant 0 : index
    %c0_251 = arith.constant 0 : index
    %522 = vector.load %arg24[%c6_249, %c0_250, %c0_251] : memref<8x2x64xf32, #tpu.memory_space<vmem>>, vector<1x2x64xf32>
    %523 = vector.shape_cast %522 : vector<1x2x64xf32> to vector<2x64xf32>
    %524 = vector.shape_cast %518 : vector<2x64xf32> to vector<1x2x64xf32>
    tpu.vector_store %arg24[%c6_249, %c0_250, %c0_251], %524 {strides = array<i32>} : memref<8x2x64xf32, #tpu.memory_space<vmem>>, vector<1x2x64xf32>,
    %c2_252 = arith.constant 2 : index
    %c0_253 = arith.constant 0 : index
    %c0_254 = arith.constant 0 : index
    %525 = vector.load %arg22[%c2_252, %c0_253, %c0_254] : memref<8x2x256xf32, #tpu.memory_space<vmem>>, vector<1x2x256xf32>
    %526 = vector.shape_cast %525 : vector<1x2x256xf32> to vector<2x256xf32>
    %cst_255 = arith.constant dense<0.000000e+00> : vector<2x256xf32>
    %527 = tpu.matmul %518, %470, %cst_255 {dimension_numbers = #tpu.dot_dimension_numbers<[1], [0], [0], [1], [0, 0, 1, 1], [], []>} : vector<2x64xf32>, vector<64x256xf32>, vector<2x256xf32> -> vector<2x256xf32>
    %528 = arith.addf %526, %527 : vector<2x256xf32>
    %529 = vector.extract_strided_slice %528 {offsets = [0, 0], sizes = [2, 64], strides = [1, 1]} : vector<2x256xf32> to vector<2x64xf32>
    %530 = math.tanh %529 : vector<2x64xf32>
    %531 = vector.extract_strided_slice %528 {offsets = [0, 64], sizes = [2, 192], strides = [1, 1]} : vector<2x256xf32> to vector<2x192xf32>
    %532 = arith.negf %531 : vector<2x192xf32>
    %533 = math.exp %532 : vector<2x192xf32>
    %cst_256 = arith.constant 1.000000e+00 : f32
    %534 = vector.broadcast %cst_256 : f32 to vector<2x192xf32>
    %535 = arith.addf %534, %533 : vector<2x192xf32>
    %536 = arith.divf %534, %535 : vector<2x192xf32>
    %537 = vector.extract_strided_slice %536 {offsets = [0, 0], sizes = [2, 64], strides = [1, 1]} : vector<2x192xf32> to vector<2x64xf32>
    %538 = vector.extract_strided_slice %536 {offsets = [0, 64], sizes = [2, 64], strides = [1, 1]} : vector<2x192xf32> to vector<2x64xf32>
    %539 = vector.extract_strided_slice %536 {offsets = [0, 128], sizes = [2, 64], strides = [1, 1]} : vector<2x192xf32> to vector<2x64xf32>
    %540 = arith.mulf %538, %516 : vector<2x64xf32>
    %541 = arith.mulf %537, %530 : vector<2x64xf32>
    %542 = arith.addf %540, %541 : vector<2x64xf32>
    %543 = math.tanh %542 : vector<2x64xf32>
    %544 = arith.mulf %539, %543 : vector<2x64xf32>
    %c2_257 = arith.constant 2 : index
    %c0_258 = arith.constant 0 : index
    %c0_259 = arith.constant 0 : index
    %545 = vector.load %arg23[%c2_257, %c0_258, %c0_259] : memref<8x2x64xf32, #tpu.memory_space<vmem>>, vector<1x2x64xf32>
    %546 = vector.shape_cast %545 : vector<1x2x64xf32> to vector<2x64xf32>
    %547 = vector.shape_cast %544 : vector<2x64xf32> to vector<1x2x64xf32>
    tpu.vector_store %arg23[%c2_257, %c0_258, %c0_259], %547 {strides = array<i32>} : memref<8x2x64xf32, #tpu.memory_space<vmem>>, vector<1x2x64xf32>,
    %c5_260 = arith.constant 5 : index
    %c0_261 = arith.constant 0 : index
    %c0_262 = arith.constant 0 : index
    %548 = vector.load %arg24[%c5_260, %c0_261, %c0_262] : memref<8x2x64xf32, #tpu.memory_space<vmem>>, vector<1x2x64xf32>
    %549 = vector.shape_cast %548 : vector<1x2x64xf32> to vector<2x64xf32>
    %550 = vector.shape_cast %544 : vector<2x64xf32> to vector<1x2x64xf32>
    tpu.vector_store %arg24[%c5_260, %c0_261, %c0_262], %550 {strides = array<i32>} : memref<8x2x64xf32, #tpu.memory_space<vmem>>, vector<1x2x64xf32>,
    %c3_263 = arith.constant 3 : index
    %c0_264 = arith.constant 0 : index
    %c0_265 = arith.constant 0 : index
    %551 = vector.load %arg22[%c3_263, %c0_264, %c0_265] : memref<8x2x256xf32, #tpu.memory_space<vmem>>, vector<1x2x256xf32>
    %552 = vector.shape_cast %551 : vector<1x2x256xf32> to vector<2x256xf32>
    %cst_266 = arith.constant dense<0.000000e+00> : vector<2x256xf32>
    %553 = tpu.matmul %544, %470, %cst_266 {dimension_numbers = #tpu.dot_dimension_numbers<[1], [0], [0], [1], [0, 0, 1, 1], [], []>} : vector<2x64xf32>, vector<64x256xf32>, vector<2x256xf32> -> vector<2x256xf32>
    %554 = arith.addf %552, %553 : vector<2x256xf32>
    %555 = vector.extract_strided_slice %554 {offsets = [0, 0], sizes = [2, 64], strides = [1, 1]} : vector<2x256xf32> to vector<2x64xf32>
    %556 = math.tanh %555 : vector<2x64xf32>
    %557 = vector.extract_strided_slice %554 {offsets = [0, 64], sizes = [2, 192], strides = [1, 1]} : vector<2x256xf32> to vector<2x192xf32>
    %558 = arith.negf %557 : vector<2x192xf32>
    %559 = math.exp %558 : vector<2x192xf32>
    %cst_267 = arith.constant 1.000000e+00 : f32
    %560 = vector.broadcast %cst_267 : f32 to vector<2x192xf32>
    %561 = arith.addf %560, %559 : vector<2x192xf32>
    %562 = arith.divf %560, %561 : vector<2x192xf32>
    %563 = vector.extract_strided_slice %562 {offsets = [0, 0], sizes = [2, 64], strides = [1, 1]} : vector<2x192xf32> to vector<2x64xf32>
    %564 = vector.extract_strided_slice %562 {offsets = [0, 64], sizes = [2, 64], strides = [1, 1]} : vector<2x192xf32> to vector<2x64xf32>
    %565 = vector.extract_strided_slice %562 {offsets = [0, 128], sizes = [2, 64], strides = [1, 1]} : vector<2x192xf32> to vector<2x64xf32>
    %566 = arith.mulf %564, %542 : vector<2x64xf32>
    %567 = arith.mulf %563, %556 : vector<2x64xf32>
    %568 = arith.addf %566, %567 : vector<2x64xf32>
    %569 = math.tanh %568 : vector<2x64xf32>
    %570 = arith.mulf %565, %569 : vector<2x64xf32>
    %c3_268 = arith.constant 3 : index
    %c0_269 = arith.constant 0 : index
    %c0_270 = arith.constant 0 : index
    %571 = vector.load %arg23[%c3_268, %c0_269, %c0_270] : memref<8x2x64xf32, #tpu.memory_space<vmem>>, vector<1x2x64xf32>
    %572 = vector.shape_cast %571 : vector<1x2x64xf32> to vector<2x64xf32>
    %573 = vector.shape_cast %570 : vector<2x64xf32> to vector<1x2x64xf32>
    tpu.vector_store %arg23[%c3_268, %c0_269, %c0_270], %573 {strides = array<i32>} : memref<8x2x64xf32, #tpu.memory_space<vmem>>, vector<1x2x64xf32>,
    %c4_271 = arith.constant 4 : index
    %c0_272 = arith.constant 0 : index
    %c0_273 = arith.constant 0 : index
    %574 = vector.load %arg24[%c4_271, %c0_272, %c0_273] : memref<8x2x64xf32, #tpu.memory_space<vmem>>, vector<1x2x64xf32>
    %575 = vector.shape_cast %574 : vector<1x2x64xf32> to vector<2x64xf32>
    %576 = vector.shape_cast %570 : vector<2x64xf32> to vector<1x2x64xf32>
    tpu.vector_store %arg24[%c4_271, %c0_272, %c0_273], %576 {strides = array<i32>} : memref<8x2x64xf32, #tpu.memory_space<vmem>>, vector<1x2x64xf32>,
    %c4_274 = arith.constant 4 : index
    %c0_275 = arith.constant 0 : index
    %c0_276 = arith.constant 0 : index
    %577 = vector.load %arg22[%c4_274, %c0_275, %c0_276] : memref<8x2x256xf32, #tpu.memory_space<vmem>>, vector<1x2x256xf32>
    %578 = vector.shape_cast %577 : vector<1x2x256xf32> to vector<2x256xf32>
    %cst_277 = arith.constant dense<0.000000e+00> : vector<2x256xf32>
    %579 = tpu.matmul %570, %470, %cst_277 {dimension_numbers = #tpu.dot_dimension_numbers<[1], [0], [0], [1], [0, 0, 1, 1], [], []>} : vector<2x64xf32>, vector<64x256xf32>, vector<2x256xf32> -> vector<2x256xf32>
    %580 = arith.addf %578, %579 : vector<2x256xf32>
    %581 = vector.extract_strided_slice %580 {offsets = [0, 0], sizes = [2, 64], strides = [1, 1]} : vector<2x256xf32> to vector<2x64xf32>
    %582 = math.tanh %581 : vector<2x64xf32>
    %583 = vector.extract_strided_slice %580 {offsets = [0, 64], sizes = [2, 192], strides = [1, 1]} : vector<2x256xf32> to vector<2x192xf32>
    %584 = arith.negf %583 : vector<2x192xf32>
    %585 = math.exp %584 : vector<2x192xf32>
    %cst_278 = arith.constant 1.000000e+00 : f32
    %586 = vector.broadcast %cst_278 : f32 to vector<2x192xf32>
    %587 = arith.addf %586, %585 : vector<2x192xf32>
    %588 = arith.divf %586, %587 : vector<2x192xf32>
    %589 = vector.extract_strided_slice %588 {offsets = [0, 0], sizes = [2, 64], strides = [1, 1]} : vector<2x192xf32> to vector<2x64xf32>
    %590 = vector.extract_strided_slice %588 {offsets = [0, 64], sizes = [2, 64], strides = [1, 1]} : vector<2x192xf32> to vector<2x64xf32>
    %591 = vector.extract_strided_slice %588 {offsets = [0, 128], sizes = [2, 64], strides = [1, 1]} : vector<2x192xf32> to vector<2x64xf32>
    %592 = arith.mulf %590, %568 : vector<2x64xf32>
    %593 = arith.mulf %589, %582 : vector<2x64xf32>
    %594 = arith.addf %592, %593 : vector<2x64xf32>
    %595 = math.tanh %594 : vector<2x64xf32>
    %596 = arith.mulf %591, %595 : vector<2x64xf32>
    %c4_279 = arith.constant 4 : index
    %c0_280 = arith.constant 0 : index
    %c0_281 = arith.constant 0 : index
    %597 = vector.load %arg23[%c4_279, %c0_280, %c0_281] : memref<8x2x64xf32, #tpu.memory_space<vmem>>, vector<1x2x64xf32>
    %598 = vector.shape_cast %597 : vector<1x2x64xf32> to vector<2x64xf32>
    %599 = vector.shape_cast %596 : vector<2x64xf32> to vector<1x2x64xf32>
    tpu.vector_store %arg23[%c4_279, %c0_280, %c0_281], %599 {strides = array<i32>} : memref<8x2x64xf32, #tpu.memory_space<vmem>>, vector<1x2x64xf32>,
    %c3_282 = arith.constant 3 : index
    %c0_283 = arith.constant 0 : index
    %c0_284 = arith.constant 0 : index
    %600 = vector.load %arg24[%c3_282, %c0_283, %c0_284] : memref<8x2x64xf32, #tpu.memory_space<vmem>>, vector<1x2x64xf32>
    %601 = vector.shape_cast %600 : vector<1x2x64xf32> to vector<2x64xf32>
    %602 = vector.shape_cast %596 : vector<2x64xf32> to vector<1x2x64xf32>
    tpu.vector_store %arg24[%c3_282, %c0_283, %c0_284], %602 {strides = array<i32>} : memref<8x2x64xf32, #tpu.memory_space<vmem>>, vector<1x2x64xf32>,
    %c5_285 = arith.constant 5 : index
    %c0_286 = arith.constant 0 : index
    %c0_287 = arith.constant 0 : index
    %603 = vector.load %arg22[%c5_285, %c0_286, %c0_287] : memref<8x2x256xf32, #tpu.memory_space<vmem>>, vector<1x2x256xf32>
    %604 = vector.shape_cast %603 : vector<1x2x256xf32> to vector<2x256xf32>
    %cst_288 = arith.constant dense<0.000000e+00> : vector<2x256xf32>
    %605 = tpu.matmul %596, %470, %cst_288 {dimension_numbers = #tpu.dot_dimension_numbers<[1], [0], [0], [1], [0, 0, 1, 1], [], []>} : vector<2x64xf32>, vector<64x256xf32>, vector<2x256xf32> -> vector<2x256xf32>
    %606 = arith.addf %604, %605 : vector<2x256xf32>
    %607 = vector.extract_strided_slice %606 {offsets = [0, 0], sizes = [2, 64], strides = [1, 1]} : vector<2x256xf32> to vector<2x64xf32>
    %608 = math.tanh %607 : vector<2x64xf32>
    %609 = vector.extract_strided_slice %606 {offsets = [0, 64], sizes = [2, 192], strides = [1, 1]} : vector<2x256xf32> to vector<2x192xf32>
    %610 = arith.negf %609 : vector<2x192xf32>
    %611 = math.exp %610 : vector<2x192xf32>
    %cst_289 = arith.constant 1.000000e+00 : f32
    %612 = vector.broadcast %cst_289 : f32 to vector<2x192xf32>
    %613 = arith.addf %612, %611 : vector<2x192xf32>
    %614 = arith.divf %612, %613 : vector<2x192xf32>
    %615 = vector.extract_strided_slice %614 {offsets = [0, 0], sizes = [2, 64], strides = [1, 1]} : vector<2x192xf32> to vector<2x64xf32>
    %616 = vector.extract_strided_slice %614 {offsets = [0, 64], sizes = [2, 64], strides = [1, 1]} : vector<2x192xf32> to vector<2x64xf32>
    %617 = vector.extract_strided_slice %614 {offsets = [0, 128], sizes = [2, 64], strides = [1, 1]} : vector<2x192xf32> to vector<2x64xf32>
    %618 = arith.mulf %616, %594 : vector<2x64xf32>
    %619 = arith.mulf %615, %608 : vector<2x64xf32>
    %620 = arith.addf %618, %619 : vector<2x64xf32>
    %621 = math.tanh %620 : vector<2x64xf32>
    %622 = arith.mulf %617, %621 : vector<2x64xf32>
    %c5_290 = arith.constant 5 : index
    %c0_291 = arith.constant 0 : index
    %c0_292 = arith.constant 0 : index
    %623 = vector.load %arg23[%c5_290, %c0_291, %c0_292] : memref<8x2x64xf32, #tpu.memory_space<vmem>>, vector<1x2x64xf32>
    %624 = vector.shape_cast %623 : vector<1x2x64xf32> to vector<2x64xf32>
    %625 = vector.shape_cast %622 : vector<2x64xf32> to vector<1x2x64xf32>
    tpu.vector_store %arg23[%c5_290, %c0_291, %c0_292], %625 {strides = array<i32>} : memref<8x2x64xf32, #tpu.memory_space<vmem>>, vector<1x2x64xf32>,
    %c2_293 = arith.constant 2 : index
    %c0_294 = arith.constant 0 : index
    %c0_295 = arith.constant 0 : index
    %626 = vector.load %arg24[%c2_293, %c0_294, %c0_295] : memref<8x2x64xf32, #tpu.memory_space<vmem>>, vector<1x2x64xf32>
    %627 = vector.shape_cast %626 : vector<1x2x64xf32> to vector<2x64xf32>
    %628 = vector.shape_cast %622 : vector<2x64xf32> to vector<1x2x64xf32>
    tpu.vector_store %arg24[%c2_293, %c0_294, %c0_295], %628 {strides = array<i32>} : memref<8x2x64xf32, #tpu.memory_space<vmem>>, vector<1x2x64xf32>,
    %c6_296 = arith.constant 6 : index
    %c0_297 = arith.constant 0 : index
    %c0_298 = arith.constant 0 : index
    %629 = vector.load %arg22[%c6_296, %c0_297, %c0_298] : memref<8x2x256xf32, #tpu.memory_space<vmem>>, vector<1x2x256xf32>
    %630 = vector.shape_cast %629 : vector<1x2x256xf32> to vector<2x256xf32>
    %cst_299 = arith.constant dense<0.000000e+00> : vector<2x256xf32>
    %631 = tpu.matmul %622, %470, %cst_299 {dimension_numbers = #tpu.dot_dimension_numbers<[1], [0], [0], [1], [0, 0, 1, 1], [], []>} : vector<2x64xf32>, vector<64x256xf32>, vector<2x256xf32> -> vector<2x256xf32>
    %632 = arith.addf %630, %631 : vector<2x256xf32>
    %633 = vector.extract_strided_slice %632 {offsets = [0, 0], sizes = [2, 64], strides = [1, 1]} : vector<2x256xf32> to vector<2x64xf32>
    %634 = math.tanh %633 : vector<2x64xf32>
    %635 = vector.extract_strided_slice %632 {offsets = [0, 64], sizes = [2, 192], strides = [1, 1]} : vector<2x256xf32> to vector<2x192xf32>
    %636 = arith.negf %635 : vector<2x192xf32>
    %637 = math.exp %636 : vector<2x192xf32>
    %cst_300 = arith.constant 1.000000e+00 : f32
    %638 = vector.broadcast %cst_300 : f32 to vector<2x192xf32>
    %639 = arith.addf %638, %637 : vector<2x192xf32>
    %640 = arith.divf %638, %639 : vector<2x192xf32>
    %641 = vector.extract_strided_slice %640 {offsets = [0, 0], sizes = [2, 64], strides = [1, 1]} : vector<2x192xf32> to vector<2x64xf32>
    %642 = vector.extract_strided_slice %640 {offsets = [0, 64], sizes = [2, 64], strides = [1, 1]} : vector<2x192xf32> to vector<2x64xf32>
    %643 = vector.extract_strided_slice %640 {offsets = [0, 128], sizes = [2, 64], strides = [1, 1]} : vector<2x192xf32> to vector<2x64xf32>
    %644 = arith.mulf %642, %620 : vector<2x64xf32>
    %645 = arith.mulf %641, %634 : vector<2x64xf32>
    %646 = arith.addf %644, %645 : vector<2x64xf32>
    %647 = math.tanh %646 : vector<2x64xf32>
    %648 = arith.mulf %643, %647 : vector<2x64xf32>
    %c6_301 = arith.constant 6 : index
    %c0_302 = arith.constant 0 : index
    %c0_303 = arith.constant 0 : index
    %649 = vector.load %arg23[%c6_301, %c0_302, %c0_303] : memref<8x2x64xf32, #tpu.memory_space<vmem>>, vector<1x2x64xf32>
    %650 = vector.shape_cast %649 : vector<1x2x64xf32> to vector<2x64xf32>
    %651 = vector.shape_cast %648 : vector<2x64xf32> to vector<1x2x64xf32>
    tpu.vector_store %arg23[%c6_301, %c0_302, %c0_303], %651 {strides = array<i32>} : memref<8x2x64xf32, #tpu.memory_space<vmem>>, vector<1x2x64xf32>,
    %c1_304 = arith.constant 1 : index
    %c0_305 = arith.constant 0 : index
    %c0_306 = arith.constant 0 : index
    %652 = vector.load %arg24[%c1_304, %c0_305, %c0_306] : memref<8x2x64xf32, #tpu.memory_space<vmem>>, vector<1x2x64xf32>
    %653 = vector.shape_cast %652 : vector<1x2x64xf32> to vector<2x64xf32>
    %654 = vector.shape_cast %648 : vector<2x64xf32> to vector<1x2x64xf32>
    tpu.vector_store %arg24[%c1_304, %c0_305, %c0_306], %654 {strides = array<i32>} : memref<8x2x64xf32, #tpu.memory_space<vmem>>, vector<1x2x64xf32>,
    %c7_307 = arith.constant 7 : index
    %c0_308 = arith.constant 0 : index
    %c0_309 = arith.constant 0 : index
    %655 = vector.load %arg22[%c7_307, %c0_308, %c0_309] : memref<8x2x256xf32, #tpu.memory_space<vmem>>, vector<1x2x256xf32>
    %656 = vector.shape_cast %655 : vector<1x2x256xf32> to vector<2x256xf32>
    %cst_310 = arith.constant dense<0.000000e+00> : vector<2x256xf32>
    %657 = tpu.matmul %648, %470, %cst_310 {dimension_numbers = #tpu.dot_dimension_numbers<[1], [0], [0], [1], [0, 0, 1, 1], [], []>} : vector<2x64xf32>, vector<64x256xf32>, vector<2x256xf32> -> vector<2x256xf32>
    %658 = arith.addf %656, %657 : vector<2x256xf32>
    %659 = vector.extract_strided_slice %658 {offsets = [0, 0], sizes = [2, 64], strides = [1, 1]} : vector<2x256xf32> to vector<2x64xf32>
    %660 = math.tanh %659 : vector<2x64xf32>
    %661 = vector.extract_strided_slice %658 {offsets = [0, 64], sizes = [2, 192], strides = [1, 1]} : vector<2x256xf32> to vector<2x192xf32>
    %662 = arith.negf %661 : vector<2x192xf32>
    %663 = math.exp %662 : vector<2x192xf32>
    %cst_311 = arith.constant 1.000000e+00 : f32
    %664 = vector.broadcast %cst_311 : f32 to vector<2x192xf32>
    %665 = arith.addf %664, %663 : vector<2x192xf32>
    %666 = arith.divf %664, %665 : vector<2x192xf32>
    %667 = vector.extract_strided_slice %666 {offsets = [0, 0], sizes = [2, 64], strides = [1, 1]} : vector<2x192xf32> to vector<2x64xf32>
    %668 = vector.extract_strided_slice %666 {offsets = [0, 64], sizes = [2, 64], strides = [1, 1]} : vector<2x192xf32> to vector<2x64xf32>
    %669 = vector.extract_strided_slice %666 {offsets = [0, 128], sizes = [2, 64], strides = [1, 1]} : vector<2x192xf32> to vector<2x64xf32>
    %670 = arith.mulf %668, %646 : vector<2x64xf32>
    %671 = arith.mulf %667, %660 : vector<2x64xf32>
    %672 = arith.addf %670, %671 : vector<2x64xf32>
    %673 = math.tanh %672 : vector<2x64xf32>
    %674 = arith.mulf %669, %673 : vector<2x64xf32>
    %c7_312 = arith.constant 7 : index
    %c0_313 = arith.constant 0 : index
    %c0_314 = arith.constant 0 : index
    %675 = vector.load %arg23[%c7_312, %c0_313, %c0_314] : memref<8x2x64xf32, #tpu.memory_space<vmem>>, vector<1x2x64xf32>
    %676 = vector.shape_cast %675 : vector<1x2x64xf32> to vector<2x64xf32>
    %677 = vector.shape_cast %674 : vector<2x64xf32> to vector<1x2x64xf32>
    tpu.vector_store %arg23[%c7_312, %c0_313, %c0_314], %677 {strides = array<i32>} : memref<8x2x64xf32, #tpu.memory_space<vmem>>, vector<1x2x64xf32>,
    %c0_315 = arith.constant 0 : index
    %c0_316 = arith.constant 0 : index
    %c0_317 = arith.constant 0 : index
    %678 = vector.load %arg24[%c0_315, %c0_316, %c0_317] : memref<8x2x64xf32, #tpu.memory_space<vmem>>, vector<1x2x64xf32>
    %679 = vector.shape_cast %678 : vector<1x2x64xf32> to vector<2x64xf32>
    %680 = vector.shape_cast %674 : vector<2x64xf32> to vector<1x2x64xf32>
    tpu.vector_store %arg24[%c0_315, %c0_316, %c0_317], %680 {strides = array<i32>} : memref<8x2x64xf32, #tpu.memory_space<vmem>>, vector<1x2x64xf32>,
    %c0_318 = arith.constant 0 : index
    %c0_319 = arith.constant 0 : index
    %c0_320 = arith.constant 0 : index
    %681 = vector.load %arg23[%c0_318, %c0_319, %c0_320] : memref<8x2x64xf32, #tpu.memory_space<vmem>>, vector<8x2x64xf32>
    %682 = vector.extract_strided_slice %681 {offsets = [0, 0, 0], sizes = [8, 2, 32], strides = [1, 1, 1]} : vector<8x2x64xf32> to vector<8x2x32xf32>
    %c0_321 = arith.constant 0 : index
    %c0_322 = arith.constant 0 : index
    %c0_323 = arith.constant 0 : index
    %683 = vector.load %arg24[%c0_321, %c0_322, %c0_323] : memref<8x2x64xf32, #tpu.memory_space<vmem>>, vector<8x2x64xf32>
    %684 = vector.extract_strided_slice %683 {offsets = [0, 0, 32], sizes = [8, 2, 32], strides = [1, 1, 1]} : vector<8x2x64xf32> to vector<8x2x32xf32>
    %685 = tpu.concatenate %682, %684 in 2 : vector<8x2x32xf32>, vector<8x2x32xf32> -> vector<8x2x64xf32>
    %c0_324 = arith.constant 0 : index
    %c0_325 = arith.constant 0 : index
    %686 = vector.load %arg7[%c0_324, %c0_325] : memref<64x192xf32, #tpu.memory_space<vmem>>, vector<64x192xf32>
    %c0_326 = arith.constant 0 : index
    %c0_327 = arith.constant 0 : index
    %687 = vector.load %arg8[%c0_326, %c0_327] : memref<1x192xf32, #tpu.memory_space<vmem>>, vector<1x192xf32>
    %c0_328 = arith.constant 0 : index
    %c0_329 = arith.constant 0 : index
    %688 = vector.load %arg9[%c0_328, %c0_329] : memref<64x64xf32, #tpu.memory_space<vmem>>, vector<64x64xf32>
    %c0_330 = arith.constant 0 : index
    %c0_331 = arith.constant 0 : index
    %689 = vector.load %arg10[%c0_330, %c0_331] : memref<1x64xf32, #tpu.memory_space<vmem>>, vector<1x64xf32>
    %690 = vector.extract_strided_slice %685 {offsets = [0, 0, 0], sizes = [8, 1, 64], strides = [1, 1, 1]} : vector<8x2x64xf32> to vector<8x1x64xf32>
    %691 = vector.shape_cast %690 : vector<8x1x64xf32> to vector<8x64xf32>
    %cst_332 = arith.constant dense<0.000000e+00> : vector<8x192xf32>
    %692 = tpu.matmul %691, %686, %cst_332 {dimension_numbers = #tpu.dot_dimension_numbers<[1], [0], [0], [1], [0, 0, 1, 1], [], []>} : vector<8x64xf32>, vector<64x192xf32>, vector<8x192xf32> -> vector<8x192xf32>
    %693 = vector.broadcast %687 : vector<1x192xf32> to vector<8x192xf32>
    %694 = arith.addf %692, %693 : vector<8x192xf32>
    %695 = vector.extract_strided_slice %694 {offsets = [0, 0], sizes = [8, 64], strides = [1, 1]} : vector<8x192xf32> to vector<8x64xf32>
    %cst_333 = arith.constant 0.353553385 : f32
    %696 = vector.broadcast %cst_333 : f32 to vector<8x64xf32>
    %697 = arith.mulf %695, %696 : vector<8x64xf32>
    %698 = vector.extract_strided_slice %694 {offsets = [0, 64], sizes = [8, 64], strides = [1, 1]} : vector<8x192xf32> to vector<8x64xf32>
    %699 = vector.extract_strided_slice %694 {offsets = [0, 128], sizes = [8, 64], strides = [1, 1]} : vector<8x192xf32> to vector<8x64xf32>
    %cst_334 = arith.constant 0.000000e+00 : f32
    %700 = vector.broadcast %cst_334 : f32 to vector<8x8xf32>
    %cst_335 = arith.constant 0.000000e+00 : f32
    %701 = vector.broadcast %cst_335 : f32 to vector<8x64xf32>
    %702 = vector.extract_strided_slice %697 {offsets = [0, 0], sizes = [8, 8], strides = [1, 1]} : vector<8x64xf32> to vector<8x8xf32>
    %703 = vector.extract_strided_slice %698 {offsets = [0, 0], sizes = [8, 8], strides = [1, 1]} : vector<8x64xf32> to vector<8x8xf32>
    %cst_336 = arith.constant dense<0.000000e+00> : vector<8x8xf32>
    %704 = tpu.matmul %702, %703, %cst_336 {dimension_numbers = #tpu.dot_dimension_numbers<[1], [1], [0], [0], [0, 0, 1, 0], [], []>} : vector<8x8xf32>, vector<8x8xf32>, vector<8x8xf32> -> vector<8x8xf32>
    %cst_337 = arith.constant dense<0xFF800000> : vector<8xf32>
    %705 = vector.multi_reduction <maximumf>, %704, %cst_337 [1] : vector<8x8xf32> to vector<8xf32>
    %706 = vector.shape_cast %705 : vector<8xf32> to vector<8x1xf32>
    %707 = vector.broadcast %706 : vector<8x1xf32> to vector<8x8xf32>
    %708 = arith.subf %704, %707 : vector<8x8xf32>
    %709 = math.exp %708 : vector<8x8xf32>
    %cst_338 = arith.constant dense<0.000000e+00> : vector<8xf32>
    %710 = vector.multi_reduction <add>, %709, %cst_338 [1] : vector<8x8xf32> to vector<8xf32>
    %711 = vector.shape_cast %710 : vector<8xf32> to vector<8x1xf32>
    %712 = vector.broadcast %711 : vector<8x1xf32> to vector<8x8xf32>
    %713 = arith.divf %709, %712 : vector<8x8xf32>
    %714 = arith.addf %700, %713 : vector<8x8xf32>
    %715 = vector.extract_strided_slice %699 {offsets = [0, 0], sizes = [8, 8], strides = [1, 1]} : vector<8x64xf32> to vector<8x8xf32>
    %cst_339 = arith.constant dense<0.000000e+00> : vector<8x8xf32>
    %716 = tpu.matmul %713, %715, %cst_339 {dimension_numbers = #tpu.dot_dimension_numbers<[1], [0], [0], [1], [0, 0, 1, 1], [], []>} : vector<8x8xf32>, vector<8x8xf32>, vector<8x8xf32> -> vector<8x8xf32>
    %717 = vector.extract_strided_slice %688 {offsets = [0, 0], sizes = [8, 64], strides = [1, 1]} : vector<64x64xf32> to vector<8x64xf32>
    %cst_340 = arith.constant dense<0.000000e+00> : vector<8x64xf32>
    %718 = tpu.matmul %716, %717, %cst_340 {dimension_numbers = #tpu.dot_dimension_numbers<[1], [0], [0], [1], [0, 0, 1, 1], [], []>} : vector<8x8xf32>, vector<8x64xf32>, vector<8x64xf32> -> vector<8x64xf32>
    %719 = arith.addf %701, %718 : vector<8x64xf32>
    %720 = vector.extract_strided_slice %697 {offsets = [0, 8], sizes = [8, 8], strides = [1, 1]} : vector<8x64xf32> to vector<8x8xf32>
    %721 = vector.extract_strided_slice %698 {offsets = [0, 8], sizes = [8, 8], strides = [1, 1]} : vector<8x64xf32> to vector<8x8xf32>
    %cst_341 = arith.constant dense<0.000000e+00> : vector<8x8xf32>
    %722 = tpu.matmul %720, %721, %cst_341 {dimension_numbers = #tpu.dot_dimension_numbers<[1], [1], [0], [0], [0, 0, 1, 0], [], []>} : vector<8x8xf32>, vector<8x8xf32>, vector<8x8xf32> -> vector<8x8xf32>
    %cst_342 = arith.constant dense<0xFF800000> : vector<8xf32>
    %723 = vector.multi_reduction <maximumf>, %722, %cst_342 [1] : vector<8x8xf32> to vector<8xf32>
    %724 = vector.shape_cast %723 : vector<8xf32> to vector<8x1xf32>
    %725 = vector.broadcast %724 : vector<8x1xf32> to vector<8x8xf32>
    %726 = arith.subf %722, %725 : vector<8x8xf32>
    %727 = math.exp %726 : vector<8x8xf32>
    %cst_343 = arith.constant dense<0.000000e+00> : vector<8xf32>
    %728 = vector.multi_reduction <add>, %727, %cst_343 [1] : vector<8x8xf32> to vector<8xf32>
    %729 = vector.shape_cast %728 : vector<8xf32> to vector<8x1xf32>
    %730 = vector.broadcast %729 : vector<8x1xf32> to vector<8x8xf32>
    %731 = arith.divf %727, %730 : vector<8x8xf32>
    %732 = arith.addf %714, %731 : vector<8x8xf32>
    %733 = vector.extract_strided_slice %699 {offsets = [0, 8], sizes = [8, 8], strides = [1, 1]} : vector<8x64xf32> to vector<8x8xf32>
    %cst_344 = arith.constant dense<0.000000e+00> : vector<8x8xf32>
    %734 = tpu.matmul %731, %733, %cst_344 {dimension_numbers = #tpu.dot_dimension_numbers<[1], [0], [0], [1], [0, 0, 1, 1], [], []>} : vector<8x8xf32>, vector<8x8xf32>, vector<8x8xf32> -> vector<8x8xf32>
    %735 = vector.extract_strided_slice %688 {offsets = [8, 0], sizes = [8, 64], strides = [1, 1]} : vector<64x64xf32> to vector<8x64xf32>
    %cst_345 = arith.constant dense<0.000000e+00> : vector<8x64xf32>
    %736 = tpu.matmul %734, %735, %cst_345 {dimension_numbers = #tpu.dot_dimension_numbers<[1], [0], [0], [1], [0, 0, 1, 1], [], []>} : vector<8x8xf32>, vector<8x64xf32>, vector<8x64xf32> -> vector<8x64xf32>
    %737 = arith.addf %719, %736 : vector<8x64xf32>
    %738 = vector.extract_strided_slice %697 {offsets = [0, 16], sizes = [8, 8], strides = [1, 1]} : vector<8x64xf32> to vector<8x8xf32>
    %739 = vector.extract_strided_slice %698 {offsets = [0, 16], sizes = [8, 8], strides = [1, 1]} : vector<8x64xf32> to vector<8x8xf32>
    %cst_346 = arith.constant dense<0.000000e+00> : vector<8x8xf32>
    %740 = tpu.matmul %738, %739, %cst_346 {dimension_numbers = #tpu.dot_dimension_numbers<[1], [1], [0], [0], [0, 0, 1, 0], [], []>} : vector<8x8xf32>, vector<8x8xf32>, vector<8x8xf32> -> vector<8x8xf32>
    %cst_347 = arith.constant dense<0xFF800000> : vector<8xf32>
    %741 = vector.multi_reduction <maximumf>, %740, %cst_347 [1] : vector<8x8xf32> to vector<8xf32>
    %742 = vector.shape_cast %741 : vector<8xf32> to vector<8x1xf32>
    %743 = vector.broadcast %742 : vector<8x1xf32> to vector<8x8xf32>
    %744 = arith.subf %740, %743 : vector<8x8xf32>
    %745 = math.exp %744 : vector<8x8xf32>
    %cst_348 = arith.constant dense<0.000000e+00> : vector<8xf32>
    %746 = vector.multi_reduction <add>, %745, %cst_348 [1] : vector<8x8xf32> to vector<8xf32>
    %747 = vector.shape_cast %746 : vector<8xf32> to vector<8x1xf32>
    %748 = vector.broadcast %747 : vector<8x1xf32> to vector<8x8xf32>
    %749 = arith.divf %745, %748 : vector<8x8xf32>
    %750 = arith.addf %732, %749 : vector<8x8xf32>
    %751 = vector.extract_strided_slice %699 {offsets = [0, 16], sizes = [8, 8], strides = [1, 1]} : vector<8x64xf32> to vector<8x8xf32>
    %cst_349 = arith.constant dense<0.000000e+00> : vector<8x8xf32>
    %752 = tpu.matmul %749, %751, %cst_349 {dimension_numbers = #tpu.dot_dimension_numbers<[1], [0], [0], [1], [0, 0, 1, 1], [], []>} : vector<8x8xf32>, vector<8x8xf32>, vector<8x8xf32> -> vector<8x8xf32>
    %753 = vector.extract_strided_slice %688 {offsets = [16, 0], sizes = [8, 64], strides = [1, 1]} : vector<64x64xf32> to vector<8x64xf32>
    %cst_350 = arith.constant dense<0.000000e+00> : vector<8x64xf32>
    %754 = tpu.matmul %752, %753, %cst_350 {dimension_numbers = #tpu.dot_dimension_numbers<[1], [0], [0], [1], [0, 0, 1, 1], [], []>} : vector<8x8xf32>, vector<8x64xf32>, vector<8x64xf32> -> vector<8x64xf32>
    %755 = arith.addf %737, %754 : vector<8x64xf32>
    %756 = vector.extract_strided_slice %697 {offsets = [0, 24], sizes = [8, 8], strides = [1, 1]} : vector<8x64xf32> to vector<8x8xf32>
    %757 = vector.extract_strided_slice %698 {offsets = [0, 24], sizes = [8, 8], strides = [1, 1]} : vector<8x64xf32> to vector<8x8xf32>
    %cst_351 = arith.constant dense<0.000000e+00> : vector<8x8xf32>
    %758 = tpu.matmul %756, %757, %cst_351 {dimension_numbers = #tpu.dot_dimension_numbers<[1], [1], [0], [0], [0, 0, 1, 0], [], []>} : vector<8x8xf32>, vector<8x8xf32>, vector<8x8xf32> -> vector<8x8xf32>
    %cst_352 = arith.constant dense<0xFF800000> : vector<8xf32>
    %759 = vector.multi_reduction <maximumf>, %758, %cst_352 [1] : vector<8x8xf32> to vector<8xf32>
    %760 = vector.shape_cast %759 : vector<8xf32> to vector<8x1xf32>
    %761 = vector.broadcast %760 : vector<8x1xf32> to vector<8x8xf32>
    %762 = arith.subf %758, %761 : vector<8x8xf32>
    %763 = math.exp %762 : vector<8x8xf32>
    %cst_353 = arith.constant dense<0.000000e+00> : vector<8xf32>
    %764 = vector.multi_reduction <add>, %763, %cst_353 [1] : vector<8x8xf32> to vector<8xf32>
    %765 = vector.shape_cast %764 : vector<8xf32> to vector<8x1xf32>
    %766 = vector.broadcast %765 : vector<8x1xf32> to vector<8x8xf32>
    %767 = arith.divf %763, %766 : vector<8x8xf32>
    %768 = arith.addf %750, %767 : vector<8x8xf32>
    %769 = vector.extract_strided_slice %699 {offsets = [0, 24], sizes = [8, 8], strides = [1, 1]} : vector<8x64xf32> to vector<8x8xf32>
    %cst_354 = arith.constant dense<0.000000e+00> : vector<8x8xf32>
    %770 = tpu.matmul %767, %769, %cst_354 {dimension_numbers = #tpu.dot_dimension_numbers<[1], [0], [0], [1], [0, 0, 1, 1], [], []>} : vector<8x8xf32>, vector<8x8xf32>, vector<8x8xf32> -> vector<8x8xf32>
    %771 = vector.extract_strided_slice %688 {offsets = [24, 0], sizes = [8, 64], strides = [1, 1]} : vector<64x64xf32> to vector<8x64xf32>
    %cst_355 = arith.constant dense<0.000000e+00> : vector<8x64xf32>
    %772 = tpu.matmul %770, %771, %cst_355 {dimension_numbers = #tpu.dot_dimension_numbers<[1], [0], [0], [1], [0, 0, 1, 1], [], []>} : vector<8x8xf32>, vector<8x64xf32>, vector<8x64xf32> -> vector<8x64xf32>
    %773 = arith.addf %755, %772 : vector<8x64xf32>
    %774 = vector.extract_strided_slice %697 {offsets = [0, 32], sizes = [8, 8], strides = [1, 1]} : vector<8x64xf32> to vector<8x8xf32>
    %775 = vector.extract_strided_slice %698 {offsets = [0, 32], sizes = [8, 8], strides = [1, 1]} : vector<8x64xf32> to vector<8x8xf32>
    %cst_356 = arith.constant dense<0.000000e+00> : vector<8x8xf32>
    %776 = tpu.matmul %774, %775, %cst_356 {dimension_numbers = #tpu.dot_dimension_numbers<[1], [1], [0], [0], [0, 0, 1, 0], [], []>} : vector<8x8xf32>, vector<8x8xf32>, vector<8x8xf32> -> vector<8x8xf32>
    %cst_357 = arith.constant dense<0xFF800000> : vector<8xf32>
    %777 = vector.multi_reduction <maximumf>, %776, %cst_357 [1] : vector<8x8xf32> to vector<8xf32>
    %778 = vector.shape_cast %777 : vector<8xf32> to vector<8x1xf32>
    %779 = vector.broadcast %778 : vector<8x1xf32> to vector<8x8xf32>
    %780 = arith.subf %776, %779 : vector<8x8xf32>
    %781 = math.exp %780 : vector<8x8xf32>
    %cst_358 = arith.constant dense<0.000000e+00> : vector<8xf32>
    %782 = vector.multi_reduction <add>, %781, %cst_358 [1] : vector<8x8xf32> to vector<8xf32>
    %783 = vector.shape_cast %782 : vector<8xf32> to vector<8x1xf32>
    %784 = vector.broadcast %783 : vector<8x1xf32> to vector<8x8xf32>
    %785 = arith.divf %781, %784 : vector<8x8xf32>
    %786 = arith.addf %768, %785 : vector<8x8xf32>
    %787 = vector.extract_strided_slice %699 {offsets = [0, 32], sizes = [8, 8], strides = [1, 1]} : vector<8x64xf32> to vector<8x8xf32>
    %cst_359 = arith.constant dense<0.000000e+00> : vector<8x8xf32>
    %788 = tpu.matmul %785, %787, %cst_359 {dimension_numbers = #tpu.dot_dimension_numbers<[1], [0], [0], [1], [0, 0, 1, 1], [], []>} : vector<8x8xf32>, vector<8x8xf32>, vector<8x8xf32> -> vector<8x8xf32>
    %789 = vector.extract_strided_slice %688 {offsets = [32, 0], sizes = [8, 64], strides = [1, 1]} : vector<64x64xf32> to vector<8x64xf32>
    %cst_360 = arith.constant dense<0.000000e+00> : vector<8x64xf32>
    %790 = tpu.matmul %788, %789, %cst_360 {dimension_numbers = #tpu.dot_dimension_numbers<[1], [0], [0], [1], [0, 0, 1, 1], [], []>} : vector<8x8xf32>, vector<8x64xf32>, vector<8x64xf32> -> vector<8x64xf32>
    %791 = arith.addf %773, %790 : vector<8x64xf32>
    %792 = vector.extract_strided_slice %697 {offsets = [0, 40], sizes = [8, 8], strides = [1, 1]} : vector<8x64xf32> to vector<8x8xf32>
    %793 = vector.extract_strided_slice %698 {offsets = [0, 40], sizes = [8, 8], strides = [1, 1]} : vector<8x64xf32> to vector<8x8xf32>
    %cst_361 = arith.constant dense<0.000000e+00> : vector<8x8xf32>
    %794 = tpu.matmul %792, %793, %cst_361 {dimension_numbers = #tpu.dot_dimension_numbers<[1], [1], [0], [0], [0, 0, 1, 0], [], []>} : vector<8x8xf32>, vector<8x8xf32>, vector<8x8xf32> -> vector<8x8xf32>
    %cst_362 = arith.constant dense<0xFF800000> : vector<8xf32>
    %795 = vector.multi_reduction <maximumf>, %794, %cst_362 [1] : vector<8x8xf32> to vector<8xf32>
    %796 = vector.shape_cast %795 : vector<8xf32> to vector<8x1xf32>
    %797 = vector.broadcast %796 : vector<8x1xf32> to vector<8x8xf32>
    %798 = arith.subf %794, %797 : vector<8x8xf32>
    %799 = math.exp %798 : vector<8x8xf32>
    %cst_363 = arith.constant dense<0.000000e+00> : vector<8xf32>
    %800 = vector.multi_reduction <add>, %799, %cst_363 [1] : vector<8x8xf32> to vector<8xf32>
    %801 = vector.shape_cast %800 : vector<8xf32> to vector<8x1xf32>
    %802 = vector.broadcast %801 : vector<8x1xf32> to vector<8x8xf32>
    %803 = arith.divf %799, %802 : vector<8x8xf32>
    %804 = arith.addf %786, %803 : vector<8x8xf32>
    %805 = vector.extract_strided_slice %699 {offsets = [0, 40], sizes = [8, 8], strides = [1, 1]} : vector<8x64xf32> to vector<8x8xf32>
    %cst_364 = arith.constant dense<0.000000e+00> : vector<8x8xf32>
    %806 = tpu.matmul %803, %805, %cst_364 {dimension_numbers = #tpu.dot_dimension_numbers<[1], [0], [0], [1], [0, 0, 1, 1], [], []>} : vector<8x8xf32>, vector<8x8xf32>, vector<8x8xf32> -> vector<8x8xf32>
    %807 = vector.extract_strided_slice %688 {offsets = [40, 0], sizes = [8, 64], strides = [1, 1]} : vector<64x64xf32> to vector<8x64xf32>
    %cst_365 = arith.constant dense<0.000000e+00> : vector<8x64xf32>
    %808 = tpu.matmul %806, %807, %cst_365 {dimension_numbers = #tpu.dot_dimension_numbers<[1], [0], [0], [1], [0, 0, 1, 1], [], []>} : vector<8x8xf32>, vector<8x64xf32>, vector<8x64xf32> -> vector<8x64xf32>
    %809 = arith.addf %791, %808 : vector<8x64xf32>
    %810 = vector.extract_strided_slice %697 {offsets = [0, 48], sizes = [8, 8], strides = [1, 1]} : vector<8x64xf32> to vector<8x8xf32>
    %811 = vector.extract_strided_slice %698 {offsets = [0, 48], sizes = [8, 8], strides = [1, 1]} : vector<8x64xf32> to vector<8x8xf32>
    %cst_366 = arith.constant dense<0.000000e+00> : vector<8x8xf32>
    %812 = tpu.matmul %810, %811, %cst_366 {dimension_numbers = #tpu.dot_dimension_numbers<[1], [1], [0], [0], [0, 0, 1, 0], [], []>} : vector<8x8xf32>, vector<8x8xf32>, vector<8x8xf32> -> vector<8x8xf32>
    %cst_367 = arith.constant dense<0xFF800000> : vector<8xf32>
    %813 = vector.multi_reduction <maximumf>, %812, %cst_367 [1] : vector<8x8xf32> to vector<8xf32>
    %814 = vector.shape_cast %813 : vector<8xf32> to vector<8x1xf32>
    %815 = vector.broadcast %814 : vector<8x1xf32> to vector<8x8xf32>
    %816 = arith.subf %812, %815 : vector<8x8xf32>
    %817 = math.exp %816 : vector<8x8xf32>
    %cst_368 = arith.constant dense<0.000000e+00> : vector<8xf32>
    %818 = vector.multi_reduction <add>, %817, %cst_368 [1] : vector<8x8xf32> to vector<8xf32>
    %819 = vector.shape_cast %818 : vector<8xf32> to vector<8x1xf32>
    %820 = vector.broadcast %819 : vector<8x1xf32> to vector<8x8xf32>
    %821 = arith.divf %817, %820 : vector<8x8xf32>
    %822 = arith.addf %804, %821 : vector<8x8xf32>
    %823 = vector.extract_strided_slice %699 {offsets = [0, 48], sizes = [8, 8], strides = [1, 1]} : vector<8x64xf32> to vector<8x8xf32>
    %cst_369 = arith.constant dense<0.000000e+00> : vector<8x8xf32>
    %824 = tpu.matmul %821, %823, %cst_369 {dimension_numbers = #tpu.dot_dimension_numbers<[1], [0], [0], [1], [0, 0, 1, 1], [], []>} : vector<8x8xf32>, vector<8x8xf32>, vector<8x8xf32> -> vector<8x8xf32>
    %825 = vector.extract_strided_slice %688 {offsets = [48, 0], sizes = [8, 64], strides = [1, 1]} : vector<64x64xf32> to vector<8x64xf32>
    %cst_370 = arith.constant dense<0.000000e+00> : vector<8x64xf32>
    %826 = tpu.matmul %824, %825, %cst_370 {dimension_numbers = #tpu.dot_dimension_numbers<[1], [0], [0], [1], [0, 0, 1, 1], [], []>} : vector<8x8xf32>, vector<8x64xf32>, vector<8x64xf32> -> vector<8x64xf32>
    %827 = arith.addf %809, %826 : vector<8x64xf32>
    %828 = vector.extract_strided_slice %697 {offsets = [0, 56], sizes = [8, 8], strides = [1, 1]} : vector<8x64xf32> to vector<8x8xf32>
    %829 = vector.extract_strided_slice %698 {offsets = [0, 56], sizes = [8, 8], strides = [1, 1]} : vector<8x64xf32> to vector<8x8xf32>
    %cst_371 = arith.constant dense<0.000000e+00> : vector<8x8xf32>
    %830 = tpu.matmul %828, %829, %cst_371 {dimension_numbers = #tpu.dot_dimension_numbers<[1], [1], [0], [0], [0, 0, 1, 0], [], []>} : vector<8x8xf32>, vector<8x8xf32>, vector<8x8xf32> -> vector<8x8xf32>
    %cst_372 = arith.constant dense<0xFF800000> : vector<8xf32>
    %831 = vector.multi_reduction <maximumf>, %830, %cst_372 [1] : vector<8x8xf32> to vector<8xf32>
    %832 = vector.shape_cast %831 : vector<8xf32> to vector<8x1xf32>
    %833 = vector.broadcast %832 : vector<8x1xf32> to vector<8x8xf32>
    %834 = arith.subf %830, %833 : vector<8x8xf32>
    %835 = math.exp %834 : vector<8x8xf32>
    %cst_373 = arith.constant dense<0.000000e+00> : vector<8xf32>
    %836 = vector.multi_reduction <add>, %835, %cst_373 [1] : vector<8x8xf32> to vector<8xf32>
    %837 = vector.shape_cast %836 : vector<8xf32> to vector<8x1xf32>
    %838 = vector.broadcast %837 : vector<8x1xf32> to vector<8x8xf32>
    %839 = arith.divf %835, %838 : vector<8x8xf32>
    %840 = arith.addf %822, %839 : vector<8x8xf32>
    %841 = vector.extract_strided_slice %699 {offsets = [0, 56], sizes = [8, 8], strides = [1, 1]} : vector<8x64xf32> to vector<8x8xf32>
    %cst_374 = arith.constant dense<0.000000e+00> : vector<8x8xf32>
    %842 = tpu.matmul %839, %841, %cst_374 {dimension_numbers = #tpu.dot_dimension_numbers<[1], [0], [0], [1], [0, 0, 1, 1], [], []>} : vector<8x8xf32>, vector<8x8xf32>, vector<8x8xf32> -> vector<8x8xf32>
    %843 = vector.extract_strided_slice %688 {offsets = [56, 0], sizes = [8, 64], strides = [1, 1]} : vector<64x64xf32> to vector<8x64xf32>
    %cst_375 = arith.constant dense<0.000000e+00> : vector<8x64xf32>
    %844 = tpu.matmul %842, %843, %cst_375 {dimension_numbers = #tpu.dot_dimension_numbers<[1], [0], [0], [1], [0, 0, 1, 1], [], []>} : vector<8x8xf32>, vector<8x64xf32>, vector<8x64xf32> -> vector<8x64xf32>
    %845 = arith.addf %827, %844 : vector<8x64xf32>
    %cst_376 = arith.constant 1.250000e-01 : f32
    %846 = vector.broadcast %cst_376 : f32 to vector<8x8xf32>
    %847 = arith.mulf %840, %846 : vector<8x8xf32>
    %c0_377 = arith.constant 0 : index
    %c0_378 = arith.constant 0 : index
    %c0_379 = arith.constant 0 : index
    %848 = vector.load %arg21[%c0_377, %c0_378, %c0_379] : memref<2x8x8xf32, #tpu.memory_space<vmem>>, vector<1x8x8xf32>
    %849 = vector.shape_cast %848 : vector<1x8x8xf32> to vector<8x8xf32>
    %850 = vector.shape_cast %847 : vector<8x8xf32> to vector<1x8x8xf32>
    tpu.vector_store %arg21[%c0_377, %c0_378, %c0_379], %850 {strides = array<i32>} : memref<2x8x8xf32, #tpu.memory_space<vmem>>, vector<1x8x8xf32>,
    %851 = arith.addf %691, %845 : vector<8x64xf32>
    %852 = vector.broadcast %689 : vector<1x64xf32> to vector<8x64xf32>
    %853 = arith.addf %851, %852 : vector<8x64xf32>
    %c0_380 = arith.constant 0 : index
    %c0_381 = arith.constant 0 : index
    %854 = vector.load %arg11[%c0_380, %c0_381] : memref<64x32xf32, #tpu.memory_space<vmem>>, vector<64x32xf32>
    %cst_382 = arith.constant dense<0.000000e+00> : vector<8x32xf32>
    %855 = tpu.matmul %853, %854, %cst_382 {dimension_numbers = #tpu.dot_dimension_numbers<[1], [0], [0], [1], [0, 0, 1, 1], [], []>} : vector<8x64xf32>, vector<64x32xf32>, vector<8x32xf32> -> vector<8x32xf32>
    %c0_383 = arith.constant 0 : index
    %c0_384 = arith.constant 0 : index
    %856 = vector.load %arg12[%c0_383, %c0_384] : memref<1x32xf32, #tpu.memory_space<vmem>>, vector<1x32xf32>
    %857 = vector.broadcast %856 : vector<1x32xf32> to vector<8x32xf32>
    %858 = arith.addf %855, %857 : vector<8x32xf32>
    %cst_385 = arith.constant 0.000000e+00 : f32
    %859 = vector.broadcast %cst_385 : f32 to vector<8x32xf32>
    %860 = arith.maximumf %858, %859 : vector<8x32xf32>
    %c0_386 = arith.constant 0 : index
    %c0_387 = arith.constant 0 : index
    %861 = vector.load %arg13[%c0_386, %c0_387] : memref<32x16xf32, #tpu.memory_space<vmem>>, vector<32x16xf32>
    %cst_388 = arith.constant dense<0.000000e+00> : vector<8x16xf32>
    %862 = tpu.matmul %860, %861, %cst_388 {dimension_numbers = #tpu.dot_dimension_numbers<[1], [0], [0], [1], [0, 0, 1, 1], [], []>} : vector<8x32xf32>, vector<32x16xf32>, vector<8x16xf32> -> vector<8x16xf32>
    %c0_389 = arith.constant 0 : index
    %c0_390 = arith.constant 0 : index
    %863 = vector.load %arg14[%c0_389, %c0_390] : memref<1x16xf32, #tpu.memory_space<vmem>>, vector<1x16xf32>
    %864 = vector.broadcast %863 : vector<1x16xf32> to vector<8x16xf32>
    %865 = arith.addf %862, %864 : vector<8x16xf32>
    %cst_391 = arith.constant 0.000000e+00 : f32
    %866 = vector.broadcast %cst_391 : f32 to vector<8x16xf32>
    %867 = arith.maximumf %865, %866 : vector<8x16xf32>
    %c0_392 = arith.constant 0 : index
    %c0_393 = arith.constant 0 : index
    %868 = vector.load %arg15[%c0_392, %c0_393] : memref<16x9xf32, #tpu.memory_space<vmem>>, vector<16x9xf32>
    %cst_394 = arith.constant dense<0.000000e+00> : vector<9x8xf32>
    %869 = tpu.matmul %868, %867, %cst_394 {dimension_numbers = #tpu.dot_dimension_numbers<[0], [1], [1], [0], [0, 1, 1, 0], [], []>} : vector<16x9xf32>, vector<8x16xf32>, vector<9x8xf32> -> vector<9x8xf32>
    %c0_395 = arith.constant 0 : index
    %c0_396 = arith.constant 0 : index
    %870 = vector.load %arg16[%c0_395, %c0_396] : memref<9x1xf32, #tpu.memory_space<vmem>>, vector<9x1xf32>
    %871 = vector.broadcast %870 : vector<9x1xf32> to vector<9x8xf32>
    %872 = arith.addf %869, %871 : vector<9x8xf32>
    %873 = vector.extract_strided_slice %872 {offsets = [0, 0], sizes = [1, 8], strides = [1, 1]} : vector<9x8xf32> to vector<1x8xf32>
    %874 = vector.extract_strided_slice %872 {offsets = [1, 0], sizes = [8, 8], strides = [1, 1]} : vector<9x8xf32> to vector<8x8xf32>
    %cst_397 = arith.constant 0.000000e+00 : f32
    %875 = vector.broadcast %cst_397 : f32 to vector<8x8xf32>
    %876 = arith.maximumf %874, %875 : vector<8x8xf32>
    %c0_398 = arith.constant 0 : index
    %c0_399 = arith.constant 0 : index
    %877 = vector.load %arg17[%c0_398, %c0_399] : memref<8x1xf32, #tpu.memory_space<vmem>>, vector<8x1xf32>
    %cst_400 = arith.constant dense<0.000000e+00> : vector<1x8xf32>
    %878 = tpu.matmul %877, %876, %cst_400 {dimension_numbers = #tpu.dot_dimension_numbers<[0], [0], [1], [1], [0, 1, 1, 1], [], []>} : vector<8x1xf32>, vector<8x8xf32>, vector<1x8xf32> -> vector<1x8xf32>
    %c0_401 = arith.constant 0 : index
    %c0_402 = arith.constant 0 : index
    %879 = vector.load %arg18[%c0_401, %c0_402] : memref<1x1xf32, #tpu.memory_space<vmem>>, vector<1x1xf32>
    %880 = vector.broadcast %879 : vector<1x1xf32> to vector<1x8xf32>
    %881 = arith.addf %878, %880 : vector<1x8xf32>
    %cst_403 = arith.constant 0.000000e+00 : f32
    %882 = vector.broadcast %cst_403 : f32 to vector<1x8xf32>
    %883 = arith.maximumf %881, %882 : vector<1x8xf32>
    %884 = vector.broadcast %cst_403 : f32 to vector<1x8xf32>
    %885 = arith.subf %881, %884 : vector<1x8xf32>
    %886 = arith.cmpf one, %885, %885 : vector<1x8xf32>
    %887 = vector.broadcast %cst_403 : f32 to vector<1x8xf32>
    %888 = arith.addf %881, %887 : vector<1x8xf32>
    %889 = math.absf %885 : vector<1x8xf32>
    %cst_404 = arith.constant 0.000000e+00 : f32
    %890 = vector.broadcast %cst_404 : f32 to vector<1x8xf32>
    %891 = arith.subf %890, %889 : vector<1x8xf32>
    %892 = math.exp %891 : vector<1x8xf32>
    %893 = math.log1p %892 : vector<1x8xf32>
    %894 = arith.addf %883, %893 : vector<1x8xf32>
    %895 = arith.select %886, %888, %894 : vector<1x8xi1>, vector<1x8xf32>
    %896 = vector.extract_strided_slice %685 {offsets = [0, 1, 0], sizes = [8, 1, 64], strides = [1, 1, 1]} : vector<8x2x64xf32> to vector<8x1x64xf32>
    %897 = vector.shape_cast %896 : vector<8x1x64xf32> to vector<8x64xf32>
    %cst_405 = arith.constant dense<0.000000e+00> : vector<8x192xf32>
    %898 = tpu.matmul %897, %686, %cst_405 {dimension_numbers = #tpu.dot_dimension_numbers<[1], [0], [0], [1], [0, 0, 1, 1], [], []>} : vector<8x64xf32>, vector<64x192xf32>, vector<8x192xf32> -> vector<8x192xf32>
    %899 = vector.broadcast %687 : vector<1x192xf32> to vector<8x192xf32>
    %900 = arith.addf %898, %899 : vector<8x192xf32>
    %901 = vector.extract_strided_slice %900 {offsets = [0, 0], sizes = [8, 64], strides = [1, 1]} : vector<8x192xf32> to vector<8x64xf32>
    %cst_406 = arith.constant 0.353553385 : f32
    %902 = vector.broadcast %cst_406 : f32 to vector<8x64xf32>
    %903 = arith.mulf %901, %902 : vector<8x64xf32>
    %904 = vector.extract_strided_slice %900 {offsets = [0, 64], sizes = [8, 64], strides = [1, 1]} : vector<8x192xf32> to vector<8x64xf32>
    %905 = vector.extract_strided_slice %900 {offsets = [0, 128], sizes = [8, 64], strides = [1, 1]} : vector<8x192xf32> to vector<8x64xf32>
    %cst_407 = arith.constant 0.000000e+00 : f32
    %906 = vector.broadcast %cst_407 : f32 to vector<8x8xf32>
    %cst_408 = arith.constant 0.000000e+00 : f32
    %907 = vector.broadcast %cst_408 : f32 to vector<8x64xf32>
    %908 = vector.extract_strided_slice %903 {offsets = [0, 0], sizes = [8, 8], strides = [1, 1]} : vector<8x64xf32> to vector<8x8xf32>
    %909 = vector.extract_strided_slice %904 {offsets = [0, 0], sizes = [8, 8], strides = [1, 1]} : vector<8x64xf32> to vector<8x8xf32>
    %cst_409 = arith.constant dense<0.000000e+00> : vector<8x8xf32>
    %910 = tpu.matmul %908, %909, %cst_409 {dimension_numbers = #tpu.dot_dimension_numbers<[1], [1], [0], [0], [0, 0, 1, 0], [], []>} : vector<8x8xf32>, vector<8x8xf32>, vector<8x8xf32> -> vector<8x8xf32>
    %cst_410 = arith.constant dense<0xFF800000> : vector<8xf32>
    %911 = vector.multi_reduction <maximumf>, %910, %cst_410 [1] : vector<8x8xf32> to vector<8xf32>
    %912 = vector.shape_cast %911 : vector<8xf32> to vector<8x1xf32>
    %913 = vector.broadcast %912 : vector<8x1xf32> to vector<8x8xf32>
    %914 = arith.subf %910, %913 : vector<8x8xf32>
    %915 = math.exp %914 : vector<8x8xf32>
    %cst_411 = arith.constant dense<0.000000e+00> : vector<8xf32>
    %916 = vector.multi_reduction <add>, %915, %cst_411 [1] : vector<8x8xf32> to vector<8xf32>
    %917 = vector.shape_cast %916 : vector<8xf32> to vector<8x1xf32>
    %918 = vector.broadcast %917 : vector<8x1xf32> to vector<8x8xf32>
    %919 = arith.divf %915, %918 : vector<8x8xf32>
    %920 = arith.addf %906, %919 : vector<8x8xf32>
    %921 = vector.extract_strided_slice %905 {offsets = [0, 0], sizes = [8, 8], strides = [1, 1]} : vector<8x64xf32> to vector<8x8xf32>
    %cst_412 = arith.constant dense<0.000000e+00> : vector<8x8xf32>
    %922 = tpu.matmul %919, %921, %cst_412 {dimension_numbers = #tpu.dot_dimension_numbers<[1], [0], [0], [1], [0, 0, 1, 1], [], []>} : vector<8x8xf32>, vector<8x8xf32>, vector<8x8xf32> -> vector<8x8xf32>
    %923 = vector.extract_strided_slice %688 {offsets = [0, 0], sizes = [8, 64], strides = [1, 1]} : vector<64x64xf32> to vector<8x64xf32>
    %cst_413 = arith.constant dense<0.000000e+00> : vector<8x64xf32>
    %924 = tpu.matmul %922, %923, %cst_413 {dimension_numbers = #tpu.dot_dimension_numbers<[1], [0], [0], [1], [0, 0, 1, 1], [], []>} : vector<8x8xf32>, vector<8x64xf32>, vector<8x64xf32> -> vector<8x64xf32>
    %925 = arith.addf %907, %924 : vector<8x64xf32>
    %926 = vector.extract_strided_slice %903 {offsets = [0, 8], sizes = [8, 8], strides = [1, 1]} : vector<8x64xf32> to vector<8x8xf32>
    %927 = vector.extract_strided_slice %904 {offsets = [0, 8], sizes = [8, 8], strides = [1, 1]} : vector<8x64xf32> to vector<8x8xf32>
    %cst_414 = arith.constant dense<0.000000e+00> : vector<8x8xf32>
    %928 = tpu.matmul %926, %927, %cst_414 {dimension_numbers = #tpu.dot_dimension_numbers<[1], [1], [0], [0], [0, 0, 1, 0], [], []>} : vector<8x8xf32>, vector<8x8xf32>, vector<8x8xf32> -> vector<8x8xf32>
    %cst_415 = arith.constant dense<0xFF800000> : vector<8xf32>
    %929 = vector.multi_reduction <maximumf>, %928, %cst_415 [1] : vector<8x8xf32> to vector<8xf32>
    %930 = vector.shape_cast %929 : vector<8xf32> to vector<8x1xf32>
    %931 = vector.broadcast %930 : vector<8x1xf32> to vector<8x8xf32>
    %932 = arith.subf %928, %931 : vector<8x8xf32>
    %933 = math.exp %932 : vector<8x8xf32>
    %cst_416 = arith.constant dense<0.000000e+00> : vector<8xf32>
    %934 = vector.multi_reduction <add>, %933, %cst_416 [1] : vector<8x8xf32> to vector<8xf32>
    %935 = vector.shape_cast %934 : vector<8xf32> to vector<8x1xf32>
    %936 = vector.broadcast %935 : vector<8x1xf32> to vector<8x8xf32>
    %937 = arith.divf %933, %936 : vector<8x8xf32>
    %938 = arith.addf %920, %937 : vector<8x8xf32>
    %939 = vector.extract_strided_slice %905 {offsets = [0, 8], sizes = [8, 8], strides = [1, 1]} : vector<8x64xf32> to vector<8x8xf32>
    %cst_417 = arith.constant dense<0.000000e+00> : vector<8x8xf32>
    %940 = tpu.matmul %937, %939, %cst_417 {dimension_numbers = #tpu.dot_dimension_numbers<[1], [0], [0], [1], [0, 0, 1, 1], [], []>} : vector<8x8xf32>, vector<8x8xf32>, vector<8x8xf32> -> vector<8x8xf32>
    %941 = vector.extract_strided_slice %688 {offsets = [8, 0], sizes = [8, 64], strides = [1, 1]} : vector<64x64xf32> to vector<8x64xf32>
    %cst_418 = arith.constant dense<0.000000e+00> : vector<8x64xf32>
    %942 = tpu.matmul %940, %941, %cst_418 {dimension_numbers = #tpu.dot_dimension_numbers<[1], [0], [0], [1], [0, 0, 1, 1], [], []>} : vector<8x8xf32>, vector<8x64xf32>, vector<8x64xf32> -> vector<8x64xf32>
    %943 = arith.addf %925, %942 : vector<8x64xf32>
    %944 = vector.extract_strided_slice %903 {offsets = [0, 16], sizes = [8, 8], strides = [1, 1]} : vector<8x64xf32> to vector<8x8xf32>
    %945 = vector.extract_strided_slice %904 {offsets = [0, 16], sizes = [8, 8], strides = [1, 1]} : vector<8x64xf32> to vector<8x8xf32>
    %cst_419 = arith.constant dense<0.000000e+00> : vector<8x8xf32>
    %946 = tpu.matmul %944, %945, %cst_419 {dimension_numbers = #tpu.dot_dimension_numbers<[1], [1], [0], [0], [0, 0, 1, 0], [], []>} : vector<8x8xf32>, vector<8x8xf32>, vector<8x8xf32> -> vector<8x8xf32>
    %cst_420 = arith.constant dense<0xFF800000> : vector<8xf32>
    %947 = vector.multi_reduction <maximumf>, %946, %cst_420 [1] : vector<8x8xf32> to vector<8xf32>
    %948 = vector.shape_cast %947 : vector<8xf32> to vector<8x1xf32>
    %949 = vector.broadcast %948 : vector<8x1xf32> to vector<8x8xf32>
    %950 = arith.subf %946, %949 : vector<8x8xf32>
    %951 = math.exp %950 : vector<8x8xf32>
    %cst_421 = arith.constant dense<0.000000e+00> : vector<8xf32>
    %952 = vector.multi_reduction <add>, %951, %cst_421 [1] : vector<8x8xf32> to vector<8xf32>
    %953 = vector.shape_cast %952 : vector<8xf32> to vector<8x1xf32>
    %954 = vector.broadcast %953 : vector<8x1xf32> to vector<8x8xf32>
    %955 = arith.divf %951, %954 : vector<8x8xf32>
    %956 = arith.addf %938, %955 : vector<8x8xf32>
    %957 = vector.extract_strided_slice %905 {offsets = [0, 16], sizes = [8, 8], strides = [1, 1]} : vector<8x64xf32> to vector<8x8xf32>
    %cst_422 = arith.constant dense<0.000000e+00> : vector<8x8xf32>
    %958 = tpu.matmul %955, %957, %cst_422 {dimension_numbers = #tpu.dot_dimension_numbers<[1], [0], [0], [1], [0, 0, 1, 1], [], []>} : vector<8x8xf32>, vector<8x8xf32>, vector<8x8xf32> -> vector<8x8xf32>
    %959 = vector.extract_strided_slice %688 {offsets = [16, 0], sizes = [8, 64], strides = [1, 1]} : vector<64x64xf32> to vector<8x64xf32>
    %cst_423 = arith.constant dense<0.000000e+00> : vector<8x64xf32>
    %960 = tpu.matmul %958, %959, %cst_423 {dimension_numbers = #tpu.dot_dimension_numbers<[1], [0], [0], [1], [0, 0, 1, 1], [], []>} : vector<8x8xf32>, vector<8x64xf32>, vector<8x64xf32> -> vector<8x64xf32>
    %961 = arith.addf %943, %960 : vector<8x64xf32>
    %962 = vector.extract_strided_slice %903 {offsets = [0, 24], sizes = [8, 8], strides = [1, 1]} : vector<8x64xf32> to vector<8x8xf32>
    %963 = vector.extract_strided_slice %904 {offsets = [0, 24], sizes = [8, 8], strides = [1, 1]} : vector<8x64xf32> to vector<8x8xf32>
    %cst_424 = arith.constant dense<0.000000e+00> : vector<8x8xf32>
    %964 = tpu.matmul %962, %963, %cst_424 {dimension_numbers = #tpu.dot_dimension_numbers<[1], [1], [0], [0], [0, 0, 1, 0], [], []>} : vector<8x8xf32>, vector<8x8xf32>, vector<8x8xf32> -> vector<8x8xf32>
    %cst_425 = arith.constant dense<0xFF800000> : vector<8xf32>
    %965 = vector.multi_reduction <maximumf>, %964, %cst_425 [1] : vector<8x8xf32> to vector<8xf32>
    %966 = vector.shape_cast %965 : vector<8xf32> to vector<8x1xf32>
    %967 = vector.broadcast %966 : vector<8x1xf32> to vector<8x8xf32>
    %968 = arith.subf %964, %967 : vector<8x8xf32>
    %969 = math.exp %968 : vector<8x8xf32>
    %cst_426 = arith.constant dense<0.000000e+00> : vector<8xf32>
    %970 = vector.multi_reduction <add>, %969, %cst_426 [1] : vector<8x8xf32> to vector<8xf32>
    %971 = vector.shape_cast %970 : vector<8xf32> to vector<8x1xf32>
    %972 = vector.broadcast %971 : vector<8x1xf32> to vector<8x8xf32>
    %973 = arith.divf %969, %972 : vector<8x8xf32>
    %974 = arith.addf %956, %973 : vector<8x8xf32>
    %975 = vector.extract_strided_slice %905 {offsets = [0, 24], sizes = [8, 8], strides = [1, 1]} : vector<8x64xf32> to vector<8x8xf32>
    %cst_427 = arith.constant dense<0.000000e+00> : vector<8x8xf32>
    %976 = tpu.matmul %973, %975, %cst_427 {dimension_numbers = #tpu.dot_dimension_numbers<[1], [0], [0], [1], [0, 0, 1, 1], [], []>} : vector<8x8xf32>, vector<8x8xf32>, vector<8x8xf32> -> vector<8x8xf32>
    %977 = vector.extract_strided_slice %688 {offsets = [24, 0], sizes = [8, 64], strides = [1, 1]} : vector<64x64xf32> to vector<8x64xf32>
    %cst_428 = arith.constant dense<0.000000e+00> : vector<8x64xf32>
    %978 = tpu.matmul %976, %977, %cst_428 {dimension_numbers = #tpu.dot_dimension_numbers<[1], [0], [0], [1], [0, 0, 1, 1], [], []>} : vector<8x8xf32>, vector<8x64xf32>, vector<8x64xf32> -> vector<8x64xf32>
    %979 = arith.addf %961, %978 : vector<8x64xf32>
    %980 = vector.extract_strided_slice %903 {offsets = [0, 32], sizes = [8, 8], strides = [1, 1]} : vector<8x64xf32> to vector<8x8xf32>
    %981 = vector.extract_strided_slice %904 {offsets = [0, 32], sizes = [8, 8], strides = [1, 1]} : vector<8x64xf32> to vector<8x8xf32>
    %cst_429 = arith.constant dense<0.000000e+00> : vector<8x8xf32>
    %982 = tpu.matmul %980, %981, %cst_429 {dimension_numbers = #tpu.dot_dimension_numbers<[1], [1], [0], [0], [0, 0, 1, 0], [], []>} : vector<8x8xf32>, vector<8x8xf32>, vector<8x8xf32> -> vector<8x8xf32>
    %cst_430 = arith.constant dense<0xFF800000> : vector<8xf32>
    %983 = vector.multi_reduction <maximumf>, %982, %cst_430 [1] : vector<8x8xf32> to vector<8xf32>
    %984 = vector.shape_cast %983 : vector<8xf32> to vector<8x1xf32>
    %985 = vector.broadcast %984 : vector<8x1xf32> to vector<8x8xf32>
    %986 = arith.subf %982, %985 : vector<8x8xf32>
    %987 = math.exp %986 : vector<8x8xf32>
    %cst_431 = arith.constant dense<0.000000e+00> : vector<8xf32>
    %988 = vector.multi_reduction <add>, %987, %cst_431 [1] : vector<8x8xf32> to vector<8xf32>
    %989 = vector.shape_cast %988 : vector<8xf32> to vector<8x1xf32>
    %990 = vector.broadcast %989 : vector<8x1xf32> to vector<8x8xf32>
    %991 = arith.divf %987, %990 : vector<8x8xf32>
    %992 = arith.addf %974, %991 : vector<8x8xf32>
    %993 = vector.extract_strided_slice %905 {offsets = [0, 32], sizes = [8, 8], strides = [1, 1]} : vector<8x64xf32> to vector<8x8xf32>
    %cst_432 = arith.constant dense<0.000000e+00> : vector<8x8xf32>
    %994 = tpu.matmul %991, %993, %cst_432 {dimension_numbers = #tpu.dot_dimension_numbers<[1], [0], [0], [1], [0, 0, 1, 1], [], []>} : vector<8x8xf32>, vector<8x8xf32>, vector<8x8xf32> -> vector<8x8xf32>
    %995 = vector.extract_strided_slice %688 {offsets = [32, 0], sizes = [8, 64], strides = [1, 1]} : vector<64x64xf32> to vector<8x64xf32>
    %cst_433 = arith.constant dense<0.000000e+00> : vector<8x64xf32>
    %996 = tpu.matmul %994, %995, %cst_433 {dimension_numbers = #tpu.dot_dimension_numbers<[1], [0], [0], [1], [0, 0, 1, 1], [], []>} : vector<8x8xf32>, vector<8x64xf32>, vector<8x64xf32> -> vector<8x64xf32>
    %997 = arith.addf %979, %996 : vector<8x64xf32>
    %998 = vector.extract_strided_slice %903 {offsets = [0, 40], sizes = [8, 8], strides = [1, 1]} : vector<8x64xf32> to vector<8x8xf32>
    %999 = vector.extract_strided_slice %904 {offsets = [0, 40], sizes = [8, 8], strides = [1, 1]} : vector<8x64xf32> to vector<8x8xf32>
    %cst_434 = arith.constant dense<0.000000e+00> : vector<8x8xf32>
    %1000 = tpu.matmul %998, %999, %cst_434 {dimension_numbers = #tpu.dot_dimension_numbers<[1], [1], [0], [0], [0, 0, 1, 0], [], []>} : vector<8x8xf32>, vector<8x8xf32>, vector<8x8xf32> -> vector<8x8xf32>
    %cst_435 = arith.constant dense<0xFF800000> : vector<8xf32>
    %1001 = vector.multi_reduction <maximumf>, %1000, %cst_435 [1] : vector<8x8xf32> to vector<8xf32>
    %1002 = vector.shape_cast %1001 : vector<8xf32> to vector<8x1xf32>
    %1003 = vector.broadcast %1002 : vector<8x1xf32> to vector<8x8xf32>
    %1004 = arith.subf %1000, %1003 : vector<8x8xf32>
    %1005 = math.exp %1004 : vector<8x8xf32>
    %cst_436 = arith.constant dense<0.000000e+00> : vector<8xf32>
    %1006 = vector.multi_reduction <add>, %1005, %cst_436 [1] : vector<8x8xf32> to vector<8xf32>
    %1007 = vector.shape_cast %1006 : vector<8xf32> to vector<8x1xf32>
    %1008 = vector.broadcast %1007 : vector<8x1xf32> to vector<8x8xf32>
    %1009 = arith.divf %1005, %1008 : vector<8x8xf32>
    %1010 = arith.addf %992, %1009 : vector<8x8xf32>
    %1011 = vector.extract_strided_slice %905 {offsets = [0, 40], sizes = [8, 8], strides = [1, 1]} : vector<8x64xf32> to vector<8x8xf32>
    %cst_437 = arith.constant dense<0.000000e+00> : vector<8x8xf32>
    %1012 = tpu.matmul %1009, %1011, %cst_437 {dimension_numbers = #tpu.dot_dimension_numbers<[1], [0], [0], [1], [0, 0, 1, 1], [], []>} : vector<8x8xf32>, vector<8x8xf32>, vector<8x8xf32> -> vector<8x8xf32>
    %1013 = vector.extract_strided_slice %688 {offsets = [40, 0], sizes = [8, 64], strides = [1, 1]} : vector<64x64xf32> to vector<8x64xf32>
    %cst_438 = arith.constant dense<0.000000e+00> : vector<8x64xf32>
    %1014 = tpu.matmul %1012, %1013, %cst_438 {dimension_numbers = #tpu.dot_dimension_numbers<[1], [0], [0], [1], [0, 0, 1, 1], [], []>} : vector<8x8xf32>, vector<8x64xf32>, vector<8x64xf32> -> vector<8x64xf32>
    %1015 = arith.addf %997, %1014 : vector<8x64xf32>
    %1016 = vector.extract_strided_slice %903 {offsets = [0, 48], sizes = [8, 8], strides = [1, 1]} : vector<8x64xf32> to vector<8x8xf32>
    %1017 = vector.extract_strided_slice %904 {offsets = [0, 48], sizes = [8, 8], strides = [1, 1]} : vector<8x64xf32> to vector<8x8xf32>
    %cst_439 = arith.constant dense<0.000000e+00> : vector<8x8xf32>
    %1018 = tpu.matmul %1016, %1017, %cst_439 {dimension_numbers = #tpu.dot_dimension_numbers<[1], [1], [0], [0], [0, 0, 1, 0], [], []>} : vector<8x8xf32>, vector<8x8xf32>, vector<8x8xf32> -> vector<8x8xf32>
    %cst_440 = arith.constant dense<0xFF800000> : vector<8xf32>
    %1019 = vector.multi_reduction <maximumf>, %1018, %cst_440 [1] : vector<8x8xf32> to vector<8xf32>
    %1020 = vector.shape_cast %1019 : vector<8xf32> to vector<8x1xf32>
    %1021 = vector.broadcast %1020 : vector<8x1xf32> to vector<8x8xf32>
    %1022 = arith.subf %1018, %1021 : vector<8x8xf32>
    %1023 = math.exp %1022 : vector<8x8xf32>
    %cst_441 = arith.constant dense<0.000000e+00> : vector<8xf32>
    %1024 = vector.multi_reduction <add>, %1023, %cst_441 [1] : vector<8x8xf32> to vector<8xf32>
    %1025 = vector.shape_cast %1024 : vector<8xf32> to vector<8x1xf32>
    %1026 = vector.broadcast %1025 : vector<8x1xf32> to vector<8x8xf32>
    %1027 = arith.divf %1023, %1026 : vector<8x8xf32>
    %1028 = arith.addf %1010, %1027 : vector<8x8xf32>
    %1029 = vector.extract_strided_slice %905 {offsets = [0, 48], sizes = [8, 8], strides = [1, 1]} : vector<8x64xf32> to vector<8x8xf32>
    %cst_442 = arith.constant dense<0.000000e+00> : vector<8x8xf32>
    %1030 = tpu.matmul %1027, %1029, %cst_442 {dimension_numbers = #tpu.dot_dimension_numbers<[1], [0], [0], [1], [0, 0, 1, 1], [], []>} : vector<8x8xf32>, vector<8x8xf32>, vector<8x8xf32> -> vector<8x8xf32>
    %1031 = vector.extract_strided_slice %688 {offsets = [48, 0], sizes = [8, 64], strides = [1, 1]} : vector<64x64xf32> to vector<8x64xf32>
    %cst_443 = arith.constant dense<0.000000e+00> : vector<8x64xf32>
    %1032 = tpu.matmul %1030, %1031, %cst_443 {dimension_numbers = #tpu.dot_dimension_numbers<[1], [0], [0], [1], [0, 0, 1, 1], [], []>} : vector<8x8xf32>, vector<8x64xf32>, vector<8x64xf32> -> vector<8x64xf32>
    %1033 = arith.addf %1015, %1032 : vector<8x64xf32>
    %1034 = vector.extract_strided_slice %903 {offsets = [0, 56], sizes = [8, 8], strides = [1, 1]} : vector<8x64xf32> to vector<8x8xf32>
    %1035 = vector.extract_strided_slice %904 {offsets = [0, 56], sizes = [8, 8], strides = [1, 1]} : vector<8x64xf32> to vector<8x8xf32>
    %cst_444 = arith.constant dense<0.000000e+00> : vector<8x8xf32>
    %1036 = tpu.matmul %1034, %1035, %cst_444 {dimension_numbers = #tpu.dot_dimension_numbers<[1], [1], [0], [0], [0, 0, 1, 0], [], []>} : vector<8x8xf32>, vector<8x8xf32>, vector<8x8xf32> -> vector<8x8xf32>
    %cst_445 = arith.constant dense<0xFF800000> : vector<8xf32>
    %1037 = vector.multi_reduction <maximumf>, %1036, %cst_445 [1] : vector<8x8xf32> to vector<8xf32>
    %1038 = vector.shape_cast %1037 : vector<8xf32> to vector<8x1xf32>
    %1039 = vector.broadcast %1038 : vector<8x1xf32> to vector<8x8xf32>
    %1040 = arith.subf %1036, %1039 : vector<8x8xf32>
    %1041 = math.exp %1040 : vector<8x8xf32>
    %cst_446 = arith.constant dense<0.000000e+00> : vector<8xf32>
    %1042 = vector.multi_reduction <add>, %1041, %cst_446 [1] : vector<8x8xf32> to vector<8xf32>
    %1043 = vector.shape_cast %1042 : vector<8xf32> to vector<8x1xf32>
    %1044 = vector.broadcast %1043 : vector<8x1xf32> to vector<8x8xf32>
    %1045 = arith.divf %1041, %1044 : vector<8x8xf32>
    %1046 = arith.addf %1028, %1045 : vector<8x8xf32>
    %1047 = vector.extract_strided_slice %905 {offsets = [0, 56], sizes = [8, 8], strides = [1, 1]} : vector<8x64xf32> to vector<8x8xf32>
    %cst_447 = arith.constant dense<0.000000e+00> : vector<8x8xf32>
    %1048 = tpu.matmul %1045, %1047, %cst_447 {dimension_numbers = #tpu.dot_dimension_numbers<[1], [0], [0], [1], [0, 0, 1, 1], [], []>} : vector<8x8xf32>, vector<8x8xf32>, vector<8x8xf32> -> vector<8x8xf32>
    %1049 = vector.extract_strided_slice %688 {offsets = [56, 0], sizes = [8, 64], strides = [1, 1]} : vector<64x64xf32> to vector<8x64xf32>
    %cst_448 = arith.constant dense<0.000000e+00> : vector<8x64xf32>
    %1050 = tpu.matmul %1048, %1049, %cst_448 {dimension_numbers = #tpu.dot_dimension_numbers<[1], [0], [0], [1], [0, 0, 1, 1], [], []>} : vector<8x8xf32>, vector<8x64xf32>, vector<8x64xf32> -> vector<8x64xf32>
    %1051 = arith.addf %1033, %1050 : vector<8x64xf32>
    %cst_449 = arith.constant 1.250000e-01 : f32
    %1052 = vector.broadcast %cst_449 : f32 to vector<8x8xf32>
    %1053 = arith.mulf %1046, %1052 : vector<8x8xf32>
    %c1_450 = arith.constant 1 : index
    %c0_451 = arith.constant 0 : index
    %c0_452 = arith.constant 0 : index
    %1054 = vector.load %arg21[%c1_450, %c0_451, %c0_452] : memref<2x8x8xf32, #tpu.memory_space<vmem>>, vector<1x8x8xf32>
    %1055 = vector.shape_cast %1054 : vector<1x8x8xf32> to vector<8x8xf32>
    %1056 = vector.shape_cast %1053 : vector<8x8xf32> to vector<1x8x8xf32>
    tpu.vector_store %arg21[%c1_450, %c0_451, %c0_452], %1056 {strides = array<i32>} : memref<2x8x8xf32, #tpu.memory_space<vmem>>, vector<1x8x8xf32>,
    %1057 = arith.addf %897, %1051 : vector<8x64xf32>
    %1058 = vector.broadcast %689 : vector<1x64xf32> to vector<8x64xf32>
    %1059 = arith.addf %1057, %1058 : vector<8x64xf32>
    %c0_453 = arith.constant 0 : index
    %c0_454 = arith.constant 0 : index
    %1060 = vector.load %arg11[%c0_453, %c0_454] : memref<64x32xf32, #tpu.memory_space<vmem>>, vector<64x32xf32>
    %cst_455 = arith.constant dense<0.000000e+00> : vector<8x32xf32>
    %1061 = tpu.matmul %1059, %1060, %cst_455 {dimension_numbers = #tpu.dot_dimension_numbers<[1], [0], [0], [1], [0, 0, 1, 1], [], []>} : vector<8x64xf32>, vector<64x32xf32>, vector<8x32xf32> -> vector<8x32xf32>
    %c0_456 = arith.constant 0 : index
    %c0_457 = arith.constant 0 : index
    %1062 = vector.load %arg12[%c0_456, %c0_457] : memref<1x32xf32, #tpu.memory_space<vmem>>, vector<1x32xf32>
    %1063 = vector.broadcast %1062 : vector<1x32xf32> to vector<8x32xf32>
    %1064 = arith.addf %1061, %1063 : vector<8x32xf32>
    %cst_458 = arith.constant 0.000000e+00 : f32
    %1065 = vector.broadcast %cst_458 : f32 to vector<8x32xf32>
    %1066 = arith.maximumf %1064, %1065 : vector<8x32xf32>
    %c0_459 = arith.constant 0 : index
    %c0_460 = arith.constant 0 : index
    %1067 = vector.load %arg13[%c0_459, %c0_460] : memref<32x16xf32, #tpu.memory_space<vmem>>, vector<32x16xf32>
    %cst_461 = arith.constant dense<0.000000e+00> : vector<8x16xf32>
    %1068 = tpu.matmul %1066, %1067, %cst_461 {dimension_numbers = #tpu.dot_dimension_numbers<[1], [0], [0], [1], [0, 0, 1, 1], [], []>} : vector<8x32xf32>, vector<32x16xf32>, vector<8x16xf32> -> vector<8x16xf32>
    %c0_462 = arith.constant 0 : index
    %c0_463 = arith.constant 0 : index
    %1069 = vector.load %arg14[%c0_462, %c0_463] : memref<1x16xf32, #tpu.memory_space<vmem>>, vector<1x16xf32>
    %1070 = vector.broadcast %1069 : vector<1x16xf32> to vector<8x16xf32>
    %1071 = arith.addf %1068, %1070 : vector<8x16xf32>
    %cst_464 = arith.constant 0.000000e+00 : f32
    %1072 = vector.broadcast %cst_464 : f32 to vector<8x16xf32>
    %1073 = arith.maximumf %1071, %1072 : vector<8x16xf32>
    %c0_465 = arith.constant 0 : index
    %c0_466 = arith.constant 0 : index
    %1074 = vector.load %arg15[%c0_465, %c0_466] : memref<16x9xf32, #tpu.memory_space<vmem>>, vector<16x9xf32>
    %cst_467 = arith.constant dense<0.000000e+00> : vector<9x8xf32>
    %1075 = tpu.matmul %1074, %1073, %cst_467 {dimension_numbers = #tpu.dot_dimension_numbers<[0], [1], [1], [0], [0, 1, 1, 0], [], []>} : vector<16x9xf32>, vector<8x16xf32>, vector<9x8xf32> -> vector<9x8xf32>
    %c0_468 = arith.constant 0 : index
    %c0_469 = arith.constant 0 : index
    %1076 = vector.load %arg16[%c0_468, %c0_469] : memref<9x1xf32, #tpu.memory_space<vmem>>, vector<9x1xf32>
    %1077 = vector.broadcast %1076 : vector<9x1xf32> to vector<9x8xf32>
    %1078 = arith.addf %1075, %1077 : vector<9x8xf32>
    %1079 = vector.extract_strided_slice %1078 {offsets = [0, 0], sizes = [1, 8], strides = [1, 1]} : vector<9x8xf32> to vector<1x8xf32>
    %1080 = vector.extract_strided_slice %1078 {offsets = [1, 0], sizes = [8, 8], strides = [1, 1]} : vector<9x8xf32> to vector<8x8xf32>
    %cst_470 = arith.constant 0.000000e+00 : f32
    %1081 = vector.broadcast %cst_470 : f32 to vector<8x8xf32>
    %1082 = arith.maximumf %1080, %1081 : vector<8x8xf32>
    %c0_471 = arith.constant 0 : index
    %c0_472 = arith.constant 0 : index
    %1083 = vector.load %arg17[%c0_471, %c0_472] : memref<8x1xf32, #tpu.memory_space<vmem>>, vector<8x1xf32>
    %cst_473 = arith.constant dense<0.000000e+00> : vector<1x8xf32>
    %1084 = tpu.matmul %1083, %1082, %cst_473 {dimension_numbers = #tpu.dot_dimension_numbers<[0], [0], [1], [1], [0, 1, 1, 1], [], []>} : vector<8x1xf32>, vector<8x8xf32>, vector<1x8xf32> -> vector<1x8xf32>
    %c0_474 = arith.constant 0 : index
    %c0_475 = arith.constant 0 : index
    %1085 = vector.load %arg18[%c0_474, %c0_475] : memref<1x1xf32, #tpu.memory_space<vmem>>, vector<1x1xf32>
    %1086 = vector.broadcast %1085 : vector<1x1xf32> to vector<1x8xf32>
    %1087 = arith.addf %1084, %1086 : vector<1x8xf32>
    %cst_476 = arith.constant 0.000000e+00 : f32
    %1088 = vector.broadcast %cst_476 : f32 to vector<1x8xf32>
    %1089 = arith.maximumf %1087, %1088 : vector<1x8xf32>
    %1090 = vector.broadcast %cst_476 : f32 to vector<1x8xf32>
    %1091 = arith.subf %1087, %1090 : vector<1x8xf32>
    %1092 = arith.cmpf one, %1091, %1091 : vector<1x8xf32>
    %1093 = vector.broadcast %cst_476 : f32 to vector<1x8xf32>
    %1094 = arith.addf %1087, %1093 : vector<1x8xf32>
    %1095 = math.absf %1091 : vector<1x8xf32>
    %cst_477 = arith.constant 0.000000e+00 : f32
    %1096 = vector.broadcast %cst_477 : f32 to vector<1x8xf32>
    %1097 = arith.subf %1096, %1095 : vector<1x8xf32>
    %1098 = math.exp %1097 : vector<1x8xf32>
    %1099 = math.log1p %1098 : vector<1x8xf32>
    %1100 = arith.addf %1089, %1099 : vector<1x8xf32>
    %1101 = arith.select %1092, %1094, %1100 : vector<1x8xi1>, vector<1x8xf32>
    %1102 = tpu.concatenate %873, %1079 in 0 : vector<1x8xf32>, vector<1x8xf32> -> vector<2x8xf32>
    %c0_478 = arith.constant 0 : index
    %c0_479 = arith.constant 0 : index
    %1103 = vector.load %arg19[%c0_478, %c0_479] : memref<2x8xf32, #tpu.memory_space<vmem>>, vector<2x8xf32>
    tpu.vector_store %arg19[%c0_478, %c0_479], %1102 {strides = array<i32>} : memref<2x8xf32, #tpu.memory_space<vmem>>, vector<2x8xf32>,
    %1104 = tpu.concatenate %895, %1101 in 0 : vector<1x8xf32>, vector<1x8xf32> -> vector<2x8xf32>
    %c0_480 = arith.constant 0 : index
    %c0_481 = arith.constant 0 : index
    %1105 = vector.load %arg20[%c0_480, %c0_481] : memref<2x8xf32, #tpu.memory_space<vmem>>, vector<2x8xf32>
    tpu.vector_store %arg20[%c0_480, %c0_481], %1104 {strides = array<i32>} : memref<2x8xf32, #tpu.memory_space<vmem>>, vector<2x8xf32>,
    return
  }
}

</mosaic_0001>

<llo_original>
// kernel: reverse
$region0: #{reverse}
  %s0 = inlined_call_operand.vmem [shape: f32[8,2], index: 0, kind: input, shape index: {}]
  %s1 = inlined_call_operand.vmem [shape: f32[8,2], index: 1, kind: output, shape index: {}]
  %v2 = vlaneseq
  %v3 = vsub.s32 7, %v2
  %4 = vset.pattern.permute.xlu0 %v3
  $region1: #{reverse} parent=0
    #allocation0 [shape = 'u8[4096]{0}', space=vmem, size = 0x1000, scoped, tag = 'operand span for operand 0']
    #allocation1 [shape = 'u8[1024]{0}', space=vmem, size = 0x400, scoped, tag = 'packed  for operand 0']
    #allocation2 [shape = 'u8[4096]{0}', space=vmem, size = 0x1000, scoped, tag = 'operand span for operand 1']
    #allocation3 [shape = 'u8[1024]{0}', space=vmem, size = 0x400, scoped, tag = 'packed  for operand 1']
    // Predicated region
    $region2: #{reverse} parent=1 // pred_check
      _
    $region3: #{reverse} parent=1 // pred_check_branch
      %6 = sbr.rel (0) target = $region5
    $region4: #{reverse} parent=1 // pred_region
      // Predicated region
      $region6: #{reverse} parent=4 // pred_check
        _
      $region7: #{reverse} parent=4 // pred_check_branch
        %8 = sbr.rel target = $region9
      $region8: #{reverse} parent=4 // pred_region
        // Predicated region
        $region21: #{reverse} parent=8 // pred_check
          _
        $region22: #{reverse} parent=8 // pred_check_branch
          %24 = sbr.rel (0) target = $region24
        $region23: #{reverse} parent=8 // pred_region
          %s26 = ssub.s32 4, 1
          loop: start=0, step=1, limit=1
          $region25: #{reverse} parent=23 // loop_pre_header
            _
          $region26: #{reverse} parent=23 // loop_header
            %s28 = sphi 0, %s32
            %p29 = scmp.ge.s32.totalorder %s28, 1
            %s33 = sphi %s0, %s0
            %s34 = sphi [#allocation1], [#allocation1]
          $region27: #{reverse} parent=23 // loop_header_branch
            %31 = sbr.rel (%p29) target = $region31
          $region28: #{reverse} parent=23 // loop_body
            %v35 = vld [vmem:[%s33] sm:%s26]
            %36 = vst [vmem:[%s34] sm:%s26] %v35
          $region29: #{reverse} parent=23 // loop_footer
            %s32 = sadd.s32 1, %s28
          $region30: #{reverse} parent=23 // loop_footer_branch
            %27 = sbr.rel target = $region26
          $region31: #{reverse} parent=23 // loop_exit
            _
        $region24: #{reverse} parent=8 // pred_fallthru
          _
      $region9: #{reverse} parent=4 // pred_fallthru
        _
      // Predicated region
      $region10: #{reverse} parent=4 // pred_check
        _
      $region11: #{reverse} parent=4 // pred_check_branch
        %10 = sbr.rel (0) target = $region13
      $region12: #{reverse} parent=4 // pred_region
        %s12 = ssub.s32 4, 1
        loop: start=0, step=1, limit=1
        $region14: #{reverse} parent=12 // loop_pre_header
          _
        $region15: #{reverse} parent=12 // loop_header
          %s14 = sphi 0, %s18
          %p15 = scmp.ge.s32.totalorder %s14, 1
          %s19 = sphi %s0, %s0
          %s20 = sphi [#allocation1], [#allocation1]
        $region16: #{reverse} parent=12 // loop_header_branch
          %17 = sbr.rel (%p15) target = $region20
        $region17: #{reverse} parent=12 // loop_body
          %v21 = vld [vmem:[%s19] sm:%s12]
          %22 = vst [vmem:[%s20] sm:%s12] %v21
        $region18: #{reverse} parent=12 // loop_footer
          %s18 = sadd.s32 1, %s14
        $region19: #{reverse} parent=12 // loop_footer_branch
          %13 = sbr.rel target = $region15
        $region20: #{reverse} parent=12 // loop_exit
          _
      $region13: #{reverse} parent=4 // pred_fallthru
        _
    $region5: #{reverse} parent=1 // pred_fallthru
      _
    %37 = vnop
    %s39 = ssub.s32 4, 1
    %v40 = vld [vmem:[#allocation1] sm:%s39]
    %41 = vst [vmem:[#allocation0] sm:%s39] %v40
    %v42 = vld [vmem:[#allocation0] sm:$0xff]
    %43 = vperm.xlu0 %4, %v42
    %v44 = vpop.permute.xlu0 %43
    %45 = vst [vmem:[#allocation2] sm:$0xff] %v44
    %s47 = ssub.s32 4, 1
    %v48 = vld [vmem:[#allocation2] sm:%s47]
    %s50 = ssub.s32 4, 1
    %51 = vst [vmem:[#allocation3] sm:%s50] %v48
    // Predicated region
    $region32: #{reverse} parent=1 // pred_check
      _
    $region33: #{reverse} parent=1 // pred_check_branch
      %53 = sbr.rel (0) target = $region35
    $region34: #{reverse} parent=1 // pred_region
      // Predicated region
      $region36: #{reverse} parent=34 // pred_check
        _
      $region37: #{reverse} parent=34 // pred_check_branch
        %55 = sbr.rel target = $region39
      $region38: #{reverse} parent=34 // pred_region
        // Predicated region
        $region51: #{reverse} parent=38 // pred_check
          _
        $region52: #{reverse} parent=38 // pred_check_branch
          %71 = sbr.rel (0) target = $region54
        $region53: #{reverse} parent=38 // pred_region
          %s73 = ssub.s32 4, 1
          loop: start=0, step=1, limit=1
          $region55: #{reverse} parent=53 // loop_pre_header
            _
          $region56: #{reverse} parent=53 // loop_header
            %s75 = sphi 0, %s79
            %p76 = scmp.ge.s32.totalorder %s75, 1
            %s80 = sphi [#allocation3], [#allocation3]
            %s81 = sphi %s1, %s1
          $region57: #{reverse} parent=53 // loop_header_branch
            %78 = sbr.rel (%p76) target = $region61
          $region58: #{reverse} parent=53 // loop_body
            %v82 = vld [vmem:[%s80] sm:%s73]
            %83 = vst [vmem:[%s81] sm:%s73] %v82
          $region59: #{reverse} parent=53 // loop_footer
            %s79 = sadd.s32 1, %s75
          $region60: #{reverse} parent=53 // loop_footer_branch
            %74 = sbr.rel target = $region56
          $region61: #{reverse} parent=53 // loop_exit
            _
        $region54: #{reverse} parent=38 // pred_fallthru
          _
      $region39: #{reverse} parent=34 // pred_fallthru
        _
      // Predicated region
      $region40: #{reverse} parent=34 // pred_check
        _
      $region41: #{reverse} parent=34 // pred_check_branch
        %57 = sbr.rel (0) target = $region43
      $region42: #{reverse} parent=34 // pred_region
        %s59 = ssub.s32 4, 1
        loop: start=0, step=1, limit=1
        $region44: #{reverse} parent=42 // loop_pre_header
          _
        $region45: #{reverse} parent=42 // loop_header
          %s61 = sphi 0, %s65
          %p62 = scmp.ge.s32.totalorder %s61, 1
          %s66 = sphi [#allocation3], [#allocation3]
          %s67 = sphi %s1, %s1
        $region46: #{reverse} parent=42 // loop_header_branch
          %64 = sbr.rel (%p62) target = $region50
        $region47: #{reverse} parent=42 // loop_body
          %v68 = vld [vmem:[%s66] sm:%s59]
          %69 = vst [vmem:[%s67] sm:%s59] %v68
        $region48: #{reverse} parent=42 // loop_footer
          %s65 = sadd.s32 1, %s61
        $region49: #{reverse} parent=42 // loop_footer_branch
          %60 = sbr.rel target = $region45
        $region50: #{reverse} parent=42 // loop_exit
          _
      $region43: #{reverse} parent=34 // pred_fallthru
        _
    $region35: #{reverse} parent=1 // pred_fallthru
      _
    %84 = vnop

// kernel: bilstm_denoiser_forward.1
$region0: #{bilstm_denoiser_forward.1}
  #allocation0 [shape = 'u32[]', space=smem, size = 0x4, offset = 0x4, fixed_abs, tag = 'smem constant byte address 0x4 - core index']
  #allocation1 [shape = 'u32[72,128]{1,0:T(1,128)}', space=vmem, size = 0x9000, scoped, tag = 'internal scratch']
  #allocation2 [shape = 'f32[8,2,256]{2,1,0:T(2,128)}', space=vmem, size = 0x4000, scoped, tag = 'scratch operand']
  #allocation3 [shape = 'f32[8,2,64]{2,1,0:T(2,128)}', space=vmem, size = 0x2000, scoped, tag = 'scratch operand']
  #allocation4 [shape = 'f32[8,2,64]{2,1,0:T(2,128)}', space=vmem, size = 0x2000, scoped, tag = 'scratch operand']
  #allocation5 [shape = 'f32[1,1]{1,0:T(1,128)S(1)}', space=vmem, size = 0x200, scoped, tag = 'scoped memory for bilstm_denoiser_forward.1']
  %s0 = inlined_call_operand.vmem [shape: f32[8,2,1], index: 0, kind: input, shape index: {}]
  %s1 = inlined_call_operand.vmem [shape: f32[8,2,1], index: 1, kind: input, shape index: {}]
  %s2 = inlined_call_operand.vmem [shape: f32[1,256], index: 2, kind: input, shape index: {}]
  %s3 = inlined_call_operand.vmem [shape: f32[1,256], index: 3, kind: input, shape index: {}]
  %s4 = inlined_call_operand.hbm [shape: f32[2,128,256], index: 4, kind: input, shape index: {}]
  %s5 = inlined_call_operand.hbm [shape: f32[3,64,256], index: 5, kind: input, shape index: {}]
  %s6 = inlined_call_operand.vmem [shape: f32[3,1,256], index: 6, kind: input, shape index: {}]
  %s7 = inlined_call_operand.vmem [shape: f32[64,192], index: 7, kind: input, shape index: {}]
  %s8 = inlined_call_operand.vmem [shape: f32[1,192], index: 8, kind: input, shape index: {}]
  %s9 = inlined_call_operand.vmem [shape: f32[64,64], index: 9, kind: input, shape index: {}]
  %s10 = inlined_call_operand.vmem [shape: f32[1,64], index: 10, kind: input, shape index: {}]
  %s11 = inlined_call_operand.vmem [shape: f32[64,32], index: 11, kind: input, shape index: {}]
  %s12 = inlined_call_operand.vmem [shape: f32[1,32], index: 12, kind: input, shape index: {}]
  %s13 = inlined_call_operand.vmem [shape: f32[32,16], index: 13, kind: input, shape index: {}]
  %s14 = inlined_call_operand.vmem [shape: f32[1,16], index: 14, kind: input, shape index: {}]
  %s15 = inlined_call_operand.vmem [shape: f32[16,9], index: 15, kind: input, shape index: {}]
  %s16 = inlined_call_operand.vmem [shape: f32[9,1], index: 16, kind: input, shape index: {}]
  %s17 = inlined_call_operand.vmem [shape: f32[8,1], index: 17, kind: input, shape index: {}]
  %s18 = inlined_call_operand.<no memory space> [shape: f32[1,1], index: 18, kind: input, shape index: {}]
  %s19 = inlined_call_operand.hbm [shape: f32[2,8], index: 19, kind: output, shape index: {0}]
  %s20 = inlined_call_operand.hbm [shape: f32[2,8], index: 20, kind: output, shape index: {1}]
  %s21 = inlined_call_operand.hbm [shape: f32[2,8,8], index: 21, kind: output, shape index: {2}]
  %22 = xla_tuple %s19, %s20, %s21
  %s23 = sld [smem:[#allocation0]]
  $region110: #{bilstm_denoiser_forward.1} parent=0
    _
  %s25 = ssub.s32 1, %s23
  %s26 = scalar_select 0, %s25, %s23
  %v27 = vstv %s18
  %28 = vst [vmem:[#allocation5] sm:$0x1] %v27
  $region1: #{bilstm_denoiser_forward.1} parent=0
    #allocation6 [shape = 'u8[262144]{0}', space=vmem, size = 0x40000, scoped, tag = 'input window, operand 4, single buffered']
    #allocation7 [shape = 's32[1]{0}', space=sflag, size = 0x4, scoped, tag = 'scoped memory for bilstm_denoiser_forward.1']
    #allocation8 [shape = 's32[1]{0}', space=sflag, size = 0x4, scoped, tag = 'scoped memory for bilstm_denoiser_forward.1']
    #allocation9 [shape = 'u8[196608]{0}', space=vmem, size = 0x30000, scoped, tag = 'input window, operand 5, single buffered']
    #allocation10 [shape = 's32[1]{0}', space=sflag, size = 0x4, scoped, tag = 'scoped memory for bilstm_denoiser_forward.1']
    #allocation11 [shape = 'u8[1024]{0}', space=vmem, size = 0x400, scoped, tag = 'output window, operand 0, single buffered']
    #allocation12 [shape = 'u8[1024]{0}', space=vmem, size = 0x400, scoped, tag = 'output window, operand 1, single buffered']
    #allocation13 [shape = 's32[1]{0}', space=sflag, size = 0x4, scoped, tag = 'scoped memory for bilstm_denoiser_forward.1']
    #allocation14 [shape = 'u8[8192]{0}', space=vmem, size = 0x2000, scoped, tag = 'output window, operand 2, single buffered']
    %29 = vsyncpa [#allocation7], 0
    %30 = vsyncpa [#allocation10], 0
    %31 = vsyncpa [#allocation8], 0
    %32 = vsyncpa [#allocation13], 0
    // Predicated region
    $region2: #{bilstm_denoiser_forward.1} parent=1 // pred_check
      _
    $region3: #{bilstm_denoiser_forward.1} parent=1 // pred_check_branch
      %34 = sbr.rel (0) target = $region5
    $region4: #{bilstm_denoiser_forward.1} parent=1 // pred_region
      _
    $region5: #{bilstm_denoiser_forward.1} parent=1 // pred_fallthru
      _
    // Predicated region
    $region6: #{bilstm_denoiser_forward.1} parent=1 // pred_check
      _
    $region7: #{bilstm_denoiser_forward.1} parent=1 // pred_check_branch
      %36 = sbr.rel (0) target = $region9
    $region8: #{bilstm_denoiser_forward.1} parent=1 // pred_region
      _
    $region9: #{bilstm_denoiser_forward.1} parent=1 // pred_fallthru
      _
    // Predicated region
    $region10: #{bilstm_denoiser_forward.1} parent=1 // pred_check
      _
    $region11: #{bilstm_denoiser_forward.1} parent=1 // pred_check_branch
      %38 = sbr.rel (0) target = $region13
    $region12: #{bilstm_denoiser_forward.1} parent=1 // pred_region
      _
    $region13: #{bilstm_denoiser_forward.1} parent=1 // pred_fallthru
      _
    // Predicated region
    $region14: #{bilstm_denoiser_forward.1} parent=1 // pred_check
      _
    $region15: #{bilstm_denoiser_forward.1} parent=1 // pred_check_branch
      %40 = sbr.rel (0) target = $region17
    $region16: #{bilstm_denoiser_forward.1} parent=1 // pred_region
      _
    $region17: #{bilstm_denoiser_forward.1} parent=1 // pred_fallthru
      _
    // Predicated region
    $region18: #{bilstm_denoiser_forward.1} parent=1 // pred_check
      _
    $region19: #{bilstm_denoiser_forward.1} parent=1 // pred_check_branch
      %42 = sbr.rel (0) target = $region21
    $region20: #{bilstm_denoiser_forward.1} parent=1 // pred_region
      %44 = vsyncadd [#allocation7], 0
      %s45 = sshll.u32 %s4, 4
      %s46 = int_to_ptr.hbm [resolvable:$true] %s45
      %s47 = sshll.u32 [#allocation6], 4
      %s48 = int_to_ptr.vmem [resolvable:$true] %s47
      %53 = dma.hbm_to_vmem [thread:$0]  %s46, 8192, %s48, [#allocation7], 256, 256, 16
    $region21: #{bilstm_denoiser_forward.1} parent=1 // pred_fallthru
      _
    // Predicated region
    $region22: #{bilstm_denoiser_forward.1} parent=1 // pred_check
      _
    $region23: #{bilstm_denoiser_forward.1} parent=1 // pred_check_branch
      %55 = sbr.rel (0) target = $region25
    $region24: #{bilstm_denoiser_forward.1} parent=1 // pred_region
      %57 = vsyncadd [#allocation10], 0
      %s58 = sshll.u32 %s5, 4
      %s59 = int_to_ptr.hbm [resolvable:$true] %s58
      %s60 = sshll.u32 [#allocation9], 4
      %s61 = int_to_ptr.vmem [resolvable:$true] %s60
      %66 = dma.hbm_to_vmem [thread:$0]  %s59, 6144, %s61, [#allocation10], 256, 256, 16
    $region25: #{bilstm_denoiser_forward.1} parent=1 // pred_fallthru
      _
    // Predicated region
    $region26: #{bilstm_denoiser_forward.1} parent=1 // pred_check
      _
    $region27: #{bilstm_denoiser_forward.1} parent=1 // pred_check_branch
      %68 = sbr.rel (0) target = $region29
    $region28: #{bilstm_denoiser_forward.1} parent=1 // pred_region
      _
    $region29: #{bilstm_denoiser_forward.1} parent=1 // pred_fallthru
      _
    // Predicated region
    $region30: #{bilstm_denoiser_forward.1} parent=1 // pred_check
      _
    $region31: #{bilstm_denoiser_forward.1} parent=1 // pred_check_branch
      %70 = sbr.rel (0) target = $region33
    $region32: #{bilstm_denoiser_forward.1} parent=1 // pred_region
      _
    $region33: #{bilstm_denoiser_forward.1} parent=1 // pred_fallthru
      _
    // Predicated region
    $region34: #{bilstm_denoiser_forward.1} parent=1 // pred_check
      _
    $region35: #{bilstm_denoiser_forward.1} parent=1 // pred_check_branch
      %72 = sbr.rel (0) target = $region37
    $region36: #{bilstm_denoiser_forward.1} parent=1 // pred_region
      _
    $region37: #{bilstm_denoiser_forward.1} parent=1 // pred_fallthru
      _
    // Predicated region
    $region38: #{bilstm_denoiser_forward.1} parent=1 // pred_check
      _
    $region39: #{bilstm_denoiser_forward.1} parent=1 // pred_check_branch
      %74 = sbr.rel (0) target = $region41
    $region40: #{bilstm_denoiser_forward.1} parent=1 // pred_region
      _
    $region41: #{bilstm_denoiser_forward.1} parent=1 // pred_fallthru
      _
    // Predicated region
    $region42: #{bilstm_denoiser_forward.1} parent=1 // pred_check
      _
    $region43: #{bilstm_denoiser_forward.1} parent=1 // pred_check_branch
      %76 = sbr.rel (0) target = $region45
    $region44: #{bilstm_denoiser_forward.1} parent=1 // pred_region
      _
    $region45: #{bilstm_denoiser_forward.1} parent=1 // pred_fallthru
      _
    // Predicated region
    $region46: #{bilstm_denoiser_forward.1} parent=1 // pred_check
      _
    $region47: #{bilstm_denoiser_forward.1} parent=1 // pred_check_branch
      %78 = sbr.rel (0) target = $region49
    $region48: #{bilstm_denoiser_forward.1} parent=1 // pred_region
      _
    $region49: #{bilstm_denoiser_forward.1} parent=1 // pred_fallthru
      _
    // Predicated region
    $region50: #{bilstm_denoiser_forward.1} parent=1 // pred_check
      _
    $region51: #{bilstm_denoiser_forward.1} parent=1 // pred_check_branch
      %80 = sbr.rel (0) target = $region53
    $region52: #{bilstm_denoiser_forward.1} parent=1 // pred_region
      _
    $region53: #{bilstm_denoiser_forward.1} parent=1 // pred_fallthru
      _
    // Predicated region
    $region54: #{bilstm_denoiser_forward.1} parent=1 // pred_check
      _
    $region55: #{bilstm_denoiser_forward.1} parent=1 // pred_check_branch
      %82 = sbr.rel (0) target = $region57
    $region56: #{bilstm_denoiser_forward.1} parent=1 // pred_region
      _
    $region57: #{bilstm_denoiser_forward.1} parent=1 // pred_fallthru
      _
    // Predicated region
    $region58: #{bilstm_denoiser_forward.1} parent=1 // pred_check
      _
    $region59: #{bilstm_denoiser_forward.1} parent=1 // pred_check_branch
      %84 = sbr.rel (0) target = $region61
    $region60: #{bilstm_denoiser_forward.1} parent=1 // pred_region
      _
    $region61: #{bilstm_denoiser_forward.1} parent=1 // pred_fallthru
      _
    // Predicated region
    $region62: #{bilstm_denoiser_forward.1} parent=1 // pred_check
      _
    $region63: #{bilstm_denoiser_forward.1} parent=1 // pred_check_branch
      %86 = sbr.rel (0) target = $region65
    $region64: #{bilstm_denoiser_forward.1} parent=1 // pred_region
      _
    $region65: #{bilstm_denoiser_forward.1} parent=1 // pred_fallthru
      _
    // Predicated region
    $region66: #{bilstm_denoiser_forward.1} parent=1 // pred_check
      _
    $region67: #{bilstm_denoiser_forward.1} parent=1 // pred_check_branch
      %88 = sbr.rel (0) target = $region69
    $region68: #{bilstm_denoiser_forward.1} parent=1 // pred_region
      _
    $region69: #{bilstm_denoiser_forward.1} parent=1 // pred_fallthru
      _
    // Predicated region
    $region70: #{bilstm_denoiser_forward.1} parent=1 // pred_check
      _
    $region71: #{bilstm_denoiser_forward.1} parent=1 // pred_check_branch
      %90 = sbr.rel (0) target = $region73
    $region72: #{bilstm_denoiser_forward.1} parent=1 // pred_region
      _
    $region73: #{bilstm_denoiser_forward.1} parent=1 // pred_fallthru
      _
    // Predicated region
    $region74: #{bilstm_denoiser_forward.1} parent=1 // pred_check
      _
    $region75: #{bilstm_denoiser_forward.1} parent=1 // pred_check_branch
      %92 = sbr.rel (0) target = $region77
    $region76: #{bilstm_denoiser_forward.1} parent=1 // pred_region
      _
    $region77: #{bilstm_denoiser_forward.1} parent=1 // pred_fallthru
      _
    // Predicated region
    $region78: #{bilstm_denoiser_forward.1} parent=1 // pred_check
      _
    $region79: #{bilstm_denoiser_forward.1} parent=1 // pred_check_branch
      %94 = sbr.rel (0) target = $region81
    $region80: #{bilstm_denoiser_forward.1} parent=1 // pred_region
      %96 = dma.done [#allocation7], 8192
    $region81: #{bilstm_denoiser_forward.1} parent=1 // pred_fallthru
      _
    // Predicated region
    $region82: #{bilstm_denoiser_forward.1} parent=1 // pred_check
      _
    $region83: #{bilstm_denoiser_forward.1} parent=1 // pred_check_branch
      %98 = sbr.rel (0) target = $region85
    $region84: #{bilstm_denoiser_forward.1} parent=1 // pred_region
      %100 = dma.done [#allocation10], 6144
    $region85: #{bilstm_denoiser_forward.1} parent=1 // pred_fallthru
      _
    %v101 = vld [vmem:[%s0] sm:$0x3]
    %v102 = vld [vmem:[%s0 + $0x2] sm:$0x3]
    %v103 = vld [vmem:[%s0 + $0x4] sm:$0x3]
    %v104 = vld [vmem:[%s0 + $0x6] sm:$0x3]
    %v105 = vld [vmem:[%s0 + $0x8] sm:$0x3]
    %v106 = vld [vmem:[%s0 + $0xa] sm:$0x3]
    %v107 = vld [vmem:[%s0 + $0xc] sm:$0x3]
    %v108 = vld [vmem:[%s0 + $0xe] sm:$0x3]
    %v109 = vld [vmem:[%s2] sm:$0x3]
    %111 = vset.pattern.permute.xlu0 0
    %112 = vperm.xlu0 %111, %v101
    %v113 = vpop.permute.xlu0 %112
    %116 = vset.pattern.permute.xlu0 0
    %117 = vperm.xlu0 %116, %v102
    %v118 = vpop.permute.xlu0 %117
    %121 = vset.pattern.permute.xlu0 0
    %122 = vperm.xlu0 %121, %v103
    %v123 = vpop.permute.xlu0 %122
    %126 = vset.pattern.permute.xlu0 0
    %127 = vperm.xlu0 %126, %v104
    %v128 = vpop.permute.xlu0 %127
    %131 = vset.pattern.permute.xlu0 0
    %132 = vperm.xlu0 %131, %v105
    %v133 = vpop.permute.xlu0 %132
    %136 = vset.pattern.permute.xlu0 0
    %137 = vperm.xlu0 %136, %v106
    %v138 = vpop.permute.xlu0 %137
    %141 = vset.pattern.permute.xlu0 0
    %142 = vperm.xlu0 %141, %v107
    %v143 = vpop.permute.xlu0 %142
    %146 = vset.pattern.permute.xlu0 0
    %147 = vperm.xlu0 %146, %v108
    %v148 = vpop.permute.xlu0 %147
    %v151 = vperm.slane %v109, 0
    %v152 = vperm.slane %v109, 1
    %v155 = vmul.f32 %v113, %v151
    %v156 = vmul.f32 %v113, %v152
    %v157 = vmul.f32 %v118, %v151
    %v158 = vmul.f32 %v118, %v152
    %v159 = vmul.f32 %v123, %v151
    %v160 = vmul.f32 %v123, %v152
    %v161 = vmul.f32 %v128, %v151
    %v162 = vmul.f32 %v128, %v152
    %v163 = vmul.f32 %v133, %v151
    %v164 = vmul.f32 %v133, %v152
    %v165 = vmul.f32 %v138, %v151
    %v166 = vmul.f32 %v138, %v152
    %v167 = vmul.f32 %v143, %v151
    %v168 = vmul.f32 %v143, %v152
    %v169 = vmul.f32 %v148, %v151
    %v170 = vmul.f32 %v148, %v152
    %v171 = vld [vmem:[%s1] sm:$0x3]
    %v172 = vld [vmem:[%s1 + $0x2] sm:$0x3]
    %v173 = vld [vmem:[%s1 + $0x4] sm:$0x3]
    %v174 = vld [vmem:[%s1 + $0x6] sm:$0x3]
    %v175 = vld [vmem:[%s1 + $0x8] sm:$0x3]
    %v176 = vld [vmem:[%s1 + $0xa] sm:$0x3]
    %v177 = vld [vmem:[%s1 + $0xc] sm:$0x3]
    %v178 = vld [vmem:[%s1 + $0xe] sm:$0x3]
    %v179 = vld [vmem:[%s3] sm:$0x3]
    %181 = vset.pattern.permute.xlu0 0
    %182 = vperm.xlu0 %181, %v171
    %v183 = vpop.permute.xlu0 %182
    %186 = vset.pattern.permute.xlu0 0
    %187 = vperm.xlu0 %186, %v172
    %v188 = vpop.permute.xlu0 %187
    %191 = vset.pattern.permute.xlu0 0
    %192 = vperm.xlu0 %191, %v173
    %v193 = vpop.permute.xlu0 %192
    %196 = vset.pattern.permute.xlu0 0
    %197 = vperm.xlu0 %196, %v174
    %v198 = vpop.permute.xlu0 %197
    %201 = vset.pattern.permute.xlu0 0
    %202 = vperm.xlu0 %201, %v175
    %v203 = vpop.permute.xlu0 %202
    %206 = vset.pattern.permute.xlu0 0
    %207 = vperm.xlu0 %206, %v176
    %v208 = vpop.permute.xlu0 %207
    %211 = vset.pattern.permute.xlu0 0
    %212 = vperm.xlu0 %211, %v177
    %v213 = vpop.permute.xlu0 %212
    %216 = vset.pattern.permute.xlu0 0
    %217 = vperm.xlu0 %216, %v178
    %v218 = vpop.permute.xlu0 %217
    %v221 = vperm.slane %v179, 0
    %v222 = vperm.slane %v179, 1
    %v225 = vmul.f32 %v183, %v221
    %v226 = vmul.f32 %v183, %v222
    %v227 = vmul.f32 %v188, %v221
    %v228 = vmul.f32 %v188, %v222
    %v229 = vmul.f32 %v193, %v221
    %v230 = vmul.f32 %v193, %v222
    %v231 = vmul.f32 %v198, %v221
    %v232 = vmul.f32 %v198, %v222
    %v233 = vmul.f32 %v203, %v221
    %v234 = vmul.f32 %v203, %v222
    %v235 = vmul.f32 %v208, %v221
    %v236 = vmul.f32 %v208, %v222
    %v237 = vmul.f32 %v213, %v221
    %v238 = vmul.f32 %v213, %v222
    %v239 = vmul.f32 %v218, %v221
    %v240 = vmul.f32 %v218, %v222
    %v241 = vadd.f32 %v155, %v225
    %v242 = vadd.f32 %v156, %v226
    %v243 = vadd.f32 %v157, %v227
    %v244 = vadd.f32 %v158, %v228
    %v245 = vadd.f32 %v159, %v229
    %v246 = vadd.f32 %v160, %v230
    %v247 = vadd.f32 %v161, %v231
    %v248 = vadd.f32 %v162, %v232
    %v249 = vadd.f32 %v163, %v233
    %v250 = vadd.f32 %v164, %v234
    %v251 = vadd.f32 %v165, %v235
    %v252 = vadd.f32 %v166, %v236
    %v253 = vadd.f32 %v167, %v237
    %v254 = vadd.f32 %v168, %v238
    %v255 = vadd.f32 %v169, %v239
    %v256 = vadd.f32 %v170, %v240
    %v257 = vld [vmem:[%s6] sm:$0x3]
    %v259 = vperm.slane %v257, 0
    %v260 = vperm.slane %v257, 1
    %v263 = vadd.f32 %v241, %v259
    %v264 = vadd.f32 %v242, %v260
    %v265 = vadd.f32 %v243, %v259
    %v266 = vadd.f32 %v244, %v260
    %v267 = vadd.f32 %v245, %v259
    %v268 = vadd.f32 %v246, %v260
    %v269 = vadd.f32 %v247, %v259
    %v270 = vadd.f32 %v248, %v260
    %v271 = vadd.f32 %v249, %v259
    %v272 = vadd.f32 %v250, %v260
    %v273 = vadd.f32 %v251, %v259
    %v274 = vadd.f32 %v252, %v260
    %v275 = vadd.f32 %v253, %v259
    %v276 = vadd.f32 %v254, %v260
    %v277 = vadd.f32 %v255, %v259
    %v278 = vadd.f32 %v256, %v260
    %v295 = vrot.slane %v264, 6
    %v296 = vrot.slane %v266, 6
    %v297 = vrot.slane %v268, 6
    %v298 = vrot.slane %v270, 6
    %v299 = vrot.slane %v272, 6
    %v300 = vrot.slane %v274, 6
    %v301 = vrot.slane %v276, 6
    %v302 = vrot.slane %v278, 6
    %vm303 = vcmask 1041408
    %v304 = vsel %vm303, %v263, %v295
    %v305 = vsel %vm303, %v265, %v296
    %v306 = vsel %vm303, %v267, %v297
    %v307 = vsel %vm303, %v269, %v298
    %v308 = vsel %vm303, %v271, %v299
    %v309 = vsel %vm303, %v273, %v300
    %v310 = vsel %vm303, %v275, %v301
    %v311 = vsel %vm303, %v277, %v302
    %320 = vst [vmem:[#allocation2] sm:$0xf] %v304
    %321 = vst [vmem:[#allocation2 + $0x4] sm:$0xf] %v305
    %322 = vst [vmem:[#allocation2 + $0x8] sm:$0xf] %v306
    %323 = vst [vmem:[#allocation2 + $0xc] sm:$0xf] %v307
    %324 = vst [vmem:[#allocation2 + $0x10] sm:$0xf] %v308
    %325 = vst [vmem:[#allocation2 + $0x14] sm:$0xf] %v309
    %326 = vst [vmem:[#allocation2 + $0x18] sm:$0xf] %v310
    %327 = vst [vmem:[#allocation2 + $0x1c] sm:$0xf] %v311
    %v328 = vld [vmem:[#allocation9] sm:$0xff]
    %v329 = vld [vmem:[#allocation9 + $0x8] sm:$0xff]
    %v330 = vld [vmem:[#allocation9 + $0x10] sm:$0xff]
    %v331 = vld [vmem:[#allocation9 + $0x18] sm:$0xff]
    %v332 = vld [vmem:[#allocation9 + $0x20] sm:$0xff]
    %v333 = vld [vmem:[#allocation9 + $0x28] sm:$0xff]
    %v334 = vld [vmem:[#allocation9 + $0x30] sm:$0xff]
    %v335 = vld [vmem:[#allocation9 + $0x38] sm:$0xff]
    %v336 = vld [vmem:[#allocation9 + $0x40] sm:$0xff]
    %v337 = vld [vmem:[#allocation9 + $0x48] sm:$0xff]
    %v338 = vld [vmem:[#allocation9 + $0x50] sm:$0xff]
    %v339 = vld [vmem:[#allocation9 + $0x58] sm:$0xff]
    %v340 = vld [vmem:[#allocation9 + $0x60] sm:$0xff]
    %v341 = vld [vmem:[#allocation9 + $0x68] sm:$0xff]
    %v342 = vld [vmem:[#allocation9 + $0x70] sm:$0xff]
    %v343 = vld [vmem:[#allocation9 + $0x78] sm:$0xff]
    %v344 = vld [vmem:[#allocation2] sm:$0xf]
    %vm345 = vcmask 523264
    %v347 = vsel %vm345, 0.0, 0
    %349 = vmatpush.msra.mxu0 0.0
    %350 = vmatpush.msra.mxu0 0.0
    %351 = vmatpush.msra.mxu0 0.0
    %352 = vmatpush.msra.mxu0 0.0
    %353 = vmatpush.msra.mxu0 0.0
    %354 = vmatpush.msra.mxu0 0.0
    %355 = vmatpush.msra.mxu0 0.0
    %356 = vmatpush.msra.mxu0 0.0
    %357 = vmatpush.msra.mxu0 %v342
    %358 = vmatpush.msra.mxu0 %v340
    %359 = vmatpush.msra.mxu0 %v338
    %360 = vmatpush.msra.mxu0 %v336
    %361 = vmatpush.msra.mxu0 %v334
    %362 = vmatpush.msra.mxu0 %v332
    %363 = vmatpush.msra.mxu0 %v330
    %364 = vmatpush.msra.mxu0 %v328
    %365 = vmatmul.f32.gmra.mxu0 %v347
    %v366 = vpop.f32.mrf.mxu0
    %v367 = vadd.f32 0.0, %v366
    %368 = vdwg.mxu0
    %369 = vmatpush.msra.mxu0 0.0
    %370 = vmatpush.msra.mxu0 0.0
    %371 = vmatpush.msra.mxu0 0.0
    %372 = vmatpush.msra.mxu0 0.0
    %373 = vmatpush.msra.mxu0 0.0
    %374 = vmatpush.msra.mxu0 0.0
    %375 = vmatpush.msra.mxu0 0.0
    %376 = vmatpush.msra.mxu0 0.0
    %377 = vmatpush.msra.mxu0 %v343
    %378 = vmatpush.msra.mxu0 %v341
    %379 = vmatpush.msra.mxu0 %v339
    %380 = vmatpush.msra.mxu0 %v337
    %381 = vmatpush.msra.mxu0 %v335
    %382 = vmatpush.msra.mxu0 %v333
    %383 = vmatpush.msra.mxu0 %v331
    %384 = vmatpush.msra.mxu0 %v329
    %385 = vmatmul.f32.gmra.mxu0 %v347
    %v386 = vpop.f32.mrf.mxu0
    %v387 = vadd.f32 0.0, %v386
    %388 = vdwg.mxu0
    %v391 = vrot.slane %v387, 6
    %v392 = vsel %vm303, %v367, %v391
    %v394 = vadd.f32 %v344, %v392
    %v395 = vtanh.pop %v394
    %v396 = vxor.u32 %v394, 2147483648
    %v397 = vmul.f32 %v396, 1.442695
    %v398 = vpow.pop %v397
    %v399 = vadd.f32 %v398, 1.0
    %v400 = vrcp.pop %v399
    %v401 = vmul.f32 %v399, %v400
    %v402 = vsub.f32 1.0, %v401
    %v403 = vmul.f32 %v400, %v402
    %v404 = vadd.f32 %v400, %v403
    %vm405 = vweird.f32 %v399
    %vm406 = vweird.f32 %v400
    %vm407 = vmor %vm405, %vm406
    %v408 = vsel %vm407, %v400, %v404
    %v409 = vand.u32 2147483647, %v399
    %vm410 = vcmp.eq.f32.partialorder %v409, 8.507059e+37
    %v411 = vand.u32 %v399, 2147483648
    %v412 = vor.u32 1.1754944e-38, %v411
    %v413 = vsel %vm410, %v412, %v408
    %v414 = vmul.f32 1.0, %v413
    %v416 = vrot.slane %v414, 2
    %v418 = vmul.f32 %v416, 0.0
    %420 = vrot.lane.b32.xlu0 %v395, 64
    %v421 = vpop.permute.xlu0 %420
    %v423 = vmul.f32 %v414, %v421
    %425 = vrot.lane.b32.xlu0 %v423, 64
    %v426 = vpop.permute.xlu0 %425
    %v428 = vadd.f32 %v418, %v426
    %v429 = vtanh.pop %v428
    %430 = vrot.lane.b32.xlu0 %v414, 64
    %v431 = vpop.permute.xlu0 %430
    %v432 = vrot.slane %v431, 2
    %v434 = vmul.f32 %v432, %v429
    %vm435 = vcmask 517120
    %436 = vst.msk [vmem:[#allocation3] sm:$0x3] %vm435, %v434
    %s437 = scalar_lea.vmem [#allocation4], 14
    %438 = vst.msk [vmem:[%s437] sm:$0x3] %vm435, %v434
    %s439 = scalar_lea.vmem [#allocation2], 4
    %v440 = vld [vmem:[%s439] sm:$0xf]
    %v442 = vsel %vm345, %v434, 0
    %444 = vmatpush.msra.mxu0 0.0
    %445 = vmatpush.msra.mxu0 0.0
    %446 = vmatpush.msra.mxu0 0.0
    %447 = vmatpush.msra.mxu0 0.0
    %448 = vmatpush.msra.mxu0 0.0
    %449 = vmatpush.msra.mxu0 0.0
    %450 = vmatpush.msra.mxu0 0.0
    %451 = vmatpush.msra.mxu0 0.0
    %452 = vmatpush.msra.mxu0 %v342
    %453 = vmatpush.msra.mxu0 %v340
    %454 = vmatpush.msra.mxu0 %v338
    %455 = vmatpush.msra.mxu0 %v336
    %456 = vmatpush.msra.mxu0 %v334
    %457 = vmatpush.msra.mxu0 %v332
    %458 = vmatpush.msra.mxu0 %v330
    %459 = vmatpush.msra.mxu0 %v328
    %460 = vmatmul.f32.gmra.mxu0 %v442
    %v461 = vpop.f32.mrf.mxu0
    %v462 = vadd.f32 0.0, %v461
    %463 = vdwg.mxu0
    %464 = vmatpush.msra.mxu0 0.0
    %465 = vmatpush.msra.mxu0 0.0
    %466 = vmatpush.msra.mxu0 0.0
    %467 = vmatpush.msra.mxu0 0.0
    %468 = vmatpush.msra.mxu0 0.0
    %469 = vmatpush.msra.mxu0 0.0
    %470 = vmatpush.msra.mxu0 0.0
    %471 = vmatpush.msra.mxu0 0.0
    %472 = vmatpush.msra.mxu0 %v343
    %473 = vmatpush.msra.mxu0 %v341
    %474 = vmatpush.msra.mxu0 %v339
    %475 = vmatpush.msra.mxu0 %v337
    %476 = vmatpush.msra.mxu0 %v335
    %477 = vmatpush.msra.mxu0 %v333
    %478 = vmatpush.msra.mxu0 %v331
    %479 = vmatpush.msra.mxu0 %v329
    %480 = vmatmul.f32.gmra.mxu0 %v442
    %v481 = vpop.f32.mrf.mxu0
    %v482 = vadd.f32 0.0, %v481
    %483 = vdwg.mxu0
    %v486 = vrot.slane %v482, 6
    %v487 = vsel %vm303, %v462, %v486
    %v489 = vadd.f32 %v440, %v487
    %v490 = vtanh.pop %v489
    %v491 = vxor.u32 %v489, 2147483648
    %v492 = vmul.f32 %v491, 1.442695
    %v493 = vpow.pop %v492
    %v494 = vadd.f32 %v493, 1.0
    %v495 = vrcp.pop %v494
    %v496 = vmul.f32 %v494, %v495
    %v497 = vsub.f32 1.0, %v496
    %v498 = vmul.f32 %v495, %v497
    %v499 = vadd.f32 %v495, %v498
    %vm500 = vweird.f32 %v494
    %vm501 = vweird.f32 %v495
    %vm502 = vmor %vm500, %vm501
    %v503 = vsel %vm502, %v495, %v499
    %v504 = vand.u32 2147483647, %v494
    %vm505 = vcmp.eq.f32.partialorder %v504, 8.507059e+37
    %v506 = vand.u32 %v494, 2147483648
    %v507 = vor.u32 1.1754944e-38, %v506
    %v508 = vsel %vm505, %v507, %v503
    %v509 = vmul.f32 1.0, %v508
    %v511 = vrot.slane %v509, 2
    %v513 = vmul.f32 %v511, %v428
    %515 = vrot.lane.b32.xlu0 %v490, 64
    %v516 = vpop.permute.xlu0 %515
    %v518 = vmul.f32 %v509, %v516
    %520 = vrot.lane.b32.xlu0 %v518, 64
    %v521 = vpop.permute.xlu0 %520
    %v523 = vadd.f32 %v513, %v521
    %v524 = vtanh.pop %v523
    %525 = vrot.lane.b32.xlu0 %v509, 64
    %v526 = vpop.permute.xlu0 %525
    %v527 = vrot.slane %v526, 2
    %v529 = vmul.f32 %v527, %v524
    %s530 = scalar_lea.vmem [#allocation3], 2
    %531 = vst.msk [vmem:[%s530] sm:$0x3] %vm435, %v529
    %s532 = scalar_lea.vmem [#allocation4], 12
    %533 = vst.msk [vmem:[%s532] sm:$0x3] %vm435, %v529
    %s534 = scalar_lea.vmem [#allocation2], 8
    %v535 = vld [vmem:[%s534] sm:$0xf]
    %v537 = vsel %vm345, %v529, 0
    %539 = vmatpush.msra.mxu0 0.0
    %540 = vmatpush.msra.mxu0 0.0
    %541 = vmatpush.msra.mxu0 0.0
    %542 = vmatpush.msra.mxu0 0.0
    %543 = vmatpush.msra.mxu0 0.0
    %544 = vmatpush.msra.mxu0 0.0
    %545 = vmatpush.msra.mxu0 0.0
    %546 = vmatpush.msra.mxu0 0.0
    %547 = vmatpush.msra.mxu0 %v342
    %548 = vmatpush.msra.mxu0 %v340
    %549 = vmatpush.msra.mxu0 %v338
    %550 = vmatpush.msra.mxu0 %v336
    %551 = vmatpush.msra.mxu0 %v334
    %552 = vmatpush.msra.mxu0 %v332
    %553 = vmatpush.msra.mxu0 %v330
    %554 = vmatpush.msra.mxu0 %v328
    %555 = vmatmul.f32.gmra.mxu0 %v537
    %v556 = vpop.f32.mrf.mxu0
    %v557 = vadd.f32 0.0, %v556
    %558 = vdwg.mxu0
    %559 = vmatpush.msra.mxu0 0.0
    %560 = vmatpush.msra.mxu0 0.0
    %561 = vmatpush.msra.mxu0 0.0
    %562 = vmatpush.msra.mxu0 0.0
    %563 = vmatpush.msra.mxu0 0.0
    %564 = vmatpush.msra.mxu0 0.0
    %565 = vmatpush.msra.mxu0 0.0
    %566 = vmatpush.msra.mxu0 0.0
    %567 = vmatpush.msra.mxu0 %v343
    %568 = vmatpush.msra.mxu0 %v341
    %569 = vmatpush.msra.mxu0 %v339
    %570 = vmatpush.msra.mxu0 %v337
    %571 = vmatpush.msra.mxu0 %v335
    %572 = vmatpush.msra.mxu0 %v333
    %573 = vmatpush.msra.mxu0 %v331
    %574 = vmatpush.msra.mxu0 %v329
    %575 = vmatmul.f32.gmra.mxu0 %v537
    %v576 = vpop.f32.mrf.mxu0
    %v577 = vadd.f32 0.0, %v576
    %578 = vdwg.mxu0
    %v581 = vrot.slane %v577, 6
    %v582 = vsel %vm303, %v557, %v581
    %v584 = vadd.f32 %v535, %v582
    %v585 = vtanh.pop %v584
    %v586 = vxor.u32 %v584, 2147483648
    %v587 = vmul.f32 %v586, 1.442695
    %v588 = vpow.pop %v587
    %v589 = vadd.f32 %v588, 1.0
    %v590 = vrcp.pop %v589
    %v591 = vmul.f32 %v589, %v590
    %v592 = vsub.f32 1.0, %v591
    %v593 = vmul.f32 %v590, %v592
    %v594 = vadd.f32 %v590, %v593
    %vm595 = vweird.f32 %v589
    %vm596 = vweird.f32 %v590
    %vm597 = vmor %vm595, %vm596
    %v598 = vsel %vm597, %v590, %v594
    %v599 = vand.u32 2147483647, %v589
    %vm600 = vcmp.eq.f32.partialorder %v599, 8.507059e+37
    %v601 = vand.u32 %v589, 2147483648
    %v602 = vor.u32 1.1754944e-38, %v601
    %v603 = vsel %vm600, %v602, %v598
    %v604 = vmul.f32 1.0, %v603
    %v606 = vrot.slane %v604, 2
    %v608 = vmul.f32 %v606, %v523
    %610 = vrot.lane.b32.xlu0 %v585, 64
    %v611 = vpop.permute.xlu0 %610
    %v613 = vmul.f32 %v604, %v611
    %615 = vrot.lane.b32.xlu0 %v613, 64
    %v616 = vpop.permute.xlu0 %615
    %v618 = vadd.f32 %v608, %v616
    %v619 = vtanh.pop %v618
    %620 = vrot.lane.b32.xlu0 %v604, 64
    %v621 = vpop.permute.xlu0 %620
    %v622 = vrot.slane %v621, 2
    %v624 = vmul.f32 %v622, %v619
    %s625 = scalar_lea.vmem [#allocation3], 4
    %626 = vst.msk [vmem:[%s625] sm:$0x3] %vm435, %v624
    %s627 = scalar_lea.vmem [#allocation4], 10
    %628 = vst.msk [vmem:[%s627] sm:$0x3] %vm435, %v624
    %s629 = scalar_lea.vmem [#allocation2], 12
    %v630 = vld [vmem:[%s629] sm:$0xf]
    %v632 = vsel %vm345, %v624, 0
    %634 = vmatpush.msra.mxu0 0.0
    %635 = vmatpush.msra.mxu0 0.0
    %636 = vmatpush.msra.mxu0 0.0
    %637 = vmatpush.msra.mxu0 0.0
    %638 = vmatpush.msra.mxu0 0.0
    %639 = vmatpush.msra.mxu0 0.0
    %640 = vmatpush.msra.mxu0 0.0
    %641 = vmatpush.msra.mxu0 0.0
    %642 = vmatpush.msra.mxu0 %v342
    %643 = vmatpush.msra.mxu0 %v340
    %644 = vmatpush.msra.mxu0 %v338
    %645 = vmatpush.msra.mxu0 %v336
    %646 = vmatpush.msra.mxu0 %v334
    %647 = vmatpush.msra.mxu0 %v332
    %648 = vmatpush.msra.mxu0 %v330
    %649 = vmatpush.msra.mxu0 %v328
    %650 = vmatmul.f32.gmra.mxu0 %v632
    %v651 = vpop.f32.mrf.mxu0
    %v652 = vadd.f32 0.0, %v651
    %653 = vdwg.mxu0
    %654 = vmatpush.msra.mxu0 0.0
    %655 = vmatpush.msra.mxu0 0.0
    %656 = vmatpush.msra.mxu0 0.0
    %657 = vmatpush.msra.mxu0 0.0
    %658 = vmatpush.msra.mxu0 0.0
    %659 = vmatpush.msra.mxu0 0.0
    %660 = vmatpush.msra.mxu0 0.0
    %661 = vmatpush.msra.mxu0 0.0
    %662 = vmatpush.msra.mxu0 %v343
    %663 = vmatpush.msra.mxu0 %v341
    %664 = vmatpush.msra.mxu0 %v339
    %665 = vmatpush.msra.mxu0 %v337
    %666 = vmatpush.msra.mxu0 %v335
    %667 = vmatpush.msra.mxu0 %v333
    %668 = vmatpush.msra.mxu0 %v331
    %669 = vmatpush.msra.mxu0 %v329
    %670 = vmatmul.f32.gmra.mxu0 %v632
    %v671 = vpop.f32.mrf.mxu0
    %v672 = vadd.f32 0.0, %v671
    %673 = vdwg.mxu0
    %v676 = vrot.slane %v672, 6
    %v677 = vsel %vm303, %v652, %v676
    %v679 = vadd.f32 %v630, %v677
    %v680 = vtanh.pop %v679
    %v681 = vxor.u32 %v679, 2147483648
    %v682 = vmul.f32 %v681, 1.442695
    %v683 = vpow.pop %v682
    %v684 = vadd.f32 %v683, 1.0
    %v685 = vrcp.pop %v684
    %v686 = vmul.f32 %v684, %v685
    %v687 = vsub.f32 1.0, %v686
    %v688 = vmul.f32 %v685, %v687
    %v689 = vadd.f32 %v685, %v688
    %vm690 = vweird.f32 %v684
    %vm691 = vweird.f32 %v685
    %vm692 = vmor %vm690, %vm691
    %v693 = vsel %vm692, %v685, %v689
    %v694 = vand.u32 2147483647, %v684
    %vm695 = vcmp.eq.f32.partialorder %v694, 8.507059e+37
    %v696 = vand.u32 %v684, 2147483648
    %v697 = vor.u32 1.1754944e-38, %v696
    %v698 = vsel %vm695, %v697, %v693
    %v699 = vmul.f32 1.0, %v698
    %v701 = vrot.slane %v699, 2
    %v703 = vmul.f32 %v701, %v618
    %705 = vrot.lane.b32.xlu0 %v680, 64
    %v706 = vpop.permute.xlu0 %705
    %v708 = vmul.f32 %v699, %v706
    %710 = vrot.lane.b32.xlu0 %v708, 64
    %v711 = vpop.permute.xlu0 %710
    %v713 = vadd.f32 %v703, %v711
    %v714 = vtanh.pop %v713
    %715 = vrot.lane.b32.xlu0 %v699, 64
    %v716 = vpop.permute.xlu0 %715
    %v717 = vrot.slane %v716, 2
    %v719 = vmul.f32 %v717, %v714
    %s720 = scalar_lea.vmem [#allocation3], 6
    %721 = vst.msk [vmem:[%s720] sm:$0x3] %vm435, %v719
    %s722 = scalar_lea.vmem [#allocation4], 8
    %723 = vst.msk [vmem:[%s722] sm:$0x3] %vm435, %v719
    %s724 = scalar_lea.vmem [#allocation2], 16
    %v725 = vld [vmem:[%s724] sm:$0xf]
    %v727 = vsel %vm345, %v719, 0
    %729 = vmatpush.msra.mxu0 0.0
    %730 = vmatpush.msra.mxu0 0.0
    %731 = vmatpush.msra.mxu0 0.0
    %732 = vmatpush.msra.mxu0 0.0
    %733 = vmatpush.msra.mxu0 0.0
    %734 = vmatpush.msra.mxu0 0.0
    %735 = vmatpush.msra.mxu0 0.0
    %736 = vmatpush.msra.mxu0 0.0
    %737 = vmatpush.msra.mxu0 %v342
    %738 = vmatpush.msra.mxu0 %v340
    %739 = vmatpush.msra.mxu0 %v338
    %740 = vmatpush.msra.mxu0 %v336
    %741 = vmatpush.msra.mxu0 %v334
    %742 = vmatpush.msra.mxu0 %v332
    %743 = vmatpush.msra.mxu0 %v330
    %744 = vmatpush.msra.mxu0 %v328
    %745 = vmatmul.f32.gmra.mxu0 %v727
    %v746 = vpop.f32.mrf.mxu0
    %v747 = vadd.f32 0.0, %v746
    %748 = vdwg.mxu0
    %749 = vmatpush.msra.mxu0 0.0
    %750 = vmatpush.msra.mxu0 0.0
    %751 = vmatpush.msra.mxu0 0.0
    %752 = vmatpush.msra.mxu0 0.0
    %753 = vmatpush.msra.mxu0 0.0
    %754 = vmatpush.msra.mxu0 0.0
    %755 = vmatpush.msra.mxu0 0.0
    %756 = vmatpush.msra.mxu0 0.0
    %757 = vmatpush.msra.mxu0 %v343
    %758 = vmatpush.msra.mxu0 %v341
    %759 = vmatpush.msra.mxu0 %v339
    %760 = vmatpush.msra.mxu0 %v337
    %761 = vmatpush.msra.mxu0 %v335
    %762 = vmatpush.msra.mxu0 %v333
    %763 = vmatpush.msra.mxu0 %v331
    %764 = vmatpush.msra.mxu0 %v329
    %765 = vmatmul.f32.gmra.mxu0 %v727
    %v766 = vpop.f32.mrf.mxu0
    %v767 = vadd.f32 0.0, %v766
    %768 = vdwg.mxu0
    %v771 = vrot.slane %v767, 6
    %v772 = vsel %vm303, %v747, %v771
    %v774 = vadd.f32 %v725, %v772
    %v775 = vtanh.pop %v774
    %v776 = vxor.u32 %v774, 2147483648
    %v777 = vmul.f32 %v776, 1.442695
    %v778 = vpow.pop %v777
    %v779 = vadd.f32 %v778, 1.0
    %v780 = vrcp.pop %v779
    %v781 = vmul.f32 %v779, %v780
    %v782 = vsub.f32 1.0, %v781
    %v783 = vmul.f32 %v780, %v782
    %v784 = vadd.f32 %v780, %v783
    %vm785 = vweird.f32 %v779
    %vm786 = vweird.f32 %v780
    %vm787 = vmor %vm785, %vm786
    %v788 = vsel %vm787, %v780, %v784
    %v789 = vand.u32 2147483647, %v779
    %vm790 = vcmp.eq.f32.partialorder %v789, 8.507059e+37
    %v791 = vand.u32 %v779, 2147483648
    %v792 = vor.u32 1.1754944e-38, %v791
    %v793 = vsel %vm790, %v792, %v788
    %v794 = vmul.f32 1.0, %v793
    %v796 = vrot.slane %v794, 2
    %v798 = vmul.f32 %v796, %v713
    %800 = vrot.lane.b32.xlu0 %v775, 64
    %v801 = vpop.permute.xlu0 %800
    %v803 = vmul.f32 %v794, %v801
    %805 = vrot.lane.b32.xlu0 %v803, 64
    %v806 = vpop.permute.xlu0 %805
    %v808 = vadd.f32 %v798, %v806
    %v809 = vtanh.pop %v808
    %810 = vrot.lane.b32.xlu0 %v794, 64
    %v811 = vpop.permute.xlu0 %810
    %v812 = vrot.slane %v811, 2
    %v814 = vmul.f32 %v812, %v809
    %s815 = scalar_lea.vmem [#allocation3], 8
    %816 = vst.msk [vmem:[%s815] sm:$0x3] %vm435, %v814
    %s817 = scalar_lea.vmem [#allocation4], 6
    %818 = vst.msk [vmem:[%s817] sm:$0x3] %vm435, %v814
    %s819 = scalar_lea.vmem [#allocation2], 20
    %v820 = vld [vmem:[%s819] sm:$0xf]
    %v822 = vsel %vm345, %v814, 0
    %824 = vmatpush.msra.mxu0 0.0
    %825 = vmatpush.msra.mxu0 0.0
    %826 = vmatpush.msra.mxu0 0.0
    %827 = vmatpush.msra.mxu0 0.0
    %828 = vmatpush.msra.mxu0 0.0
    %829 = vmatpush.msra.mxu0 0.0
    %830 = vmatpush.msra.mxu0 0.0
    %831 = vmatpush.msra.mxu0 0.0
    %832 = vmatpush.msra.mxu0 %v342
    %833 = vmatpush.msra.mxu0 %v340
    %834 = vmatpush.msra.mxu0 %v338
    %835 = vmatpush.msra.mxu0 %v336
    %836 = vmatpush.msra.mxu0 %v334
    %837 = vmatpush.msra.mxu0 %v332
    %838 = vmatpush.msra.mxu0 %v330
    %839 = vmatpush.msra.mxu0 %v328
    %840 = vmatmul.f32.gmra.mxu0 %v822
    %v841 = vpop.f32.mrf.mxu0
    %v842 = vadd.f32 0.0, %v841
    %843 = vdwg.mxu0
    %844 = vmatpush.msra.mxu0 0.0
    %845 = vmatpush.msra.mxu0 0.0
    %846 = vmatpush.msra.mxu0 0.0
    %847 = vmatpush.msra.mxu0 0.0
    %848 = vmatpush.msra.mxu0 0.0
    %849 = vmatpush.msra.mxu0 0.0
    %850 = vmatpush.msra.mxu0 0.0
    %851 = vmatpush.msra.mxu0 0.0
    %852 = vmatpush.msra.mxu0 %v343
    %853 = vmatpush.msra.mxu0 %v341
    %854 = vmatpush.msra.mxu0 %v339
    %855 = vmatpush.msra.mxu0 %v337
    %856 = vmatpush.msra.mxu0 %v335
    %857 = vmatpush.msra.mxu0 %v333
    %858 = vmatpush.msra.mxu0 %v331
    %859 = vmatpush.msra.mxu0 %v329
    %860 = vmatmul.f32.gmra.mxu0 %v822
    %v861 = vpop.f32.mrf.mxu0
    %v862 = vadd.f32 0.0, %v861
    %863 = vdwg.mxu0
    %v866 = vrot.slane %v862, 6
    %v867 = vsel %vm303, %v842, %v866
    %v869 = vadd.f32 %v820, %v867
    %v870 = vtanh.pop %v869
    %v871 = vxor.u32 %v869, 2147483648
    %v872 = vmul.f32 %v871, 1.442695
    %v873 = vpow.pop %v872
    %v874 = vadd.f32 %v873, 1.0
    %v875 = vrcp.pop %v874
    %v876 = vmul.f32 %v874, %v875
    %v877 = vsub.f32 1.0, %v876
    %v878 = vmul.f32 %v875, %v877
    %v879 = vadd.f32 %v875, %v878
    %vm880 = vweird.f32 %v874
    %vm881 = vweird.f32 %v875
    %vm882 = vmor %vm880, %vm881
    %v883 = vsel %vm882, %v875, %v879
    %v884 = vand.u32 2147483647, %v874
    %vm885 = vcmp.eq.f32.partialorder %v884, 8.507059e+37
    %v886 = vand.u32 %v874, 2147483648
    %v887 = vor.u32 1.1754944e-38, %v886
    %v888 = vsel %vm885, %v887, %v883
    %v889 = vmul.f32 1.0, %v888
    %v891 = vrot.slane %v889, 2
    %v893 = vmul.f32 %v891, %v808
    %895 = vrot.lane.b32.xlu0 %v870, 64
    %v896 = vpop.permute.xlu0 %895
    %v898 = vmul.f32 %v889, %v896
    %900 = vrot.lane.b32.xlu0 %v898, 64
    %v901 = vpop.permute.xlu0 %900
    %v903 = vadd.f32 %v893, %v901
    %v904 = vtanh.pop %v903
    %905 = vrot.lane.b32.xlu0 %v889, 64
    %v906 = vpop.permute.xlu0 %905
    %v907 = vrot.slane %v906, 2
    %v909 = vmul.f32 %v907, %v904
    %s910 = scalar_lea.vmem [#allocation3], 10
    %911 = vst.msk [vmem:[%s910] sm:$0x3] %vm435, %v909
    %s912 = scalar_lea.vmem [#allocation4], 4
    %913 = vst.msk [vmem:[%s912] sm:$0x3] %vm435, %v909
    %s914 = scalar_lea.vmem [#allocation2], 24
    %v915 = vld [vmem:[%s914] sm:$0xf]
    %v917 = vsel %vm345, %v909, 0
    %919 = vmatpush.msra.mxu0 0.0
    %920 = vmatpush.msra.mxu0 0.0
    %921 = vmatpush.msra.mxu0 0.0
    %922 = vmatpush.msra.mxu0 0.0
    %923 = vmatpush.msra.mxu0 0.0
    %924 = vmatpush.msra.mxu0 0.0
    %925 = vmatpush.msra.mxu0 0.0
    %926 = vmatpush.msra.mxu0 0.0
    %927 = vmatpush.msra.mxu0 %v342
    %928 = vmatpush.msra.mxu0 %v340
    %929 = vmatpush.msra.mxu0 %v338
    %930 = vmatpush.msra.mxu0 %v336
    %931 = vmatpush.msra.mxu0 %v334
    %932 = vmatpush.msra.mxu0 %v332
    %933 = vmatpush.msra.mxu0 %v330
    %934 = vmatpush.msra.mxu0 %v328
    %935 = vmatmul.f32.gmra.mxu0 %v917
    %v936 = vpop.f32.mrf.mxu0
    %v937 = vadd.f32 0.0, %v936
    %938 = vdwg.mxu0
    %939 = vmatpush.msra.mxu0 0.0
    %940 = vmatpush.msra.mxu0 0.0
    %941 = vmatpush.msra.mxu0 0.0
    %942 = vmatpush.msra.mxu0 0.0
    %943 = vmatpush.msra.mxu0 0.0
    %944 = vmatpush.msra.mxu0 0.0
    %945 = vmatpush.msra.mxu0 0.0
    %946 = vmatpush.msra.mxu0 0.0
    %947 = vmatpush.msra.mxu0 %v343
    %948 = vmatpush.msra.mxu0 %v341
    %949 = vmatpush.msra.mxu0 %v339
    %950 = vmatpush.msra.mxu0 %v337
    %951 = vmatpush.msra.mxu0 %v335
    %952 = vmatpush.msra.mxu0 %v333
    %953 = vmatpush.msra.mxu0 %v331
    %954 = vmatpush.msra.mxu0 %v329
    %955 = vmatmul.f32.gmra.mxu0 %v917
    %v956 = vpop.f32.mrf.mxu0
    %v957 = vadd.f32 0.0, %v956
    %958 = vdwg.mxu0
    %v961 = vrot.slane %v957, 6
    %v962 = vsel %vm303, %v937, %v961
    %v964 = vadd.f32 %v915, %v962
    %v965 = vtanh.pop %v964
    %v966 = vxor.u32 %v964, 2147483648
    %v967 = vmul.f32 %v966, 1.442695
    %v968 = vpow.pop %v967
    %v969 = vadd.f32 %v968, 1.0
    %v970 = vrcp.pop %v969
    %v971 = vmul.f32 %v969, %v970
    %v972 = vsub.f32 1.0, %v971
    %v973 = vmul.f32 %v970, %v972
    %v974 = vadd.f32 %v970, %v973
    %vm975 = vweird.f32 %v969
    %vm976 = vweird.f32 %v970
    %vm977 = vmor %vm975, %vm976
    %v978 = vsel %vm977, %v970, %v974
    %v979 = vand.u32 2147483647, %v969
    %vm980 = vcmp.eq.f32.partialorder %v979, 8.507059e+37
    %v981 = vand.u32 %v969, 2147483648
    %v982 = vor.u32 1.1754944e-38, %v981
    %v983 = vsel %vm980, %v982, %v978
    %v984 = vmul.f32 1.0, %v983
    %v986 = vrot.slane %v984, 2
    %v988 = vmul.f32 %v986, %v903
    %990 = vrot.lane.b32.xlu0 %v965, 64
    %v991 = vpop.permute.xlu0 %990
    %v993 = vmul.f32 %v984, %v991
    %995 = vrot.lane.b32.xlu0 %v993, 64
    %v996 = vpop.permute.xlu0 %995
    %v998 = vadd.f32 %v988, %v996
    %v999 = vtanh.pop %v998
    %1000 = vrot.lane.b32.xlu0 %v984, 64
    %v1001 = vpop.permute.xlu0 %1000
    %v1002 = vrot.slane %v1001, 2
    %v1004 = vmul.f32 %v1002, %v999
    %s1005 = scalar_lea.vmem [#allocation3], 12
    %1006 = vst.msk [vmem:[%s1005] sm:$0x3] %vm435, %v1004
    %s1007 = scalar_lea.vmem [#allocation4], 2
    %1008 = vst.msk [vmem:[%s1007] sm:$0x3] %vm435, %v1004
    %s1009 = scalar_lea.vmem [#allocation2], 28
    %v1010 = vld [vmem:[%s1009] sm:$0xf]
    %v1012 = vsel %vm345, %v1004, 0
    %1014 = vmatpush.msra.mxu0 0.0
    %1015 = vmatpush.msra.mxu0 0.0
    %1016 = vmatpush.msra.mxu0 0.0
    %1017 = vmatpush.msra.mxu0 0.0
    %1018 = vmatpush.msra.mxu0 0.0
    %1019 = vmatpush.msra.mxu0 0.0
    %1020 = vmatpush.msra.mxu0 0.0
    %1021 = vmatpush.msra.mxu0 0.0
    %1022 = vmatpush.msra.mxu0 %v342
    %1023 = vmatpush.msra.mxu0 %v340
    %1024 = vmatpush.msra.mxu0 %v338
    %1025 = vmatpush.msra.mxu0 %v336
    %1026 = vmatpush.msra.mxu0 %v334
    %1027 = vmatpush.msra.mxu0 %v332
    %1028 = vmatpush.msra.mxu0 %v330
    %1029 = vmatpush.msra.mxu0 %v328
    %1030 = vmatmul.f32.gmra.mxu0 %v1012
    %v1031 = vpop.f32.mrf.mxu0
    %v1032 = vadd.f32 0.0, %v1031
    %1033 = vdwg.mxu0
    %1034 = vmatpush.msra.mxu0 0.0
    %1035 = vmatpush.msra.mxu0 0.0
    %1036 = vmatpush.msra.mxu0 0.0
    %1037 = vmatpush.msra.mxu0 0.0
    %1038 = vmatpush.msra.mxu0 0.0
    %1039 = vmatpush.msra.mxu0 0.0
    %1040 = vmatpush.msra.mxu0 0.0
    %1041 = vmatpush.msra.mxu0 0.0
    %1042 = vmatpush.msra.mxu0 %v343
    %1043 = vmatpush.msra.mxu0 %v341
    %1044 = vmatpush.msra.mxu0 %v339
    %1045 = vmatpush.msra.mxu0 %v337
    %1046 = vmatpush.msra.mxu0 %v335
    %1047 = vmatpush.msra.mxu0 %v333
    %1048 = vmatpush.msra.mxu0 %v331
    %1049 = vmatpush.msra.mxu0 %v329
    %1050 = vmatmul.f32.gmra.mxu0 %v1012
    %v1051 = vpop.f32.mrf.mxu0
    %v1052 = vadd.f32 0.0, %v1051
    %1053 = vdwg.mxu0
    %v1056 = vrot.slane %v1052, 6
    %v1057 = vsel %vm303, %v1032, %v1056
    %v1059 = vadd.f32 %v1010, %v1057
    %v1060 = vtanh.pop %v1059
    %v1061 = vxor.u32 %v1059, 2147483648
    %v1062 = vmul.f32 %v1061, 1.442695
    %v1063 = vpow.pop %v1062
    %v1064 = vadd.f32 %v1063, 1.0
    %v1065 = vrcp.pop %v1064
    %v1066 = vmul.f32 %v1064, %v1065
    %v1067 = vsub.f32 1.0, %v1066
    %v1068 = vmul.f32 %v1065, %v1067
    %v1069 = vadd.f32 %v1065, %v1068
    %vm1070 = vweird.f32 %v1064
    %vm1071 = vweird.f32 %v1065
    %vm1072 = vmor %vm1070, %vm1071
    %v1073 = vsel %vm1072, %v1065, %v1069
    %v1074 = vand.u32 2147483647, %v1064
    %vm1075 = vcmp.eq.f32.partialorder %v1074, 8.507059e+37
    %v1076 = vand.u32 %v1064, 2147483648
    %v1077 = vor.u32 1.1754944e-38, %v1076
    %v1078 = vsel %vm1075, %v1077, %v1073
    %v1079 = vmul.f32 1.0, %v1078
    %v1081 = vrot.slane %v1079, 2
    %v1083 = vmul.f32 %v1081, %v998
    %1085 = vrot.lane.b32.xlu0 %v1060, 64
    %v1086 = vpop.permute.xlu0 %1085
    %v1088 = vmul.f32 %v1079, %v1086
    %1090 = vrot.lane.b32.xlu0 %v1088, 64
    %v1091 = vpop.permute.xlu0 %1090
    %v1093 = vadd.f32 %v1083, %v1091
    %v1094 = vtanh.pop %v1093
    %1095 = vrot.lane.b32.xlu0 %v1079, 64
    %v1096 = vpop.permute.xlu0 %1095
    %v1097 = vrot.slane %v1096, 2
    %v1099 = vmul.f32 %v1097, %v1094
    %s1100 = scalar_lea.vmem [#allocation3], 14
    %1101 = vst.msk [vmem:[%s1100] sm:$0x3] %vm435, %v1099
    %1102 = vst.msk [vmem:[#allocation4] sm:$0x3] %vm435, %v1099
    %v1103 = vld [vmem:[#allocation3] sm:$0x3]
    %v1104 = vld [vmem:[#allocation3 + $0x2] sm:$0x3]
    %v1105 = vld [vmem:[#allocation3 + $0x4] sm:$0x3]
    %v1106 = vld [vmem:[#allocation3 + $0x6] sm:$0x3]
    %v1107 = vld [vmem:[#allocation3 + $0x8] sm:$0x3]
    %v1108 = vld [vmem:[#allocation3 + $0xa] sm:$0x3]
    %v1109 = vld [vmem:[#allocation3 + $0xc] sm:$0x3]
    %v1110 = vld [vmem:[#allocation3 + $0xe] sm:$0x3]
    %v1111 = vld [vmem:[#allocation4] sm:$0x3]
    %v1112 = vld [vmem:[#allocation4 + $0x2] sm:$0x3]
    %v1113 = vld [vmem:[#allocation4 + $0x4] sm:$0x3]
    %v1114 = vld [vmem:[#allocation4 + $0x6] sm:$0x3]
    %v1115 = vld [vmem:[#allocation4 + $0x8] sm:$0x3]
    %v1116 = vld [vmem:[#allocation4 + $0xa] sm:$0x3]
    %v1117 = vld [vmem:[#allocation4 + $0xc] sm:$0x3]
    %v1118 = vld [vmem:[#allocation4 + $0xe] sm:$0x3]
    %1127 = vrot.lane.b32.xlu0 %v1111, 64
    %v1128 = vpop.permute.xlu0 %1127
    %1129 = vrot.lane.b32.xlu0 %v1112, 64
    %v1130 = vpop.permute.xlu0 %1129
    %1131 = vrot.lane.b32.xlu0 %v1113, 64
    %v1132 = vpop.permute.xlu0 %1131
    %1133 = vrot.lane.b32.xlu0 %v1114, 64
    %v1134 = vpop.permute.xlu0 %1133
    %1135 = vrot.lane.b32.xlu0 %v1115, 64
    %v1136 = vpop.permute.xlu0 %1135
    %1137 = vrot.lane.b32.xlu0 %v1116, 64
    %v1138 = vpop.permute.xlu0 %1137
    %1139 = vrot.lane.b32.xlu0 %v1117, 64
    %v1140 = vpop.permute.xlu0 %1139
    %1141 = vrot.lane.b32.xlu0 %v1118, 64
    %v1142 = vpop.permute.xlu0 %1141
    %v1151 = vsel %vm345, %v1103, %v1128
    %v1152 = vsel %vm345, %v1104, %v1130
    %v1153 = vsel %vm345, %v1105, %v1132
    %v1154 = vsel %vm345, %v1106, %v1134
    %v1155 = vsel %vm345, %v1107, %v1136
    %v1156 = vsel %vm345, %v1108, %v1138
    %v1157 = vsel %vm345, %v1109, %v1140
    %v1158 = vsel %vm345, %v1110, %v1142
    %v1159 = vld [vmem:[#allocation6] sm:$0xff]
    %v1160 = vld [vmem:[#allocation6 + $0x8] sm:$0xff]
    %v1161 = vld [vmem:[#allocation6 + $0x10] sm:$0xff]
    %v1162 = vld [vmem:[#allocation6 + $0x18] sm:$0xff]
    %v1163 = vld [vmem:[#allocation6 + $0x20] sm:$0xff]
    %v1164 = vld [vmem:[#allocation6 + $0x28] sm:$0xff]
    %v1165 = vld [vmem:[#allocation6 + $0x30] sm:$0xff]
    %v1166 = vld [vmem:[#allocation6 + $0x38] sm:$0xff]
    %v1167 = vld [vmem:[#allocation6 + $0x40] sm:$0xff]
    %v1168 = vld [vmem:[#allocation6 + $0x48] sm:$0xff]
    %v1169 = vld [vmem:[#allocation6 + $0x50] sm:$0xff]
    %v1170 = vld [vmem:[#allocation6 + $0x58] sm:$0xff]
    %v1171 = vld [vmem:[#allocation6 + $0x60] sm:$0xff]
    %v1172 = vld [vmem:[#allocation6 + $0x68] sm:$0xff]
    %v1173 = vld [vmem:[#allocation6 + $0x70] sm:$0xff]
    %v1174 = vld [vmem:[#allocation6 + $0x78] sm:$0xff]
    %v1175 = vld [vmem:[#allocation6 + $0x80] sm:$0xff]
    %v1176 = vld [vmem:[#allocation6 + $0x88] sm:$0xff]
    %v1177 = vld [vmem:[#allocation6 + $0x90] sm:$0xff]
    %v1178 = vld [vmem:[#allocation6 + $0x98] sm:$0xff]
    %v1179 = vld [vmem:[#allocation6 + $0xa0] sm:$0xff]
    %v1180 = vld [vmem:[#allocation6 + $0xa8] sm:$0xff]
    %v1181 = vld [vmem:[#allocation6 + $0xb0] sm:$0xff]
    %v1182 = vld [vmem:[#allocation6 + $0xb8] sm:$0xff]
    %v1183 = vld [vmem:[#allocation6 + $0xc0] sm:$0xff]
    %v1184 = vld [vmem:[#allocation6 + $0xc8] sm:$0xff]
    %v1185 = vld [vmem:[#allocation6 + $0xd0] sm:$0xff]
    %v1186 = vld [vmem:[#allocation6 + $0xd8] sm:$0xff]
    %v1187 = vld [vmem:[#allocation6 + $0xe0] sm:$0xff]
    %v1188 = vld [vmem:[#allocation6 + $0xe8] sm:$0xff]
    %v1189 = vld [vmem:[#allocation6 + $0xf0] sm:$0xff]
    %v1190 = vld [vmem:[#allocation6 + $0xf8] sm:$0xff]
    %s1191 = scalar_lea.vmem %s6, 2
    %v1192 = vld [vmem:[%s1191] sm:$0x3]
    %v1194 = vperm.slane %v1192, 0
    %v1195 = vperm.slane %v1192, 1
    %1206 = vst [vmem:[#allocation1] ss:$4 sm:$0xff] %v1151
    %s1207 = scalar_lea.vmem [#allocation1], 1
    %1208 = vst [vmem:[%s1207] ss:$4 sm:$0xff] %v1152
    %s1209 = scalar_lea.vmem [#allocation1], 2
    %1210 = vst [vmem:[%s1209] ss:$4 sm:$0xff] %v1153
    %s1211 = scalar_lea.vmem [#allocation1], 3
    %1212 = vst [vmem:[%s1211] ss:$4 sm:$0xff] %v1154
    %s1213 = scalar_lea.vmem [#allocation1], 32
    %1214 = vst [vmem:[%s1213] ss:$4 sm:$0xff] %v1155
    %s1215 = scalar_lea.vmem [#allocation1], 33
    %1216 = vst [vmem:[%s1215] ss:$4 sm:$0xff] %v1156
    %s1217 = scalar_lea.vmem [#allocation1], 34
    %1218 = vst [vmem:[%s1217] ss:$4 sm:$0xff] %v1157
    %s1219 = scalar_lea.vmem [#allocation1], 35
    %1220 = vst [vmem:[%s1219] ss:$4 sm:$0xff] %v1158
    %v1221 = vld.sshfl [vmem:[#allocation1] sm:$0xff pattern:$0x73625140]
    %v1222 = vld.sshfl [vmem:[#allocation1 + $0x20] sm:$0xff pattern:$0x73625140]
    %1225 = vmatpush.msra.mxu0 %v1189
    %1226 = vmatpush.msra.mxu0 %v1187
    %1227 = vmatpush.msra.mxu0 %v1185
    %1228 = vmatpush.msra.mxu0 %v1183
    %1229 = vmatpush.msra.mxu0 %v1181
    %1230 = vmatpush.msra.mxu0 %v1179
    %1231 = vmatpush.msra.mxu0 %v1177
    %1232 = vmatpush.msra.mxu0 %v1175
    %1233 = vmatpush.msra.mxu0 %v1173
    %1234 = vmatpush.msra.mxu0 %v1171
    %1235 = vmatpush.msra.mxu0 %v1169
    %1236 = vmatpush.msra.mxu0 %v1167
    %1237 = vmatpush.msra.mxu0 %v1165
    %1238 = vmatpush.msra.mxu0 %v1163
    %1239 = vmatpush.msra.mxu0 %v1161
    %1240 = vmatpush.msra.mxu0 %v1159
    %1241 = vmatmul.f32.gmra.mxu0 %v1221
    %v1242 = vpop.f32.mrf.mxu0
    %v1243 = vadd.f32 %v1194, %v1242
    %1244 = vmatmul.f32.gmra.mxu0 %v1222
    %v1245 = vpop.f32.mrf.mxu0
    %v1246 = vadd.f32 %v1194, %v1245
    %1247 = vdwg.mxu0
    %1248 = vmatpush.msra.mxu0 %v1190
    %1249 = vmatpush.msra.mxu0 %v1188
    %1250 = vmatpush.msra.mxu0 %v1186
    %1251 = vmatpush.msra.mxu0 %v1184
    %1252 = vmatpush.msra.mxu0 %v1182
    %1253 = vmatpush.msra.mxu0 %v1180
    %1254 = vmatpush.msra.mxu0 %v1178
    %1255 = vmatpush.msra.mxu0 %v1176
    %1256 = vmatpush.msra.mxu0 %v1174
    %1257 = vmatpush.msra.mxu0 %v1172
    %1258 = vmatpush.msra.mxu0 %v1170
    %1259 = vmatpush.msra.mxu0 %v1168
    %1260 = vmatpush.msra.mxu0 %v1166
    %1261 = vmatpush.msra.mxu0 %v1164
    %1262 = vmatpush.msra.mxu0 %v1162
    %1263 = vmatpush.msra.mxu0 %v1160
    %1264 = vmatmul.f32.gmra.mxu0 %v1221
    %v1265 = vpop.f32.mrf.mxu0
    %v1266 = vadd.f32 %v1195, %v1265
    %1267 = vmatmul.f32.gmra.mxu0 %v1222
    %v1268 = vpop.f32.mrf.mxu0
    %v1269 = vadd.f32 %v1195, %v1268
    %1270 = vdwg.mxu0
    %v1275 = vrot.slane %v1266, 6
    %v1276 = vrot.slane %v1269, 6
    %v1277 = vsel %vm303, %v1243, %v1275
    %vm1278 = vcmask 1043458
    %v1279 = vsel %vm1278, %v1243, %v1275
    %v1280 = vrot.slane %v1279, 2
    %vm1281 = vcmask 1045508
    %v1282 = vsel %vm1281, %v1243, %v1275
    %v1283 = vrot.slane %v1282, 4
    %vm1284 = vcmask 1045504
    %v1285 = vsel %vm1284, %v1275, %v1243
    %v1286 = vrot.slane %v1285, 6
    %v1287 = vsel %vm303, %v1246, %v1276
    %v1288 = vsel %vm1278, %v1246, %v1276
    %v1289 = vrot.slane %v1288, 2
    %v1290 = vsel %vm1281, %v1246, %v1276
    %v1291 = vrot.slane %v1290, 4
    %v1292 = vsel %vm1284, %v1276, %v1246
    %v1293 = vrot.slane %v1292, 6
    %1302 = vst [vmem:[#allocation2] sm:$0xf] %v1277
    %1303 = vst [vmem:[#allocation2 + $0x4] sm:$0xf] %v1280
    %1304 = vst [vmem:[#allocation2 + $0x8] sm:$0xf] %v1283
    %1305 = vst [vmem:[#allocation2 + $0xc] sm:$0xf] %v1286
    %1306 = vst [vmem:[#allocation2 + $0x10] sm:$0xf] %v1287
    %1307 = vst [vmem:[#allocation2 + $0x14] sm:$0xf] %v1289
    %1308 = vst [vmem:[#allocation2 + $0x18] sm:$0xf] %v1291
    %1309 = vst [vmem:[#allocation2 + $0x1c] sm:$0xf] %v1293
    %s1310 = scalar_lea.vmem [#allocation9], 128
    %v1311 = vld [vmem:[%s1310] sm:$0xff]
    %v1312 = vld [vmem:[%s1310 + $0x8] sm:$0xff]
    %v1313 = vld [vmem:[%s1310 + $0x10] sm:$0xff]
    %v1314 = vld [vmem:[%s1310 + $0x18] sm:$0xff]
    %v1315 = vld [vmem:[%s1310 + $0x20] sm:$0xff]
    %v1316 = vld [vmem:[%s1310 + $0x28] sm:$0xff]
    %v1317 = vld [vmem:[%s1310 + $0x30] sm:$0xff]
    %v1318 = vld [vmem:[%s1310 + $0x38] sm:$0xff]
    %v1319 = vld [vmem:[%s1310 + $0x40] sm:$0xff]
    %v1320 = vld [vmem:[%s1310 + $0x48] sm:$0xff]
    %v1321 = vld [vmem:[%s1310 + $0x50] sm:$0xff]
    %v1322 = vld [vmem:[%s1310 + $0x58] sm:$0xff]
    %v1323 = vld [vmem:[%s1310 + $0x60] sm:$0xff]
    %v1324 = vld [vmem:[%s1310 + $0x68] sm:$0xff]
    %v1325 = vld [vmem:[%s1310 + $0x70] sm:$0xff]
    %v1326 = vld [vmem:[%s1310 + $0x78] sm:$0xff]
    %v1327 = vld [vmem:[#allocation2] sm:$0xf]
    %1328 = vmatpush.msra.mxu0 0.0
    %1329 = vmatpush.msra.mxu0 0.0
    %1330 = vmatpush.msra.mxu0 0.0
    %1331 = vmatpush.msra.mxu0 0.0
    %1332 = vmatpush.msra.mxu0 0.0
    %1333 = vmatpush.msra.mxu0 0.0
    %1334 = vmatpush.msra.mxu0 0.0
    %1335 = vmatpush.msra.mxu0 0.0
    %1336 = vmatpush.msra.mxu0 %v1325
    %1337 = vmatpush.msra.mxu0 %v1323
    %1338 = vmatpush.msra.mxu0 %v1321
    %1339 = vmatpush.msra.mxu0 %v1319
    %1340 = vmatpush.msra.mxu0 %v1317
    %1341 = vmatpush.msra.mxu0 %v1315
    %1342 = vmatpush.msra.mxu0 %v1313
    %1343 = vmatpush.msra.mxu0 %v1311
    %1344 = vmatmul.f32.gmra.mxu0 %v347
    %v1345 = vpop.f32.mrf.mxu0
    %v1346 = vadd.f32 0.0, %v1345
    %1347 = vdwg.mxu0
    %1348 = vmatpush.msra.mxu0 0.0
    %1349 = vmatpush.msra.mxu0 0.0
    %1350 = vmatpush.msra.mxu0 0.0
    %1351 = vmatpush.msra.mxu0 0.0
    %1352 = vmatpush.msra.mxu0 0.0
    %1353 = vmatpush.msra.mxu0 0.0
    %1354 = vmatpush.msra.mxu0 0.0
    %1355 = vmatpush.msra.mxu0 0.0
    %1356 = vmatpush.msra.mxu0 %v1326
    %1357 = vmatpush.msra.mxu0 %v1324
    %1358 = vmatpush.msra.mxu0 %v1322
    %1359 = vmatpush.msra.mxu0 %v1320
    %1360 = vmatpush.msra.mxu0 %v1318
    %1361 = vmatpush.msra.mxu0 %v1316
    %1362 = vmatpush.msra.mxu0 %v1314
    %1363 = vmatpush.msra.mxu0 %v1312
    %1364 = vmatmul.f32.gmra.mxu0 %v347
    %v1365 = vpop.f32.mrf.mxu0
    %v1366 = vadd.f32 0.0, %v1365
    %1367 = vdwg.mxu0
    %v1370 = vrot.slane %v1366, 6
    %v1371 = vsel %vm303, %v1346, %v1370
    %v1373 = vadd.f32 %v1327, %v1371
    %v1374 = vtanh.pop %v1373
    %v1375 = vxor.u32 %v1373, 2147483648
    %v1376 = vmul.f32 %v1375, 1.442695
    %v1377 = vpow.pop %v1376
    %v1378 = vadd.f32 %v1377, 1.0
    %v1379 = vrcp.pop %v1378
    %v1380 = vmul.f32 %v1378, %v1379
    %v1381 = vsub.f32 1.0, %v1380
    %v1382 = vmul.f32 %v1379, %v1381
    %v1383 = vadd.f32 %v1379, %v1382
    %vm1384 = vweird.f32 %v1378
    %vm1385 = vweird.f32 %v1379
    %vm1386 = vmor %vm1384, %vm1385
    %v1387 = vsel %vm1386, %v1379, %v1383
    %v1388 = vand.u32 2147483647, %v1378
    %vm1389 = vcmp.eq.f32.partialorder %v1388, 8.507059e+37
    %v1390 = vand.u32 %v1378, 2147483648
    %v1391 = vor.u32 1.1754944e-38, %v1390
    %v1392 = vsel %vm1389, %v1391, %v1387
    %v1393 = vmul.f32 1.0, %v1392
    %v1395 = vrot.slane %v1393, 2
    %v1397 = vmul.f32 %v1395, 0.0
    %1399 = vrot.lane.b32.xlu0 %v1374, 64
    %v1400 = vpop.permute.xlu0 %1399
    %v1402 = vmul.f32 %v1393, %v1400
    %1404 = vrot.lane.b32.xlu0 %v1402, 64
    %v1405 = vpop.permute.xlu0 %1404
    %v1407 = vadd.f32 %v1397, %v1405
    %v1408 = vtanh.pop %v1407
    %1409 = vrot.lane.b32.xlu0 %v1393, 64
    %v1410 = vpop.permute.xlu0 %1409
    %v1411 = vrot.slane %v1410, 2
    %v1413 = vmul.f32 %v1411, %v1408
    %1414 = vst.msk [vmem:[#allocation3] sm:$0x3] %vm435, %v1413
    %1415 = vst.msk [vmem:[%s437] sm:$0x3] %vm435, %v1413
    %v1416 = vld [vmem:[%s439] sm:$0xf]
    %v1418 = vsel %vm345, %v1413, 0
    %1420 = vmatpush.msra.mxu0 0.0
    %1421 = vmatpush.msra.mxu0 0.0
    %1422 = vmatpush.msra.mxu0 0.0
    %1423 = vmatpush.msra.mxu0 0.0
    %1424 = vmatpush.msra.mxu0 0.0
    %1425 = vmatpush.msra.mxu0 0.0
    %1426 = vmatpush.msra.mxu0 0.0
    %1427 = vmatpush.msra.mxu0 0.0
    %1428 = vmatpush.msra.mxu0 %v1325
    %1429 = vmatpush.msra.mxu0 %v1323
    %1430 = vmatpush.msra.mxu0 %v1321
    %1431 = vmatpush.msra.mxu0 %v1319
    %1432 = vmatpush.msra.mxu0 %v1317
    %1433 = vmatpush.msra.mxu0 %v1315
    %1434 = vmatpush.msra.mxu0 %v1313
    %1435 = vmatpush.msra.mxu0 %v1311
    %1436 = vmatmul.f32.gmra.mxu0 %v1418
    %v1437 = vpop.f32.mrf.mxu0
    %v1438 = vadd.f32 0.0, %v1437
    %1439 = vdwg.mxu0
    %1440 = vmatpush.msra.mxu0 0.0
    %1441 = vmatpush.msra.mxu0 0.0
    %1442 = vmatpush.msra.mxu0 0.0
    %1443 = vmatpush.msra.mxu0 0.0
    %1444 = vmatpush.msra.mxu0 0.0
    %1445 = vmatpush.msra.mxu0 0.0
    %1446 = vmatpush.msra.mxu0 0.0
    %1447 = vmatpush.msra.mxu0 0.0
    %1448 = vmatpush.msra.mxu0 %v1326
    %1449 = vmatpush.msra.mxu0 %v1324
    %1450 = vmatpush.msra.mxu0 %v1322
    %1451 = vmatpush.msra.mxu0 %v1320
    %1452 = vmatpush.msra.mxu0 %v1318
    %1453 = vmatpush.msra.mxu0 %v1316
    %1454 = vmatpush.msra.mxu0 %v1314
    %1455 = vmatpush.msra.mxu0 %v1312
    %1456 = vmatmul.f32.gmra.mxu0 %v1418
    %v1457 = vpop.f32.mrf.mxu0
    %v1458 = vadd.f32 0.0, %v1457
    %1459 = vdwg.mxu0
    %v1462 = vrot.slane %v1458, 6
    %v1463 = vsel %vm303, %v1438, %v1462
    %v1465 = vadd.f32 %v1416, %v1463
    %v1466 = vtanh.pop %v1465
    %v1467 = vxor.u32 %v1465, 2147483648
    %v1468 = vmul.f32 %v1467, 1.442695
    %v1469 = vpow.pop %v1468
    %v1470 = vadd.f32 %v1469, 1.0
    %v1471 = vrcp.pop %v1470
    %v1472 = vmul.f32 %v1470, %v1471
    %v1473 = vsub.f32 1.0, %v1472
    %v1474 = vmul.f32 %v1471, %v1473
    %v1475 = vadd.f32 %v1471, %v1474
    %vm1476 = vweird.f32 %v1470
    %vm1477 = vweird.f32 %v1471
    %vm1478 = vmor %vm1476, %vm1477
    %v1479 = vsel %vm1478, %v1471, %v1475
    %v1480 = vand.u32 2147483647, %v1470
    %vm1481 = vcmp.eq.f32.partialorder %v1480, 8.507059e+37
    %v1482 = vand.u32 %v1470, 2147483648
    %v1483 = vor.u32 1.1754944e-38, %v1482
    %v1484 = vsel %vm1481, %v1483, %v1479
    %v1485 = vmul.f32 1.0, %v1484
    %v1487 = vrot.slane %v1485, 2
    %v1489 = vmul.f32 %v1487, %v1407
    %1491 = vrot.lane.b32.xlu0 %v1466, 64
    %v1492 = vpop.permute.xlu0 %1491
    %v1494 = vmul.f32 %v1485, %v1492
    %1496 = vrot.lane.b32.xlu0 %v1494, 64
    %v1497 = vpop.permute.xlu0 %1496
    %v1499 = vadd.f32 %v1489, %v1497
    %v1500 = vtanh.pop %v1499
    %1501 = vrot.lane.b32.xlu0 %v1485, 64
    %v1502 = vpop.permute.xlu0 %1501
    %v1503 = vrot.slane %v1502, 2
    %v1505 = vmul.f32 %v1503, %v1500
    %1506 = vst.msk [vmem:[%s530] sm:$0x3] %vm435, %v1505
    %1507 = vst.msk [vmem:[%s532] sm:$0x3] %vm435, %v1505
    %v1508 = vld [vmem:[%s534] sm:$0xf]
    %v1510 = vsel %vm345, %v1505, 0
    %1512 = vmatpush.msra.mxu0 0.0
    %1513 = vmatpush.msra.mxu0 0.0
    %1514 = vmatpush.msra.mxu0 0.0
    %1515 = vmatpush.msra.mxu0 0.0
    %1516 = vmatpush.msra.mxu0 0.0
    %1517 = vmatpush.msra.mxu0 0.0
    %1518 = vmatpush.msra.mxu0 0.0
    %1519 = vmatpush.msra.mxu0 0.0
    %1520 = vmatpush.msra.mxu0 %v1325
    %1521 = vmatpush.msra.mxu0 %v1323
    %1522 = vmatpush.msra.mxu0 %v1321
    %1523 = vmatpush.msra.mxu0 %v1319
    %1524 = vmatpush.msra.mxu0 %v1317
    %1525 = vmatpush.msra.mxu0 %v1315
    %1526 = vmatpush.msra.mxu0 %v1313
    %1527 = vmatpush.msra.mxu0 %v1311
    %1528 = vmatmul.f32.gmra.mxu0 %v1510
    %v1529 = vpop.f32.mrf.mxu0
    %v1530 = vadd.f32 0.0, %v1529
    %1531 = vdwg.mxu0
    %1532 = vmatpush.msra.mxu0 0.0
    %1533 = vmatpush.msra.mxu0 0.0
    %1534 = vmatpush.msra.mxu0 0.0
    %1535 = vmatpush.msra.mxu0 0.0
    %1536 = vmatpush.msra.mxu0 0.0
    %1537 = vmatpush.msra.mxu0 0.0
    %1538 = vmatpush.msra.mxu0 0.0
    %1539 = vmatpush.msra.mxu0 0.0
    %1540 = vmatpush.msra.mxu0 %v1326
    %1541 = vmatpush.msra.mxu0 %v1324
    %1542 = vmatpush.msra.mxu0 %v1322
    %1543 = vmatpush.msra.mxu0 %v1320
    %1544 = vmatpush.msra.mxu0 %v1318
    %1545 = vmatpush.msra.mxu0 %v1316
    %1546 = vmatpush.msra.mxu0 %v1314
    %1547 = vmatpush.msra.mxu0 %v1312
    %1548 = vmatmul.f32.gmra.mxu0 %v1510
    %v1549 = vpop.f32.mrf.mxu0
    %v1550 = vadd.f32 0.0, %v1549
    %1551 = vdwg.mxu0
    %v1554 = vrot.slane %v1550, 6
    %v1555 = vsel %vm303, %v1530, %v1554
    %v1557 = vadd.f32 %v1508, %v1555
    %v1558 = vtanh.pop %v1557
    %v1559 = vxor.u32 %v1557, 2147483648
    %v1560 = vmul.f32 %v1559, 1.442695
    %v1561 = vpow.pop %v1560
    %v1562 = vadd.f32 %v1561, 1.0
    %v1563 = vrcp.pop %v1562
    %v1564 = vmul.f32 %v1562, %v1563
    %v1565 = vsub.f32 1.0, %v1564
    %v1566 = vmul.f32 %v1563, %v1565
    %v1567 = vadd.f32 %v1563, %v1566
    %vm1568 = vweird.f32 %v1562
    %vm1569 = vweird.f32 %v1563
    %vm1570 = vmor %vm1568, %vm1569
    %v1571 = vsel %vm1570, %v1563, %v1567
    %v1572 = vand.u32 2147483647, %v1562
    %vm1573 = vcmp.eq.f32.partialorder %v1572, 8.507059e+37
    %v1574 = vand.u32 %v1562, 2147483648
    %v1575 = vor.u32 1.1754944e-38, %v1574
    %v1576 = vsel %vm1573, %v1575, %v1571
    %v1577 = vmul.f32 1.0, %v1576
    %v1579 = vrot.slane %v1577, 2
    %v1581 = vmul.f32 %v1579, %v1499
    %1583 = vrot.lane.b32.xlu0 %v1558, 64
    %v1584 = vpop.permute.xlu0 %1583
    %v1586 = vmul.f32 %v1577, %v1584
    %1588 = vrot.lane.b32.xlu0 %v1586, 64
    %v1589 = vpop.permute.xlu0 %1588
    %v1591 = vadd.f32 %v1581, %v1589
    %v1592 = vtanh.pop %v1591
    %1593 = vrot.lane.b32.xlu0 %v1577, 64
    %v1594 = vpop.permute.xlu0 %1593
    %v1595 = vrot.slane %v1594, 2
    %v1597 = vmul.f32 %v1595, %v1592
    %1598 = vst.msk [vmem:[%s625] sm:$0x3] %vm435, %v1597
    %1599 = vst.msk [vmem:[%s627] sm:$0x3] %vm435, %v1597
    %v1600 = vld [vmem:[%s629] sm:$0xf]
    %v1602 = vsel %vm345, %v1597, 0
    %1604 = vmatpush.msra.mxu0 0.0
    %1605 = vmatpush.msra.mxu0 0.0
    %1606 = vmatpush.msra.mxu0 0.0
    %1607 = vmatpush.msra.mxu0 0.0
    %1608 = vmatpush.msra.mxu0 0.0
    %1609 = vmatpush.msra.mxu0 0.0
    %1610 = vmatpush.msra.mxu0 0.0
    %1611 = vmatpush.msra.mxu0 0.0
    %1612 = vmatpush.msra.mxu0 %v1325
    %1613 = vmatpush.msra.mxu0 %v1323
    %1614 = vmatpush.msra.mxu0 %v1321
    %1615 = vmatpush.msra.mxu0 %v1319
    %1616 = vmatpush.msra.mxu0 %v1317
    %1617 = vmatpush.msra.mxu0 %v1315
    %1618 = vmatpush.msra.mxu0 %v1313
    %1619 = vmatpush.msra.mxu0 %v1311
    %1620 = vmatmul.f32.gmra.mxu0 %v1602
    %v1621 = vpop.f32.mrf.mxu0
    %v1622 = vadd.f32 0.0, %v1621
    %1623 = vdwg.mxu0
    %1624 = vmatpush.msra.mxu0 0.0
    %1625 = vmatpush.msra.mxu0 0.0
    %1626 = vmatpush.msra.mxu0 0.0
    %1627 = vmatpush.msra.mxu0 0.0
    %1628 = vmatpush.msra.mxu0 0.0
    %1629 = vmatpush.msra.mxu0 0.0
    %1630 = vmatpush.msra.mxu0 0.0
    %1631 = vmatpush.msra.mxu0 0.0
    %1632 = vmatpush.msra.mxu0 %v1326
    %1633 = vmatpush.msra.mxu0 %v1324
    %1634 = vmatpush.msra.mxu0 %v1322
    %1635 = vmatpush.msra.mxu0 %v1320
    %1636 = vmatpush.msra.mxu0 %v1318
    %1637 = vmatpush.msra.mxu0 %v1316
    %1638 = vmatpush.msra.mxu0 %v1314
    %1639 = vmatpush.msra.mxu0 %v1312
    %1640 = vmatmul.f32.gmra.mxu0 %v1602
    %v1641 = vpop.f32.mrf.mxu0
    %v1642 = vadd.f32 0.0, %v1641
    %1643 = vdwg.mxu0
    %v1646 = vrot.slane %v1642, 6
    %v1647 = vsel %vm303, %v1622, %v1646
    %v1649 = vadd.f32 %v1600, %v1647
    %v1650 = vtanh.pop %v1649
    %v1651 = vxor.u32 %v1649, 2147483648
    %v1652 = vmul.f32 %v1651, 1.442695
    %v1653 = vpow.pop %v1652
    %v1654 = vadd.f32 %v1653, 1.0
    %v1655 = vrcp.pop %v1654
    %v1656 = vmul.f32 %v1654, %v1655
    %v1657 = vsub.f32 1.0, %v1656
    %v1658 = vmul.f32 %v1655, %v1657
    %v1659 = vadd.f32 %v1655, %v1658
    %vm1660 = vweird.f32 %v1654
    %vm1661 = vweird.f32 %v1655
    %vm1662 = vmor %vm1660, %vm1661
    %v1663 = vsel %vm1662, %v1655, %v1659
    %v1664 = vand.u32 2147483647, %v1654
    %vm1665 = vcmp.eq.f32.partialorder %v1664, 8.507059e+37
    %v1666 = vand.u32 %v1654, 2147483648
    %v1667 = vor.u32 1.1754944e-38, %v1666
    %v1668 = vsel %vm1665, %v1667, %v1663
    %v1669 = vmul.f32 1.0, %v1668
    %v1671 = vrot.slane %v1669, 2
    %v1673 = vmul.f32 %v1671, %v1591
    %1675 = vrot.lane.b32.xlu0 %v1650, 64
    %v1676 = vpop.permute.xlu0 %1675
    %v1678 = vmul.f32 %v1669, %v1676
    %1680 = vrot.lane.b32.xlu0 %v1678, 64
    %v1681 = vpop.permute.xlu0 %1680
    %v1683 = vadd.f32 %v1673, %v1681
    %v1684 = vtanh.pop %v1683
    %1685 = vrot.lane.b32.xlu0 %v1669, 64
    %v1686 = vpop.permute.xlu0 %1685
    %v1687 = vrot.slane %v1686, 2
    %v1689 = vmul.f32 %v1687, %v1684
    %1690 = vst.msk [vmem:[%s720] sm:$0x3] %vm435, %v1689
    %1691 = vst.msk [vmem:[%s722] sm:$0x3] %vm435, %v1689
    %v1692 = vld [vmem:[%s724] sm:$0xf]
    %v1694 = vsel %vm345, %v1689, 0
    %1696 = vmatpush.msra.mxu0 0.0
    %1697 = vmatpush.msra.mxu0 0.0
    %1698 = vmatpush.msra.mxu0 0.0
    %1699 = vmatpush.msra.mxu0 0.0
    %1700 = vmatpush.msra.mxu0 0.0
    %1701 = vmatpush.msra.mxu0 0.0
    %1702 = vmatpush.msra.mxu0 0.0
    %1703 = vmatpush.msra.mxu0 0.0
    %1704 = vmatpush.msra.mxu0 %v1325
    %1705 = vmatpush.msra.mxu0 %v1323
    %1706 = vmatpush.msra.mxu0 %v1321
    %1707 = vmatpush.msra.mxu0 %v1319
    %1708 = vmatpush.msra.mxu0 %v1317
    %1709 = vmatpush.msra.mxu0 %v1315
    %1710 = vmatpush.msra.mxu0 %v1313
    %1711 = vmatpush.msra.mxu0 %v1311
    %1712 = vmatmul.f32.gmra.mxu0 %v1694
    %v1713 = vpop.f32.mrf.mxu0
    %v1714 = vadd.f32 0.0, %v1713
    %1715 = vdwg.mxu0
    %1716 = vmatpush.msra.mxu0 0.0
    %1717 = vmatpush.msra.mxu0 0.0
    %1718 = vmatpush.msra.mxu0 0.0
    %1719 = vmatpush.msra.mxu0 0.0
    %1720 = vmatpush.msra.mxu0 0.0
    %1721 = vmatpush.msra.mxu0 0.0
    %1722 = vmatpush.msra.mxu0 0.0
    %1723 = vmatpush.msra.mxu0 0.0
    %1724 = vmatpush.msra.mxu0 %v1326
    %1725 = vmatpush.msra.mxu0 %v1324
    %1726 = vmatpush.msra.mxu0 %v1322
    %1727 = vmatpush.msra.mxu0 %v1320
    %1728 = vmatpush.msra.mxu0 %v1318
    %1729 = vmatpush.msra.mxu0 %v1316
    %1730 = vmatpush.msra.mxu0 %v1314
    %1731 = vmatpush.msra.mxu0 %v1312
    %1732 = vmatmul.f32.gmra.mxu0 %v1694
    %v1733 = vpop.f32.mrf.mxu0
    %v1734 = vadd.f32 0.0, %v1733
    %1735 = vdwg.mxu0
    %v1738 = vrot.slane %v1734, 6
    %v1739 = vsel %vm303, %v1714, %v1738
    %v1741 = vadd.f32 %v1692, %v1739
    %v1742 = vtanh.pop %v1741
    %v1743 = vxor.u32 %v1741, 2147483648
    %v1744 = vmul.f32 %v1743, 1.442695
    %v1745 = vpow.pop %v1744
    %v1746 = vadd.f32 %v1745, 1.0
    %v1747 = vrcp.pop %v1746
    %v1748 = vmul.f32 %v1746, %v1747
    %v1749 = vsub.f32 1.0, %v1748
    %v1750 = vmul.f32 %v1747, %v1749
    %v1751 = vadd.f32 %v1747, %v1750
    %vm1752 = vweird.f32 %v1746
    %vm1753 = vweird.f32 %v1747
    %vm1754 = vmor %vm1752, %vm1753
    %v1755 = vsel %vm1754, %v1747, %v1751
    %v1756 = vand.u32 2147483647, %v1746
    %vm1757 = vcmp.eq.f32.partialorder %v1756, 8.507059e+37
    %v1758 = vand.u32 %v1746, 2147483648
    %v1759 = vor.u32 1.1754944e-38, %v1758
    %v1760 = vsel %vm1757, %v1759, %v1755
    %v1761 = vmul.f32 1.0, %v1760
    %v1763 = vrot.slane %v1761, 2
    %v1765 = vmul.f32 %v1763, %v1683
    %1767 = vrot.lane.b32.xlu0 %v1742, 64
    %v1768 = vpop.permute.xlu0 %1767
    %v1770 = vmul.f32 %v1761, %v1768
    %1772 = vrot.lane.b32.xlu0 %v1770, 64
    %v1773 = vpop.permute.xlu0 %1772
    %v1775 = vadd.f32 %v1765, %v1773
    %v1776 = vtanh.pop %v1775
    %1777 = vrot.lane.b32.xlu0 %v1761, 64
    %v1778 = vpop.permute.xlu0 %1777
    %v1779 = vrot.slane %v1778, 2
    %v1781 = vmul.f32 %v1779, %v1776
    %1782 = vst.msk [vmem:[%s815] sm:$0x3] %vm435, %v1781
    %1783 = vst.msk [vmem:[%s817] sm:$0x3] %vm435, %v1781
    %v1784 = vld [vmem:[%s819] sm:$0xf]
    %v1786 = vsel %vm345, %v1781, 0
    %1788 = vmatpush.msra.mxu0 0.0
    %1789 = vmatpush.msra.mxu0 0.0
    %1790 = vmatpush.msra.mxu0 0.0
    %1791 = vmatpush.msra.mxu0 0.0
    %1792 = vmatpush.msra.mxu0 0.0
    %1793 = vmatpush.msra.mxu0 0.0
    %1794 = vmatpush.msra.mxu0 0.0
    %1795 = vmatpush.msra.mxu0 0.0
    %1796 = vmatpush.msra.mxu0 %v1325
    %1797 = vmatpush.msra.mxu0 %v1323
    %1798 = vmatpush.msra.mxu0 %v1321
    %1799 = vmatpush.msra.mxu0 %v1319
    %1800 = vmatpush.msra.mxu0 %v1317
    %1801 = vmatpush.msra.mxu0 %v1315
    %1802 = vmatpush.msra.mxu0 %v1313
    %1803 = vmatpush.msra.mxu0 %v1311
    %1804 = vmatmul.f32.gmra.mxu0 %v1786
    %v1805 = vpop.f32.mrf.mxu0
    %v1806 = vadd.f32 0.0, %v1805
    %1807 = vdwg.mxu0
    %1808 = vmatpush.msra.mxu0 0.0
    %1809 = vmatpush.msra.mxu0 0.0
    %1810 = vmatpush.msra.mxu0 0.0
    %1811 = vmatpush.msra.mxu0 0.0
    %1812 = vmatpush.msra.mxu0 0.0
    %1813 = vmatpush.msra.mxu0 0.0
    %1814 = vmatpush.msra.mxu0 0.0
    %1815 = vmatpush.msra.mxu0 0.0
    %1816 = vmatpush.msra.mxu0 %v1326
    %1817 = vmatpush.msra.mxu0 %v1324
    %1818 = vmatpush.msra.mxu0 %v1322
    %1819 = vmatpush.msra.mxu0 %v1320
    %1820 = vmatpush.msra.mxu0 %v1318
    %1821 = vmatpush.msra.mxu0 %v1316
    %1822 = vmatpush.msra.mxu0 %v1314
    %1823 = vmatpush.msra.mxu0 %v1312
    %1824 = vmatmul.f32.gmra.mxu0 %v1786
    %v1825 = vpop.f32.mrf.mxu0
    %v1826 = vadd.f32 0.0, %v1825
    %1827 = vdwg.mxu0
    %v1830 = vrot.slane %v1826, 6
    %v1831 = vsel %vm303, %v1806, %v1830
    %v1833 = vadd.f32 %v1784, %v1831
    %v1834 = vtanh.pop %v1833
    %v1835 = vxor.u32 %v1833, 2147483648
    %v1836 = vmul.f32 %v1835, 1.442695
    %v1837 = vpow.pop %v1836
    %v1838 = vadd.f32 %v1837, 1.0
    %v1839 = vrcp.pop %v1838
    %v1840 = vmul.f32 %v1838, %v1839
    %v1841 = vsub.f32 1.0, %v1840
    %v1842 = vmul.f32 %v1839, %v1841
    %v1843 = vadd.f32 %v1839, %v1842
    %vm1844 = vweird.f32 %v1838
    %vm1845 = vweird.f32 %v1839
    %vm1846 = vmor %vm1844, %vm1845
    %v1847 = vsel %vm1846, %v1839, %v1843
    %v1848 = vand.u32 2147483647, %v1838
    %vm1849 = vcmp.eq.f32.partialorder %v1848, 8.507059e+37
    %v1850 = vand.u32 %v1838, 2147483648
    %v1851 = vor.u32 1.1754944e-38, %v1850
    %v1852 = vsel %vm1849, %v1851, %v1847
    %v1853 = vmul.f32 1.0, %v1852
    %v1855 = vrot.slane %v1853, 2
    %v1857 = vmul.f32 %v1855, %v1775
    %1859 = vrot.lane.b32.xlu0 %v1834, 64
    %v1860 = vpop.permute.xlu0 %1859
    %v1862 = vmul.f32 %v1853, %v1860
    %1864 = vrot.lane.b32.xlu0 %v1862, 64
    %v1865 = vpop.permute.xlu0 %1864
    %v1867 = vadd.f32 %v1857, %v1865
    %v1868 = vtanh.pop %v1867
    %1869 = vrot.lane.b32.xlu0 %v1853, 64
    %v1870 = vpop.permute.xlu0 %1869
    %v1871 = vrot.slane %v1870, 2
    %v1873 = vmul.f32 %v1871, %v1868
    %1874 = vst.msk [vmem:[%s910] sm:$0x3] %vm435, %v1873
    %1875 = vst.msk [vmem:[%s912] sm:$0x3] %vm435, %v1873
    %v1876 = vld [vmem:[%s914] sm:$0xf]
    %v1878 = vsel %vm345, %v1873, 0
    %1880 = vmatpush.msra.mxu0 0.0
    %1881 = vmatpush.msra.mxu0 0.0
    %1882 = vmatpush.msra.mxu0 0.0
    %1883 = vmatpush.msra.mxu0 0.0
    %1884 = vmatpush.msra.mxu0 0.0
    %1885 = vmatpush.msra.mxu0 0.0
    %1886 = vmatpush.msra.mxu0 0.0
    %1887 = vmatpush.msra.mxu0 0.0
    %1888 = vmatpush.msra.mxu0 %v1325
    %1889 = vmatpush.msra.mxu0 %v1323
    %1890 = vmatpush.msra.mxu0 %v1321
    %1891 = vmatpush.msra.mxu0 %v1319
    %1892 = vmatpush.msra.mxu0 %v1317
    %1893 = vmatpush.msra.mxu0 %v1315
    %1894 = vmatpush.msra.mxu0 %v1313
    %1895 = vmatpush.msra.mxu0 %v1311
    %1896 = vmatmul.f32.gmra.mxu0 %v1878
    %v1897 = vpop.f32.mrf.mxu0
    %v1898 = vadd.f32 0.0, %v1897
    %1899 = vdwg.mxu0
    %1900 = vmatpush.msra.mxu0 0.0
    %1901 = vmatpush.msra.mxu0 0.0
    %1902 = vmatpush.msra.mxu0 0.0
    %1903 = vmatpush.msra.mxu0 0.0
    %1904 = vmatpush.msra.mxu0 0.0
    %1905 = vmatpush.msra.mxu0 0.0
    %1906 = vmatpush.msra.mxu0 0.0
    %1907 = vmatpush.msra.mxu0 0.0
    %1908 = vmatpush.msra.mxu0 %v1326
    %1909 = vmatpush.msra.mxu0 %v1324
    %1910 = vmatpush.msra.mxu0 %v1322
    %1911 = vmatpush.msra.mxu0 %v1320
    %1912 = vmatpush.msra.mxu0 %v1318
    %1913 = vmatpush.msra.mxu0 %v1316
    %1914 = vmatpush.msra.mxu0 %v1314
    %1915 = vmatpush.msra.mxu0 %v1312
    %1916 = vmatmul.f32.gmra.mxu0 %v1878
    %v1917 = vpop.f32.mrf.mxu0
    %v1918 = vadd.f32 0.0, %v1917
    %1919 = vdwg.mxu0
    %v1922 = vrot.slane %v1918, 6
    %v1923 = vsel %vm303, %v1898, %v1922
    %v1925 = vadd.f32 %v1876, %v1923
    %v1926 = vtanh.pop %v1925
    %v1927 = vxor.u32 %v1925, 2147483648
    %v1928 = vmul.f32 %v1927, 1.442695
    %v1929 = vpow.pop %v1928
    %v1930 = vadd.f32 %v1929, 1.0
    %v1931 = vrcp.pop %v1930
    %v1932 = vmul.f32 %v1930, %v1931
    %v1933 = vsub.f32 1.0, %v1932
    %v1934 = vmul.f32 %v1931, %v1933
    %v1935 = vadd.f32 %v1931, %v1934
    %vm1936 = vweird.f32 %v1930
    %vm1937 = vweird.f32 %v1931
    %vm1938 = vmor %vm1936, %vm1937
    %v1939 = vsel %vm1938, %v1931, %v1935
    %v1940 = vand.u32 2147483647, %v1930
    %vm1941 = vcmp.eq.f32.partialorder %v1940, 8.507059e+37
    %v1942 = vand.u32 %v1930, 2147483648
    %v1943 = vor.u32 1.1754944e-38, %v1942
    %v1944 = vsel %vm1941, %v1943, %v1939
    %v1945 = vmul.f32 1.0, %v1944
    %v1947 = vrot.slane %v1945, 2
    %v1949 = vmul.f32 %v1947, %v1867
    %1951 = vrot.lane.b32.xlu0 %v1926, 64
    %v1952 = vpop.permute.xlu0 %1951
    %v1954 = vmul.f32 %v1945, %v1952
    %1956 = vrot.lane.b32.xlu0 %v1954, 64
    %v1957 = vpop.permute.xlu0 %1956
    %v1959 = vadd.f32 %v1949, %v1957
    %v1960 = vtanh.pop %v1959
    %1961 = vrot.lane.b32.xlu0 %v1945, 64
    %v1962 = vpop.permute.xlu0 %1961
    %v1963 = vrot.slane %v1962, 2
    %v1965 = vmul.f32 %v1963, %v1960
    %1966 = vst.msk [vmem:[%s1005] sm:$0x3] %vm435, %v1965
    %1967 = vst.msk [vmem:[%s1007] sm:$0x3] %vm435, %v1965
    %v1968 = vld [vmem:[%s1009] sm:$0xf]
    %v1970 = vsel %vm345, %v1965, 0
    %1972 = vmatpush.msra.mxu0 0.0
    %1973 = vmatpush.msra.mxu0 0.0
    %1974 = vmatpush.msra.mxu0 0.0
    %1975 = vmatpush.msra.mxu0 0.0
    %1976 = vmatpush.msra.mxu0 0.0
    %1977 = vmatpush.msra.mxu0 0.0
    %1978 = vmatpush.msra.mxu0 0.0
    %1979 = vmatpush.msra.mxu0 0.0
    %1980 = vmatpush.msra.mxu0 %v1325
    %1981 = vmatpush.msra.mxu0 %v1323
    %1982 = vmatpush.msra.mxu0 %v1321
    %1983 = vmatpush.msra.mxu0 %v1319
    %1984 = vmatpush.msra.mxu0 %v1317
    %1985 = vmatpush.msra.mxu0 %v1315
    %1986 = vmatpush.msra.mxu0 %v1313
    %1987 = vmatpush.msra.mxu0 %v1311
    %1988 = vmatmul.f32.gmra.mxu0 %v1970
    %v1989 = vpop.f32.mrf.mxu0
    %v1990 = vadd.f32 0.0, %v1989
    %1991 = vdwg.mxu0
    %1992 = vmatpush.msra.mxu0 0.0
    %1993 = vmatpush.msra.mxu0 0.0
    %1994 = vmatpush.msra.mxu0 0.0
    %1995 = vmatpush.msra.mxu0 0.0
    %1996 = vmatpush.msra.mxu0 0.0
    %1997 = vmatpush.msra.mxu0 0.0
    %1998 = vmatpush.msra.mxu0 0.0
    %1999 = vmatpush.msra.mxu0 0.0
    %2000 = vmatpush.msra.mxu0 %v1326
    %2001 = vmatpush.msra.mxu0 %v1324
    %2002 = vmatpush.msra.mxu0 %v1322
    %2003 = vmatpush.msra.mxu0 %v1320
    %2004 = vmatpush.msra.mxu0 %v1318
    %2005 = vmatpush.msra.mxu0 %v1316
    %2006 = vmatpush.msra.mxu0 %v1314
    %2007 = vmatpush.msra.mxu0 %v1312
    %2008 = vmatmul.f32.gmra.mxu0 %v1970
    %v2009 = vpop.f32.mrf.mxu0
    %v2010 = vadd.f32 0.0, %v2009
    %2011 = vdwg.mxu0
    %v2014 = vrot.slane %v2010, 6
    %v2015 = vsel %vm303, %v1990, %v2014
    %v2017 = vadd.f32 %v1968, %v2015
    %v2018 = vtanh.pop %v2017
    %v2019 = vxor.u32 %v2017, 2147483648
    %v2020 = vmul.f32 %v2019, 1.442695
    %v2021 = vpow.pop %v2020
    %v2022 = vadd.f32 %v2021, 1.0
    %v2023 = vrcp.pop %v2022
    %v2024 = vmul.f32 %v2022, %v2023
    %v2025 = vsub.f32 1.0, %v2024
    %v2026 = vmul.f32 %v2023, %v2025
    %v2027 = vadd.f32 %v2023, %v2026
    %vm2028 = vweird.f32 %v2022
    %vm2029 = vweird.f32 %v2023
    %vm2030 = vmor %vm2028, %vm2029
    %v2031 = vsel %vm2030, %v2023, %v2027
    %v2032 = vand.u32 2147483647, %v2022
    %vm2033 = vcmp.eq.f32.partialorder %v2032, 8.507059e+37
    %v2034 = vand.u32 %v2022, 2147483648
    %v2035 = vor.u32 1.1754944e-38, %v2034
    %v2036 = vsel %vm2033, %v2035, %v2031
    %v2037 = vmul.f32 1.0, %v2036
    %v2039 = vrot.slane %v2037, 2
    %v2041 = vmul.f32 %v2039, %v1959
    %2043 = vrot.lane.b32.xlu0 %v2018, 64
    %v2044 = vpop.permute.xlu0 %2043
    %v2046 = vmul.f32 %v2037, %v2044
    %2048 = vrot.lane.b32.xlu0 %v2046, 64
    %v2049 = vpop.permute.xlu0 %2048
    %v2051 = vadd.f32 %v2041, %v2049
    %v2052 = vtanh.pop %v2051
    %2053 = vrot.lane.b32.xlu0 %v2037, 64
    %v2054 = vpop.permute.xlu0 %2053
    %v2055 = vrot.slane %v2054, 2
    %v2057 = vmul.f32 %v2055, %v2052
    %2058 = vst.msk [vmem:[%s1100] sm:$0x3] %vm435, %v2057
    %2059 = vst.msk [vmem:[#allocation4] sm:$0x3] %vm435, %v2057
    %v2060 = vld [vmem:[#allocation3] sm:$0x3]
    %v2061 = vld [vmem:[#allocation3 + $0x2] sm:$0x3]
    %v2062 = vld [vmem:[#allocation3 + $0x4] sm:$0x3]
    %v2063 = vld [vmem:[#allocation3 + $0x6] sm:$0x3]
    %v2064 = vld [vmem:[#allocation3 + $0x8] sm:$0x3]
    %v2065 = vld [vmem:[#allocation3 + $0xa] sm:$0x3]
    %v2066 = vld [vmem:[#allocation3 + $0xc] sm:$0x3]
    %v2067 = vld [vmem:[#allocation3 + $0xe] sm:$0x3]
    %v2068 = vld [vmem:[#allocation4] sm:$0x3]
    %v2069 = vld [vmem:[#allocation4 + $0x2] sm:$0x3]
    %v2070 = vld [vmem:[#allocation4 + $0x4] sm:$0x3]
    %v2071 = vld [vmem:[#allocation4 + $0x6] sm:$0x3]
    %v2072 = vld [vmem:[#allocation4 + $0x8] sm:$0x3]
    %v2073 = vld [vmem:[#allocation4 + $0xa] sm:$0x3]
    %v2074 = vld [vmem:[#allocation4 + $0xc] sm:$0x3]
    %v2075 = vld [vmem:[#allocation4 + $0xe] sm:$0x3]
    %2084 = vrot.lane.b32.xlu0 %v2068, 64
    %v2085 = vpop.permute.xlu0 %2084
    %2086 = vrot.lane.b32.xlu0 %v2069, 64
    %v2087 = vpop.permute.xlu0 %2086
    %2088 = vrot.lane.b32.xlu0 %v2070, 64
    %v2089 = vpop.permute.xlu0 %2088
    %2090 = vrot.lane.b32.xlu0 %v2071, 64
    %v2091 = vpop.permute.xlu0 %2090
    %2092 = vrot.lane.b32.xlu0 %v2072, 64
    %v2093 = vpop.permute.xlu0 %2092
    %2094 = vrot.lane.b32.xlu0 %v2073, 64
    %v2095 = vpop.permute.xlu0 %2094
    %2096 = vrot.lane.b32.xlu0 %v2074, 64
    %v2097 = vpop.permute.xlu0 %2096
    %2098 = vrot.lane.b32.xlu0 %v2075, 64
    %v2099 = vpop.permute.xlu0 %2098
    %v2108 = vsel %vm345, %v2060, %v2085
    %v2109 = vsel %vm345, %v2061, %v2087
    %v2110 = vsel %vm345, %v2062, %v2089
    %v2111 = vsel %vm345, %v2063, %v2091
    %v2112 = vsel %vm345, %v2064, %v2093
    %v2113 = vsel %vm345, %v2065, %v2095
    %v2114 = vsel %vm345, %v2066, %v2097
    %v2115 = vsel %vm345, %v2067, %v2099
    %s2116 = scalar_lea.vmem [#allocation6], 256
    %v2117 = vld [vmem:[%s2116] sm:$0xff]
    %v2118 = vld [vmem:[%s2116 + $0x8] sm:$0xff]
    %v2119 = vld [vmem:[%s2116 + $0x10] sm:$0xff]
    %v2120 = vld [vmem:[%s2116 + $0x18] sm:$0xff]
    %v2121 = vld [vmem:[%s2116 + $0x20] sm:$0xff]
    %v2122 = vld [vmem:[%s2116 + $0x28] sm:$0xff]
    %v2123 = vld [vmem:[%s2116 + $0x30] sm:$0xff]
    %v2124 = vld [vmem:[%s2116 + $0x38] sm:$0xff]
    %v2125 = vld [vmem:[%s2116 + $0x40] sm:$0xff]
    %v2126 = vld [vmem:[%s2116 + $0x48] sm:$0xff]
    %v2127 = vld [vmem:[%s2116 + $0x50] sm:$0xff]
    %v2128 = vld [vmem:[%s2116 + $0x58] sm:$0xff]
    %v2129 = vld [vmem:[%s2116 + $0x60] sm:$0xff]
    %v2130 = vld [vmem:[%s2116 + $0x68] sm:$0xff]
    %v2131 = vld [vmem:[%s2116 + $0x70] sm:$0xff]
    %v2132 = vld [vmem:[%s2116 + $0x78] sm:$0xff]
    %v2133 = vld [vmem:[%s2116 + $0x80] sm:$0xff]
    %v2134 = vld [vmem:[%s2116 + $0x88] sm:$0xff]
    %v2135 = vld [vmem:[%s2116 + $0x90] sm:$0xff]
    %v2136 = vld [vmem:[%s2116 + $0x98] sm:$0xff]
    %v2137 = vld [vmem:[%s2116 + $0xa0] sm:$0xff]
    %v2138 = vld [vmem:[%s2116 + $0xa8] sm:$0xff]
    %v2139 = vld [vmem:[%s2116 + $0xb0] sm:$0xff]
    %v2140 = vld [vmem:[%s2116 + $0xb8] sm:$0xff]
    %v2141 = vld [vmem:[%s2116 + $0xc0] sm:$0xff]
    %v2142 = vld [vmem:[%s2116 + $0xc8] sm:$0xff]
    %v2143 = vld [vmem:[%s2116 + $0xd0] sm:$0xff]
    %v2144 = vld [vmem:[%s2116 + $0xd8] sm:$0xff]
    %v2145 = vld [vmem:[%s2116 + $0xe0] sm:$0xff]
    %v2146 = vld [vmem:[%s2116 + $0xe8] sm:$0xff]
    %v2147 = vld [vmem:[%s2116 + $0xf0] sm:$0xff]
    %v2148 = vld [vmem:[%s2116 + $0xf8] sm:$0xff]
    %s2149 = scalar_lea.vmem %s6, 4
    %v2150 = vld [vmem:[%s2149] sm:$0x3]
    %v2152 = vperm.slane %v2150, 0
    %v2153 = vperm.slane %v2150, 1
    %2164 = vst [vmem:[#allocation1] ss:$4 sm:$0xff] %v2108
    %s2165 = scalar_lea.vmem [#allocation1], 1
    %2166 = vst [vmem:[%s2165] ss:$4 sm:$0xff] %v2109
    %s2167 = scalar_lea.vmem [#allocation1], 2
    %2168 = vst [vmem:[%s2167] ss:$4 sm:$0xff] %v2110
    %s2169 = scalar_lea.vmem [#allocation1], 3
    %2170 = vst [vmem:[%s2169] ss:$4 sm:$0xff] %v2111
    %s2171 = scalar_lea.vmem [#allocation1], 32
    %2172 = vst [vmem:[%s2171] ss:$4 sm:$0xff] %v2112
    %s2173 = scalar_lea.vmem [#allocation1], 33
    %2174 = vst [vmem:[%s2173] ss:$4 sm:$0xff] %v2113
    %s2175 = scalar_lea.vmem [#allocation1], 34
    %2176 = vst [vmem:[%s2175] ss:$4 sm:$0xff] %v2114
    %s2177 = scalar_lea.vmem [#allocation1], 35
    %2178 = vst [vmem:[%s2177] ss:$4 sm:$0xff] %v2115
    %v2179 = vld.sshfl [vmem:[#allocation1] sm:$0xff pattern:$0x73625140]
    %v2180 = vld.sshfl [vmem:[#allocation1 + $0x20] sm:$0xff pattern:$0x73625140]
    %2183 = vmatpush.msra.mxu0 %v2147
    %2184 = vmatpush.msra.mxu0 %v2145
    %2185 = vmatpush.msra.mxu0 %v2143
    %2186 = vmatpush.msra.mxu0 %v2141
    %2187 = vmatpush.msra.mxu0 %v2139
    %2188 = vmatpush.msra.mxu0 %v2137
    %2189 = vmatpush.msra.mxu0 %v2135
    %2190 = vmatpush.msra.mxu0 %v2133
    %2191 = vmatpush.msra.mxu0 %v2131
    %2192 = vmatpush.msra.mxu0 %v2129
    %2193 = vmatpush.msra.mxu0 %v2127
    %2194 = vmatpush.msra.mxu0 %v2125
    %2195 = vmatpush.msra.mxu0 %v2123
    %2196 = vmatpush.msra.mxu0 %v2121
    %2197 = vmatpush.msra.mxu0 %v2119
    %2198 = vmatpush.msra.mxu0 %v2117
    %2199 = vmatmul.f32.gmra.mxu0 %v2179
    %v2200 = vpop.f32.mrf.mxu0
    %v2201 = vadd.f32 %v2152, %v2200
    %2202 = vmatmul.f32.gmra.mxu0 %v2180
    %v2203 = vpop.f32.mrf.mxu0
    %v2204 = vadd.f32 %v2152, %v2203
    %2205 = vdwg.mxu0
    %2206 = vmatpush.msra.mxu0 %v2148
    %2207 = vmatpush.msra.mxu0 %v2146
    %2208 = vmatpush.msra.mxu0 %v2144
    %2209 = vmatpush.msra.mxu0 %v2142
    %2210 = vmatpush.msra.mxu0 %v2140
    %2211 = vmatpush.msra.mxu0 %v2138
    %2212 = vmatpush.msra.mxu0 %v2136
    %2213 = vmatpush.msra.mxu0 %v2134
    %2214 = vmatpush.msra.mxu0 %v2132
    %2215 = vmatpush.msra.mxu0 %v2130
    %2216 = vmatpush.msra.mxu0 %v2128
    %2217 = vmatpush.msra.mxu0 %v2126
    %2218 = vmatpush.msra.mxu0 %v2124
    %2219 = vmatpush.msra.mxu0 %v2122
    %2220 = vmatpush.msra.mxu0 %v2120
    %2221 = vmatpush.msra.mxu0 %v2118
    %2222 = vmatmul.f32.gmra.mxu0 %v2179
    %v2223 = vpop.f32.mrf.mxu0
    %v2224 = vadd.f32 %v2153, %v2223
    %2225 = vmatmul.f32.gmra.mxu0 %v2180
    %v2226 = vpop.f32.mrf.mxu0
    %v2227 = vadd.f32 %v2153, %v2226
    %2228 = vdwg.mxu0
    %v2233 = vrot.slane %v2224, 6
    %v2234 = vrot.slane %v2227, 6
    %v2235 = vsel %vm303, %v2201, %v2233
    %v2236 = vsel %vm1278, %v2201, %v2233
    %v2237 = vrot.slane %v2236, 2
    %v2238 = vsel %vm1281, %v2201, %v2233
    %v2239 = vrot.slane %v2238, 4
    %v2240 = vsel %vm1284, %v2233, %v2201
    %v2241 = vrot.slane %v2240, 6
    %v2242 = vsel %vm303, %v2204, %v2234
    %v2243 = vsel %vm1278, %v2204, %v2234
    %v2244 = vrot.slane %v2243, 2
    %v2245 = vsel %vm1281, %v2204, %v2234
    %v2246 = vrot.slane %v2245, 4
    %v2247 = vsel %vm1284, %v2234, %v2204
    %v2248 = vrot.slane %v2247, 6
    %2257 = vst [vmem:[#allocation2] sm:$0xf] %v2235
    %2258 = vst [vmem:[#allocation2 + $0x4] sm:$0xf] %v2237
    %2259 = vst [vmem:[#allocation2 + $0x8] sm:$0xf] %v2239
    %2260 = vst [vmem:[#allocation2 + $0xc] sm:$0xf] %v2241
    %2261 = vst [vmem:[#allocation2 + $0x10] sm:$0xf] %v2242
    %2262 = vst [vmem:[#allocation2 + $0x14] sm:$0xf] %v2244
    %2263 = vst [vmem:[#allocation2 + $0x18] sm:$0xf] %v2246
    %2264 = vst [vmem:[#allocation2 + $0x1c] sm:$0xf] %v2248
    %s2265 = scalar_lea.vmem [#allocation9], 256
    %v2266 = vld [vmem:[%s2265] sm:$0xff]
    %v2267 = vld [vmem:[%s2265 + $0x8] sm:$0xff]
    %v2268 = vld [vmem:[%s2265 + $0x10] sm:$0xff]
    %v2269 = vld [vmem:[%s2265 + $0x18] sm:$0xff]
    %v2270 = vld [vmem:[%s2265 + $0x20] sm:$0xff]
    %v2271 = vld [vmem:[%s2265 + $0x28] sm:$0xff]
    %v2272 = vld [vmem:[%s2265 + $0x30] sm:$0xff]
    %v2273 = vld [vmem:[%s2265 + $0x38] sm:$0xff]
    %v2274 = vld [vmem:[%s2265 + $0x40] sm:$0xff]
    %v2275 = vld [vmem:[%s2265 + $0x48] sm:$0xff]
    %v2276 = vld [vmem:[%s2265 + $0x50] sm:$0xff]
    %v2277 = vld [vmem:[%s2265 + $0x58] sm:$0xff]
    %v2278 = vld [vmem:[%s2265 + $0x60] sm:$0xff]
    %v2279 = vld [vmem:[%s2265 + $0x68] sm:$0xff]
    %v2280 = vld [vmem:[%s2265 + $0x70] sm:$0xff]
    %v2281 = vld [vmem:[%s2265 + $0x78] sm:$0xff]
    %v2282 = vld [vmem:[#allocation2] sm:$0xf]
    %2283 = vmatpush.msra.mxu0 0.0
    %2284 = vmatpush.msra.mxu0 0.0
    %2285 = vmatpush.msra.mxu0 0.0
    %2286 = vmatpush.msra.mxu0 0.0
    %2287 = vmatpush.msra.mxu0 0.0
    %2288 = vmatpush.msra.mxu0 0.0
    %2289 = vmatpush.msra.mxu0 0.0
    %2290 = vmatpush.msra.mxu0 0.0
    %2291 = vmatpush.msra.mxu0 %v2280
    %2292 = vmatpush.msra.mxu0 %v2278
    %2293 = vmatpush.msra.mxu0 %v2276
    %2294 = vmatpush.msra.mxu0 %v2274
    %2295 = vmatpush.msra.mxu0 %v2272
    %2296 = vmatpush.msra.mxu0 %v2270
    %2297 = vmatpush.msra.mxu0 %v2268
    %2298 = vmatpush.msra.mxu0 %v2266
    %2299 = vmatmul.f32.gmra.mxu0 %v347
    %v2300 = vpop.f32.mrf.mxu0
    %v2301 = vadd.f32 0.0, %v2300
    %2302 = vdwg.mxu0
    %2303 = vmatpush.msra.mxu0 0.0
    %2304 = vmatpush.msra.mxu0 0.0
    %2305 = vmatpush.msra.mxu0 0.0
    %2306 = vmatpush.msra.mxu0 0.0
    %2307 = vmatpush.msra.mxu0 0.0
    %2308 = vmatpush.msra.mxu0 0.0
    %2309 = vmatpush.msra.mxu0 0.0
    %2310 = vmatpush.msra.mxu0 0.0
    %2311 = vmatpush.msra.mxu0 %v2281
    %2312 = vmatpush.msra.mxu0 %v2279
    %2313 = vmatpush.msra.mxu0 %v2277
    %2314 = vmatpush.msra.mxu0 %v2275
    %2315 = vmatpush.msra.mxu0 %v2273
    %2316 = vmatpush.msra.mxu0 %v2271
    %2317 = vmatpush.msra.mxu0 %v2269
    %2318 = vmatpush.msra.mxu0 %v2267
    %2319 = vmatmul.f32.gmra.mxu0 %v347
    %v2320 = vpop.f32.mrf.mxu0
    %v2321 = vadd.f32 0.0, %v2320
    %2322 = vdwg.mxu0
    %v2325 = vrot.slane %v2321, 6
    %v2326 = vsel %vm303, %v2301, %v2325
    %v2328 = vadd.f32 %v2282, %v2326
    %v2329 = vtanh.pop %v2328
    %v2330 = vxor.u32 %v2328, 2147483648
    %v2331 = vmul.f32 %v2330, 1.442695
    %v2332 = vpow.pop %v2331
    %v2333 = vadd.f32 %v2332, 1.0
    %v2334 = vrcp.pop %v2333
    %v2335 = vmul.f32 %v2333, %v2334
    %v2336 = vsub.f32 1.0, %v2335
    %v2337 = vmul.f32 %v2334, %v2336
    %v2338 = vadd.f32 %v2334, %v2337
    %vm2339 = vweird.f32 %v2333
    %vm2340 = vweird.f32 %v2334
    %vm2341 = vmor %vm2339, %vm2340
    %v2342 = vsel %vm2341, %v2334, %v2338
    %v2343 = vand.u32 2147483647, %v2333
    %vm2344 = vcmp.eq.f32.partialorder %v2343, 8.507059e+37
    %v2345 = vand.u32 %v2333, 2147483648
    %v2346 = vor.u32 1.1754944e-38, %v2345
    %v2347 = vsel %vm2344, %v2346, %v2342
    %v2348 = vmul.f32 1.0, %v2347
    %v2350 = vrot.slane %v2348, 2
    %v2352 = vmul.f32 %v2350, 0.0
    %2354 = vrot.lane.b32.xlu0 %v2329, 64
    %v2355 = vpop.permute.xlu0 %2354
    %v2357 = vmul.f32 %v2348, %v2355
    %2359 = vrot.lane.b32.xlu0 %v2357, 64
    %v2360 = vpop.permute.xlu0 %2359
    %v2362 = vadd.f32 %v2352, %v2360
    %v2363 = vtanh.pop %v2362
    %2364 = vrot.lane.b32.xlu0 %v2348, 64
    %v2365 = vpop.permute.xlu0 %2364
    %v2366 = vrot.slane %v2365, 2
    %v2368 = vmul.f32 %v2366, %v2363
    %2369 = vst.msk [vmem:[#allocation3] sm:$0x3] %vm435, %v2368
    %2370 = vst.msk [vmem:[%s437] sm:$0x3] %vm435, %v2368
    %v2371 = vld [vmem:[%s439] sm:$0xf]
    %v2373 = vsel %vm345, %v2368, 0
    %2375 = vmatpush.msra.mxu0 0.0
    %2376 = vmatpush.msra.mxu0 0.0
    %2377 = vmatpush.msra.mxu0 0.0
    %2378 = vmatpush.msra.mxu0 0.0
    %2379 = vmatpush.msra.mxu0 0.0
    %2380 = vmatpush.msra.mxu0 0.0
    %2381 = vmatpush.msra.mxu0 0.0
    %2382 = vmatpush.msra.mxu0 0.0
    %2383 = vmatpush.msra.mxu0 %v2280
    %2384 = vmatpush.msra.mxu0 %v2278
    %2385 = vmatpush.msra.mxu0 %v2276
    %2386 = vmatpush.msra.mxu0 %v2274
    %2387 = vmatpush.msra.mxu0 %v2272
    %2388 = vmatpush.msra.mxu0 %v2270
    %2389 = vmatpush.msra.mxu0 %v2268
    %2390 = vmatpush.msra.mxu0 %v2266
    %2391 = vmatmul.f32.gmra.mxu0 %v2373
    %v2392 = vpop.f32.mrf.mxu0
    %v2393 = vadd.f32 0.0, %v2392
    %2394 = vdwg.mxu0
    %2395 = vmatpush.msra.mxu0 0.0
    %2396 = vmatpush.msra.mxu0 0.0
    %2397 = vmatpush.msra.mxu0 0.0
    %2398 = vmatpush.msra.mxu0 0.0
    %2399 = vmatpush.msra.mxu0 0.0
    %2400 = vmatpush.msra.mxu0 0.0
    %2401 = vmatpush.msra.mxu0 0.0
    %2402 = vmatpush.msra.mxu0 0.0
    %2403 = vmatpush.msra.mxu0 %v2281
    %2404 = vmatpush.msra.mxu0 %v2279
    %2405 = vmatpush.msra.mxu0 %v2277
    %2406 = vmatpush.msra.mxu0 %v2275
    %2407 = vmatpush.msra.mxu0 %v2273
    %2408 = vmatpush.msra.mxu0 %v2271
    %2409 = vmatpush.msra.mxu0 %v2269
    %2410 = vmatpush.msra.mxu0 %v2267
    %2411 = vmatmul.f32.gmra.mxu0 %v2373
    %v2412 = vpop.f32.mrf.mxu0
    %v2413 = vadd.f32 0.0, %v2412
    %2414 = vdwg.mxu0
    %v2417 = vrot.slane %v2413, 6
    %v2418 = vsel %vm303, %v2393, %v2417
    %v2420 = vadd.f32 %v2371, %v2418
    %v2421 = vtanh.pop %v2420
    %v2422 = vxor.u32 %v2420, 2147483648
    %v2423 = vmul.f32 %v2422, 1.442695
    %v2424 = vpow.pop %v2423
    %v2425 = vadd.f32 %v2424, 1.0
    %v2426 = vrcp.pop %v2425
    %v2427 = vmul.f32 %v2425, %v2426
    %v2428 = vsub.f32 1.0, %v2427
    %v2429 = vmul.f32 %v2426, %v2428
    %v2430 = vadd.f32 %v2426, %v2429
    %vm2431 = vweird.f32 %v2425
    %vm2432 = vweird.f32 %v2426
    %vm2433 = vmor %vm2431, %vm2432
    %v2434 = vsel %vm2433, %v2426, %v2430
    %v2435 = vand.u32 2147483647, %v2425
    %vm2436 = vcmp.eq.f32.partialorder %v2435, 8.507059e+37
    %v2437 = vand.u32 %v2425, 2147483648
    %v2438 = vor.u32 1.1754944e-38, %v2437
    %v2439 = vsel %vm2436, %v2438, %v2434
    %v2440 = vmul.f32 1.0, %v2439
    %v2442 = vrot.slane %v2440, 2
    %v2444 = vmul.f32 %v2442, %v2362
    %2446 = vrot.lane.b32.xlu0 %v2421, 64
    %v2447 = vpop.permute.xlu0 %2446
    %v2449 = vmul.f32 %v2440, %v2447
    %2451 = vrot.lane.b32.xlu0 %v2449, 64
    %v2452 = vpop.permute.xlu0 %2451
    %v2454 = vadd.f32 %v2444, %v2452
    %v2455 = vtanh.pop %v2454
    %2456 = vrot.lane.b32.xlu0 %v2440, 64
    %v2457 = vpop.permute.xlu0 %2456
    %v2458 = vrot.slane %v2457, 2
    %v2460 = vmul.f32 %v2458, %v2455
    %2461 = vst.msk [vmem:[%s530] sm:$0x3] %vm435, %v2460
    %2462 = vst.msk [vmem:[%s532] sm:$0x3] %vm435, %v2460
    %v2463 = vld [vmem:[%s534] sm:$0xf]
    %v2465 = vsel %vm345, %v2460, 0
    %2467 = vmatpush.msra.mxu0 0.0
    %2468 = vmatpush.msra.mxu0 0.0
    %2469 = vmatpush.msra.mxu0 0.0
    %2470 = vmatpush.msra.mxu0 0.0
    %2471 = vmatpush.msra.mxu0 0.0
    %2472 = vmatpush.msra.mxu0 0.0
    %2473 = vmatpush.msra.mxu0 0.0
    %2474 = vmatpush.msra.mxu0 0.0
    %2475 = vmatpush.msra.mxu0 %v2280
    %2476 = vmatpush.msra.mxu0 %v2278
    %2477 = vmatpush.msra.mxu0 %v2276
    %2478 = vmatpush.msra.mxu0 %v2274
    %2479 = vmatpush.msra.mxu0 %v2272
    %2480 = vmatpush.msra.mxu0 %v2270
    %2481 = vmatpush.msra.mxu0 %v2268
    %2482 = vmatpush.msra.mxu0 %v2266
    %2483 = vmatmul.f32.gmra.mxu0 %v2465
    %v2484 = vpop.f32.mrf.mxu0
    %v2485 = vadd.f32 0.0, %v2484
    %2486 = vdwg.mxu0
    %2487 = vmatpush.msra.mxu0 0.0
    %2488 = vmatpush.msra.mxu0 0.0
    %2489 = vmatpush.msra.mxu0 0.0
    %2490 = vmatpush.msra.mxu0 0.0
    %2491 = vmatpush.msra.mxu0 0.0
    %2492 = vmatpush.msra.mxu0 0.0
    %2493 = vmatpush.msra.mxu0 0.0
    %2494 = vmatpush.msra.mxu0 0.0
    %2495 = vmatpush.msra.mxu0 %v2281
    %2496 = vmatpush.msra.mxu0 %v2279
    %2497 = vmatpush.msra.mxu0 %v2277
    %2498 = vmatpush.msra.mxu0 %v2275
    %2499 = vmatpush.msra.mxu0 %v2273
    %2500 = vmatpush.msra.mxu0 %v2271
    %2501 = vmatpush.msra.mxu0 %v2269
    %2502 = vmatpush.msra.mxu0 %v2267
    %2503 = vmatmul.f32.gmra.mxu0 %v2465
    %v2504 = vpop.f32.mrf.mxu0
    %v2505 = vadd.f32 0.0, %v2504
    %2506 = vdwg.mxu0
    %v2509 = vrot.slane %v2505, 6
    %v2510 = vsel %vm303, %v2485, %v2509
    %v2512 = vadd.f32 %v2463, %v2510
    %v2513 = vtanh.pop %v2512
    %v2514 = vxor.u32 %v2512, 2147483648
    %v2515 = vmul.f32 %v2514, 1.442695
    %v2516 = vpow.pop %v2515
    %v2517 = vadd.f32 %v2516, 1.0
    %v2518 = vrcp.pop %v2517
    %v2519 = vmul.f32 %v2517, %v2518
    %v2520 = vsub.f32 1.0, %v2519
    %v2521 = vmul.f32 %v2518, %v2520
    %v2522 = vadd.f32 %v2518, %v2521
    %vm2523 = vweird.f32 %v2517
    %vm2524 = vweird.f32 %v2518
    %vm2525 = vmor %vm2523, %vm2524
    %v2526 = vsel %vm2525, %v2518, %v2522
    %v2527 = vand.u32 2147483647, %v2517
    %vm2528 = vcmp.eq.f32.partialorder %v2527, 8.507059e+37
    %v2529 = vand.u32 %v2517, 2147483648
    %v2530 = vor.u32 1.1754944e-38, %v2529
    %v2531 = vsel %vm2528, %v2530, %v2526
    %v2532 = vmul.f32 1.0, %v2531
    %v2534 = vrot.slane %v2532, 2
    %v2536 = vmul.f32 %v2534, %v2454
    %2538 = vrot.lane.b32.xlu0 %v2513, 64
    %v2539 = vpop.permute.xlu0 %2538
    %v2541 = vmul.f32 %v2532, %v2539
    %2543 = vrot.lane.b32.xlu0 %v2541, 64
    %v2544 = vpop.permute.xlu0 %2543
    %v2546 = vadd.f32 %v2536, %v2544
    %v2547 = vtanh.pop %v2546
    %2548 = vrot.lane.b32.xlu0 %v2532, 64
    %v2549 = vpop.permute.xlu0 %2548
    %v2550 = vrot.slane %v2549, 2
    %v2552 = vmul.f32 %v2550, %v2547
    %2553 = vst.msk [vmem:[%s625] sm:$0x3] %vm435, %v2552
    %2554 = vst.msk [vmem:[%s627] sm:$0x3] %vm435, %v2552
    %v2555 = vld [vmem:[%s629] sm:$0xf]
    %v2557 = vsel %vm345, %v2552, 0
    %2559 = vmatpush.msra.mxu0 0.0
    %2560 = vmatpush.msra.mxu0 0.0
    %2561 = vmatpush.msra.mxu0 0.0
    %2562 = vmatpush.msra.mxu0 0.0
    %2563 = vmatpush.msra.mxu0 0.0
    %2564 = vmatpush.msra.mxu0 0.0
    %2565 = vmatpush.msra.mxu0 0.0
    %2566 = vmatpush.msra.mxu0 0.0
    %2567 = vmatpush.msra.mxu0 %v2280
    %2568 = vmatpush.msra.mxu0 %v2278
    %2569 = vmatpush.msra.mxu0 %v2276
    %2570 = vmatpush.msra.mxu0 %v2274
    %2571 = vmatpush.msra.mxu0 %v2272
    %2572 = vmatpush.msra.mxu0 %v2270
    %2573 = vmatpush.msra.mxu0 %v2268
    %2574 = vmatpush.msra.mxu0 %v2266
    %2575 = vmatmul.f32.gmra.mxu0 %v2557
    %v2576 = vpop.f32.mrf.mxu0
    %v2577 = vadd.f32 0.0, %v2576
    %2578 = vdwg.mxu0
    %2579 = vmatpush.msra.mxu0 0.0
    %2580 = vmatpush.msra.mxu0 0.0
    %2581 = vmatpush.msra.mxu0 0.0
    %2582 = vmatpush.msra.mxu0 0.0
    %2583 = vmatpush.msra.mxu0 0.0
    %2584 = vmatpush.msra.mxu0 0.0
    %2585 = vmatpush.msra.mxu0 0.0
    %2586 = vmatpush.msra.mxu0 0.0
    %2587 = vmatpush.msra.mxu0 %v2281
    %2588 = vmatpush.msra.mxu0 %v2279
    %2589 = vmatpush.msra.mxu0 %v2277
    %2590 = vmatpush.msra.mxu0 %v2275
    %2591 = vmatpush.msra.mxu0 %v2273
    %2592 = vmatpush.msra.mxu0 %v2271
    %2593 = vmatpush.msra.mxu0 %v2269
    %2594 = vmatpush.msra.mxu0 %v2267
    %2595 = vmatmul.f32.gmra.mxu0 %v2557
    %v2596 = vpop.f32.mrf.mxu0
    %v2597 = vadd.f32 0.0, %v2596
    %2598 = vdwg.mxu0
    %v2601 = vrot.slane %v2597, 6
    %v2602 = vsel %vm303, %v2577, %v2601
    %v2604 = vadd.f32 %v2555, %v2602
    %v2605 = vtanh.pop %v2604
    %v2606 = vxor.u32 %v2604, 2147483648
    %v2607 = vmul.f32 %v2606, 1.442695
    %v2608 = vpow.pop %v2607
    %v2609 = vadd.f32 %v2608, 1.0
    %v2610 = vrcp.pop %v2609
    %v2611 = vmul.f32 %v2609, %v2610
    %v2612 = vsub.f32 1.0, %v2611
    %v2613 = vmul.f32 %v2610, %v2612
    %v2614 = vadd.f32 %v2610, %v2613
    %vm2615 = vweird.f32 %v2609
    %vm2616 = vweird.f32 %v2610
    %vm2617 = vmor %vm2615, %vm2616
    %v2618 = vsel %vm2617, %v2610, %v2614
    %v2619 = vand.u32 2147483647, %v2609
    %vm2620 = vcmp.eq.f32.partialorder %v2619, 8.507059e+37
    %v2621 = vand.u32 %v2609, 2147483648
    %v2622 = vor.u32 1.1754944e-38, %v2621
    %v2623 = vsel %vm2620, %v2622, %v2618
    %v2624 = vmul.f32 1.0, %v2623
    %v2626 = vrot.slane %v2624, 2
    %v2628 = vmul.f32 %v2626, %v2546
    %2630 = vrot.lane.b32.xlu0 %v2605, 64
    %v2631 = vpop.permute.xlu0 %2630
    %v2633 = vmul.f32 %v2624, %v2631
    %2635 = vrot.lane.b32.xlu0 %v2633, 64
    %v2636 = vpop.permute.xlu0 %2635
    %v2638 = vadd.f32 %v2628, %v2636
    %v2639 = vtanh.pop %v2638
    %2640 = vrot.lane.b32.xlu0 %v2624, 64
    %v2641 = vpop.permute.xlu0 %2640
    %v2642 = vrot.slane %v2641, 2
    %v2644 = vmul.f32 %v2642, %v2639
    %2645 = vst.msk [vmem:[%s720] sm:$0x3] %vm435, %v2644
    %2646 = vst.msk [vmem:[%s722] sm:$0x3] %vm435, %v2644
    %v2647 = vld [vmem:[%s724] sm:$0xf]
    %v2649 = vsel %vm345, %v2644, 0
    %2651 = vmatpush.msra.mxu0 0.0
    %2652 = vmatpush.msra.mxu0 0.0
    %2653 = vmatpush.msra.mxu0 0.0
    %2654 = vmatpush.msra.mxu0 0.0
    %2655 = vmatpush.msra.mxu0 0.0
    %2656 = vmatpush.msra.mxu0 0.0
    %2657 = vmatpush.msra.mxu0 0.0
    %2658 = vmatpush.msra.mxu0 0.0
    %2659 = vmatpush.msra.mxu0 %v2280
    %2660 = vmatpush.msra.mxu0 %v2278
    %2661 = vmatpush.msra.mxu0 %v2276
    %2662 = vmatpush.msra.mxu0 %v2274
    %2663 = vmatpush.msra.mxu0 %v2272
    %2664 = vmatpush.msra.mxu0 %v2270
    %2665 = vmatpush.msra.mxu0 %v2268
    %2666 = vmatpush.msra.mxu0 %v2266
    %2667 = vmatmul.f32.gmra.mxu0 %v2649
    %v2668 = vpop.f32.mrf.mxu0
    %v2669 = vadd.f32 0.0, %v2668
    %2670 = vdwg.mxu0
    %2671 = vmatpush.msra.mxu0 0.0
    %2672 = vmatpush.msra.mxu0 0.0
    %2673 = vmatpush.msra.mxu0 0.0
    %2674 = vmatpush.msra.mxu0 0.0
    %2675 = vmatpush.msra.mxu0 0.0
    %2676 = vmatpush.msra.mxu0 0.0
    %2677 = vmatpush.msra.mxu0 0.0
    %2678 = vmatpush.msra.mxu0 0.0
    %2679 = vmatpush.msra.mxu0 %v2281
    %2680 = vmatpush.msra.mxu0 %v2279
    %2681 = vmatpush.msra.mxu0 %v2277
    %2682 = vmatpush.msra.mxu0 %v2275
    %2683 = vmatpush.msra.mxu0 %v2273
    %2684 = vmatpush.msra.mxu0 %v2271
    %2685 = vmatpush.msra.mxu0 %v2269
    %2686 = vmatpush.msra.mxu0 %v2267
    %2687 = vmatmul.f32.gmra.mxu0 %v2649
    %v2688 = vpop.f32.mrf.mxu0
    %v2689 = vadd.f32 0.0, %v2688
    %2690 = vdwg.mxu0
    %v2693 = vrot.slane %v2689, 6
    %v2694 = vsel %vm303, %v2669, %v2693
    %v2696 = vadd.f32 %v2647, %v2694
    %v2697 = vtanh.pop %v2696
    %v2698 = vxor.u32 %v2696, 2147483648
    %v2699 = vmul.f32 %v2698, 1.442695
    %v2700 = vpow.pop %v2699
    %v2701 = vadd.f32 %v2700, 1.0
    %v2702 = vrcp.pop %v2701
    %v2703 = vmul.f32 %v2701, %v2702
    %v2704 = vsub.f32 1.0, %v2703
    %v2705 = vmul.f32 %v2702, %v2704
    %v2706 = vadd.f32 %v2702, %v2705
    %vm2707 = vweird.f32 %v2701
    %vm2708 = vweird.f32 %v2702
    %vm2709 = vmor %vm2707, %vm2708
    %v2710 = vsel %vm2709, %v2702, %v2706
    %v2711 = vand.u32 2147483647, %v2701
    %vm2712 = vcmp.eq.f32.partialorder %v2711, 8.507059e+37
    %v2713 = vand.u32 %v2701, 2147483648
    %v2714 = vor.u32 1.1754944e-38, %v2713
    %v2715 = vsel %vm2712, %v2714, %v2710
    %v2716 = vmul.f32 1.0, %v2715
    %v2718 = vrot.slane %v2716, 2
    %v2720 = vmul.f32 %v2718, %v2638
    %2722 = vrot.lane.b32.xlu0 %v2697, 64
    %v2723 = vpop.permute.xlu0 %2722
    %v2725 = vmul.f32 %v2716, %v2723
    %2727 = vrot.lane.b32.xlu0 %v2725, 64
    %v2728 = vpop.permute.xlu0 %2727
    %v2730 = vadd.f32 %v2720, %v2728
    %v2731 = vtanh.pop %v2730
    %2732 = vrot.lane.b32.xlu0 %v2716, 64
    %v2733 = vpop.permute.xlu0 %2732
    %v2734 = vrot.slane %v2733, 2
    %v2736 = vmul.f32 %v2734, %v2731
    %2737 = vst.msk [vmem:[%s815] sm:$0x3] %vm435, %v2736
    %2738 = vst.msk [vmem:[%s817] sm:$0x3] %vm435, %v2736
    %v2739 = vld [vmem:[%s819] sm:$0xf]
    %v2741 = vsel %vm345, %v2736, 0
    %2743 = vmatpush.msra.mxu0 0.0
    %2744 = vmatpush.msra.mxu0 0.0
    %2745 = vmatpush.msra.mxu0 0.0
    %2746 = vmatpush.msra.mxu0 0.0
    %2747 = vmatpush.msra.mxu0 0.0
    %2748 = vmatpush.msra.mxu0 0.0
    %2749 = vmatpush.msra.mxu0 0.0
    %2750 = vmatpush.msra.mxu0 0.0
    %2751 = vmatpush.msra.mxu0 %v2280
    %2752 = vmatpush.msra.mxu0 %v2278
    %2753 = vmatpush.msra.mxu0 %v2276
    %2754 = vmatpush.msra.mxu0 %v2274
    %2755 = vmatpush.msra.mxu0 %v2272
    %2756 = vmatpush.msra.mxu0 %v2270
    %2757 = vmatpush.msra.mxu0 %v2268
    %2758 = vmatpush.msra.mxu0 %v2266
    %2759 = vmatmul.f32.gmra.mxu0 %v2741
    %v2760 = vpop.f32.mrf.mxu0
    %v2761 = vadd.f32 0.0, %v2760
    %2762 = vdwg.mxu0
    %2763 = vmatpush.msra.mxu0 0.0
    %2764 = vmatpush.msra.mxu0 0.0
    %2765 = vmatpush.msra.mxu0 0.0
    %2766 = vmatpush.msra.mxu0 0.0
    %2767 = vmatpush.msra.mxu0 0.0
    %2768 = vmatpush.msra.mxu0 0.0
    %2769 = vmatpush.msra.mxu0 0.0
    %2770 = vmatpush.msra.mxu0 0.0
    %2771 = vmatpush.msra.mxu0 %v2281
    %2772 = vmatpush.msra.mxu0 %v2279
    %2773 = vmatpush.msra.mxu0 %v2277
    %2774 = vmatpush.msra.mxu0 %v2275
    %2775 = vmatpush.msra.mxu0 %v2273
    %2776 = vmatpush.msra.mxu0 %v2271
    %2777 = vmatpush.msra.mxu0 %v2269
    %2778 = vmatpush.msra.mxu0 %v2267
    %2779 = vmatmul.f32.gmra.mxu0 %v2741
    %v2780 = vpop.f32.mrf.mxu0
    %v2781 = vadd.f32 0.0, %v2780
    %2782 = vdwg.mxu0
    %v2785 = vrot.slane %v2781, 6
    %v2786 = vsel %vm303, %v2761, %v2785
    %v2788 = vadd.f32 %v2739, %v2786
    %v2789 = vtanh.pop %v2788
    %v2790 = vxor.u32 %v2788, 2147483648
    %v2791 = vmul.f32 %v2790, 1.442695
    %v2792 = vpow.pop %v2791
    %v2793 = vadd.f32 %v2792, 1.0
    %v2794 = vrcp.pop %v2793
    %v2795 = vmul.f32 %v2793, %v2794
    %v2796 = vsub.f32 1.0, %v2795
    %v2797 = vmul.f32 %v2794, %v2796
    %v2798 = vadd.f32 %v2794, %v2797
    %vm2799 = vweird.f32 %v2793
    %vm2800 = vweird.f32 %v2794
    %vm2801 = vmor %vm2799, %vm2800
    %v2802 = vsel %vm2801, %v2794, %v2798
    %v2803 = vand.u32 2147483647, %v2793
    %vm2804 = vcmp.eq.f32.partialorder %v2803, 8.507059e+37
    %v2805 = vand.u32 %v2793, 2147483648
    %v2806 = vor.u32 1.1754944e-38, %v2805
    %v2807 = vsel %vm2804, %v2806, %v2802
    %v2808 = vmul.f32 1.0, %v2807
    %v2810 = vrot.slane %v2808, 2
    %v2812 = vmul.f32 %v2810, %v2730
    %2814 = vrot.lane.b32.xlu0 %v2789, 64
    %v2815 = vpop.permute.xlu0 %2814
    %v2817 = vmul.f32 %v2808, %v2815
    %2819 = vrot.lane.b32.xlu0 %v2817, 64
    %v2820 = vpop.permute.xlu0 %2819
    %v2822 = vadd.f32 %v2812, %v2820
    %v2823 = vtanh.pop %v2822
    %2824 = vrot.lane.b32.xlu0 %v2808, 64
    %v2825 = vpop.permute.xlu0 %2824
    %v2826 = vrot.slane %v2825, 2
    %v2828 = vmul.f32 %v2826, %v2823
    %2829 = vst.msk [vmem:[%s910] sm:$0x3] %vm435, %v2828
    %2830 = vst.msk [vmem:[%s912] sm:$0x3] %vm435, %v2828
    %v2831 = vld [vmem:[%s914] sm:$0xf]
    %v2833 = vsel %vm345, %v2828, 0
    %2835 = vmatpush.msra.mxu0 0.0
    %2836 = vmatpush.msra.mxu0 0.0
    %2837 = vmatpush.msra.mxu0 0.0
    %2838 = vmatpush.msra.mxu0 0.0
    %2839 = vmatpush.msra.mxu0 0.0
    %2840 = vmatpush.msra.mxu0 0.0
    %2841 = vmatpush.msra.mxu0 0.0
    %2842 = vmatpush.msra.mxu0 0.0
    %2843 = vmatpush.msra.mxu0 %v2280
    %2844 = vmatpush.msra.mxu0 %v2278
    %2845 = vmatpush.msra.mxu0 %v2276
    %2846 = vmatpush.msra.mxu0 %v2274
    %2847 = vmatpush.msra.mxu0 %v2272
    %2848 = vmatpush.msra.mxu0 %v2270
    %2849 = vmatpush.msra.mxu0 %v2268
    %2850 = vmatpush.msra.mxu0 %v2266
    %2851 = vmatmul.f32.gmra.mxu0 %v2833
    %v2852 = vpop.f32.mrf.mxu0
    %v2853 = vadd.f32 0.0, %v2852
    %2854 = vdwg.mxu0
    %2855 = vmatpush.msra.mxu0 0.0
    %2856 = vmatpush.msra.mxu0 0.0
    %2857 = vmatpush.msra.mxu0 0.0
    %2858 = vmatpush.msra.mxu0 0.0
    %2859 = vmatpush.msra.mxu0 0.0
    %2860 = vmatpush.msra.mxu0 0.0
    %2861 = vmatpush.msra.mxu0 0.0
    %2862 = vmatpush.msra.mxu0 0.0
    %2863 = vmatpush.msra.mxu0 %v2281
    %2864 = vmatpush.msra.mxu0 %v2279
    %2865 = vmatpush.msra.mxu0 %v2277
    %2866 = vmatpush.msra.mxu0 %v2275
    %2867 = vmatpush.msra.mxu0 %v2273
    %2868 = vmatpush.msra.mxu0 %v2271
    %2869 = vmatpush.msra.mxu0 %v2269
    %2870 = vmatpush.msra.mxu0 %v2267
    %2871 = vmatmul.f32.gmra.mxu0 %v2833
    %v2872 = vpop.f32.mrf.mxu0
    %v2873 = vadd.f32 0.0, %v2872
    %2874 = vdwg.mxu0
    %v2877 = vrot.slane %v2873, 6
    %v2878 = vsel %vm303, %v2853, %v2877
    %v2880 = vadd.f32 %v2831, %v2878
    %v2881 = vtanh.pop %v2880
    %v2882 = vxor.u32 %v2880, 2147483648
    %v2883 = vmul.f32 %v2882, 1.442695
    %v2884 = vpow.pop %v2883
    %v2885 = vadd.f32 %v2884, 1.0
    %v2886 = vrcp.pop %v2885
    %v2887 = vmul.f32 %v2885, %v2886
    %v2888 = vsub.f32 1.0, %v2887
    %v2889 = vmul.f32 %v2886, %v2888
    %v2890 = vadd.f32 %v2886, %v2889
    %vm2891 = vweird.f32 %v2885
    %vm2892 = vweird.f32 %v2886
    %vm2893 = vmor %vm2891, %vm2892
    %v2894 = vsel %vm2893, %v2886, %v2890
    %v2895 = vand.u32 2147483647, %v2885
    %vm2896 = vcmp.eq.f32.partialorder %v2895, 8.507059e+37
    %v2897 = vand.u32 %v2885, 2147483648
    %v2898 = vor.u32 1.1754944e-38, %v2897
    %v2899 = vsel %vm2896, %v2898, %v2894
    %v2900 = vmul.f32 1.0, %v2899
    %v2902 = vrot.slane %v2900, 2
    %v2904 = vmul.f32 %v2902, %v2822
    %2906 = vrot.lane.b32.xlu0 %v2881, 64
    %v2907 = vpop.permute.xlu0 %2906
    %v2909 = vmul.f32 %v2900, %v2907
    %2911 = vrot.lane.b32.xlu0 %v2909, 64
    %v2912 = vpop.permute.xlu0 %2911
    %v2914 = vadd.f32 %v2904, %v2912
    %v2915 = vtanh.pop %v2914
    %2916 = vrot.lane.b32.xlu0 %v2900, 64
    %v2917 = vpop.permute.xlu0 %2916
    %v2918 = vrot.slane %v2917, 2
    %v2920 = vmul.f32 %v2918, %v2915
    %2921 = vst.msk [vmem:[%s1005] sm:$0x3] %vm435, %v2920
    %2922 = vst.msk [vmem:[%s1007] sm:$0x3] %vm435, %v2920
    %v2923 = vld [vmem:[%s1009] sm:$0xf]
    %v2925 = vsel %vm345, %v2920, 0
    %2927 = vmatpush.msra.mxu0 0.0
    %2928 = vmatpush.msra.mxu0 0.0
    %2929 = vmatpush.msra.mxu0 0.0
    %2930 = vmatpush.msra.mxu0 0.0
    %2931 = vmatpush.msra.mxu0 0.0
    %2932 = vmatpush.msra.mxu0 0.0
    %2933 = vmatpush.msra.mxu0 0.0
    %2934 = vmatpush.msra.mxu0 0.0
    %2935 = vmatpush.msra.mxu0 %v2280
    %2936 = vmatpush.msra.mxu0 %v2278
    %2937 = vmatpush.msra.mxu0 %v2276
    %2938 = vmatpush.msra.mxu0 %v2274
    %2939 = vmatpush.msra.mxu0 %v2272
    %2940 = vmatpush.msra.mxu0 %v2270
    %2941 = vmatpush.msra.mxu0 %v2268
    %2942 = vmatpush.msra.mxu0 %v2266
    %2943 = vmatmul.f32.gmra.mxu0 %v2925
    %v2944 = vpop.f32.mrf.mxu0
    %v2945 = vadd.f32 0.0, %v2944
    %2946 = vdwg.mxu0
    %2947 = vmatpush.msra.mxu0 0.0
    %2948 = vmatpush.msra.mxu0 0.0
    %2949 = vmatpush.msra.mxu0 0.0
    %2950 = vmatpush.msra.mxu0 0.0
    %2951 = vmatpush.msra.mxu0 0.0
    %2952 = vmatpush.msra.mxu0 0.0
    %2953 = vmatpush.msra.mxu0 0.0
    %2954 = vmatpush.msra.mxu0 0.0
    %2955 = vmatpush.msra.mxu0 %v2281
    %2956 = vmatpush.msra.mxu0 %v2279
    %2957 = vmatpush.msra.mxu0 %v2277
    %2958 = vmatpush.msra.mxu0 %v2275
    %2959 = vmatpush.msra.mxu0 %v2273
    %2960 = vmatpush.msra.mxu0 %v2271
    %2961 = vmatpush.msra.mxu0 %v2269
    %2962 = vmatpush.msra.mxu0 %v2267
    %2963 = vmatmul.f32.gmra.mxu0 %v2925
    %v2964 = vpop.f32.mrf.mxu0
    %v2965 = vadd.f32 0.0, %v2964
    %2966 = vdwg.mxu0
    %v2969 = vrot.slane %v2965, 6
    %v2970 = vsel %vm303, %v2945, %v2969
    %v2972 = vadd.f32 %v2923, %v2970
    %v2973 = vtanh.pop %v2972
    %v2974 = vxor.u32 %v2972, 2147483648
    %v2975 = vmul.f32 %v2974, 1.442695
    %v2976 = vpow.pop %v2975
    %v2977 = vadd.f32 %v2976, 1.0
    %v2978 = vrcp.pop %v2977
    %v2979 = vmul.f32 %v2977, %v2978
    %v2980 = vsub.f32 1.0, %v2979
    %v2981 = vmul.f32 %v2978, %v2980
    %v2982 = vadd.f32 %v2978, %v2981
    %vm2983 = vweird.f32 %v2977
    %vm2984 = vweird.f32 %v2978
    %vm2985 = vmor %vm2983, %vm2984
    %v2986 = vsel %vm2985, %v2978, %v2982
    %v2987 = vand.u32 2147483647, %v2977
    %vm2988 = vcmp.eq.f32.partialorder %v2987, 8.507059e+37
    %v2989 = vand.u32 %v2977, 2147483648
    %v2990 = vor.u32 1.1754944e-38, %v2989
    %v2991 = vsel %vm2988, %v2990, %v2986
    %v2992 = vmul.f32 1.0, %v2991
    %v2994 = vrot.slane %v2992, 2
    %v2996 = vmul.f32 %v2994, %v2914
    %2998 = vrot.lane.b32.xlu0 %v2973, 64
    %v2999 = vpop.permute.xlu0 %2998
    %v3001 = vmul.f32 %v2992, %v2999
    %3003 = vrot.lane.b32.xlu0 %v3001, 64
    %v3004 = vpop.permute.xlu0 %3003
    %v3006 = vadd.f32 %v2996, %v3004
    %v3007 = vtanh.pop %v3006
    %3008 = vrot.lane.b32.xlu0 %v2992, 64
    %v3009 = vpop.permute.xlu0 %3008
    %v3010 = vrot.slane %v3009, 2
    %v3012 = vmul.f32 %v3010, %v3007
    %3013 = vst.msk [vmem:[%s1100] sm:$0x3] %vm435, %v3012
    %3014 = vst.msk [vmem:[#allocation4] sm:$0x3] %vm435, %v3012
    %v3015 = vld [vmem:[#allocation3] sm:$0x3]
    %v3016 = vld [vmem:[#allocation3 + $0x2] sm:$0x3]
    %v3017 = vld [vmem:[#allocation3 + $0x4] sm:$0x3]
    %v3018 = vld [vmem:[#allocation3 + $0x6] sm:$0x3]
    %v3019 = vld [vmem:[#allocation3 + $0x8] sm:$0x3]
    %v3020 = vld [vmem:[#allocation3 + $0xa] sm:$0x3]
    %v3021 = vld [vmem:[#allocation3 + $0xc] sm:$0x3]
    %v3022 = vld [vmem:[#allocation3 + $0xe] sm:$0x3]
    %v3023 = vld [vmem:[#allocation4] sm:$0x3]
    %v3024 = vld [vmem:[#allocation4 + $0x2] sm:$0x3]
    %v3025 = vld [vmem:[#allocation4 + $0x4] sm:$0x3]
    %v3026 = vld [vmem:[#allocation4 + $0x6] sm:$0x3]
    %v3027 = vld [vmem:[#allocation4 + $0x8] sm:$0x3]
    %v3028 = vld [vmem:[#allocation4 + $0xa] sm:$0x3]
    %v3029 = vld [vmem:[#allocation4 + $0xc] sm:$0x3]
    %v3030 = vld [vmem:[#allocation4 + $0xe] sm:$0x3]
    %vm3031 = vcmask 261120
    %v3032 = vsel %vm3031, %v3015, %v3023
    %v3033 = vsel %vm3031, %v3016, %v3024
    %v3034 = vsel %vm3031, %v3017, %v3025
    %v3035 = vsel %vm3031, %v3018, %v3026
    %v3036 = vsel %vm3031, %v3019, %v3027
    %v3037 = vsel %vm3031, %v3020, %v3028
    %v3038 = vsel %vm3031, %v3021, %v3029
    %v3039 = vsel %vm3031, %v3022, %v3030
    %v3040 = vld [vmem:[%s7] sm:$0xff]
    %v3041 = vld [vmem:[%s7 + $0x8] sm:$0xff]
    %v3042 = vld [vmem:[%s7 + $0x10] sm:$0xff]
    %v3043 = vld [vmem:[%s7 + $0x18] sm:$0xff]
    %v3044 = vld [vmem:[%s7 + $0x20] sm:$0xff]
    %v3045 = vld [vmem:[%s7 + $0x28] sm:$0xff]
    %v3046 = vld [vmem:[%s7 + $0x30] sm:$0xff]
    %v3047 = vld [vmem:[%s7 + $0x38] sm:$0xff]
    %v3048 = vld [vmem:[%s7 + $0x40] sm:$0xff]
    %v3049 = vld [vmem:[%s7 + $0x48] sm:$0xff]
    %v3050 = vld [vmem:[%s7 + $0x50] sm:$0xff]
    %v3051 = vld [vmem:[%s7 + $0x58] sm:$0xff]
    %v3052 = vld [vmem:[%s7 + $0x60] sm:$0xff]
    %v3053 = vld [vmem:[%s7 + $0x68] sm:$0xff]
    %v3054 = vld [vmem:[%s7 + $0x70] sm:$0xff]
    %v3055 = vld [vmem:[%s7 + $0x78] sm:$0xff]
    %v3056 = vld [vmem:[%s8] sm:$0x3]
    %v3057 = vld [vmem:[%s9] sm:$0xff]
    %v3058 = vld [vmem:[%s9 + $0x8] sm:$0xff]
    %v3059 = vld [vmem:[%s9 + $0x10] sm:$0xff]
    %v3060 = vld [vmem:[%s9 + $0x18] sm:$0xff]
    %v3061 = vld [vmem:[%s9 + $0x20] sm:$0xff]
    %v3062 = vld [vmem:[%s9 + $0x28] sm:$0xff]
    %v3063 = vld [vmem:[%s9 + $0x30] sm:$0xff]
    %v3064 = vld [vmem:[%s9 + $0x38] sm:$0xff]
    %v3065 = vld [vmem:[%s10] sm:$0x1]
    %v3067 = vperm.slane %v3056, 0
    %v3068 = vperm.slane %v3056, 1
    %v3079 = vrot.slane %v3033, 7
    %vm3080 = vcmask 1041409
    %v3081 = vsel %vm3080, %v3079, %v3032
    %v3082 = vrot.slane %v3034, 6
    %vm3083 = vcmask 1042434
    %v3084 = vsel %vm3083, %v3082, %v3081
    %v3085 = vrot.slane %v3035, 5
    %vm3086 = vcmask 1043459
    %v3087 = vsel %vm3086, %v3085, %v3084
    %v3088 = vrot.slane %v3036, 4
    %vm3089 = vcmask 1044484
    %v3090 = vsel %vm3089, %v3088, %v3087
    %v3091 = vrot.slane %v3037, 3
    %vm3092 = vcmask 1045509
    %v3093 = vsel %vm3092, %v3091, %v3090
    %v3094 = vrot.slane %v3038, 2
    %vm3095 = vcmask 1046534
    %v3096 = vsel %vm3095, %v3094, %v3093
    %v3097 = vrot.slane %v3039, 1
    %vm3098 = vcmask 1047559
    %v3099 = vsel %vm3098, %v3097, %v3096
    %v3100 = vsel %vm345, %v3099, 0
    %3102 = vmatpush.msra.mxu0 0.0
    %3103 = vmatpush.msra.mxu0 0.0
    %3104 = vmatpush.msra.mxu0 0.0
    %3105 = vmatpush.msra.mxu0 0.0
    %3106 = vmatpush.msra.mxu0 0.0
    %3107 = vmatpush.msra.mxu0 0.0
    %3108 = vmatpush.msra.mxu0 0.0
    %3109 = vmatpush.msra.mxu0 0.0
    %3110 = vmatpush.msra.mxu0 %v3054
    %3111 = vmatpush.msra.mxu0 %v3052
    %3112 = vmatpush.msra.mxu0 %v3050
    %3113 = vmatpush.msra.mxu0 %v3048
    %3114 = vmatpush.msra.mxu0 %v3046
    %3115 = vmatpush.msra.mxu0 %v3044
    %3116 = vmatpush.msra.mxu0 %v3042
    %3117 = vmatpush.msra.mxu0 %v3040
    %3118 = vmatmul.f32.gmra.mxu0 %v3100
    %v3119 = vpop.f32.mrf.mxu0
    %v3120 = vadd.f32 %v3067, %v3119
    %3121 = vdwg.mxu0
    %3122 = vmatpush.msra.mxu0 0.0
    %3123 = vmatpush.msra.mxu0 0.0
    %3124 = vmatpush.msra.mxu0 0.0
    %3125 = vmatpush.msra.mxu0 0.0
    %3126 = vmatpush.msra.mxu0 0.0
    %3127 = vmatpush.msra.mxu0 0.0
    %3128 = vmatpush.msra.mxu0 0.0
    %3129 = vmatpush.msra.mxu0 0.0
    %3130 = vmatpush.msra.mxu0 %v3055
    %3131 = vmatpush.msra.mxu0 %v3053
    %3132 = vmatpush.msra.mxu0 %v3051
    %3133 = vmatpush.msra.mxu0 %v3049
    %3134 = vmatpush.msra.mxu0 %v3047
    %3135 = vmatpush.msra.mxu0 %v3045
    %3136 = vmatpush.msra.mxu0 %v3043
    %3137 = vmatpush.msra.mxu0 %v3041
    %3138 = vmatmul.f32.gmra.mxu0 %v3100
    %v3139 = vpop.f32.mrf.mxu0
    %v3140 = vadd.f32 %v3068, %v3139
    %3141 = vdwg.mxu0
    %v3142 = vmul.f32 %v3120, 0.35355338
    %3144 = vrot.lane.b32.xlu0 %v3120, 64
    %v3145 = vpop.permute.xlu0 %3144
    %vm3146 = vcmask 64512
    %v3148 = vsel %vm3146, %v3142, 0
    %v3150 = vsel %vm3146, %v3145, 0
    %3152 = vmatpush.xpose.msra.mxu0 0.0
    %3153 = vmatpush.xpose.msra.mxu0 0.0
    %3154 = vmatpush.xpose.msra.mxu0 0.0
    %3155 = vmatpush.xpose.msra.mxu0 0.0
    %3156 = vmatpush.xpose.msra.mxu0 0.0
    %3157 = vmatpush.xpose.msra.mxu0 0.0
    %3158 = vmatpush.xpose.msra.mxu0 0.0
    %3159 = vmatpush.xpose.msra.mxu0 0.0
    %3160 = vmatpush.xpose.msra.mxu0 0.0
    %3161 = vmatpush.xpose.msra.mxu0 0.0
    %3162 = vmatpush.xpose.msra.mxu0 0.0
    %3163 = vmatpush.xpose.msra.mxu0 0.0
    %3164 = vmatpush.xpose.msra.mxu0 0.0
    %3165 = vmatpush.xpose.msra.mxu0 0.0
    %3166 = vmatpush.xpose.msra.mxu0 0.0
    %3167 = vmatpush.xpose.msra.mxu0 %v3150
    %3168 = vmatmul.f32.gmra.mxu0 %v3148
    %v3169 = vpop.f32.mrf.mxu0
    %v3170 = vadd.f32 0.0, %v3169
    %3171 = vdwg.mxu0
    %v3172 = vsel %vm3146, %v3170, -inf
    %3173 = vmax.xlane.f32.xlu0 %v3172
    %v3174 = vpop.xlane.xlu0 %3173
    %v3175 = vsub.f32 %v3170, %v3174
    %v3176 = vmul.f32 %v3175, 1.442695
    %v3177 = vpow.pop %v3176
    %v3178 = vsel %vm3146, %v3177, 0.0
    %3179 = vadd.xlane.f32.xlu0 %v3178
    %v3180 = vpop.xlane.xlu0 %3179
    %v3181 = vrcp.pop %v3180
    %v3182 = vmul.f32 %v3180, %v3181
    %v3183 = vsub.f32 1.0, %v3182
    %v3184 = vmul.f32 %v3181, %v3183
    %v3185 = vadd.f32 %v3181, %v3184
    %vm3186 = vweird.f32 %v3180
    %vm3187 = vweird.f32 %v3181
    %vm3188 = vmor %vm3186, %vm3187
    %v3189 = vsel %vm3188, %v3181, %v3185
    %v3190 = vand.u32 2147483647, %v3180
    %vm3191 = vcmp.eq.f32.partialorder %v3190, 8.507059e+37
    %v3192 = vand.u32 %v3180, 2147483648
    %v3193 = vor.u32 1.1754944e-38, %v3192
    %v3194 = vsel %vm3191, %v3193, %v3189
    %v3195 = vmul.f32 %v3177, %v3194
    %v3196 = vadd.f32 %v3195, 0.0
    %v3198 = vsel %vm3146, %v3195, 0
    %3200 = vmatpush.msra.mxu0 0.0
    %3201 = vmatpush.msra.mxu0 0.0
    %3202 = vmatpush.msra.mxu0 0.0
    %3203 = vmatpush.msra.mxu0 0.0
    %3204 = vmatpush.msra.mxu0 0.0
    %3205 = vmatpush.msra.mxu0 0.0
    %3206 = vmatpush.msra.mxu0 0.0
    %3207 = vmatpush.msra.mxu0 0.0
    %3208 = vmatpush.msra.mxu0 0.0
    %3209 = vmatpush.msra.mxu0 0.0
    %3210 = vmatpush.msra.mxu0 0.0
    %3211 = vmatpush.msra.mxu0 0.0
    %3212 = vmatpush.msra.mxu0 0.0
    %3213 = vmatpush.msra.mxu0 0.0
    %3214 = vmatpush.msra.mxu0 0.0
    %3215 = vmatpush.msra.mxu0 %v3140
    %3216 = vmatmul.f32.gmra.mxu0 %v3198
    %v3217 = vpop.f32.mrf.mxu0
    %v3218 = vadd.f32 0.0, %v3217
    %3219 = vdwg.mxu0
    %3220 = vrot.lane.b32.xlu0 %v3142, 120
    %v3221 = vpop.permute.xlu0 %3220
    %3222 = vrot.lane.b32.xlu0 %v3120, 56
    %v3223 = vpop.permute.xlu0 %3222
    %v3224 = vsel %vm3146, %v3221, 0
    %v3226 = vsel %vm3146, %v3223, 0
    %3228 = vmatpush.xpose.msra.mxu0 0.0
    %3229 = vmatpush.xpose.msra.mxu0 0.0
    %3230 = vmatpush.xpose.msra.mxu0 0.0
    %3231 = vmatpush.xpose.msra.mxu0 0.0
    %3232 = vmatpush.xpose.msra.mxu0 0.0
    %3233 = vmatpush.xpose.msra.mxu0 0.0
    %3234 = vmatpush.xpose.msra.mxu0 0.0
    %3235 = vmatpush.xpose.msra.mxu0 0.0
    %3236 = vmatpush.xpose.msra.mxu0 0.0
    %3237 = vmatpush.xpose.msra.mxu0 0.0
    %3238 = vmatpush.xpose.msra.mxu0 0.0
    %3239 = vmatpush.xpose.msra.mxu0 0.0
    %3240 = vmatpush.xpose.msra.mxu0 0.0
    %3241 = vmatpush.xpose.msra.mxu0 0.0
    %3242 = vmatpush.xpose.msra.mxu0 0.0
    %3243 = vmatpush.xpose.msra.mxu0 %v3226
    %3244 = vmatmul.f32.gmra.mxu0 %v3224
    %v3245 = vpop.f32.mrf.mxu0
    %v3246 = vadd.f32 0.0, %v3245
    %3247 = vdwg.mxu0
    %v3248 = vsel %vm3146, %v3246, -inf
    %3249 = vmax.xlane.f32.xlu0 %v3248
    %v3250 = vpop.xlane.xlu0 %3249
    %v3251 = vsub.f32 %v3246, %v3250
    %v3252 = vmul.f32 %v3251, 1.442695
    %v3253 = vpow.pop %v3252
    %v3254 = vsel %vm3146, %v3253, 0.0
    %3255 = vadd.xlane.f32.xlu0 %v3254
    %v3256 = vpop.xlane.xlu0 %3255
    %v3257 = vrcp.pop %v3256
    %v3258 = vmul.f32 %v3256, %v3257
    %v3259 = vsub.f32 1.0, %v3258
    %v3260 = vmul.f32 %v3257, %v3259
    %v3261 = vadd.f32 %v3257, %v3260
    %vm3262 = vweird.f32 %v3256
    %vm3263 = vweird.f32 %v3257
    %vm3264 = vmor %vm3262, %vm3263
    %v3265 = vsel %vm3264, %v3257, %v3261
    %v3266 = vand.u32 2147483647, %v3256
    %vm3267 = vcmp.eq.f32.partialorder %v3266, 8.507059e+37
    %v3268 = vand.u32 %v3256, 2147483648
    %v3269 = vor.u32 1.1754944e-38, %v3268
    %v3270 = vsel %vm3267, %v3269, %v3265
    %v3271 = vmul.f32 %v3253, %v3270
    %v3272 = vadd.f32 %v3196, %v3271
    %3274 = vrot.lane.b32.xlu0 %v3140, 120
    %v3275 = vpop.permute.xlu0 %3274
    %v3278 = vsel %vm3146, %v3271, 0
    %3280 = vmatpush.msra.mxu0 0.0
    %3281 = vmatpush.msra.mxu0 0.0
    %3282 = vmatpush.msra.mxu0 0.0
    %3283 = vmatpush.msra.mxu0 0.0
    %3284 = vmatpush.msra.mxu0 0.0
    %3285 = vmatpush.msra.mxu0 0.0
    %3286 = vmatpush.msra.mxu0 0.0
    %3287 = vmatpush.msra.mxu0 0.0
    %3288 = vmatpush.msra.mxu0 0.0
    %3289 = vmatpush.msra.mxu0 0.0
    %3290 = vmatpush.msra.mxu0 0.0
    %3291 = vmatpush.msra.mxu0 0.0
    %3292 = vmatpush.msra.mxu0 0.0
    %3293 = vmatpush.msra.mxu0 0.0
    %3294 = vmatpush.msra.mxu0 0.0
    %3295 = vmatpush.msra.mxu0 %v3275
    %3296 = vmatmul.f32.gmra.mxu0 %v3278
    %v3297 = vpop.f32.mrf.mxu0
    %v3298 = vadd.f32 0.0, %v3297
    %3299 = vdwg.mxu0
    %v3301 = vsel %vm3146, %v3298, 0
    %3303 = vmatpush.msra.mxu0 0.0
    %3304 = vmatpush.msra.mxu0 0.0
    %3305 = vmatpush.msra.mxu0 0.0
    %3306 = vmatpush.msra.mxu0 0.0
    %3307 = vmatpush.msra.mxu0 0.0
    %3308 = vmatpush.msra.mxu0 0.0
    %3309 = vmatpush.msra.mxu0 0.0
    %3310 = vmatpush.msra.mxu0 0.0
    %3311 = vmatpush.msra.mxu0 0.0
    %3312 = vmatpush.msra.mxu0 0.0
    %3313 = vmatpush.msra.mxu0 0.0
    %3314 = vmatpush.msra.mxu0 0.0
    %3315 = vmatpush.msra.mxu0 0.0
    %3316 = vmatpush.msra.mxu0 0.0
    %3317 = vmatpush.msra.mxu0 0.0
    %3318 = vmatpush.msra.mxu0 %v3058
    %3319 = vmatmul.f32.gmra.mxu0 %v3301
    %v3320 = vpop.f32.mrf.mxu0
    %v3321 = vadd.f32 0.0, %v3320
    %3322 = vdwg.mxu0
    %v3324 = vsel %vm3146, %v3218, 0
    %3326 = vmatpush.msra.mxu0 0.0
    %3327 = vmatpush.msra.mxu0 0.0
    %3328 = vmatpush.msra.mxu0 0.0
    %3329 = vmatpush.msra.mxu0 0.0
    %3330 = vmatpush.msra.mxu0 0.0
    %3331 = vmatpush.msra.mxu0 0.0
    %3332 = vmatpush.msra.mxu0 0.0
    %3333 = vmatpush.msra.mxu0 0.0
    %3334 = vmatpush.msra.mxu0 0.0
    %3335 = vmatpush.msra.mxu0 0.0
    %3336 = vmatpush.msra.mxu0 0.0
    %3337 = vmatpush.msra.mxu0 0.0
    %3338 = vmatpush.msra.mxu0 0.0
    %3339 = vmatpush.msra.mxu0 0.0
    %3340 = vmatpush.msra.mxu0 0.0
    %3341 = vmatpush.msra.mxu0 %v3057
    %3342 = vmatmul.f32.gmra.mxu0 %v3324
    %v3343 = vpop.f32.mrf.mxu0
    %v3344 = vadd.f32 %v3321, %v3343
    %3345 = vdwg.mxu0
    %3346 = vrot.lane.b32.xlu0 %v3142, 112
    %v3347 = vpop.permute.xlu0 %3346
    %3348 = vrot.lane.b32.xlu0 %v3120, 48
    %v3349 = vpop.permute.xlu0 %3348
    %v3350 = vsel %vm3146, %v3347, 0
    %v3352 = vsel %vm3146, %v3349, 0
    %3354 = vmatpush.xpose.msra.mxu0 0.0
    %3355 = vmatpush.xpose.msra.mxu0 0.0
    %3356 = vmatpush.xpose.msra.mxu0 0.0
    %3357 = vmatpush.xpose.msra.mxu0 0.0
    %3358 = vmatpush.xpose.msra.mxu0 0.0
    %3359 = vmatpush.xpose.msra.mxu0 0.0
    %3360 = vmatpush.xpose.msra.mxu0 0.0
    %3361 = vmatpush.xpose.msra.mxu0 0.0
    %3362 = vmatpush.xpose.msra.mxu0 0.0
    %3363 = vmatpush.xpose.msra.mxu0 0.0
    %3364 = vmatpush.xpose.msra.mxu0 0.0
    %3365 = vmatpush.xpose.msra.mxu0 0.0
    %3366 = vmatpush.xpose.msra.mxu0 0.0
    %3367 = vmatpush.xpose.msra.mxu0 0.0
    %3368 = vmatpush.xpose.msra.mxu0 0.0
    %3369 = vmatpush.xpose.msra.mxu0 %v3352
    %3370 = vmatmul.f32.gmra.mxu0 %v3350
    %v3371 = vpop.f32.mrf.mxu0
    %v3372 = vadd.f32 0.0, %v3371
    %3373 = vdwg.mxu0
    %v3374 = vsel %vm3146, %v3372, -inf
    %3375 = vmax.xlane.f32.xlu0 %v3374
    %v3376 = vpop.xlane.xlu0 %3375
    %v3377 = vsub.f32 %v3372, %v3376
    %v3378 = vmul.f32 %v3377, 1.442695
    %v3379 = vpow.pop %v3378
    %v3380 = vsel %vm3146, %v3379, 0.0
    %3381 = vadd.xlane.f32.xlu0 %v3380
    %v3382 = vpop.xlane.xlu0 %3381
    %v3383 = vrcp.pop %v3382
    %v3384 = vmul.f32 %v3382, %v3383
    %v3385 = vsub.f32 1.0, %v3384
    %v3386 = vmul.f32 %v3383, %v3385
    %v3387 = vadd.f32 %v3383, %v3386
    %vm3388 = vweird.f32 %v3382
    %vm3389 = vweird.f32 %v3383
    %vm3390 = vmor %vm3388, %vm3389
    %v3391 = vsel %vm3390, %v3383, %v3387
    %v3392 = vand.u32 2147483647, %v3382
    %vm3393 = vcmp.eq.f32.partialorder %v3392, 8.507059e+37
    %v3394 = vand.u32 %v3382, 2147483648
    %v3395 = vor.u32 1.1754944e-38, %v3394
    %v3396 = vsel %vm3393, %v3395, %v3391
    %v3397 = vmul.f32 %v3379, %v3396
    %v3398 = vadd.f32 %v3272, %v3397
    %3399 = vrot.lane.b32.xlu0 %v3140, 112
    %v3400 = vpop.permute.xlu0 %3399
    %v3403 = vsel %vm3146, %v3397, 0
    %3405 = vmatpush.msra.mxu0 0.0
    %3406 = vmatpush.msra.mxu0 0.0
    %3407 = vmatpush.msra.mxu0 0.0
    %3408 = vmatpush.msra.mxu0 0.0
    %3409 = vmatpush.msra.mxu0 0.0
    %3410 = vmatpush.msra.mxu0 0.0
    %3411 = vmatpush.msra.mxu0 0.0
    %3412 = vmatpush.msra.mxu0 0.0
    %3413 = vmatpush.msra.mxu0 0.0
    %3414 = vmatpush.msra.mxu0 0.0
    %3415 = vmatpush.msra.mxu0 0.0
    %3416 = vmatpush.msra.mxu0 0.0
    %3417 = vmatpush.msra.mxu0 0.0
    %3418 = vmatpush.msra.mxu0 0.0
    %3419 = vmatpush.msra.mxu0 0.0
    %3420 = vmatpush.msra.mxu0 %v3400
    %3421 = vmatmul.f32.gmra.mxu0 %v3403
    %v3422 = vpop.f32.mrf.mxu0
    %v3423 = vadd.f32 0.0, %v3422
    %3424 = vdwg.mxu0
    %v3426 = vsel %vm3146, %v3423, 0
    %3428 = vmatpush.msra.mxu0 0.0
    %3429 = vmatpush.msra.mxu0 0.0
    %3430 = vmatpush.msra.mxu0 0.0
    %3431 = vmatpush.msra.mxu0 0.0
    %3432 = vmatpush.msra.mxu0 0.0
    %3433 = vmatpush.msra.mxu0 0.0
    %3434 = vmatpush.msra.mxu0 0.0
    %3435 = vmatpush.msra.mxu0 0.0
    %3436 = vmatpush.msra.mxu0 0.0
    %3437 = vmatpush.msra.mxu0 0.0
    %3438 = vmatpush.msra.mxu0 0.0
    %3439 = vmatpush.msra.mxu0 0.0
    %3440 = vmatpush.msra.mxu0 0.0
    %3441 = vmatpush.msra.mxu0 0.0
    %3442 = vmatpush.msra.mxu0 0.0
    %3443 = vmatpush.msra.mxu0 %v3059
    %3444 = vmatmul.f32.gmra.mxu0 %v3426
    %v3445 = vpop.f32.mrf.mxu0
    %v3446 = vadd.f32 0.0, %v3445
    %3447 = vdwg.mxu0
    %v3448 = vadd.f32 %v3344, %v3446
    %3449 = vrot.lane.b32.xlu0 %v3142, 104
    %v3450 = vpop.permute.xlu0 %3449
    %3451 = vrot.lane.b32.xlu0 %v3120, 40
    %v3452 = vpop.permute.xlu0 %3451
    %v3453 = vsel %vm3146, %v3450, 0
    %v3455 = vsel %vm3146, %v3452, 0
    %3457 = vmatpush.xpose.msra.mxu0 0.0
    %3458 = vmatpush.xpose.msra.mxu0 0.0
    %3459 = vmatpush.xpose.msra.mxu0 0.0
    %3460 = vmatpush.xpose.msra.mxu0 0.0
    %3461 = vmatpush.xpose.msra.mxu0 0.0
    %3462 = vmatpush.xpose.msra.mxu0 0.0
    %3463 = vmatpush.xpose.msra.mxu0 0.0
    %3464 = vmatpush.xpose.msra.mxu0 0.0
    %3465 = vmatpush.xpose.msra.mxu0 0.0
    %3466 = vmatpush.xpose.msra.mxu0 0.0
    %3467 = vmatpush.xpose.msra.mxu0 0.0
    %3468 = vmatpush.xpose.msra.mxu0 0.0
    %3469 = vmatpush.xpose.msra.mxu0 0.0
    %3470 = vmatpush.xpose.msra.mxu0 0.0
    %3471 = vmatpush.xpose.msra.mxu0 0.0
    %3472 = vmatpush.xpose.msra.mxu0 %v3455
    %3473 = vmatmul.f32.gmra.mxu0 %v3453
    %v3474 = vpop.f32.mrf.mxu0
    %v3475 = vadd.f32 0.0, %v3474
    %3476 = vdwg.mxu0
    %v3477 = vsel %vm3146, %v3475, -inf
    %3478 = vmax.xlane.f32.xlu0 %v3477
    %v3479 = vpop.xlane.xlu0 %3478
    %v3480 = vsub.f32 %v3475, %v3479
    %v3481 = vmul.f32 %v3480, 1.442695
    %v3482 = vpow.pop %v3481
    %v3483 = vsel %vm3146, %v3482, 0.0
    %3484 = vadd.xlane.f32.xlu0 %v3483
    %v3485 = vpop.xlane.xlu0 %3484
    %v3486 = vrcp.pop %v3485
    %v3487 = vmul.f32 %v3485, %v3486
    %v3488 = vsub.f32 1.0, %v3487
    %v3489 = vmul.f32 %v3486, %v3488
    %v3490 = vadd.f32 %v3486, %v3489
    %vm3491 = vweird.f32 %v3485
    %vm3492 = vweird.f32 %v3486
    %vm3493 = vmor %vm3491, %vm3492
    %v3494 = vsel %vm3493, %v3486, %v3490
    %v3495 = vand.u32 2147483647, %v3485
    %vm3496 = vcmp.eq.f32.partialorder %v3495, 8.507059e+37
    %v3497 = vand.u32 %v3485, 2147483648
    %v3498 = vor.u32 1.1754944e-38, %v3497
    %v3499 = vsel %vm3496, %v3498, %v3494
    %v3500 = vmul.f32 %v3482, %v3499
    %v3501 = vadd.f32 %v3398, %v3500
    %3502 = vrot.lane.b32.xlu0 %v3140, 104
    %v3503 = vpop.permute.xlu0 %3502
    %v3506 = vsel %vm3146, %v3500, 0
    %3508 = vmatpush.msra.mxu0 0.0
    %3509 = vmatpush.msra.mxu0 0.0
    %3510 = vmatpush.msra.mxu0 0.0
    %3511 = vmatpush.msra.mxu0 0.0
    %3512 = vmatpush.msra.mxu0 0.0
    %3513 = vmatpush.msra.mxu0 0.0
    %3514 = vmatpush.msra.mxu0 0.0
    %3515 = vmatpush.msra.mxu0 0.0
    %3516 = vmatpush.msra.mxu0 0.0
    %3517 = vmatpush.msra.mxu0 0.0
    %3518 = vmatpush.msra.mxu0 0.0
    %3519 = vmatpush.msra.mxu0 0.0
    %3520 = vmatpush.msra.mxu0 0.0
    %3521 = vmatpush.msra.mxu0 0.0
    %3522 = vmatpush.msra.mxu0 0.0
    %3523 = vmatpush.msra.mxu0 %v3503
    %3524 = vmatmul.f32.gmra.mxu0 %v3506
    %v3525 = vpop.f32.mrf.mxu0
    %v3526 = vadd.f32 0.0, %v3525
    %3527 = vdwg.mxu0
    %v3529 = vsel %vm3146, %v3526, 0
    %3531 = vmatpush.msra.mxu0 0.0
    %3532 = vmatpush.msra.mxu0 0.0
    %3533 = vmatpush.msra.mxu0 0.0
    %3534 = vmatpush.msra.mxu0 0.0
    %3535 = vmatpush.msra.mxu0 0.0
    %3536 = vmatpush.msra.mxu0 0.0
    %3537 = vmatpush.msra.mxu0 0.0
    %3538 = vmatpush.msra.mxu0 0.0
    %3539 = vmatpush.msra.mxu0 0.0
    %3540 = vmatpush.msra.mxu0 0.0
    %3541 = vmatpush.msra.mxu0 0.0
    %3542 = vmatpush.msra.mxu0 0.0
    %3543 = vmatpush.msra.mxu0 0.0
    %3544 = vmatpush.msra.mxu0 0.0
    %3545 = vmatpush.msra.mxu0 0.0
    %3546 = vmatpush.msra.mxu0 %v3060
    %3547 = vmatmul.f32.gmra.mxu0 %v3529
    %v3548 = vpop.f32.mrf.mxu0
    %v3549 = vadd.f32 0.0, %v3548
    %3550 = vdwg.mxu0
    %v3551 = vadd.f32 %v3448, %v3549
    %3552 = vrot.lane.b32.xlu0 %v3142, 96
    %v3553 = vpop.permute.xlu0 %3552
    %3554 = vrot.lane.b32.xlu0 %v3120, 32
    %v3555 = vpop.permute.xlu0 %3554
    %v3556 = vsel %vm3146, %v3553, 0
    %v3558 = vsel %vm3146, %v3555, 0
    %3560 = vmatpush.xpose.msra.mxu0 0.0
    %3561 = vmatpush.xpose.msra.mxu0 0.0
    %3562 = vmatpush.xpose.msra.mxu0 0.0
    %3563 = vmatpush.xpose.msra.mxu0 0.0
    %3564 = vmatpush.xpose.msra.mxu0 0.0
    %3565 = vmatpush.xpose.msra.mxu0 0.0
    %3566 = vmatpush.xpose.msra.mxu0 0.0
    %3567 = vmatpush.xpose.msra.mxu0 0.0
    %3568 = vmatpush.xpose.msra.mxu0 0.0
    %3569 = vmatpush.xpose.msra.mxu0 0.0
    %3570 = vmatpush.xpose.msra.mxu0 0.0
    %3571 = vmatpush.xpose.msra.mxu0 0.0
    %3572 = vmatpush.xpose.msra.mxu0 0.0
    %3573 = vmatpush.xpose.msra.mxu0 0.0
    %3574 = vmatpush.xpose.msra.mxu0 0.0
    %3575 = vmatpush.xpose.msra.mxu0 %v3558
    %3576 = vmatmul.f32.gmra.mxu0 %v3556
    %v3577 = vpop.f32.mrf.mxu0
    %v3578 = vadd.f32 0.0, %v3577
    %3579 = vdwg.mxu0
    %v3580 = vsel %vm3146, %v3578, -inf
    %3581 = vmax.xlane.f32.xlu0 %v3580
    %v3582 = vpop.xlane.xlu0 %3581
    %v3583 = vsub.f32 %v3578, %v3582
    %v3584 = vmul.f32 %v3583, 1.442695
    %v3585 = vpow.pop %v3584
    %v3586 = vsel %vm3146, %v3585, 0.0
    %3587 = vadd.xlane.f32.xlu0 %v3586
    %v3588 = vpop.xlane.xlu0 %3587
    %v3589 = vrcp.pop %v3588
    %v3590 = vmul.f32 %v3588, %v3589
    %v3591 = vsub.f32 1.0, %v3590
    %v3592 = vmul.f32 %v3589, %v3591
    %v3593 = vadd.f32 %v3589, %v3592
    %vm3594 = vweird.f32 %v3588
    %vm3595 = vweird.f32 %v3589
    %vm3596 = vmor %vm3594, %vm3595
    %v3597 = vsel %vm3596, %v3589, %v3593
    %v3598 = vand.u32 2147483647, %v3588
    %vm3599 = vcmp.eq.f32.partialorder %v3598, 8.507059e+37
    %v3600 = vand.u32 %v3588, 2147483648
    %v3601 = vor.u32 1.1754944e-38, %v3600
    %v3602 = vsel %vm3599, %v3601, %v3597
    %v3603 = vmul.f32 %v3585, %v3602
    %v3604 = vadd.f32 %v3501, %v3603
    %3605 = vrot.lane.b32.xlu0 %v3140, 96
    %v3606 = vpop.permute.xlu0 %3605
    %v3609 = vsel %vm3146, %v3603, 0
    %3611 = vmatpush.msra.mxu0 0.0
    %3612 = vmatpush.msra.mxu0 0.0
    %3613 = vmatpush.msra.mxu0 0.0
    %3614 = vmatpush.msra.mxu0 0.0
    %3615 = vmatpush.msra.mxu0 0.0
    %3616 = vmatpush.msra.mxu0 0.0
    %3617 = vmatpush.msra.mxu0 0.0
    %3618 = vmatpush.msra.mxu0 0.0
    %3619 = vmatpush.msra.mxu0 0.0
    %3620 = vmatpush.msra.mxu0 0.0
    %3621 = vmatpush.msra.mxu0 0.0
    %3622 = vmatpush.msra.mxu0 0.0
    %3623 = vmatpush.msra.mxu0 0.0
    %3624 = vmatpush.msra.mxu0 0.0
    %3625 = vmatpush.msra.mxu0 0.0
    %3626 = vmatpush.msra.mxu0 %v3606
    %3627 = vmatmul.f32.gmra.mxu0 %v3609
    %v3628 = vpop.f32.mrf.mxu0
    %v3629 = vadd.f32 0.0, %v3628
    %3630 = vdwg.mxu0
    %v3632 = vsel %vm3146, %v3629, 0
    %3634 = vmatpush.msra.mxu0 0.0
    %3635 = vmatpush.msra.mxu0 0.0
    %3636 = vmatpush.msra.mxu0 0.0
    %3637 = vmatpush.msra.mxu0 0.0
    %3638 = vmatpush.msra.mxu0 0.0
    %3639 = vmatpush.msra.mxu0 0.0
    %3640 = vmatpush.msra.mxu0 0.0
    %3641 = vmatpush.msra.mxu0 0.0
    %3642 = vmatpush.msra.mxu0 0.0
    %3643 = vmatpush.msra.mxu0 0.0
    %3644 = vmatpush.msra.mxu0 0.0
    %3645 = vmatpush.msra.mxu0 0.0
    %3646 = vmatpush.msra.mxu0 0.0
    %3647 = vmatpush.msra.mxu0 0.0
    %3648 = vmatpush.msra.mxu0 0.0
    %3649 = vmatpush.msra.mxu0 %v3061
    %3650 = vmatmul.f32.gmra.mxu0 %v3632
    %v3651 = vpop.f32.mrf.mxu0
    %v3652 = vadd.f32 0.0, %v3651
    %3653 = vdwg.mxu0
    %v3654 = vadd.f32 %v3551, %v3652
    %3655 = vrot.lane.b32.xlu0 %v3142, 88
    %v3656 = vpop.permute.xlu0 %3655
    %3657 = vrot.lane.b32.xlu0 %v3120, 24
    %v3658 = vpop.permute.xlu0 %3657
    %v3659 = vsel %vm3146, %v3656, 0
    %v3661 = vsel %vm3146, %v3658, 0
    %3663 = vmatpush.xpose.msra.mxu0 0.0
    %3664 = vmatpush.xpose.msra.mxu0 0.0
    %3665 = vmatpush.xpose.msra.mxu0 0.0
    %3666 = vmatpush.xpose.msra.mxu0 0.0
    %3667 = vmatpush.xpose.msra.mxu0 0.0
    %3668 = vmatpush.xpose.msra.mxu0 0.0
    %3669 = vmatpush.xpose.msra.mxu0 0.0
    %3670 = vmatpush.xpose.msra.mxu0 0.0
    %3671 = vmatpush.xpose.msra.mxu0 0.0
    %3672 = vmatpush.xpose.msra.mxu0 0.0
    %3673 = vmatpush.xpose.msra.mxu0 0.0
    %3674 = vmatpush.xpose.msra.mxu0 0.0
    %3675 = vmatpush.xpose.msra.mxu0 0.0
    %3676 = vmatpush.xpose.msra.mxu0 0.0
    %3677 = vmatpush.xpose.msra.mxu0 0.0
    %3678 = vmatpush.xpose.msra.mxu0 %v3661
    %3679 = vmatmul.f32.gmra.mxu0 %v3659
    %v3680 = vpop.f32.mrf.mxu0
    %v3681 = vadd.f32 0.0, %v3680
    %3682 = vdwg.mxu0
    %v3683 = vsel %vm3146, %v3681, -inf
    %3684 = vmax.xlane.f32.xlu0 %v3683
    %v3685 = vpop.xlane.xlu0 %3684
    %v3686 = vsub.f32 %v3681, %v3685
    %v3687 = vmul.f32 %v3686, 1.442695
    %v3688 = vpow.pop %v3687
    %v3689 = vsel %vm3146, %v3688, 0.0
    %3690 = vadd.xlane.f32.xlu0 %v3689
    %v3691 = vpop.xlane.xlu0 %3690
    %v3692 = vrcp.pop %v3691
    %v3693 = vmul.f32 %v3691, %v3692
    %v3694 = vsub.f32 1.0, %v3693
    %v3695 = vmul.f32 %v3692, %v3694
    %v3696 = vadd.f32 %v3692, %v3695
    %vm3697 = vweird.f32 %v3691
    %vm3698 = vweird.f32 %v3692
    %vm3699 = vmor %vm3697, %vm3698
    %v3700 = vsel %vm3699, %v3692, %v3696
    %v3701 = vand.u32 2147483647, %v3691
    %vm3702 = vcmp.eq.f32.partialorder %v3701, 8.507059e+37
    %v3703 = vand.u32 %v3691, 2147483648
    %v3704 = vor.u32 1.1754944e-38, %v3703
    %v3705 = vsel %vm3702, %v3704, %v3700
    %v3706 = vmul.f32 %v3688, %v3705
    %v3707 = vadd.f32 %v3604, %v3706
    %3708 = vrot.lane.b32.xlu0 %v3140, 88
    %v3709 = vpop.permute.xlu0 %3708
    %v3712 = vsel %vm3146, %v3706, 0
    %3714 = vmatpush.msra.mxu0 0.0
    %3715 = vmatpush.msra.mxu0 0.0
    %3716 = vmatpush.msra.mxu0 0.0
    %3717 = vmatpush.msra.mxu0 0.0
    %3718 = vmatpush.msra.mxu0 0.0
    %3719 = vmatpush.msra.mxu0 0.0
    %3720 = vmatpush.msra.mxu0 0.0
    %3721 = vmatpush.msra.mxu0 0.0
    %3722 = vmatpush.msra.mxu0 0.0
    %3723 = vmatpush.msra.mxu0 0.0
    %3724 = vmatpush.msra.mxu0 0.0
    %3725 = vmatpush.msra.mxu0 0.0
    %3726 = vmatpush.msra.mxu0 0.0
    %3727 = vmatpush.msra.mxu0 0.0
    %3728 = vmatpush.msra.mxu0 0.0
    %3729 = vmatpush.msra.mxu0 %v3709
    %3730 = vmatmul.f32.gmra.mxu0 %v3712
    %v3731 = vpop.f32.mrf.mxu0
    %v3732 = vadd.f32 0.0, %v3731
    %3733 = vdwg.mxu0
    %v3735 = vsel %vm3146, %v3732, 0
    %3737 = vmatpush.msra.mxu0 0.0
    %3738 = vmatpush.msra.mxu0 0.0
    %3739 = vmatpush.msra.mxu0 0.0
    %3740 = vmatpush.msra.mxu0 0.0
    %3741 = vmatpush.msra.mxu0 0.0
    %3742 = vmatpush.msra.mxu0 0.0
    %3743 = vmatpush.msra.mxu0 0.0
    %3744 = vmatpush.msra.mxu0 0.0
    %3745 = vmatpush.msra.mxu0 0.0
    %3746 = vmatpush.msra.mxu0 0.0
    %3747 = vmatpush.msra.mxu0 0.0
    %3748 = vmatpush.msra.mxu0 0.0
    %3749 = vmatpush.msra.mxu0 0.0
    %3750 = vmatpush.msra.mxu0 0.0
    %3751 = vmatpush.msra.mxu0 0.0
    %3752 = vmatpush.msra.mxu0 %v3062
    %3753 = vmatmul.f32.gmra.mxu0 %v3735
    %v3754 = vpop.f32.mrf.mxu0
    %v3755 = vadd.f32 0.0, %v3754
    %3756 = vdwg.mxu0
    %v3757 = vadd.f32 %v3654, %v3755
    %3758 = vrot.lane.b32.xlu0 %v3142, 80
    %v3759 = vpop.permute.xlu0 %3758
    %3760 = vrot.lane.b32.xlu0 %v3120, 16
    %v3761 = vpop.permute.xlu0 %3760
    %v3762 = vsel %vm3146, %v3759, 0
    %v3764 = vsel %vm3146, %v3761, 0
    %3766 = vmatpush.xpose.msra.mxu0 0.0
    %3767 = vmatpush.xpose.msra.mxu0 0.0
    %3768 = vmatpush.xpose.msra.mxu0 0.0
    %3769 = vmatpush.xpose.msra.mxu0 0.0
    %3770 = vmatpush.xpose.msra.mxu0 0.0
    %3771 = vmatpush.xpose.msra.mxu0 0.0
    %3772 = vmatpush.xpose.msra.mxu0 0.0
    %3773 = vmatpush.xpose.msra.mxu0 0.0
    %3774 = vmatpush.xpose.msra.mxu0 0.0
    %3775 = vmatpush.xpose.msra.mxu0 0.0
    %3776 = vmatpush.xpose.msra.mxu0 0.0
    %3777 = vmatpush.xpose.msra.mxu0 0.0
    %3778 = vmatpush.xpose.msra.mxu0 0.0
    %3779 = vmatpush.xpose.msra.mxu0 0.0
    %3780 = vmatpush.xpose.msra.mxu0 0.0
    %3781 = vmatpush.xpose.msra.mxu0 %v3764
    %3782 = vmatmul.f32.gmra.mxu0 %v3762
    %v3783 = vpop.f32.mrf.mxu0
    %v3784 = vadd.f32 0.0, %v3783
    %3785 = vdwg.mxu0
    %v3786 = vsel %vm3146, %v3784, -inf
    %3787 = vmax.xlane.f32.xlu0 %v3786
    %v3788 = vpop.xlane.xlu0 %3787
    %v3789 = vsub.f32 %v3784, %v3788
    %v3790 = vmul.f32 %v3789, 1.442695
    %v3791 = vpow.pop %v3790
    %v3792 = vsel %vm3146, %v3791, 0.0
    %3793 = vadd.xlane.f32.xlu0 %v3792
    %v3794 = vpop.xlane.xlu0 %3793
    %v3795 = vrcp.pop %v3794
    %v3796 = vmul.f32 %v3794, %v3795
    %v3797 = vsub.f32 1.0, %v3796
    %v3798 = vmul.f32 %v3795, %v3797
    %v3799 = vadd.f32 %v3795, %v3798
    %vm3800 = vweird.f32 %v3794
    %vm3801 = vweird.f32 %v3795
    %vm3802 = vmor %vm3800, %vm3801
    %v3803 = vsel %vm3802, %v3795, %v3799
    %v3804 = vand.u32 2147483647, %v3794
    %vm3805 = vcmp.eq.f32.partialorder %v3804, 8.507059e+37
    %v3806 = vand.u32 %v3794, 2147483648
    %v3807 = vor.u32 1.1754944e-38, %v3806
    %v3808 = vsel %vm3805, %v3807, %v3803
    %v3809 = vmul.f32 %v3791, %v3808
    %v3810 = vadd.f32 %v3707, %v3809
    %3811 = vrot.lane.b32.xlu0 %v3140, 80
    %v3812 = vpop.permute.xlu0 %3811
    %v3815 = vsel %vm3146, %v3809, 0
    %3817 = vmatpush.msra.mxu0 0.0
    %3818 = vmatpush.msra.mxu0 0.0
    %3819 = vmatpush.msra.mxu0 0.0
    %3820 = vmatpush.msra.mxu0 0.0
    %3821 = vmatpush.msra.mxu0 0.0
    %3822 = vmatpush.msra.mxu0 0.0
    %3823 = vmatpush.msra.mxu0 0.0
    %3824 = vmatpush.msra.mxu0 0.0
    %3825 = vmatpush.msra.mxu0 0.0
    %3826 = vmatpush.msra.mxu0 0.0
    %3827 = vmatpush.msra.mxu0 0.0
    %3828 = vmatpush.msra.mxu0 0.0
    %3829 = vmatpush.msra.mxu0 0.0
    %3830 = vmatpush.msra.mxu0 0.0
    %3831 = vmatpush.msra.mxu0 0.0
    %3832 = vmatpush.msra.mxu0 %v3812
    %3833 = vmatmul.f32.gmra.mxu0 %v3815
    %v3834 = vpop.f32.mrf.mxu0
    %v3835 = vadd.f32 0.0, %v3834
    %3836 = vdwg.mxu0
    %v3838 = vsel %vm3146, %v3835, 0
    %3840 = vmatpush.msra.mxu0 0.0
    %3841 = vmatpush.msra.mxu0 0.0
    %3842 = vmatpush.msra.mxu0 0.0
    %3843 = vmatpush.msra.mxu0 0.0
    %3844 = vmatpush.msra.mxu0 0.0
    %3845 = vmatpush.msra.mxu0 0.0
    %3846 = vmatpush.msra.mxu0 0.0
    %3847 = vmatpush.msra.mxu0 0.0
    %3848 = vmatpush.msra.mxu0 0.0
    %3849 = vmatpush.msra.mxu0 0.0
    %3850 = vmatpush.msra.mxu0 0.0
    %3851 = vmatpush.msra.mxu0 0.0
    %3852 = vmatpush.msra.mxu0 0.0
    %3853 = vmatpush.msra.mxu0 0.0
    %3854 = vmatpush.msra.mxu0 0.0
    %3855 = vmatpush.msra.mxu0 %v3063
    %3856 = vmatmul.f32.gmra.mxu0 %v3838
    %v3857 = vpop.f32.mrf.mxu0
    %v3858 = vadd.f32 0.0, %v3857
    %3859 = vdwg.mxu0
    %v3860 = vadd.f32 %v3757, %v3858
    %3861 = vrot.lane.b32.xlu0 %v3142, 72
    %v3862 = vpop.permute.xlu0 %3861
    %3863 = vrot.lane.b32.xlu0 %v3120, 8
    %v3864 = vpop.permute.xlu0 %3863
    %v3865 = vsel %vm3146, %v3862, 0
    %v3867 = vsel %vm3146, %v3864, 0
    %3869 = vmatpush.xpose.msra.mxu0 0.0
    %3870 = vmatpush.xpose.msra.mxu0 0.0
    %3871 = vmatpush.xpose.msra.mxu0 0.0
    %3872 = vmatpush.xpose.msra.mxu0 0.0
    %3873 = vmatpush.xpose.msra.mxu0 0.0
    %3874 = vmatpush.xpose.msra.mxu0 0.0
    %3875 = vmatpush.xpose.msra.mxu0 0.0
    %3876 = vmatpush.xpose.msra.mxu0 0.0
    %3877 = vmatpush.xpose.msra.mxu0 0.0
    %3878 = vmatpush.xpose.msra.mxu0 0.0
    %3879 = vmatpush.xpose.msra.mxu0 0.0
    %3880 = vmatpush.xpose.msra.mxu0 0.0
    %3881 = vmatpush.xpose.msra.mxu0 0.0
    %3882 = vmatpush.xpose.msra.mxu0 0.0
    %3883 = vmatpush.xpose.msra.mxu0 0.0
    %3884 = vmatpush.xpose.msra.mxu0 %v3867
    %3885 = vmatmul.f32.gmra.mxu0 %v3865
    %v3886 = vpop.f32.mrf.mxu0
    %v3887 = vadd.f32 0.0, %v3886
    %3888 = vdwg.mxu0
    %v3889 = vsel %vm3146, %v3887, -inf
    %3890 = vmax.xlane.f32.xlu0 %v3889
    %v3891 = vpop.xlane.xlu0 %3890
    %v3892 = vsub.f32 %v3887, %v3891
    %v3893 = vmul.f32 %v3892, 1.442695
    %v3894 = vpow.pop %v3893
    %v3895 = vsel %vm3146, %v3894, 0.0
    %3896 = vadd.xlane.f32.xlu0 %v3895
    %v3897 = vpop.xlane.xlu0 %3896
    %v3898 = vrcp.pop %v3897
    %v3899 = vmul.f32 %v3897, %v3898
    %v3900 = vsub.f32 1.0, %v3899
    %v3901 = vmul.f32 %v3898, %v3900
    %v3902 = vadd.f32 %v3898, %v3901
    %vm3903 = vweird.f32 %v3897
    %vm3904 = vweird.f32 %v3898
    %vm3905 = vmor %vm3903, %vm3904
    %v3906 = vsel %vm3905, %v3898, %v3902
    %v3907 = vand.u32 2147483647, %v3897
    %vm3908 = vcmp.eq.f32.partialorder %v3907, 8.507059e+37
    %v3909 = vand.u32 %v3897, 2147483648
    %v3910 = vor.u32 1.1754944e-38, %v3909
    %v3911 = vsel %vm3908, %v3910, %v3906
    %v3912 = vmul.f32 %v3894, %v3911
    %v3913 = vadd.f32 %v3810, %v3912
    %3914 = vrot.lane.b32.xlu0 %v3140, 72
    %v3915 = vpop.permute.xlu0 %3914
    %v3918 = vsel %vm3146, %v3912, 0
    %3920 = vmatpush.msra.mxu0 0.0
    %3921 = vmatpush.msra.mxu0 0.0
    %3922 = vmatpush.msra.mxu0 0.0
    %3923 = vmatpush.msra.mxu0 0.0
    %3924 = vmatpush.msra.mxu0 0.0
    %3925 = vmatpush.msra.mxu0 0.0
    %3926 = vmatpush.msra.mxu0 0.0
    %3927 = vmatpush.msra.mxu0 0.0
    %3928 = vmatpush.msra.mxu0 0.0
    %3929 = vmatpush.msra.mxu0 0.0
    %3930 = vmatpush.msra.mxu0 0.0
    %3931 = vmatpush.msra.mxu0 0.0
    %3932 = vmatpush.msra.mxu0 0.0
    %3933 = vmatpush.msra.mxu0 0.0
    %3934 = vmatpush.msra.mxu0 0.0
    %3935 = vmatpush.msra.mxu0 %v3915
    %3936 = vmatmul.f32.gmra.mxu0 %v3918
    %v3937 = vpop.f32.mrf.mxu0
    %v3938 = vadd.f32 0.0, %v3937
    %3939 = vdwg.mxu0
    %v3941 = vsel %vm3146, %v3938, 0
    %3943 = vmatpush.msra.mxu0 0.0
    %3944 = vmatpush.msra.mxu0 0.0
    %3945 = vmatpush.msra.mxu0 0.0
    %3946 = vmatpush.msra.mxu0 0.0
    %3947 = vmatpush.msra.mxu0 0.0
    %3948 = vmatpush.msra.mxu0 0.0
    %3949 = vmatpush.msra.mxu0 0.0
    %3950 = vmatpush.msra.mxu0 0.0
    %3951 = vmatpush.msra.mxu0 0.0
    %3952 = vmatpush.msra.mxu0 0.0
    %3953 = vmatpush.msra.mxu0 0.0
    %3954 = vmatpush.msra.mxu0 0.0
    %3955 = vmatpush.msra.mxu0 0.0
    %3956 = vmatpush.msra.mxu0 0.0
    %3957 = vmatpush.msra.mxu0 0.0
    %3958 = vmatpush.msra.mxu0 %v3064
    %3959 = vmatmul.f32.gmra.mxu0 %v3941
    %v3960 = vpop.f32.mrf.mxu0
    %v3961 = vadd.f32 0.0, %v3960
    %3962 = vdwg.mxu0
    %v3963 = vadd.f32 %v3860, %v3961
    %v3964 = vmul.f32 %v3913, 0.125
    %3965 = vst.msk [vmem:[#allocation14] sm:$0xff] %vm3146, %v3964
    %v3967 = vrot.slane %v3963, 1
    %v3968 = vrot.slane %v3963, 2
    %v3969 = vrot.slane %v3963, 3
    %v3970 = vrot.slane %v3963, 4
    %v3971 = vrot.slane %v3963, 5
    %v3972 = vrot.slane %v3963, 6
    %v3973 = vrot.slane %v3963, 7
    %v3982 = vadd.f32 %v3032, %v3963
    %v3983 = vadd.f32 %v3033, %v3967
    %v3984 = vadd.f32 %v3034, %v3968
    %v3985 = vadd.f32 %v3035, %v3969
    %v3986 = vadd.f32 %v3036, %v3970
    %v3987 = vadd.f32 %v3037, %v3971
    %v3988 = vadd.f32 %v3038, %v3972
    %v3989 = vadd.f32 %v3039, %v3973
    %v3991 = vperm.slane %v3065, 0
    %v3993 = vadd.f32 %v3982, %v3991
    %v3994 = vadd.f32 %v3983, %v3991
    %v3995 = vadd.f32 %v3984, %v3991
    %v3996 = vadd.f32 %v3985, %v3991
    %v3997 = vadd.f32 %v3986, %v3991
    %v3998 = vadd.f32 %v3987, %v3991
    %v3999 = vadd.f32 %v3988, %v3991
    %v4000 = vadd.f32 %v3989, %v3991
    %v4001 = vld [vmem:[%s11] sm:$0xff]
    %v4002 = vld [vmem:[%s11 + $0x8] sm:$0xff]
    %v4003 = vld [vmem:[%s11 + $0x10] sm:$0xff]
    %v4004 = vld [vmem:[%s11 + $0x18] sm:$0xff]
    %v4005 = vld [vmem:[%s11 + $0x20] sm:$0xff]
    %v4006 = vld [vmem:[%s11 + $0x28] sm:$0xff]
    %v4007 = vld [vmem:[%s11 + $0x30] sm:$0xff]
    %v4008 = vld [vmem:[%s11 + $0x38] sm:$0xff]
    %v4009 = vld [vmem:[%s12] sm:$0x1]
    %v4011 = vperm.slane %v4009, 0
    %v4021 = vrot.slane %v3994, 7
    %v4022 = vsel %vm3080, %v4021, %v3993
    %v4023 = vrot.slane %v3995, 6
    %v4024 = vsel %vm3083, %v4023, %v4022
    %v4025 = vrot.slane %v3996, 5
    %v4026 = vsel %vm3086, %v4025, %v4024
    %v4027 = vrot.slane %v3997, 4
    %v4028 = vsel %vm3089, %v4027, %v4026
    %v4029 = vrot.slane %v3998, 3
    %v4030 = vsel %vm3092, %v4029, %v4028
    %v4031 = vrot.slane %v3999, 2
    %v4032 = vsel %vm3095, %v4031, %v4030
    %v4033 = vrot.slane %v4000, 1
    %v4034 = vsel %vm3098, %v4033, %v4032
    %v4035 = vsel %vm345, %v4034, 0
    %4037 = vmatpush.msra.mxu0 0.0
    %4038 = vmatpush.msra.mxu0 0.0
    %4039 = vmatpush.msra.mxu0 0.0
    %4040 = vmatpush.msra.mxu0 0.0
    %4041 = vmatpush.msra.mxu0 0.0
    %4042 = vmatpush.msra.mxu0 0.0
    %4043 = vmatpush.msra.mxu0 0.0
    %4044 = vmatpush.msra.mxu0 0.0
    %4045 = vmatpush.msra.mxu0 %v4008
    %4046 = vmatpush.msra.mxu0 %v4007
    %4047 = vmatpush.msra.mxu0 %v4006
    %4048 = vmatpush.msra.mxu0 %v4005
    %4049 = vmatpush.msra.mxu0 %v4004
    %4050 = vmatpush.msra.mxu0 %v4003
    %4051 = vmatpush.msra.mxu0 %v4002
    %4052 = vmatpush.msra.mxu0 %v4001
    %4053 = vmatmul.f32.gmra.mxu0 %v4035
    %v4054 = vpop.f32.mrf.mxu0
    %v4055 = vadd.f32 %v4011, %v4054
    %4056 = vdwg.mxu0
    %v4057 = vmax.f32 %v4055, 0.0
    %v4058 = vld [vmem:[%s13] sm:$0xff]
    %v4059 = vld [vmem:[%s13 + $0x8] sm:$0xff]
    %v4060 = vld [vmem:[%s13 + $0x10] sm:$0xff]
    %v4061 = vld [vmem:[%s13 + $0x18] sm:$0xff]
    %v4062 = vld [vmem:[%s14] sm:$0x1]
    %v4064 = vperm.slane %v4062, 0
    %v4067 = vsel %vm3031, %v4057, 0
    %4069 = vmatpush.msra.mxu0 0.0
    %4070 = vmatpush.msra.mxu0 0.0
    %4071 = vmatpush.msra.mxu0 0.0
    %4072 = vmatpush.msra.mxu0 0.0
    %4073 = vmatpush.msra.mxu0 0.0
    %4074 = vmatpush.msra.mxu0 0.0
    %4075 = vmatpush.msra.mxu0 0.0
    %4076 = vmatpush.msra.mxu0 0.0
    %4077 = vmatpush.msra.mxu0 0.0
    %4078 = vmatpush.msra.mxu0 0.0
    %4079 = vmatpush.msra.mxu0 0.0
    %4080 = vmatpush.msra.mxu0 0.0
    %4081 = vmatpush.msra.mxu0 %v4061
    %4082 = vmatpush.msra.mxu0 %v4060
    %4083 = vmatpush.msra.mxu0 %v4059
    %4084 = vmatpush.msra.mxu0 %v4058
    %4085 = vmatmul.f32.gmra.mxu0 %v4067
    %v4086 = vpop.f32.mrf.mxu0
    %v4087 = vadd.f32 %v4064, %v4086
    %4088 = vdwg.mxu0
    %v4089 = vmax.f32 %v4087, 0.0
    %v4090 = vld [vmem:[%s15] sm:$0xff]
    %v4091 = vld [vmem:[%s15 + $0x8] sm:$0xff]
    %v4092 = vld [vmem:[%s16] sm:$0xff]
    %v4093 = vld [vmem:[%s16 + $0x8] sm:$0x1]
    %4095 = vset.pattern.permute.xlu0 0
    %4096 = vperm.xlu0 %4095, %v4092
    %v4097 = vpop.permute.xlu0 %4096
    %4100 = vset.pattern.permute.xlu0 0
    %4101 = vperm.xlu0 %4100, %v4093
    %v4102 = vpop.permute.xlu0 %4101
    %4104 = vxpose.xlu0.b32.start [1/16] %v4090, 128
    %4105 = vxpose.xlu0.b32.cont [2/16] %v4091, 128
    %4106 = vxpose.xlu0.b32.cont [3/16] 0.0, 128
    %4107 = vxpose.xlu0.b32.cont [4/16] 0.0, 128
    %4108 = vxpose.xlu0.b32.cont [5/16] 0.0, 128
    %4109 = vxpose.xlu0.b32.cont [6/16] 0.0, 128
    %4110 = vxpose.xlu0.b32.cont [7/16] 0.0, 128
    %4111 = vxpose.xlu0.b32.cont [8/16] 0.0, 128
    %4112 = vxpose.xlu0.b32.cont [9/16] 0.0, 128
    %4113 = vxpose.xlu0.b32.cont [10/16] 0.0, 128
    %4114 = vxpose.xlu0.b32.cont [11/16] 0.0, 128
    %4115 = vxpose.xlu0.b32.cont [12/16] 0.0, 128
    %4116 = vxpose.xlu0.b32.cont [13/16] 0.0, 128
    %4117 = vxpose.xlu0.b32.cont [14/16] 0.0, 128
    %4118 = vxpose.xlu0.b32.cont [15/16] 0.0, 128
    %4119 = vxpose.xlu0.b32.end [16/16] 0.0, 128
    %v4120 = vpop.trf.xlu0
    %v4121 = vpop.trf.xlu0
    %v4122 = vpop.trf.xlu0
    %v4123 = vpop.trf.xlu0
    %v4124 = vpop.trf.xlu0
    %v4125 = vpop.trf.xlu0
    %v4126 = vpop.trf.xlu0
    %v4127 = vpop.trf.xlu0
    %v4128 = vpop.trf.xlu0
    %v4129 = vpop.trf.xlu0
    %v4130 = vpop.trf.xlu0
    %v4131 = vpop.trf.xlu0
    %v4132 = vpop.trf.xlu0
    %v4133 = vpop.trf.xlu0
    %v4134 = vpop.trf.xlu0
    %v4135 = vpop.trf.xlu0
    %vm4136 = vcmask 130048
    %v4138 = vsel %vm4136, %v4120, 0
    %v4141 = vsel %vm4136, %v4121, 0
    %v4144 = vsel %vm4136, %v4089, 0
    %4146 = vmatpush.xpose.msra.mxu0 0.0
    %4147 = vmatpush.xpose.msra.mxu0 0.0
    %4148 = vmatpush.xpose.msra.mxu0 0.0
    %4149 = vmatpush.xpose.msra.mxu0 0.0
    %4150 = vmatpush.xpose.msra.mxu0 0.0
    %4151 = vmatpush.xpose.msra.mxu0 0.0
    %4152 = vmatpush.xpose.msra.mxu0 0.0
    %4153 = vmatpush.xpose.msra.mxu0 0.0
    %4154 = vmatpush.xpose.msra.mxu0 0.0
    %4155 = vmatpush.xpose.msra.mxu0 0.0
    %4156 = vmatpush.xpose.msra.mxu0 0.0
    %4157 = vmatpush.xpose.msra.mxu0 0.0
    %4158 = vmatpush.xpose.msra.mxu0 0.0
    %4159 = vmatpush.xpose.msra.mxu0 0.0
    %4160 = vmatpush.xpose.msra.mxu0 0.0
    %4161 = vmatpush.xpose.msra.mxu0 %v4144
    %4162 = vmatmul.f32.gmra.mxu0 %v4138
    %v4163 = vpop.f32.mrf.mxu0
    %v4164 = vadd.f32 %v4097, %v4163
    %4165 = vmatmul.f32.gmra.mxu0 %v4141
    %v4166 = vpop.f32.mrf.mxu0
    %v4167 = vadd.f32 %v4102, %v4166
    %4168 = vdwg.mxu0
    %v4169 = vmax.f32 %v4164, 0.0
    %v4170 = vmax.f32 %v4167, 0.0
    %v4171 = vld [vmem:[%s17] sm:$0xff]
    %v4172 = vld [vmem:[#allocation5] sm:$0x1]
    %4174 = vset.pattern.permute.xlu0 0
    %4175 = vperm.xlu0 %4174, %v4172
    %v4176 = vpop.permute.xlu0 %4175
    %v4178 = vperm.slane %v4176, 0
    %4179 = vxpose.xlu0.b32.start [1/16] %v4171, 128
    %4180 = vxpose.xlu0.b32.cont [2/16] 0.0, 128
    %4181 = vxpose.xlu0.b32.cont [3/16] 0.0, 128
    %4182 = vxpose.xlu0.b32.cont [4/16] 0.0, 128
    %4183 = vxpose.xlu0.b32.cont [5/16] 0.0, 128
    %4184 = vxpose.xlu0.b32.cont [6/16] 0.0, 128
    %4185 = vxpose.xlu0.b32.cont [7/16] 0.0, 128
    %4186 = vxpose.xlu0.b32.cont [8/16] 0.0, 128
    %4187 = vxpose.xlu0.b32.cont [9/16] 0.0, 128
    %4188 = vxpose.xlu0.b32.cont [10/16] 0.0, 128
    %4189 = vxpose.xlu0.b32.cont [11/16] 0.0, 128
    %4190 = vxpose.xlu0.b32.cont [12/16] 0.0, 128
    %4191 = vxpose.xlu0.b32.cont [13/16] 0.0, 128
    %4192 = vxpose.xlu0.b32.cont [14/16] 0.0, 128
    %4193 = vxpose.xlu0.b32.cont [15/16] 0.0, 128
    %4194 = vxpose.xlu0.b32.end [16/16] 0.0, 128
    %v4195 = vpop.trf.xlu0
    %v4196 = vpop.trf.xlu0
    %v4197 = vpop.trf.xlu0
    %v4198 = vpop.trf.xlu0
    %v4199 = vpop.trf.xlu0
    %v4200 = vpop.trf.xlu0
    %v4201 = vpop.trf.xlu0
    %v4202 = vpop.trf.xlu0
    %v4203 = vpop.trf.xlu0
    %v4204 = vpop.trf.xlu0
    %v4205 = vpop.trf.xlu0
    %v4206 = vpop.trf.xlu0
    %v4207 = vpop.trf.xlu0
    %v4208 = vpop.trf.xlu0
    %v4209 = vpop.trf.xlu0
    %v4210 = vpop.trf.xlu0
    %vm4213 = vcmask 1046528
    %v4214 = vrot.slane %v4169, 1
    %v4215 = vrot.slane %v4170, 1
    %v4216 = vsel %vm4213, %v4214, %v4215
    %v4219 = vsel %vm3146, %v4195, 0
    %4221 = vmatpush.msra.mxu0 0.0
    %4222 = vmatpush.msra.mxu0 0.0
    %4223 = vmatpush.msra.mxu0 0.0
    %4224 = vmatpush.msra.mxu0 0.0
    %4225 = vmatpush.msra.mxu0 0.0
    %4226 = vmatpush.msra.mxu0 0.0
    %4227 = vmatpush.msra.mxu0 0.0
    %4228 = vmatpush.msra.mxu0 0.0
    %4229 = vmatpush.msra.mxu0 0.0
    %4230 = vmatpush.msra.mxu0 0.0
    %4231 = vmatpush.msra.mxu0 0.0
    %4232 = vmatpush.msra.mxu0 0.0
    %4233 = vmatpush.msra.mxu0 0.0
    %4234 = vmatpush.msra.mxu0 0.0
    %4235 = vmatpush.msra.mxu0 0.0
    %4236 = vmatpush.msra.mxu0 %v4216
    %4237 = vmatmul.f32.gmra.mxu0 %v4219
    %v4238 = vpop.f32.mrf.mxu0
    %v4239 = vadd.f32 %v4178, %v4238
    %4240 = vdwg.mxu0
    %v4241 = vmax.f32 %v4239, 0.0
    %vm4242 = vcmp.ne.f32.partialorder %v4239, %v4239
    %v4243 = vadd.f32 %v4239, 0.0
    %v4244 = vand.u32 2147483647, %v4239
    %v4245 = vsub.f32 0.0, %v4244
    %v4246 = vmul.f32 %v4245, 1.442695
    %v4247 = vpow.pop %v4246
    %v4248 = vadd.f32 %v4247, 1.0
    %v4249 = vlog2.pop %v4248
    %v4250 = vmul.f32 %v4249, 0.6931472
    %v4251 = vmul.f32 -0.5, %v4247
    %v4252 = vadd.f32 %v4251, 1.0
    %v4253 = vmul.f32 %v4252, %v4247
    %v4254 = vand.u32 2147483647, %v4247
    %vm4255 = vcmp.lt.f32.partialorder %v4254, 0.0004427343
    %v4256 = vsel %vm4255, %v4253, %v4250
    %v4257 = vadd.f32 %v4241, %v4256
    %v4258 = vsel %vm4242, %v4243, %v4257
    %v4259 = vrot.slane %v3032, 1
    %v4260 = vsel %vm3080, %v3033, %v4259
    %v4261 = vrot.slane %v3034, 7
    %v4262 = vsel %vm3083, %v4261, %v4260
    %v4263 = vrot.slane %v3035, 6
    %v4264 = vsel %vm3086, %v4263, %v4262
    %v4265 = vrot.slane %v3036, 5
    %v4266 = vsel %vm3089, %v4265, %v4264
    %v4267 = vrot.slane %v3037, 4
    %v4268 = vsel %vm3092, %v4267, %v4266
    %v4269 = vrot.slane %v3038, 3
    %v4270 = vsel %vm3095, %v4269, %v4268
    %v4271 = vrot.slane %v3039, 2
    %v4272 = vsel %vm3098, %v4271, %v4270
    %v4273 = vsel %vm345, %v4272, 0
    %4275 = vmatpush.msra.mxu0 0.0
    %4276 = vmatpush.msra.mxu0 0.0
    %4277 = vmatpush.msra.mxu0 0.0
    %4278 = vmatpush.msra.mxu0 0.0
    %4279 = vmatpush.msra.mxu0 0.0
    %4280 = vmatpush.msra.mxu0 0.0
    %4281 = vmatpush.msra.mxu0 0.0
    %4282 = vmatpush.msra.mxu0 0.0
    %4283 = vmatpush.msra.mxu0 %v3054
    %4284 = vmatpush.msra.mxu0 %v3052
    %4285 = vmatpush.msra.mxu0 %v3050
    %4286 = vmatpush.msra.mxu0 %v3048
    %4287 = vmatpush.msra.mxu0 %v3046
    %4288 = vmatpush.msra.mxu0 %v3044
    %4289 = vmatpush.msra.mxu0 %v3042
    %4290 = vmatpush.msra.mxu0 %v3040
    %4291 = vmatmul.f32.gmra.mxu0 %v4273
    %v4292 = vpop.f32.mrf.mxu0
    %v4293 = vadd.f32 %v3067, %v4292
    %4294 = vdwg.mxu0
    %4295 = vmatpush.msra.mxu0 0.0
    %4296 = vmatpush.msra.mxu0 0.0
    %4297 = vmatpush.msra.mxu0 0.0
    %4298 = vmatpush.msra.mxu0 0.0
    %4299 = vmatpush.msra.mxu0 0.0
    %4300 = vmatpush.msra.mxu0 0.0
    %4301 = vmatpush.msra.mxu0 0.0
    %4302 = vmatpush.msra.mxu0 0.0
    %4303 = vmatpush.msra.mxu0 %v3055
    %4304 = vmatpush.msra.mxu0 %v3053
    %4305 = vmatpush.msra.mxu0 %v3051
    %4306 = vmatpush.msra.mxu0 %v3049
    %4307 = vmatpush.msra.mxu0 %v3047
    %4308 = vmatpush.msra.mxu0 %v3045
    %4309 = vmatpush.msra.mxu0 %v3043
    %4310 = vmatpush.msra.mxu0 %v3041
    %4311 = vmatmul.f32.gmra.mxu0 %v4273
    %v4312 = vpop.f32.mrf.mxu0
    %v4313 = vadd.f32 %v3068, %v4312
    %4314 = vdwg.mxu0
    %v4315 = vmul.f32 %v4293, 0.35355338
    %4317 = vrot.lane.b32.xlu0 %v4293, 64
    %v4318 = vpop.permute.xlu0 %4317
    %v4320 = vsel %vm3146, %v4315, 0
    %v4322 = vsel %vm3146, %v4318, 0
    %4324 = vmatpush.xpose.msra.mxu0 0.0
    %4325 = vmatpush.xpose.msra.mxu0 0.0
    %4326 = vmatpush.xpose.msra.mxu0 0.0
    %4327 = vmatpush.xpose.msra.mxu0 0.0
    %4328 = vmatpush.xpose.msra.mxu0 0.0
    %4329 = vmatpush.xpose.msra.mxu0 0.0
    %4330 = vmatpush.xpose.msra.mxu0 0.0
    %4331 = vmatpush.xpose.msra.mxu0 0.0
    %4332 = vmatpush.xpose.msra.mxu0 0.0
    %4333 = vmatpush.xpose.msra.mxu0 0.0
    %4334 = vmatpush.xpose.msra.mxu0 0.0
    %4335 = vmatpush.xpose.msra.mxu0 0.0
    %4336 = vmatpush.xpose.msra.mxu0 0.0
    %4337 = vmatpush.xpose.msra.mxu0 0.0
    %4338 = vmatpush.xpose.msra.mxu0 0.0
    %4339 = vmatpush.xpose.msra.mxu0 %v4322
    %4340 = vmatmul.f32.gmra.mxu0 %v4320
    %v4341 = vpop.f32.mrf.mxu0
    %v4342 = vadd.f32 0.0, %v4341
    %4343 = vdwg.mxu0
    %v4344 = vsel %vm3146, %v4342, -inf
    %4345 = vmax.xlane.f32.xlu0 %v4344
    %v4346 = vpop.xlane.xlu0 %4345
    %v4347 = vsub.f32 %v4342, %v4346
    %v4348 = vmul.f32 %v4347, 1.442695
    %v4349 = vpow.pop %v4348
    %v4350 = vsel %vm3146, %v4349, 0.0
    %4351 = vadd.xlane.f32.xlu0 %v4350
    %v4352 = vpop.xlane.xlu0 %4351
    %v4353 = vrcp.pop %v4352
    %v4354 = vmul.f32 %v4352, %v4353
    %v4355 = vsub.f32 1.0, %v4354
    %v4356 = vmul.f32 %v4353, %v4355
    %v4357 = vadd.f32 %v4353, %v4356
    %vm4358 = vweird.f32 %v4352
    %vm4359 = vweird.f32 %v4353
    %vm4360 = vmor %vm4358, %vm4359
    %v4361 = vsel %vm4360, %v4353, %v4357
    %v4362 = vand.u32 2147483647, %v4352
    %vm4363 = vcmp.eq.f32.partialorder %v4362, 8.507059e+37
    %v4364 = vand.u32 %v4352, 2147483648
    %v4365 = vor.u32 1.1754944e-38, %v4364
    %v4366 = vsel %vm4363, %v4365, %v4361
    %v4367 = vmul.f32 %v4349, %v4366
    %v4368 = vadd.f32 %v4367, 0.0
    %v4370 = vsel %vm3146, %v4367, 0
    %4372 = vmatpush.msra.mxu0 0.0
    %4373 = vmatpush.msra.mxu0 0.0
    %4374 = vmatpush.msra.mxu0 0.0
    %4375 = vmatpush.msra.mxu0 0.0
    %4376 = vmatpush.msra.mxu0 0.0
    %4377 = vmatpush.msra.mxu0 0.0
    %4378 = vmatpush.msra.mxu0 0.0
    %4379 = vmatpush.msra.mxu0 0.0
    %4380 = vmatpush.msra.mxu0 0.0
    %4381 = vmatpush.msra.mxu0 0.0
    %4382 = vmatpush.msra.mxu0 0.0
    %4383 = vmatpush.msra.mxu0 0.0
    %4384 = vmatpush.msra.mxu0 0.0
    %4385 = vmatpush.msra.mxu0 0.0
    %4386 = vmatpush.msra.mxu0 0.0
    %4387 = vmatpush.msra.mxu0 %v4313
    %4388 = vmatmul.f32.gmra.mxu0 %v4370
    %v4389 = vpop.f32.mrf.mxu0
    %v4390 = vadd.f32 0.0, %v4389
    %4391 = vdwg.mxu0
    %4392 = vrot.lane.b32.xlu0 %v4315, 120
    %v4393 = vpop.permute.xlu0 %4392
    %4394 = vrot.lane.b32.xlu0 %v4293, 56
    %v4395 = vpop.permute.xlu0 %4394
    %v4396 = vsel %vm3146, %v4393, 0
    %v4398 = vsel %vm3146, %v4395, 0
    %4400 = vmatpush.xpose.msra.mxu0 0.0
    %4401 = vmatpush.xpose.msra.mxu0 0.0
    %4402 = vmatpush.xpose.msra.mxu0 0.0
    %4403 = vmatpush.xpose.msra.mxu0 0.0
    %4404 = vmatpush.xpose.msra.mxu0 0.0
    %4405 = vmatpush.xpose.msra.mxu0 0.0
    %4406 = vmatpush.xpose.msra.mxu0 0.0
    %4407 = vmatpush.xpose.msra.mxu0 0.0
    %4408 = vmatpush.xpose.msra.mxu0 0.0
    %4409 = vmatpush.xpose.msra.mxu0 0.0
    %4410 = vmatpush.xpose.msra.mxu0 0.0
    %4411 = vmatpush.xpose.msra.mxu0 0.0
    %4412 = vmatpush.xpose.msra.mxu0 0.0
    %4413 = vmatpush.xpose.msra.mxu0 0.0
    %4414 = vmatpush.xpose.msra.mxu0 0.0
    %4415 = vmatpush.xpose.msra.mxu0 %v4398
    %4416 = vmatmul.f32.gmra.mxu0 %v4396
    %v4417 = vpop.f32.mrf.mxu0
    %v4418 = vadd.f32 0.0, %v4417
    %4419 = vdwg.mxu0
    %v4420 = vsel %vm3146, %v4418, -inf
    %4421 = vmax.xlane.f32.xlu0 %v4420
    %v4422 = vpop.xlane.xlu0 %4421
    %v4423 = vsub.f32 %v4418, %v4422
    %v4424 = vmul.f32 %v4423, 1.442695
    %v4425 = vpow.pop %v4424
    %v4426 = vsel %vm3146, %v4425, 0.0
    %4427 = vadd.xlane.f32.xlu0 %v4426
    %v4428 = vpop.xlane.xlu0 %4427
    %v4429 = vrcp.pop %v4428
    %v4430 = vmul.f32 %v4428, %v4429
    %v4431 = vsub.f32 1.0, %v4430
    %v4432 = vmul.f32 %v4429, %v4431
    %v4433 = vadd.f32 %v4429, %v4432
    %vm4434 = vweird.f32 %v4428
    %vm4435 = vweird.f32 %v4429
    %vm4436 = vmor %vm4434, %vm4435
    %v4437 = vsel %vm4436, %v4429, %v4433
    %v4438 = vand.u32 2147483647, %v4428
    %vm4439 = vcmp.eq.f32.partialorder %v4438, 8.507059e+37
    %v4440 = vand.u32 %v4428, 2147483648
    %v4441 = vor.u32 1.1754944e-38, %v4440
    %v4442 = vsel %vm4439, %v4441, %v4437
    %v4443 = vmul.f32 %v4425, %v4442
    %v4444 = vadd.f32 %v4368, %v4443
    %4446 = vrot.lane.b32.xlu0 %v4313, 120
    %v4447 = vpop.permute.xlu0 %4446
    %v4450 = vsel %vm3146, %v4443, 0
    %4452 = vmatpush.msra.mxu0 0.0
    %4453 = vmatpush.msra.mxu0 0.0
    %4454 = vmatpush.msra.mxu0 0.0
    %4455 = vmatpush.msra.mxu0 0.0
    %4456 = vmatpush.msra.mxu0 0.0
    %4457 = vmatpush.msra.mxu0 0.0
    %4458 = vmatpush.msra.mxu0 0.0
    %4459 = vmatpush.msra.mxu0 0.0
    %4460 = vmatpush.msra.mxu0 0.0
    %4461 = vmatpush.msra.mxu0 0.0
    %4462 = vmatpush.msra.mxu0 0.0
    %4463 = vmatpush.msra.mxu0 0.0
    %4464 = vmatpush.msra.mxu0 0.0
    %4465 = vmatpush.msra.mxu0 0.0
    %4466 = vmatpush.msra.mxu0 0.0
    %4467 = vmatpush.msra.mxu0 %v4447
    %4468 = vmatmul.f32.gmra.mxu0 %v4450
    %v4469 = vpop.f32.mrf.mxu0
    %v4470 = vadd.f32 0.0, %v4469
    %4471 = vdwg.mxu0
    %v4473 = vsel %vm3146, %v4470, 0
    %4475 = vmatpush.msra.mxu0 0.0
    %4476 = vmatpush.msra.mxu0 0.0
    %4477 = vmatpush.msra.mxu0 0.0
    %4478 = vmatpush.msra.mxu0 0.0
    %4479 = vmatpush.msra.mxu0 0.0
    %4480 = vmatpush.msra.mxu0 0.0
    %4481 = vmatpush.msra.mxu0 0.0
    %4482 = vmatpush.msra.mxu0 0.0
    %4483 = vmatpush.msra.mxu0 0.0
    %4484 = vmatpush.msra.mxu0 0.0
    %4485 = vmatpush.msra.mxu0 0.0
    %4486 = vmatpush.msra.mxu0 0.0
    %4487 = vmatpush.msra.mxu0 0.0
    %4488 = vmatpush.msra.mxu0 0.0
    %4489 = vmatpush.msra.mxu0 0.0
    %4490 = vmatpush.msra.mxu0 %v3058
    %4491 = vmatmul.f32.gmra.mxu0 %v4473
    %v4492 = vpop.f32.mrf.mxu0
    %v4493 = vadd.f32 0.0, %v4492
    %4494 = vdwg.mxu0
    %v4496 = vsel %vm3146, %v4390, 0
    %4498 = vmatpush.msra.mxu0 0.0
    %4499 = vmatpush.msra.mxu0 0.0
    %4500 = vmatpush.msra.mxu0 0.0
    %4501 = vmatpush.msra.mxu0 0.0
    %4502 = vmatpush.msra.mxu0 0.0
    %4503 = vmatpush.msra.mxu0 0.0
    %4504 = vmatpush.msra.mxu0 0.0
    %4505 = vmatpush.msra.mxu0 0.0
    %4506 = vmatpush.msra.mxu0 0.0
    %4507 = vmatpush.msra.mxu0 0.0
    %4508 = vmatpush.msra.mxu0 0.0
    %4509 = vmatpush.msra.mxu0 0.0
    %4510 = vmatpush.msra.mxu0 0.0
    %4511 = vmatpush.msra.mxu0 0.0
    %4512 = vmatpush.msra.mxu0 0.0
    %4513 = vmatpush.msra.mxu0 %v3057
    %4514 = vmatmul.f32.gmra.mxu0 %v4496
    %v4515 = vpop.f32.mrf.mxu0
    %v4516 = vadd.f32 %v4493, %v4515
    %4517 = vdwg.mxu0
    %4518 = vrot.lane.b32.xlu0 %v4315, 112
    %v4519 = vpop.permute.xlu0 %4518
    %4520 = vrot.lane.b32.xlu0 %v4293, 48
    %v4521 = vpop.permute.xlu0 %4520
    %v4522 = vsel %vm3146, %v4519, 0
    %v4524 = vsel %vm3146, %v4521, 0
    %4526 = vmatpush.xpose.msra.mxu0 0.0
    %4527 = vmatpush.xpose.msra.mxu0 0.0
    %4528 = vmatpush.xpose.msra.mxu0 0.0
    %4529 = vmatpush.xpose.msra.mxu0 0.0
    %4530 = vmatpush.xpose.msra.mxu0 0.0
    %4531 = vmatpush.xpose.msra.mxu0 0.0
    %4532 = vmatpush.xpose.msra.mxu0 0.0
    %4533 = vmatpush.xpose.msra.mxu0 0.0
    %4534 = vmatpush.xpose.msra.mxu0 0.0
    %4535 = vmatpush.xpose.msra.mxu0 0.0
    %4536 = vmatpush.xpose.msra.mxu0 0.0
    %4537 = vmatpush.xpose.msra.mxu0 0.0
    %4538 = vmatpush.xpose.msra.mxu0 0.0
    %4539 = vmatpush.xpose.msra.mxu0 0.0
    %4540 = vmatpush.xpose.msra.mxu0 0.0
    %4541 = vmatpush.xpose.msra.mxu0 %v4524
    %4542 = vmatmul.f32.gmra.mxu0 %v4522
    %v4543 = vpop.f32.mrf.mxu0
    %v4544 = vadd.f32 0.0, %v4543
    %4545 = vdwg.mxu0
    %v4546 = vsel %vm3146, %v4544, -inf
    %4547 = vmax.xlane.f32.xlu0 %v4546
    %v4548 = vpop.xlane.xlu0 %4547
    %v4549 = vsub.f32 %v4544, %v4548
    %v4550 = vmul.f32 %v4549, 1.442695
    %v4551 = vpow.pop %v4550
    %v4552 = vsel %vm3146, %v4551, 0.0
    %4553 = vadd.xlane.f32.xlu0 %v4552
    %v4554 = vpop.xlane.xlu0 %4553
    %v4555 = vrcp.pop %v4554
    %v4556 = vmul.f32 %v4554, %v4555
    %v4557 = vsub.f32 1.0, %v4556
    %v4558 = vmul.f32 %v4555, %v4557
    %v4559 = vadd.f32 %v4555, %v4558
    %vm4560 = vweird.f32 %v4554
    %vm4561 = vweird.f32 %v4555
    %vm4562 = vmor %vm4560, %vm4561
    %v4563 = vsel %vm4562, %v4555, %v4559
    %v4564 = vand.u32 2147483647, %v4554
    %vm4565 = vcmp.eq.f32.partialorder %v4564, 8.507059e+37
    %v4566 = vand.u32 %v4554, 2147483648
    %v4567 = vor.u32 1.1754944e-38, %v4566
    %v4568 = vsel %vm4565, %v4567, %v4563
    %v4569 = vmul.f32 %v4551, %v4568
    %v4570 = vadd.f32 %v4444, %v4569
    %4571 = vrot.lane.b32.xlu0 %v4313, 112
    %v4572 = vpop.permute.xlu0 %4571
    %v4575 = vsel %vm3146, %v4569, 0
    %4577 = vmatpush.msra.mxu0 0.0
    %4578 = vmatpush.msra.mxu0 0.0
    %4579 = vmatpush.msra.mxu0 0.0
    %4580 = vmatpush.msra.mxu0 0.0
    %4581 = vmatpush.msra.mxu0 0.0
    %4582 = vmatpush.msra.mxu0 0.0
    %4583 = vmatpush.msra.mxu0 0.0
    %4584 = vmatpush.msra.mxu0 0.0
    %4585 = vmatpush.msra.mxu0 0.0
    %4586 = vmatpush.msra.mxu0 0.0
    %4587 = vmatpush.msra.mxu0 0.0
    %4588 = vmatpush.msra.mxu0 0.0
    %4589 = vmatpush.msra.mxu0 0.0
    %4590 = vmatpush.msra.mxu0 0.0
    %4591 = vmatpush.msra.mxu0 0.0
    %4592 = vmatpush.msra.mxu0 %v4572
    %4593 = vmatmul.f32.gmra.mxu0 %v4575
    %v4594 = vpop.f32.mrf.mxu0
    %v4595 = vadd.f32 0.0, %v4594
    %4596 = vdwg.mxu0
    %v4598 = vsel %vm3146, %v4595, 0
    %4600 = vmatpush.msra.mxu0 0.0
    %4601 = vmatpush.msra.mxu0 0.0
    %4602 = vmatpush.msra.mxu0 0.0
    %4603 = vmatpush.msra.mxu0 0.0
    %4604 = vmatpush.msra.mxu0 0.0
    %4605 = vmatpush.msra.mxu0 0.0
    %4606 = vmatpush.msra.mxu0 0.0
    %4607 = vmatpush.msra.mxu0 0.0
    %4608 = vmatpush.msra.mxu0 0.0
    %4609 = vmatpush.msra.mxu0 0.0
    %4610 = vmatpush.msra.mxu0 0.0
    %4611 = vmatpush.msra.mxu0 0.0
    %4612 = vmatpush.msra.mxu0 0.0
    %4613 = vmatpush.msra.mxu0 0.0
    %4614 = vmatpush.msra.mxu0 0.0
    %4615 = vmatpush.msra.mxu0 %v3059
    %4616 = vmatmul.f32.gmra.mxu0 %v4598
    %v4617 = vpop.f32.mrf.mxu0
    %v4618 = vadd.f32 0.0, %v4617
    %4619 = vdwg.mxu0
    %v4620 = vadd.f32 %v4516, %v4618
    %4621 = vrot.lane.b32.xlu0 %v4315, 104
    %v4622 = vpop.permute.xlu0 %4621
    %4623 = vrot.lane.b32.xlu0 %v4293, 40
    %v4624 = vpop.permute.xlu0 %4623
    %v4625 = vsel %vm3146, %v4622, 0
    %v4627 = vsel %vm3146, %v4624, 0
    %4629 = vmatpush.xpose.msra.mxu0 0.0
    %4630 = vmatpush.xpose.msra.mxu0 0.0
    %4631 = vmatpush.xpose.msra.mxu0 0.0
    %4632 = vmatpush.xpose.msra.mxu0 0.0
    %4633 = vmatpush.xpose.msra.mxu0 0.0
    %4634 = vmatpush.xpose.msra.mxu0 0.0
    %4635 = vmatpush.xpose.msra.mxu0 0.0
    %4636 = vmatpush.xpose.msra.mxu0 0.0
    %4637 = vmatpush.xpose.msra.mxu0 0.0
    %4638 = vmatpush.xpose.msra.mxu0 0.0
    %4639 = vmatpush.xpose.msra.mxu0 0.0
    %4640 = vmatpush.xpose.msra.mxu0 0.0
    %4641 = vmatpush.xpose.msra.mxu0 0.0
    %4642 = vmatpush.xpose.msra.mxu0 0.0
    %4643 = vmatpush.xpose.msra.mxu0 0.0
    %4644 = vmatpush.xpose.msra.mxu0 %v4627
    %4645 = vmatmul.f32.gmra.mxu0 %v4625
    %v4646 = vpop.f32.mrf.mxu0
    %v4647 = vadd.f32 0.0, %v4646
    %4648 = vdwg.mxu0
    %v4649 = vsel %vm3146, %v4647, -inf
    %4650 = vmax.xlane.f32.xlu0 %v4649
    %v4651 = vpop.xlane.xlu0 %4650
    %v4652 = vsub.f32 %v4647, %v4651
    %v4653 = vmul.f32 %v4652, 1.442695
    %v4654 = vpow.pop %v4653
    %v4655 = vsel %vm3146, %v4654, 0.0
    %4656 = vadd.xlane.f32.xlu0 %v4655
    %v4657 = vpop.xlane.xlu0 %4656
    %v4658 = vrcp.pop %v4657
    %v4659 = vmul.f32 %v4657, %v4658
    %v4660 = vsub.f32 1.0, %v4659
    %v4661 = vmul.f32 %v4658, %v4660
    %v4662 = vadd.f32 %v4658, %v4661
    %vm4663 = vweird.f32 %v4657
    %vm4664 = vweird.f32 %v4658
    %vm4665 = vmor %vm4663, %vm4664
    %v4666 = vsel %vm4665, %v4658, %v4662
    %v4667 = vand.u32 2147483647, %v4657
    %vm4668 = vcmp.eq.f32.partialorder %v4667, 8.507059e+37
    %v4669 = vand.u32 %v4657, 2147483648
    %v4670 = vor.u32 1.1754944e-38, %v4669
    %v4671 = vsel %vm4668, %v4670, %v4666
    %v4672 = vmul.f32 %v4654, %v4671
    %v4673 = vadd.f32 %v4570, %v4672
    %4674 = vrot.lane.b32.xlu0 %v4313, 104
    %v4675 = vpop.permute.xlu0 %4674
    %v4678 = vsel %vm3146, %v4672, 0
    %4680 = vmatpush.msra.mxu0 0.0
    %4681 = vmatpush.msra.mxu0 0.0
    %4682 = vmatpush.msra.mxu0 0.0
    %4683 = vmatpush.msra.mxu0 0.0
    %4684 = vmatpush.msra.mxu0 0.0
    %4685 = vmatpush.msra.mxu0 0.0
    %4686 = vmatpush.msra.mxu0 0.0
    %4687 = vmatpush.msra.mxu0 0.0
    %4688 = vmatpush.msra.mxu0 0.0
    %4689 = vmatpush.msra.mxu0 0.0
    %4690 = vmatpush.msra.mxu0 0.0
    %4691 = vmatpush.msra.mxu0 0.0
    %4692 = vmatpush.msra.mxu0 0.0
    %4693 = vmatpush.msra.mxu0 0.0
    %4694 = vmatpush.msra.mxu0 0.0
    %4695 = vmatpush.msra.mxu0 %v4675
    %4696 = vmatmul.f32.gmra.mxu0 %v4678
    %v4697 = vpop.f32.mrf.mxu0
    %v4698 = vadd.f32 0.0, %v4697
    %4699 = vdwg.mxu0
    %v4701 = vsel %vm3146, %v4698, 0
    %4703 = vmatpush.msra.mxu0 0.0
    %4704 = vmatpush.msra.mxu0 0.0
    %4705 = vmatpush.msra.mxu0 0.0
    %4706 = vmatpush.msra.mxu0 0.0
    %4707 = vmatpush.msra.mxu0 0.0
    %4708 = vmatpush.msra.mxu0 0.0
    %4709 = vmatpush.msra.mxu0 0.0
    %4710 = vmatpush.msra.mxu0 0.0
    %4711 = vmatpush.msra.mxu0 0.0
    %4712 = vmatpush.msra.mxu0 0.0
    %4713 = vmatpush.msra.mxu0 0.0
    %4714 = vmatpush.msra.mxu0 0.0
    %4715 = vmatpush.msra.mxu0 0.0
    %4716 = vmatpush.msra.mxu0 0.0
    %4717 = vmatpush.msra.mxu0 0.0
    %4718 = vmatpush.msra.mxu0 %v3060
    %4719 = vmatmul.f32.gmra.mxu0 %v4701
    %v4720 = vpop.f32.mrf.mxu0
    %v4721 = vadd.f32 0.0, %v4720
    %4722 = vdwg.mxu0
    %v4723 = vadd.f32 %v4620, %v4721
    %4724 = vrot.lane.b32.xlu0 %v4315, 96
    %v4725 = vpop.permute.xlu0 %4724
    %4726 = vrot.lane.b32.xlu0 %v4293, 32
    %v4727 = vpop.permute.xlu0 %4726
    %v4728 = vsel %vm3146, %v4725, 0
    %v4730 = vsel %vm3146, %v4727, 0
    %4732 = vmatpush.xpose.msra.mxu0 0.0
    %4733 = vmatpush.xpose.msra.mxu0 0.0
    %4734 = vmatpush.xpose.msra.mxu0 0.0
    %4735 = vmatpush.xpose.msra.mxu0 0.0
    %4736 = vmatpush.xpose.msra.mxu0 0.0
    %4737 = vmatpush.xpose.msra.mxu0 0.0
    %4738 = vmatpush.xpose.msra.mxu0 0.0
    %4739 = vmatpush.xpose.msra.mxu0 0.0
    %4740 = vmatpush.xpose.msra.mxu0 0.0
    %4741 = vmatpush.xpose.msra.mxu0 0.0
    %4742 = vmatpush.xpose.msra.mxu0 0.0
    %4743 = vmatpush.xpose.msra.mxu0 0.0
    %4744 = vmatpush.xpose.msra.mxu0 0.0
    %4745 = vmatpush.xpose.msra.mxu0 0.0
    %4746 = vmatpush.xpose.msra.mxu0 0.0
    %4747 = vmatpush.xpose.msra.mxu0 %v4730
    %4748 = vmatmul.f32.gmra.mxu0 %v4728
    %v4749 = vpop.f32.mrf.mxu0
    %v4750 = vadd.f32 0.0, %v4749
    %4751 = vdwg.mxu0
    %v4752 = vsel %vm3146, %v4750, -inf
    %4753 = vmax.xlane.f32.xlu0 %v4752
    %v4754 = vpop.xlane.xlu0 %4753
    %v4755 = vsub.f32 %v4750, %v4754
    %v4756 = vmul.f32 %v4755, 1.442695
    %v4757 = vpow.pop %v4756
    %v4758 = vsel %vm3146, %v4757, 0.0
    %4759 = vadd.xlane.f32.xlu0 %v4758
    %v4760 = vpop.xlane.xlu0 %4759
    %v4761 = vrcp.pop %v4760
    %v4762 = vmul.f32 %v4760, %v4761
    %v4763 = vsub.f32 1.0, %v4762
    %v4764 = vmul.f32 %v4761, %v4763
    %v4765 = vadd.f32 %v4761, %v4764
    %vm4766 = vweird.f32 %v4760
    %vm4767 = vweird.f32 %v4761
    %vm4768 = vmor %vm4766, %vm4767
    %v4769 = vsel %vm4768, %v4761, %v4765
    %v4770 = vand.u32 2147483647, %v4760
    %vm4771 = vcmp.eq.f32.partialorder %v4770, 8.507059e+37
    %v4772 = vand.u32 %v4760, 2147483648
    %v4773 = vor.u32 1.1754944e-38, %v4772
    %v4774 = vsel %vm4771, %v4773, %v4769
    %v4775 = vmul.f32 %v4757, %v4774
    %v4776 = vadd.f32 %v4673, %v4775
    %4777 = vrot.lane.b32.xlu0 %v4313, 96
    %v4778 = vpop.permute.xlu0 %4777
    %v4781 = vsel %vm3146, %v4775, 0
    %4783 = vmatpush.msra.mxu0 0.0
    %4784 = vmatpush.msra.mxu0 0.0
    %4785 = vmatpush.msra.mxu0 0.0
    %4786 = vmatpush.msra.mxu0 0.0
    %4787 = vmatpush.msra.mxu0 0.0
    %4788 = vmatpush.msra.mxu0 0.0
    %4789 = vmatpush.msra.mxu0 0.0
    %4790 = vmatpush.msra.mxu0 0.0
    %4791 = vmatpush.msra.mxu0 0.0
    %4792 = vmatpush.msra.mxu0 0.0
    %4793 = vmatpush.msra.mxu0 0.0
    %4794 = vmatpush.msra.mxu0 0.0
    %4795 = vmatpush.msra.mxu0 0.0
    %4796 = vmatpush.msra.mxu0 0.0
    %4797 = vmatpush.msra.mxu0 0.0
    %4798 = vmatpush.msra.mxu0 %v4778
    %4799 = vmatmul.f32.gmra.mxu0 %v4781
    %v4800 = vpop.f32.mrf.mxu0
    %v4801 = vadd.f32 0.0, %v4800
    %4802 = vdwg.mxu0
    %v4804 = vsel %vm3146, %v4801, 0
    %4806 = vmatpush.msra.mxu0 0.0
    %4807 = vmatpush.msra.mxu0 0.0
    %4808 = vmatpush.msra.mxu0 0.0
    %4809 = vmatpush.msra.mxu0 0.0
    %4810 = vmatpush.msra.mxu0 0.0
    %4811 = vmatpush.msra.mxu0 0.0
    %4812 = vmatpush.msra.mxu0 0.0
    %4813 = vmatpush.msra.mxu0 0.0
    %4814 = vmatpush.msra.mxu0 0.0
    %4815 = vmatpush.msra.mxu0 0.0
    %4816 = vmatpush.msra.mxu0 0.0
    %4817 = vmatpush.msra.mxu0 0.0
    %4818 = vmatpush.msra.mxu0 0.0
    %4819 = vmatpush.msra.mxu0 0.0
    %4820 = vmatpush.msra.mxu0 0.0
    %4821 = vmatpush.msra.mxu0 %v3061
    %4822 = vmatmul.f32.gmra.mxu0 %v4804
    %v4823 = vpop.f32.mrf.mxu0
    %v4824 = vadd.f32 0.0, %v4823
    %4825 = vdwg.mxu0
    %v4826 = vadd.f32 %v4723, %v4824
    %4827 = vrot.lane.b32.xlu0 %v4315, 88
    %v4828 = vpop.permute.xlu0 %4827
    %4829 = vrot.lane.b32.xlu0 %v4293, 24
    %v4830 = vpop.permute.xlu0 %4829
    %v4831 = vsel %vm3146, %v4828, 0
    %v4833 = vsel %vm3146, %v4830, 0
    %4835 = vmatpush.xpose.msra.mxu0 0.0
    %4836 = vmatpush.xpose.msra.mxu0 0.0
    %4837 = vmatpush.xpose.msra.mxu0 0.0
    %4838 = vmatpush.xpose.msra.mxu0 0.0
    %4839 = vmatpush.xpose.msra.mxu0 0.0
    %4840 = vmatpush.xpose.msra.mxu0 0.0
    %4841 = vmatpush.xpose.msra.mxu0 0.0
    %4842 = vmatpush.xpose.msra.mxu0 0.0
    %4843 = vmatpush.xpose.msra.mxu0 0.0
    %4844 = vmatpush.xpose.msra.mxu0 0.0
    %4845 = vmatpush.xpose.msra.mxu0 0.0
    %4846 = vmatpush.xpose.msra.mxu0 0.0
    %4847 = vmatpush.xpose.msra.mxu0 0.0
    %4848 = vmatpush.xpose.msra.mxu0 0.0
    %4849 = vmatpush.xpose.msra.mxu0 0.0
    %4850 = vmatpush.xpose.msra.mxu0 %v4833
    %4851 = vmatmul.f32.gmra.mxu0 %v4831
    %v4852 = vpop.f32.mrf.mxu0
    %v4853 = vadd.f32 0.0, %v4852
    %4854 = vdwg.mxu0
    %v4855 = vsel %vm3146, %v4853, -inf
    %4856 = vmax.xlane.f32.xlu0 %v4855
    %v4857 = vpop.xlane.xlu0 %4856
    %v4858 = vsub.f32 %v4853, %v4857
    %v4859 = vmul.f32 %v4858, 1.442695
    %v4860 = vpow.pop %v4859
    %v4861 = vsel %vm3146, %v4860, 0.0
    %4862 = vadd.xlane.f32.xlu0 %v4861
    %v4863 = vpop.xlane.xlu0 %4862
    %v4864 = vrcp.pop %v4863
    %v4865 = vmul.f32 %v4863, %v4864
    %v4866 = vsub.f32 1.0, %v4865
    %v4867 = vmul.f32 %v4864, %v4866
    %v4868 = vadd.f32 %v4864, %v4867
    %vm4869 = vweird.f32 %v4863
    %vm4870 = vweird.f32 %v4864
    %vm4871 = vmor %vm4869, %vm4870
    %v4872 = vsel %vm4871, %v4864, %v4868
    %v4873 = vand.u32 2147483647, %v4863
    %vm4874 = vcmp.eq.f32.partialorder %v4873, 8.507059e+37
    %v4875 = vand.u32 %v4863, 2147483648
    %v4876 = vor.u32 1.1754944e-38, %v4875
    %v4877 = vsel %vm4874, %v4876, %v4872
    %v4878 = vmul.f32 %v4860, %v4877
    %v4879 = vadd.f32 %v4776, %v4878
    %4880 = vrot.lane.b32.xlu0 %v4313, 88
    %v4881 = vpop.permute.xlu0 %4880
    %v4884 = vsel %vm3146, %v4878, 0
    %4886 = vmatpush.msra.mxu0 0.0
    %4887 = vmatpush.msra.mxu0 0.0
    %4888 = vmatpush.msra.mxu0 0.0
    %4889 = vmatpush.msra.mxu0 0.0
    %4890 = vmatpush.msra.mxu0 0.0
    %4891 = vmatpush.msra.mxu0 0.0
    %4892 = vmatpush.msra.mxu0 0.0
    %4893 = vmatpush.msra.mxu0 0.0
    %4894 = vmatpush.msra.mxu0 0.0
    %4895 = vmatpush.msra.mxu0 0.0
    %4896 = vmatpush.msra.mxu0 0.0
    %4897 = vmatpush.msra.mxu0 0.0
    %4898 = vmatpush.msra.mxu0 0.0
    %4899 = vmatpush.msra.mxu0 0.0
    %4900 = vmatpush.msra.mxu0 0.0
    %4901 = vmatpush.msra.mxu0 %v4881
    %4902 = vmatmul.f32.gmra.mxu0 %v4884
    %v4903 = vpop.f32.mrf.mxu0
    %v4904 = vadd.f32 0.0, %v4903
    %4905 = vdwg.mxu0
    %v4907 = vsel %vm3146, %v4904, 0
    %4909 = vmatpush.msra.mxu0 0.0
    %4910 = vmatpush.msra.mxu0 0.0
    %4911 = vmatpush.msra.mxu0 0.0
    %4912 = vmatpush.msra.mxu0 0.0
    %4913 = vmatpush.msra.mxu0 0.0
    %4914 = vmatpush.msra.mxu0 0.0
    %4915 = vmatpush.msra.mxu0 0.0
    %4916 = vmatpush.msra.mxu0 0.0
    %4917 = vmatpush.msra.mxu0 0.0
    %4918 = vmatpush.msra.mxu0 0.0
    %4919 = vmatpush.msra.mxu0 0.0
    %4920 = vmatpush.msra.mxu0 0.0
    %4921 = vmatpush.msra.mxu0 0.0
    %4922 = vmatpush.msra.mxu0 0.0
    %4923 = vmatpush.msra.mxu0 0.0
    %4924 = vmatpush.msra.mxu0 %v3062
    %4925 = vmatmul.f32.gmra.mxu0 %v4907
    %v4926 = vpop.f32.mrf.mxu0
    %v4927 = vadd.f32 0.0, %v4926
    %4928 = vdwg.mxu0
    %v4929 = vadd.f32 %v4826, %v4927
    %4930 = vrot.lane.b32.xlu0 %v4315, 80
    %v4931 = vpop.permute.xlu0 %4930
    %4932 = vrot.lane.b32.xlu0 %v4293, 16
    %v4933 = vpop.permute.xlu0 %4932
    %v4934 = vsel %vm3146, %v4931, 0
    %v4936 = vsel %vm3146, %v4933, 0
    %4938 = vmatpush.xpose.msra.mxu0 0.0
    %4939 = vmatpush.xpose.msra.mxu0 0.0
    %4940 = vmatpush.xpose.msra.mxu0 0.0
    %4941 = vmatpush.xpose.msra.mxu0 0.0
    %4942 = vmatpush.xpose.msra.mxu0 0.0
    %4943 = vmatpush.xpose.msra.mxu0 0.0
    %4944 = vmatpush.xpose.msra.mxu0 0.0
    %4945 = vmatpush.xpose.msra.mxu0 0.0
    %4946 = vmatpush.xpose.msra.mxu0 0.0
    %4947 = vmatpush.xpose.msra.mxu0 0.0
    %4948 = vmatpush.xpose.msra.mxu0 0.0
    %4949 = vmatpush.xpose.msra.mxu0 0.0
    %4950 = vmatpush.xpose.msra.mxu0 0.0
    %4951 = vmatpush.xpose.msra.mxu0 0.0
    %4952 = vmatpush.xpose.msra.mxu0 0.0
    %4953 = vmatpush.xpose.msra.mxu0 %v4936
    %4954 = vmatmul.f32.gmra.mxu0 %v4934
    %v4955 = vpop.f32.mrf.mxu0
    %v4956 = vadd.f32 0.0, %v4955
    %4957 = vdwg.mxu0
    %v4958 = vsel %vm3146, %v4956, -inf
    %4959 = vmax.xlane.f32.xlu0 %v4958
    %v4960 = vpop.xlane.xlu0 %4959
    %v4961 = vsub.f32 %v4956, %v4960
    %v4962 = vmul.f32 %v4961, 1.442695
    %v4963 = vpow.pop %v4962
    %v4964 = vsel %vm3146, %v4963, 0.0
    %4965 = vadd.xlane.f32.xlu0 %v4964
    %v4966 = vpop.xlane.xlu0 %4965
    %v4967 = vrcp.pop %v4966
    %v4968 = vmul.f32 %v4966, %v4967
    %v4969 = vsub.f32 1.0, %v4968
    %v4970 = vmul.f32 %v4967, %v4969
    %v4971 = vadd.f32 %v4967, %v4970
    %vm4972 = vweird.f32 %v4966
    %vm4973 = vweird.f32 %v4967
    %vm4974 = vmor %vm4972, %vm4973
    %v4975 = vsel %vm4974, %v4967, %v4971
    %v4976 = vand.u32 2147483647, %v4966
    %vm4977 = vcmp.eq.f32.partialorder %v4976, 8.507059e+37
    %v4978 = vand.u32 %v4966, 2147483648
    %v4979 = vor.u32 1.1754944e-38, %v4978
    %v4980 = vsel %vm4977, %v4979, %v4975
    %v4981 = vmul.f32 %v4963, %v4980
    %v4982 = vadd.f32 %v4879, %v4981
    %4983 = vrot.lane.b32.xlu0 %v4313, 80
    %v4984 = vpop.permute.xlu0 %4983
    %v4987 = vsel %vm3146, %v4981, 0
    %4989 = vmatpush.msra.mxu0 0.0
    %4990 = vmatpush.msra.mxu0 0.0
    %4991 = vmatpush.msra.mxu0 0.0
    %4992 = vmatpush.msra.mxu0 0.0
    %4993 = vmatpush.msra.mxu0 0.0
    %4994 = vmatpush.msra.mxu0 0.0
    %4995 = vmatpush.msra.mxu0 0.0
    %4996 = vmatpush.msra.mxu0 0.0
    %4997 = vmatpush.msra.mxu0 0.0
    %4998 = vmatpush.msra.mxu0 0.0
    %4999 = vmatpush.msra.mxu0 0.0
    %5000 = vmatpush.msra.mxu0 0.0
    %5001 = vmatpush.msra.mxu0 0.0
    %5002 = vmatpush.msra.mxu0 0.0
    %5003 = vmatpush.msra.mxu0 0.0
    %5004 = vmatpush.msra.mxu0 %v4984
    %5005 = vmatmul.f32.gmra.mxu0 %v4987
    %v5006 = vpop.f32.mrf.mxu0
    %v5007 = vadd.f32 0.0, %v5006
    %5008 = vdwg.mxu0
    %v5010 = vsel %vm3146, %v5007, 0
    %5012 = vmatpush.msra.mxu0 0.0
    %5013 = vmatpush.msra.mxu0 0.0
    %5014 = vmatpush.msra.mxu0 0.0
    %5015 = vmatpush.msra.mxu0 0.0
    %5016 = vmatpush.msra.mxu0 0.0
    %5017 = vmatpush.msra.mxu0 0.0
    %5018 = vmatpush.msra.mxu0 0.0
    %5019 = vmatpush.msra.mxu0 0.0
    %5020 = vmatpush.msra.mxu0 0.0
    %5021 = vmatpush.msra.mxu0 0.0
    %5022 = vmatpush.msra.mxu0 0.0
    %5023 = vmatpush.msra.mxu0 0.0
    %5024 = vmatpush.msra.mxu0 0.0
    %5025 = vmatpush.msra.mxu0 0.0
    %5026 = vmatpush.msra.mxu0 0.0
    %5027 = vmatpush.msra.mxu0 %v3063
    %5028 = vmatmul.f32.gmra.mxu0 %v5010
    %v5029 = vpop.f32.mrf.mxu0
    %v5030 = vadd.f32 0.0, %v5029
    %5031 = vdwg.mxu0
    %v5032 = vadd.f32 %v4929, %v5030
    %5033 = vrot.lane.b32.xlu0 %v4315, 72
    %v5034 = vpop.permute.xlu0 %5033
    %5035 = vrot.lane.b32.xlu0 %v4293, 8
    %v5036 = vpop.permute.xlu0 %5035
    %v5037 = vsel %vm3146, %v5034, 0
    %v5039 = vsel %vm3146, %v5036, 0
    %5041 = vmatpush.xpose.msra.mxu0 0.0
    %5042 = vmatpush.xpose.msra.mxu0 0.0
    %5043 = vmatpush.xpose.msra.mxu0 0.0
    %5044 = vmatpush.xpose.msra.mxu0 0.0
    %5045 = vmatpush.xpose.msra.mxu0 0.0
    %5046 = vmatpush.xpose.msra.mxu0 0.0
    %5047 = vmatpush.xpose.msra.mxu0 0.0
    %5048 = vmatpush.xpose.msra.mxu0 0.0
    %5049 = vmatpush.xpose.msra.mxu0 0.0
    %5050 = vmatpush.xpose.msra.mxu0 0.0
    %5051 = vmatpush.xpose.msra.mxu0 0.0
    %5052 = vmatpush.xpose.msra.mxu0 0.0
    %5053 = vmatpush.xpose.msra.mxu0 0.0
    %5054 = vmatpush.xpose.msra.mxu0 0.0
    %5055 = vmatpush.xpose.msra.mxu0 0.0
    %5056 = vmatpush.xpose.msra.mxu0 %v5039
    %5057 = vmatmul.f32.gmra.mxu0 %v5037
    %v5058 = vpop.f32.mrf.mxu0
    %v5059 = vadd.f32 0.0, %v5058
    %5060 = vdwg.mxu0
    %v5061 = vsel %vm3146, %v5059, -inf
    %5062 = vmax.xlane.f32.xlu0 %v5061
    %v5063 = vpop.xlane.xlu0 %5062
    %v5064 = vsub.f32 %v5059, %v5063
    %v5065 = vmul.f32 %v5064, 1.442695
    %v5066 = vpow.pop %v5065
    %v5067 = vsel %vm3146, %v5066, 0.0
    %5068 = vadd.xlane.f32.xlu0 %v5067
    %v5069 = vpop.xlane.xlu0 %5068
    %v5070 = vrcp.pop %v5069
    %v5071 = vmul.f32 %v5069, %v5070
    %v5072 = vsub.f32 1.0, %v5071
    %v5073 = vmul.f32 %v5070, %v5072
    %v5074 = vadd.f32 %v5070, %v5073
    %vm5075 = vweird.f32 %v5069
    %vm5076 = vweird.f32 %v5070
    %vm5077 = vmor %vm5075, %vm5076
    %v5078 = vsel %vm5077, %v5070, %v5074
    %v5079 = vand.u32 2147483647, %v5069
    %vm5080 = vcmp.eq.f32.partialorder %v5079, 8.507059e+37
    %v5081 = vand.u32 %v5069, 2147483648
    %v5082 = vor.u32 1.1754944e-38, %v5081
    %v5083 = vsel %vm5080, %v5082, %v5078
    %v5084 = vmul.f32 %v5066, %v5083
    %v5085 = vadd.f32 %v4982, %v5084
    %5086 = vrot.lane.b32.xlu0 %v4313, 72
    %v5087 = vpop.permute.xlu0 %5086
    %v5090 = vsel %vm3146, %v5084, 0
    %5092 = vmatpush.msra.mxu0 0.0
    %5093 = vmatpush.msra.mxu0 0.0
    %5094 = vmatpush.msra.mxu0 0.0
    %5095 = vmatpush.msra.mxu0 0.0
    %5096 = vmatpush.msra.mxu0 0.0
    %5097 = vmatpush.msra.mxu0 0.0
    %5098 = vmatpush.msra.mxu0 0.0
    %5099 = vmatpush.msra.mxu0 0.0
    %5100 = vmatpush.msra.mxu0 0.0
    %5101 = vmatpush.msra.mxu0 0.0
    %5102 = vmatpush.msra.mxu0 0.0
    %5103 = vmatpush.msra.mxu0 0.0
    %5104 = vmatpush.msra.mxu0 0.0
    %5105 = vmatpush.msra.mxu0 0.0
    %5106 = vmatpush.msra.mxu0 0.0
    %5107 = vmatpush.msra.mxu0 %v5087
    %5108 = vmatmul.f32.gmra.mxu0 %v5090
    %v5109 = vpop.f32.mrf.mxu0
    %v5110 = vadd.f32 0.0, %v5109
    %5111 = vdwg.mxu0
    %v5113 = vsel %vm3146, %v5110, 0
    %5115 = vmatpush.msra.mxu0 0.0
    %5116 = vmatpush.msra.mxu0 0.0
    %5117 = vmatpush.msra.mxu0 0.0
    %5118 = vmatpush.msra.mxu0 0.0
    %5119 = vmatpush.msra.mxu0 0.0
    %5120 = vmatpush.msra.mxu0 0.0
    %5121 = vmatpush.msra.mxu0 0.0
    %5122 = vmatpush.msra.mxu0 0.0
    %5123 = vmatpush.msra.mxu0 0.0
    %5124 = vmatpush.msra.mxu0 0.0
    %5125 = vmatpush.msra.mxu0 0.0
    %5126 = vmatpush.msra.mxu0 0.0
    %5127 = vmatpush.msra.mxu0 0.0
    %5128 = vmatpush.msra.mxu0 0.0
    %5129 = vmatpush.msra.mxu0 0.0
    %5130 = vmatpush.msra.mxu0 %v3064
    %5131 = vmatmul.f32.gmra.mxu0 %v5113
    %v5132 = vpop.f32.mrf.mxu0
    %v5133 = vadd.f32 0.0, %v5132
    %5134 = vdwg.mxu0
    %v5135 = vadd.f32 %v5032, %v5133
    %v5136 = vmul.f32 %v5085, 0.125
    %s5137 = scalar_lea.vmem [#allocation14], 8
    %5138 = vst.msk [vmem:[%s5137] sm:$0xff] %vm3146, %v5136
    %v5140 = vrot.slane %v5135, 7
    %v5141 = vrot.slane %v5135, 1
    %v5142 = vrot.slane %v5135, 2
    %v5143 = vrot.slane %v5135, 3
    %v5144 = vrot.slane %v5135, 4
    %v5145 = vrot.slane %v5135, 5
    %v5146 = vrot.slane %v5135, 6
    %v5155 = vadd.f32 %v3032, %v5140
    %v5156 = vadd.f32 %v3033, %v5135
    %v5157 = vadd.f32 %v3034, %v5141
    %v5158 = vadd.f32 %v3035, %v5142
    %v5159 = vadd.f32 %v3036, %v5143
    %v5160 = vadd.f32 %v3037, %v5144
    %v5161 = vadd.f32 %v3038, %v5145
    %v5162 = vadd.f32 %v3039, %v5146
    %v5163 = vadd.f32 %v5155, %v3991
    %v5164 = vadd.f32 %v5156, %v3991
    %v5165 = vadd.f32 %v5157, %v3991
    %v5166 = vadd.f32 %v5158, %v3991
    %v5167 = vadd.f32 %v5159, %v3991
    %v5168 = vadd.f32 %v5160, %v3991
    %v5169 = vadd.f32 %v5161, %v3991
    %v5170 = vadd.f32 %v5162, %v3991
    %v5171 = vld [vmem:[%s11] sm:$0xff]
    %v5172 = vld [vmem:[%s11 + $0x8] sm:$0xff]
    %v5173 = vld [vmem:[%s11 + $0x10] sm:$0xff]
    %v5174 = vld [vmem:[%s11 + $0x18] sm:$0xff]
    %v5175 = vld [vmem:[%s11 + $0x20] sm:$0xff]
    %v5176 = vld [vmem:[%s11 + $0x28] sm:$0xff]
    %v5177 = vld [vmem:[%s11 + $0x30] sm:$0xff]
    %v5178 = vld [vmem:[%s11 + $0x38] sm:$0xff]
    %v5179 = vld [vmem:[%s12] sm:$0x1]
    %v5181 = vperm.slane %v5179, 0
    %v5191 = vrot.slane %v5163, 1
    %v5192 = vsel %vm3080, %v5164, %v5191
    %v5193 = vrot.slane %v5165, 7
    %v5194 = vsel %vm3083, %v5193, %v5192
    %v5195 = vrot.slane %v5166, 6
    %v5196 = vsel %vm3086, %v5195, %v5194
    %v5197 = vrot.slane %v5167, 5
    %v5198 = vsel %vm3089, %v5197, %v5196
    %v5199 = vrot.slane %v5168, 4
    %v5200 = vsel %vm3092, %v5199, %v5198
    %v5201 = vrot.slane %v5169, 3
    %v5202 = vsel %vm3095, %v5201, %v5200
    %v5203 = vrot.slane %v5170, 2
    %v5204 = vsel %vm3098, %v5203, %v5202
    %v5205 = vsel %vm345, %v5204, 0
    %5207 = vmatpush.msra.mxu0 0.0
    %5208 = vmatpush.msra.mxu0 0.0
    %5209 = vmatpush.msra.mxu0 0.0
    %5210 = vmatpush.msra.mxu0 0.0
    %5211 = vmatpush.msra.mxu0 0.0
    %5212 = vmatpush.msra.mxu0 0.0
    %5213 = vmatpush.msra.mxu0 0.0
    %5214 = vmatpush.msra.mxu0 0.0
    %5215 = vmatpush.msra.mxu0 %v5178
    %5216 = vmatpush.msra.mxu0 %v5177
    %5217 = vmatpush.msra.mxu0 %v5176
    %5218 = vmatpush.msra.mxu0 %v5175
    %5219 = vmatpush.msra.mxu0 %v5174
    %5220 = vmatpush.msra.mxu0 %v5173
    %5221 = vmatpush.msra.mxu0 %v5172
    %5222 = vmatpush.msra.mxu0 %v5171
    %5223 = vmatmul.f32.gmra.mxu0 %v5205
    %v5224 = vpop.f32.mrf.mxu0
    %v5225 = vadd.f32 %v5181, %v5224
    %5226 = vdwg.mxu0
    %v5227 = vmax.f32 %v5225, 0.0
    %v5228 = vld [vmem:[%s13] sm:$0xff]
    %v5229 = vld [vmem:[%s13 + $0x8] sm:$0xff]
    %v5230 = vld [vmem:[%s13 + $0x10] sm:$0xff]
    %v5231 = vld [vmem:[%s13 + $0x18] sm:$0xff]
    %v5232 = vld [vmem:[%s14] sm:$0x1]
    %v5234 = vperm.slane %v5232, 0
    %v5237 = vsel %vm3031, %v5227, 0
    %5239 = vmatpush.msra.mxu0 0.0
    %5240 = vmatpush.msra.mxu0 0.0
    %5241 = vmatpush.msra.mxu0 0.0
    %5242 = vmatpush.msra.mxu0 0.0
    %5243 = vmatpush.msra.mxu0 0.0
    %5244 = vmatpush.msra.mxu0 0.0
    %5245 = vmatpush.msra.mxu0 0.0
    %5246 = vmatpush.msra.mxu0 0.0
    %5247 = vmatpush.msra.mxu0 0.0
    %5248 = vmatpush.msra.mxu0 0.0
    %5249 = vmatpush.msra.mxu0 0.0
    %5250 = vmatpush.msra.mxu0 0.0
    %5251 = vmatpush.msra.mxu0 %v5231
    %5252 = vmatpush.msra.mxu0 %v5230
    %5253 = vmatpush.msra.mxu0 %v5229
    %5254 = vmatpush.msra.mxu0 %v5228
    %5255 = vmatmul.f32.gmra.mxu0 %v5237
    %v5256 = vpop.f32.mrf.mxu0
    %v5257 = vadd.f32 %v5234, %v5256
    %5258 = vdwg.mxu0
    %v5259 = vmax.f32 %v5257, 0.0
    %v5260 = vld [vmem:[%s15] sm:$0xff]
    %v5261 = vld [vmem:[%s15 + $0x8] sm:$0xff]
    %v5262 = vld [vmem:[%s16] sm:$0xff]
    %v5263 = vld [vmem:[%s16 + $0x8] sm:$0x1]
    %5265 = vset.pattern.permute.xlu0 0
    %5266 = vperm.xlu0 %5265, %v5262
    %v5267 = vpop.permute.xlu0 %5266
    %5270 = vset.pattern.permute.xlu0 0
    %5271 = vperm.xlu0 %5270, %v5263
    %v5272 = vpop.permute.xlu0 %5271
    %5274 = vxpose.xlu0.b32.start [1/16] %v5260, 128
    %5275 = vxpose.xlu0.b32.cont [2/16] %v5261, 128
    %5276 = vxpose.xlu0.b32.cont [3/16] 0.0, 128
    %5277 = vxpose.xlu0.b32.cont [4/16] 0.0, 128
    %5278 = vxpose.xlu0.b32.cont [5/16] 0.0, 128
    %5279 = vxpose.xlu0.b32.cont [6/16] 0.0, 128
    %5280 = vxpose.xlu0.b32.cont [7/16] 0.0, 128
    %5281 = vxpose.xlu0.b32.cont [8/16] 0.0, 128
    %5282 = vxpose.xlu0.b32.cont [9/16] 0.0, 128
    %5283 = vxpose.xlu0.b32.cont [10/16] 0.0, 128
    %5284 = vxpose.xlu0.b32.cont [11/16] 0.0, 128
    %5285 = vxpose.xlu0.b32.cont [12/16] 0.0, 128
    %5286 = vxpose.xlu0.b32.cont [13/16] 0.0, 128
    %5287 = vxpose.xlu0.b32.cont [14/16] 0.0, 128
    %5288 = vxpose.xlu0.b32.cont [15/16] 0.0, 128
    %5289 = vxpose.xlu0.b32.end [16/16] 0.0, 128
    %v5290 = vpop.trf.xlu0
    %v5291 = vpop.trf.xlu0
    %v5292 = vpop.trf.xlu0
    %v5293 = vpop.trf.xlu0
    %v5294 = vpop.trf.xlu0
    %v5295 = vpop.trf.xlu0
    %v5296 = vpop.trf.xlu0
    %v5297 = vpop.trf.xlu0
    %v5298 = vpop.trf.xlu0
    %v5299 = vpop.trf.xlu0
    %v5300 = vpop.trf.xlu0
    %v5301 = vpop.trf.xlu0
    %v5302 = vpop.trf.xlu0
    %v5303 = vpop.trf.xlu0
    %v5304 = vpop.trf.xlu0
    %v5305 = vpop.trf.xlu0
    %v5307 = vsel %vm4136, %v5290, 0
    %v5310 = vsel %vm4136, %v5291, 0
    %v5313 = vsel %vm4136, %v5259, 0
    %5315 = vmatpush.xpose.msra.mxu0 0.0
    %5316 = vmatpush.xpose.msra.mxu0 0.0
    %5317 = vmatpush.xpose.msra.mxu0 0.0
    %5318 = vmatpush.xpose.msra.mxu0 0.0
    %5319 = vmatpush.xpose.msra.mxu0 0.0
    %5320 = vmatpush.xpose.msra.mxu0 0.0
    %5321 = vmatpush.xpose.msra.mxu0 0.0
    %5322 = vmatpush.xpose.msra.mxu0 0.0
    %5323 = vmatpush.xpose.msra.mxu0 0.0
    %5324 = vmatpush.xpose.msra.mxu0 0.0
    %5325 = vmatpush.xpose.msra.mxu0 0.0
    %5326 = vmatpush.xpose.msra.mxu0 0.0
    %5327 = vmatpush.xpose.msra.mxu0 0.0
    %5328 = vmatpush.xpose.msra.mxu0 0.0
    %5329 = vmatpush.xpose.msra.mxu0 0.0
    %5330 = vmatpush.xpose.msra.mxu0 %v5313
    %5331 = vmatmul.f32.gmra.mxu0 %v5307
    %v5332 = vpop.f32.mrf.mxu0
    %v5333 = vadd.f32 %v5267, %v5332
    %5334 = vmatmul.f32.gmra.mxu0 %v5310
    %v5335 = vpop.f32.mrf.mxu0
    %v5336 = vadd.f32 %v5272, %v5335
    %5337 = vdwg.mxu0
    %v5338 = vmax.f32 %v5333, 0.0
    %v5339 = vmax.f32 %v5336, 0.0
    %v5340 = vld [vmem:[%s17] sm:$0xff]
    %v5341 = vld [vmem:[#allocation5] sm:$0x1]
    %5343 = vset.pattern.permute.xlu0 0
    %5344 = vperm.xlu0 %5343, %v5341
    %v5345 = vpop.permute.xlu0 %5344
    %v5347 = vperm.slane %v5345, 0
    %5348 = vxpose.xlu0.b32.start [1/16] %v5340, 128
    %5349 = vxpose.xlu0.b32.cont [2/16] 0.0, 128
    %5350 = vxpose.xlu0.b32.cont [3/16] 0.0, 128
    %5351 = vxpose.xlu0.b32.cont [4/16] 0.0, 128
    %5352 = vxpose.xlu0.b32.cont [5/16] 0.0, 128
    %5353 = vxpose.xlu0.b32.cont [6/16] 0.0, 128
    %5354 = vxpose.xlu0.b32.cont [7/16] 0.0, 128
    %5355 = vxpose.xlu0.b32.cont [8/16] 0.0, 128
    %5356 = vxpose.xlu0.b32.cont [9/16] 0.0, 128
    %5357 = vxpose.xlu0.b32.cont [10/16] 0.0, 128
    %5358 = vxpose.xlu0.b32.cont [11/16] 0.0, 128
    %5359 = vxpose.xlu0.b32.cont [12/16] 0.0, 128
    %5360 = vxpose.xlu0.b32.cont [13/16] 0.0, 128
    %5361 = vxpose.xlu0.b32.cont [14/16] 0.0, 128
    %5362 = vxpose.xlu0.b32.cont [15/16] 0.0, 128
    %5363 = vxpose.xlu0.b32.end [16/16] 0.0, 128
    %v5364 = vpop.trf.xlu0
    %v5365 = vpop.trf.xlu0
    %v5366 = vpop.trf.xlu0
    %v5367 = vpop.trf.xlu0
    %v5368 = vpop.trf.xlu0
    %v5369 = vpop.trf.xlu0
    %v5370 = vpop.trf.xlu0
    %v5371 = vpop.trf.xlu0
    %v5372 = vpop.trf.xlu0
    %v5373 = vpop.trf.xlu0
    %v5374 = vpop.trf.xlu0
    %v5375 = vpop.trf.xlu0
    %v5376 = vpop.trf.xlu0
    %v5377 = vpop.trf.xlu0
    %v5378 = vpop.trf.xlu0
    %v5379 = vpop.trf.xlu0
    %v5382 = vrot.slane %v5338, 1
    %v5383 = vrot.slane %v5339, 1
    %v5384 = vsel %vm4213, %v5382, %v5383
    %v5387 = vsel %vm3146, %v5364, 0
    %5389 = vmatpush.msra.mxu0 0.0
    %5390 = vmatpush.msra.mxu0 0.0
    %5391 = vmatpush.msra.mxu0 0.0
    %5392 = vmatpush.msra.mxu0 0.0
    %5393 = vmatpush.msra.mxu0 0.0
    %5394 = vmatpush.msra.mxu0 0.0
    %5395 = vmatpush.msra.mxu0 0.0
    %5396 = vmatpush.msra.mxu0 0.0
    %5397 = vmatpush.msra.mxu0 0.0
    %5398 = vmatpush.msra.mxu0 0.0
    %5399 = vmatpush.msra.mxu0 0.0
    %5400 = vmatpush.msra.mxu0 0.0
    %5401 = vmatpush.msra.mxu0 0.0
    %5402 = vmatpush.msra.mxu0 0.0
    %5403 = vmatpush.msra.mxu0 0.0
    %5404 = vmatpush.msra.mxu0 %v5384
    %5405 = vmatmul.f32.gmra.mxu0 %v5387
    %v5406 = vpop.f32.mrf.mxu0
    %v5407 = vadd.f32 %v5347, %v5406
    %5408 = vdwg.mxu0
    %v5409 = vmax.f32 %v5407, 0.0
    %vm5410 = vcmp.ne.f32.partialorder %v5407, %v5407
    %v5411 = vadd.f32 %v5407, 0.0
    %v5412 = vand.u32 2147483647, %v5407
    %v5413 = vsub.f32 0.0, %v5412
    %v5414 = vmul.f32 %v5413, 1.442695
    %v5415 = vpow.pop %v5414
    %v5416 = vadd.f32 %v5415, 1.0
    %v5417 = vlog2.pop %v5416
    %v5418 = vmul.f32 %v5417, 0.6931472
    %v5419 = vmul.f32 -0.5, %v5415
    %v5420 = vadd.f32 %v5419, 1.0
    %v5421 = vmul.f32 %v5420, %v5415
    %v5422 = vand.u32 2147483647, %v5415
    %vm5423 = vcmp.lt.f32.partialorder %v5422, 0.0004427343
    %v5424 = vsel %vm5423, %v5421, %v5418
    %v5425 = vadd.f32 %v5409, %v5424
    %v5426 = vsel %vm5410, %v5411, %v5425
    %v5428 = vrot.slane %v5333, 7
    %vm5430 = vcmask 1040384
    %v5431 = vsel %vm5430, %v4164, %v5428
    %vm5432 = vcmask 58368
    %5433 = vst.msk [vmem:[#allocation11] sm:$0x3] %vm5432, %v5431
    %v5435 = vrot.slane %v5426, 7
    %v5437 = vsel %vm5430, %v4258, %v5435
    %5438 = vst.msk [vmem:[#allocation12] sm:$0x3] %vm5432, %v5437
    // Predicated region
    $region86: #{bilstm_denoiser_forward.1} parent=1 // pred_check
      _
    $region87: #{bilstm_denoiser_forward.1} parent=1 // pred_check_branch
      %5440 = sbr.rel (0) target = $region89
    $region88: #{bilstm_denoiser_forward.1} parent=1 // pred_region
      %5442 = vsyncadd [#allocation8], 0
      %s5444 = sshll.u32 [#allocation11], 4
      %s5445 = int_to_ptr.vmem [resolvable:$true] %s5444
      %s5446 = sshll.u32 %s19, 4
      %s5447 = int_to_ptr.hbm [resolvable:$true] %s5446
      %5449 = dma.vmem_to_hbm [thread:$0]  %s5445, 32, %s5447, [#allocation8]
    $region89: #{bilstm_denoiser_forward.1} parent=1 // pred_fallthru
      _
    // Predicated region
    $region90: #{bilstm_denoiser_forward.1} parent=1 // pred_check
      _
    $region91: #{bilstm_denoiser_forward.1} parent=1 // pred_check_branch
      %5451 = sbr.rel (0) target = $region93
    $region92: #{bilstm_denoiser_forward.1} parent=1 // pred_region
      %5453 = vsyncadd [#allocation13], 0
      %s5455 = sshll.u32 [#allocation12], 4
      %s5456 = int_to_ptr.vmem [resolvable:$true] %s5455
      %s5457 = sshll.u32 %s20, 4
      %s5458 = int_to_ptr.hbm [resolvable:$true] %s5457
      %5460 = dma.vmem_to_hbm [thread:$0]  %s5456, 32, %s5458, [#allocation13]
    $region93: #{bilstm_denoiser_forward.1} parent=1 // pred_fallthru
      _
    // Predicated region
    $region94: #{bilstm_denoiser_forward.1} parent=1 // pred_check
      _
    $region95: #{bilstm_denoiser_forward.1} parent=1 // pred_check_branch
      %5462 = sbr.rel (0) target = $region97
    $region96: #{bilstm_denoiser_forward.1} parent=1 // pred_region
      %5464 = vsyncadd [#allocation13], 0
      %s5465 = sshll.u32 [#allocation14], 4
      %s5466 = int_to_ptr.vmem [resolvable:$true] %s5465
      %s5467 = sshll.u32 %s21, 4
      %s5468 = int_to_ptr.hbm [resolvable:$true] %s5467
      %5473 = dma.vmem_to_hbm [thread:$0]  %s5466, 256, %s5468, [#allocation13], 128, 128, 8
    $region97: #{bilstm_denoiser_forward.1} parent=1 // pred_fallthru
      _
    // Predicated region
    $region98: #{bilstm_denoiser_forward.1} parent=1 // pred_check
      _
    $region99: #{bilstm_denoiser_forward.1} parent=1 // pred_check_branch
      %5475 = sbr.rel (0) target = $region101
    $region100: #{bilstm_denoiser_forward.1} parent=1 // pred_region
      %5477 = dma.done [#allocation8], 32
    $region101: #{bilstm_denoiser_forward.1} parent=1 // pred_fallthru
      _
    // Predicated region
    $region102: #{bilstm_denoiser_forward.1} parent=1 // pred_check
      _
    $region103: #{bilstm_denoiser_forward.1} parent=1 // pred_check_branch
      %5479 = sbr.rel (0) target = $region105
    $region104: #{bilstm_denoiser_forward.1} parent=1 // pred_region
      %5481 = dma.done [#allocation13], 32
    $region105: #{bilstm_denoiser_forward.1} parent=1 // pred_fallthru
      _
    // Predicated region
    $region106: #{bilstm_denoiser_forward.1} parent=1 // pred_check
      _
    $region107: #{bilstm_denoiser_forward.1} parent=1 // pred_check_branch
      %5483 = sbr.rel (0) target = $region109
    $region108: #{bilstm_denoiser_forward.1} parent=1 // pred_region
      %5485 = dma.done [#allocation13], 256
    $region109: #{bilstm_denoiser_forward.1} parent=1 // pred_fallthru
      _
    %5486 = vsyncpa [#allocation7], 1
    %5487 = vsyncpa [#allocation10], 1
    %5488 = vsyncpa [#allocation8], 1
    %5489 = vsyncpa [#allocation13], 1

</llo_original>
